<compile_context>
chip_gen: v7x
topology: tpu7x:2x2x1
jax: 0.10.0
libtpu: 0.0.40
codegen_flags: <defaults>
</compile_context>

<pallas_src>
import numpy as np
import jax
import jax.numpy as jnp
from jax.experimental import pallas as pl
from jax.experimental.pallas import tpu as pltpu


def _round_up(x, m):
    return (x + m - 1) // m * m


# ----------------------------------------------------------------------------
# Fused Pallas kernel: feature transform + 2-layer GRU + vocab projection
# ----------------------------------------------------------------------------
def _decoder_kernel(
    emb_ref,    # [T-1, B, E]   time-major token embeddings (inputs for t=1..T-1)
    img_ref,    # [B, F]        flattened image features (t=0 input, pre-transform)
    wft_ref,    # [F, E]        feature_transformer weight, pre-transposed
    bft_ref,    # [1, E]
    h0_ref,     # [2, B, Hp]    initial hidden (context_vector), zero-padded to Hp
    wih0_ref,   # [E,  3*Hp]    layer-0 x->gates, gate order r|z|n, each gate padded to Hp
    whh0_ref,   # [Hp, 3*Hp]    layer-0 h->gates
    bi0_ref,    # [1, 3*Hp]     (b_ih_r+b_hh_r | b_ih_z+b_hh_z | b_ih_n)
    bhn0_ref,   # [1, Hp]       b_hh_n
    wih1_ref,   # [Hp, 3*Hp]
    whh1_ref,   # [Hp, 3*Hp]
    bi1_ref,    # [1, 3*Hp]
    bhn1_ref,   # [1, Hp]
    wout_ref,   # [Hp, V]       output projection (padded rows are zero)
    bout_ref,   # [1, V]
    out_ref,    # [T, B, V]     logits for every (t, b)
):
    Hp = whh0_ref.shape[0]
    T = out_ref.shape[0]

    def dot(a, b):
        # Default (fast, single-pass) MXU precision, f32 accumulation.
        return jnp.dot(a, b, preferred_element_type=jnp.float32)

    # Hoist all weights / biases out of the (unrolled) time loop.
    wih0, whh0, bi0, bhn0 = wih0_ref[...], whh0_ref[...], bi0_ref[...], bhn0_ref[...]
    wih1, whh1, bi1, bhn1 = wih1_ref[...], whh1_ref[...], bi1_ref[...], bhn1_ref[...]
    wout, bout = wout_ref[...], bout_ref[...]

    def cell(xt, h_prev, wih, whh, bi, bhn):
        # Two fused gate matmuls per layer-step instead of six tiny ones.
        ih = dot(xt, wih) + bi                 # [B, 3*Hp]
        hh = dot(h_prev, whh)                  # [B, 3*Hp]
        # Gate slices are at multiples of Hp (>=128) -> vreg-aligned, no shuffles.
        r = jax.nn.sigmoid(ih[:, 0 * Hp:1 * Hp] + hh[:, 0 * Hp:1 * Hp])
        z = jax.nn.sigmoid(ih[:, 1 * Hp:2 * Hp] + hh[:, 1 * Hp:2 * Hp])
        n = jnp.tanh(ih[:, 2 * Hp:3 * Hp] + r * (hh[:, 2 * Hp:3 * Hp] + bhn))
        # Padded lanes stay exactly zero (zero weights/biases + zero h0 padding).
        return (1.0 - z) * n + z * h_prev

    # t = 0 input: fused feature_transformer (img @ Wft + bft).
    x0 = dot(img_ref[...], wft_ref[...]) + bft_ref[...]      # [B, E]

    h0 = h0_ref[0]      # [B, Hp]
    h1 = h0_ref[1]

    # T is small & static -> full unroll gives the scheduler visibility across
    # steps (layer-0 of step t+1 overlaps layer-1 / projection of step t).
    for t in range(T):
        xt = x0 if t == 0 else emb_ref[t - 1]
        h0 = cell(xt, h0, wih0, whh0, bi0, bhn0)
        h1 = cell(h0, h1, wih1, whh1, bi1, bhn1)
        out_ref[t] = (dot(h1, wout) + bout).astype(out_ref.dtype)


def decoder_pallas(kp, emb_tm, img_flat, h0_pad):
    """emb_tm: [T-1, B, E], img_flat: [B, F], h0_pad: [2, B, Hp] -> [T, B, V]."""
    Tm1, B, _ = emb_tm.shape
    T = Tm1 + 1
    V = kp["wout"].shape[1]
    # TODO(synk): for realistic vocab sizes (10k+) tile the [*,Hp]@[Hp,V]
    # projection over V (grid over N in 128-multiples, lane-dense out_spec)
    # instead of a single full block.
    return pl.pallas_call(
        _decoder_kernel,
        out_shape=jax.ShapeDtypeStruct((T, B, V), jnp.float32),
        compiler_params=pltpu.CompilerParams(vmem_limit_bytes=32 * 1024 * 1024),
    )(
        emb_tm.astype(jnp.float32),
        img_flat.astype(jnp.float32),
        kp["wft"], kp["bft"],
        h0_pad.astype(jnp.float32),
        kp["wih0"], kp["whh0"], kp["bi0"], kp["bhn0"],
        kp["wih1"], kp["whh1"], kp["bi1"], kp["bhn1"],
        kp["wout"], kp["bout"],
    )


# ----------------------------------------------------------------------------
# Glue: parameter init, kernel-layout packing, pack_padded_sequence ordering
# ----------------------------------------------------------------------------
def packed_indices(lengths):
    """Replicates pack_padded_sequence(batch_first=True) data ordering
    for lengths sorted in descending order."""
    t_idx, b_idx = [], []
    for t in range(max(lengths)):
        for b in range(len(lengths)):
            if lengths[b] > t:
                t_idx.append(t)
                b_idx.append(b)
    return np.array(t_idx, np.int32), np.array(b_idx, np.int32)


def init_params(key, vocab_size, embed_size, hidden_size, input_size, num_layers):
    ks = list(jax.random.split(key, 4 + 4 * num_layers))
    kH = 1.0 / np.sqrt(hidden_size)
    kF = 1.0 / np.sqrt(input_size)

    params = {}
    # Embedding table (the external `embedder`).
    params["embed"] = 0.1 * jax.random.normal(ks[0], (vocab_size, embed_size), jnp.float32)

    # feature_transformer: Linear(input_size -> embed_size)
    w_ft = jax.random.uniform(ks[1], (embed_size, input_size), jnp.float32, -kF, kF)
    b_ft = jax.random.uniform(ks[2], (embed_size,), jnp.float32, -kF, kF)
    params["w_ft_t"], params["b_ft"] = w_ft.T, b_ft

    # out: Linear(hidden_size -> vocab_size)
    w_out = jax.random.uniform(ks[3], (vocab_size, hidden_size), jnp.float32, -kH, kH)
    b_out = jax.random.uniform(ks[3], (vocab_size,), jnp.float32, -kH, kH)
    params["w_out_t"], params["b_out"] = w_out.T, b_out

    # GRU layers (gate order r, z, n as in torch.nn.GRU).
    gru = []
    for l in range(num_layers):
        in_dim = embed_size if l == 0 else hidden_size
        k0, k1, k2, k3 = ks[4 + 4 * l: 8 + 4 * l]
        w_ih = jax.random.uniform(k0, (3 * hidden_size, in_dim), jnp.float32, -kH, kH)
        w_hh = jax.random.uniform(k1, (3 * hidden_size, hidden_size), jnp.float32, -kH, kH)
        b_ih = jax.random.uniform(k2, (3 * hidden_size,), jnp.float32, -kH, kH)
        b_hh = jax.random.uniform(k3, (3 * hidden_size,), jnp.float32, -kH, kH)
        # -> [3, in, H] / [3, 1, H]
        wih = jnp.transpose(w_ih.reshape(3, hidden_size, in_dim), (0, 2, 1))
        whh = jnp.transpose(w_hh.reshape(3, hidden_size, hidden_size), (0, 2, 1))
        bih = b_ih.reshape(3, 1, hidden_size)
        bhh = b_hh.reshape(3, 1, hidden_size)
        gru.append((wih, whh, bih, bhh))
    params["gru"] = tuple(gru)
    return params


def _pack_gru_layer(wih, whh, bih, bhh, H, Hp, in_rows):
    """Fuse (r,z,n) gate weights into [in_rows, 3*Hp] / [Hp, 3*Hp] blocks with
    each gate padded to Hp lanes; pre-sum the r/z biases (n biases must stay
    split because of the r * (Whn h + b_hn) term)."""
    in_dim = wih.shape[1]
    wih_np, whh_np = np.asarray(wih), np.asarray(whh)
    bih_np, bhh_np = np.asarray(bih), np.asarray(bhh)

    wih_cat = np.zeros((in_rows, 3 * Hp), np.float32)
    whh_cat = np.zeros((Hp, 3 * Hp), np.float32)
    bi = np.zeros((1, 3 * Hp), np.float32)
    bhn = np.zeros((1, Hp), np.float32)
    for g in range(3):
        wih_cat[:in_dim, g * Hp:g * Hp + H] = wih_np[g]
        whh_cat[:H, g * Hp:g * Hp + H] = whh_np[g]
    bi[:, 0 * Hp:0 * Hp + H] = bih_np[0] + bhh_np[0]   # r
    bi[:, 1 * Hp:1 * Hp + H] = bih_np[1] + bhh_np[1]   # z
    bi[:, 2 * Hp:2 * Hp + H] = bih_np[2]               # n (ih part only)
    bhn[:, :H] = bhh_np[2]                             # n (hh part)
    return (jnp.asarray(wih_cat), jnp.asarray(whh_cat),
            jnp.asarray(bi), jnp.asarray(bhn))


def pack_kernel_params(params, embed_size, hidden_size):
    H = hidden_size
    Hp = _round_up(H, 128)
    (wih0, whh0, bih0, bhh0), (wih1, whh1, bih1, bhh1) = params["gru"]

    kwih0, kwhh0, kbi0, kbhn0 = _pack_gru_layer(wih0, whh0, bih0, bhh0, H, Hp, in_rows=embed_size)
    kwih1, kwhh1, kbi1, kbhn1 = _pack_gru_layer(wih1, whh1, bih1, bhh1, H, Hp, in_rows=Hp)

    wout_np = np.zeros((Hp, np.asarray(params["w_out_t"]).shape[1]), np.float32)
    wout_np[:H] = np.asarray(params["w_out_t"])

    return {
        "Hp": Hp,
        "wft": params["w_ft_t"].astype(jnp.float32),
        "bft": params["b_ft"].reshape(1, -1).astype(jnp.float32),
        "wih0": kwih0, "whh0": kwhh0, "bi0": kbi0, "bhn0": kbhn0,
        "wih1": kwih1, "whh1": kwhh1, "bi1": kbi1, "bhn1": kbhn1,
        "wout": jnp.asarray(wout_np),
        "bout": params["b_out"].reshape(1, -1).astype(jnp.float32),
    }


def decoder_forward(params, kp, context_vector, image_features, sentence_stories, lengths):
    B = sentence_stories.shape[0]
    tokens = sentence_stories[:, :-1]                       # teacher-forcing shift
    emb = params["embed"][tokens]                           # [B, T-1, E]  (gather in XLA)
    emb_tm = jnp.transpose(emb, (1, 0, 2))                  # [T-1, B, E]  time-major
    img_flat = image_features.reshape(B, -1)                # [B, F]

    H = context_vector.shape[-1]
    Hp = kp["Hp"]
    h0_pad = jnp.zeros((context_vector.shape[0], B, Hp), jnp.float32)
    h0_pad = h0_pad.at[:, :, :H].set(context_vector)

    logits_all = decoder_pallas(kp, emb_tm, img_flat, h0_pad)        # [T, B, V]

    # pack_padded_sequence ordering; per-(t,b) rows are independent so gathering
    # after the projection is identical to PyTorch's packed-data projection.
    t_idx, b_idx = packed_indices(lengths)
    return logits_all[jnp.asarray(t_idx), jnp.asarray(b_idx)]        # [sum(lengths), V]


# ----------------------------------------------------------------------------
# Pure-JAX reference (same math, unfused/unpadded) for correctness checking
# ----------------------------------------------------------------------------
def _gru_ref(x_tm, h0, layer_params):
    def cell(xt, h_prev, wih, whh, bih, bhh):
        r = jax.nn.sigmoid(xt @ wih[0] + bih[0] + h_prev @ whh[0] + bhh[0])
        z = jax.nn.sigmoid(xt @ wih[1] + bih[1] + h_prev @ whh[1] + bhh[1])
        n = jnp.tanh(xt @ wih[2] + bih[2] + r * (h_prev @ whh[2] + bhh[2]))
        return (1.0 - z) * n + z * h_prev

    T = x_tm.shape[0]
    h = [h0[l] for l in range(h0.shape[0])]
    outs = []
    for t in range(T):
        xt = x_tm[t]
        for l, (wih, whh, bih, bhh) in enumerate(layer_params):
            h[l] = cell(xt, h[l], wih, whh, bih, bhh)
            xt = h[l]
        outs.append(xt)
    return jnp.stack(outs, 0)


def decoder_forward_ref(params, context_vector, image_features, sentence_stories, lengths):
    B = sentence_stories.shape[0]
    tokens = sentence_stories[:, :-1]
    emb = params["embed"][tokens]
    img_emb = image_features.reshape(B, -1) @ params["w_ft_t"] + params["b_ft"]
    x = jnp.concatenate([img_emb[:, None, :], emb], axis=1)
    x_tm = jnp.transpose(x, (1, 0, 2))
    gru_out = _gru_ref(x_tm, context_vector, params["gru"])
    t_idx, b_idx = packed_indices(lengths)
    packed = gru_out[jnp.asarray(t_idx), jnp.asarray(b_idx)]
    return packed @ params["w_out_t"] + params["b_out"]


# ----------------------------------------------------------------------------
if __name__ == "__main__":
    # Hyper-parameters (small, consistent with the module):
    B = 2
    S = 8                 # tokens per story; after [:, :-1] + image prefix -> T = 8
    vocab_size = 64
    embed_size = 32
    hidden_size = 32
    num_layers = 2
    input_size = 64       # flattened image-feature dim (8 * 8)
    lengths = [8, 6]      # sorted descending, as pack_padded_sequence requires

    key = jax.random.PRNGKey(0)
    k_tok, k_img, k_ctx, k_par = jax.random.split(key, 4)

    sentence_stories = jax.random.randint(k_tok, (B, S), 0, vocab_size, dtype=jnp.int32)
    image_features = jax.random.normal(k_img, (B, 8, 8), jnp.float32)
    context_vector = 0.1 * jax.random.normal(k_ctx, (num_layers, B, hidden_size), jnp.float32)

    params = init_params(k_par, vocab_size, embed_size, hidden_size, input_size, num_layers)
    kp = pack_kernel_params(params, embed_size, hidden_size)

    out = decoder_forward(params, kp, context_vector, image_features, sentence_stories, lengths)
    out = jax.block_until_ready(out)

    ref = decoder_forward_ref(params, context_vector, image_features, sentence_stories, lengths)
    ref = jax.block_until_ready(ref)

    assert out.shape == (sum(lengths), vocab_size), out.shape
    np.testing.assert_allclose(np.asarray(out), np.asarray(ref), rtol=2e-2, atol=2e-2)

    print("KERNEL_OK")
</pallas_src>

<mosaic_0001>
module attributes {stable_mosaic.version = 11 : i64} {
  func.func @_decoder_kernel(%arg0: memref<7x2x32xf32, #tpu.memory_space<vmem>>, %arg1: memref<2x64xf32, #tpu.memory_space<vmem>>, %arg2: memref<64x32xf32, #tpu.memory_space<vmem>>, %arg3: memref<1x32xf32, #tpu.memory_space<vmem>>, %arg4: memref<2x2x128xf32, #tpu.memory_space<vmem>>, %arg5: memref<32x384xf32, #tpu.memory_space<vmem>>, %arg6: memref<128x384xf32, #tpu.memory_space<vmem>>, %arg7: memref<1x384xf32, #tpu.memory_space<vmem>>, %arg8: memref<1x128xf32, #tpu.memory_space<vmem>>, %arg9: memref<128x384xf32, #tpu.memory_space<vmem>>, %arg10: memref<128x384xf32, #tpu.memory_space<vmem>>, %arg11: memref<1x384xf32, #tpu.memory_space<vmem>>, %arg12: memref<1x128xf32, #tpu.memory_space<vmem>>, %arg13: memref<128x64xf32, #tpu.memory_space<vmem>>, %arg14: memref<1x64xf32, #tpu.memory_space<vmem>>, %arg15: memref<8x2x64xf32, #tpu.memory_space<vmem>>) attributes {dimension_semantics = [], scalar_prefetch = 0 : i64, scratch_operands = 0 : i64, tpu.core_type = #tpu.core_type<tc>} {
    %c0 = arith.constant 0 : index
    %c0_0 = arith.constant 0 : index
    %0 = vector.load %arg5[%c0, %c0_0] : memref<32x384xf32, #tpu.memory_space<vmem>>, vector<32x384xf32>
    %c0_1 = arith.constant 0 : index
    %c0_2 = arith.constant 0 : index
    %1 = vector.load %arg6[%c0_1, %c0_2] : memref<128x384xf32, #tpu.memory_space<vmem>>, vector<128x384xf32>
    %c0_3 = arith.constant 0 : index
    %c0_4 = arith.constant 0 : index
    %2 = vector.load %arg7[%c0_3, %c0_4] : memref<1x384xf32, #tpu.memory_space<vmem>>, vector<1x384xf32>
    %c0_5 = arith.constant 0 : index
    %c0_6 = arith.constant 0 : index
    %3 = vector.load %arg8[%c0_5, %c0_6] : memref<1x128xf32, #tpu.memory_space<vmem>>, vector<1x128xf32>
    %c0_7 = arith.constant 0 : index
    %c0_8 = arith.constant 0 : index
    %4 = vector.load %arg9[%c0_7, %c0_8] : memref<128x384xf32, #tpu.memory_space<vmem>>, vector<128x384xf32>
    %c0_9 = arith.constant 0 : index
    %c0_10 = arith.constant 0 : index
    %5 = vector.load %arg10[%c0_9, %c0_10] : memref<128x384xf32, #tpu.memory_space<vmem>>, vector<128x384xf32>
    %c0_11 = arith.constant 0 : index
    %c0_12 = arith.constant 0 : index
    %6 = vector.load %arg11[%c0_11, %c0_12] : memref<1x384xf32, #tpu.memory_space<vmem>>, vector<1x384xf32>
    %c0_13 = arith.constant 0 : index
    %c0_14 = arith.constant 0 : index
    %7 = vector.load %arg12[%c0_13, %c0_14] : memref<1x128xf32, #tpu.memory_space<vmem>>, vector<1x128xf32>
    %c0_15 = arith.constant 0 : index
    %c0_16 = arith.constant 0 : index
    %8 = vector.load %arg13[%c0_15, %c0_16] : memref<128x64xf32, #tpu.memory_space<vmem>>, vector<128x64xf32>
    %c0_17 = arith.constant 0 : index
    %c0_18 = arith.constant 0 : index
    %9 = vector.load %arg14[%c0_17, %c0_18] : memref<1x64xf32, #tpu.memory_space<vmem>>, vector<1x64xf32>
    %c0_19 = arith.constant 0 : index
    %c0_20 = arith.constant 0 : index
    %10 = vector.load %arg1[%c0_19, %c0_20] : memref<2x64xf32, #tpu.memory_space<vmem>>, vector<2x64xf32>
    %c0_21 = arith.constant 0 : index
    %c0_22 = arith.constant 0 : index
    %11 = vector.load %arg2[%c0_21, %c0_22] : memref<64x32xf32, #tpu.memory_space<vmem>>, vector<64x32xf32>
    %cst = arith.constant dense<0.000000e+00> : vector<2x32xf32>
    %12 = tpu.matmul %10, %11, %cst {dimension_numbers = #tpu.dot_dimension_numbers<[1], [0], [0], [1], [0, 0, 1, 1], [], []>} : vector<2x64xf32>, vector<64x32xf32>, vector<2x32xf32> -> vector<2x32xf32>
    %c0_23 = arith.constant 0 : index
    %c0_24 = arith.constant 0 : index
    %13 = vector.load %arg3[%c0_23, %c0_24] : memref<1x32xf32, #tpu.memory_space<vmem>>, vector<1x32xf32>
    %14 = vector.broadcast %13 : vector<1x32xf32> to vector<2x32xf32>
    %15 = arith.addf %12, %14 : vector<2x32xf32>
    %c0_25 = arith.constant 0 : index
    %c0_26 = arith.constant 0 : index
    %c0_27 = arith.constant 0 : index
    %16 = vector.load %arg4[%c0_25, %c0_26, %c0_27] : memref<2x2x128xf32, #tpu.memory_space<vmem>>, vector<1x2x128xf32>
    %17 = vector.shape_cast %16 : vector<1x2x128xf32> to vector<2x128xf32>
    %c1 = arith.constant 1 : index
    %c0_28 = arith.constant 0 : index
    %c0_29 = arith.constant 0 : index
    %18 = vector.load %arg4[%c1, %c0_28, %c0_29] : memref<2x2x128xf32, #tpu.memory_space<vmem>>, vector<1x2x128xf32>
    %19 = vector.shape_cast %18 : vector<1x2x128xf32> to vector<2x128xf32>
    %cst_30 = arith.constant dense<0.000000e+00> : vector<2x384xf32>
    %20 = tpu.matmul %15, %0, %cst_30 {dimension_numbers = #tpu.dot_dimension_numbers<[1], [0], [0], [1], [0, 0, 1, 1], [], []>} : vector<2x32xf32>, vector<32x384xf32>, vector<2x384xf32> -> vector<2x384xf32>
    %21 = vector.broadcast %2 : vector<1x384xf32> to vector<2x384xf32>
    %22 = arith.addf %20, %21 : vector<2x384xf32>
    %cst_31 = arith.constant dense<0.000000e+00> : vector<2x384xf32>
    %23 = tpu.matmul %17, %1, %cst_31 {dimension_numbers = #tpu.dot_dimension_numbers<[1], [0], [0], [1], [0, 0, 1, 1], [], []>} : vector<2x128xf32>, vector<128x384xf32>, vector<2x384xf32> -> vector<2x384xf32>
    %24 = vector.extract_strided_slice %22 {offsets = [0, 0], sizes = [2, 128], strides = [1, 1]} : vector<2x384xf32> to vector<2x128xf32>
    %25 = vector.extract_strided_slice %23 {offsets = [0, 0], sizes = [2, 128], strides = [1, 1]} : vector<2x384xf32> to vector<2x128xf32>
    %26 = arith.addf %24, %25 : vector<2x128xf32>
    %27 = arith.negf %26 : vector<2x128xf32>
    %28 = math.exp %27 : vector<2x128xf32>
    %cst_32 = arith.constant 1.000000e+00 : f32
    %29 = vector.broadcast %cst_32 : f32 to vector<2x128xf32>
    %30 = arith.addf %29, %28 : vector<2x128xf32>
    %31 = arith.divf %29, %30 : vector<2x128xf32>
    %32 = vector.extract_strided_slice %22 {offsets = [0, 128], sizes = [2, 128], strides = [1, 1]} : vector<2x384xf32> to vector<2x128xf32>
    %33 = vector.extract_strided_slice %23 {offsets = [0, 128], sizes = [2, 128], strides = [1, 1]} : vector<2x384xf32> to vector<2x128xf32>
    %34 = arith.addf %32, %33 : vector<2x128xf32>
    %35 = arith.negf %34 : vector<2x128xf32>
    %36 = math.exp %35 : vector<2x128xf32>
    %cst_33 = arith.constant 1.000000e+00 : f32
    %37 = vector.broadcast %cst_33 : f32 to vector<2x128xf32>
    %38 = arith.addf %37, %36 : vector<2x128xf32>
    %39 = arith.divf %37, %38 : vector<2x128xf32>
    %40 = vector.extract_strided_slice %22 {offsets = [0, 256], sizes = [2, 128], strides = [1, 1]} : vector<2x384xf32> to vector<2x128xf32>
    %41 = vector.extract_strided_slice %23 {offsets = [0, 256], sizes = [2, 128], strides = [1, 1]} : vector<2x384xf32> to vector<2x128xf32>
    %42 = vector.broadcast %3 : vector<1x128xf32> to vector<2x128xf32>
    %43 = arith.addf %41, %42 : vector<2x128xf32>
    %44 = arith.mulf %31, %43 : vector<2x128xf32>
    %45 = arith.addf %40, %44 : vector<2x128xf32>
    %46 = math.tanh %45 : vector<2x128xf32>
    %cst_34 = arith.constant 1.000000e+00 : f32
    %47 = vector.broadcast %cst_34 : f32 to vector<2x128xf32>
    %48 = arith.subf %47, %39 : vector<2x128xf32>
    %49 = arith.mulf %48, %46 : vector<2x128xf32>
    %50 = arith.mulf %39, %17 : vector<2x128xf32>
    %51 = arith.addf %49, %50 : vector<2x128xf32>
    %cst_35 = arith.constant dense<0.000000e+00> : vector<2x384xf32>
    %52 = tpu.matmul %51, %4, %cst_35 {dimension_numbers = #tpu.dot_dimension_numbers<[1], [0], [0], [1], [0, 0, 1, 1], [], []>} : vector<2x128xf32>, vector<128x384xf32>, vector<2x384xf32> -> vector<2x384xf32>
    %53 = vector.broadcast %6 : vector<1x384xf32> to vector<2x384xf32>
    %54 = arith.addf %52, %53 : vector<2x384xf32>
    %cst_36 = arith.constant dense<0.000000e+00> : vector<2x384xf32>
    %55 = tpu.matmul %19, %5, %cst_36 {dimension_numbers = #tpu.dot_dimension_numbers<[1], [0], [0], [1], [0, 0, 1, 1], [], []>} : vector<2x128xf32>, vector<128x384xf32>, vector<2x384xf32> -> vector<2x384xf32>
    %56 = vector.extract_strided_slice %54 {offsets = [0, 0], sizes = [2, 128], strides = [1, 1]} : vector<2x384xf32> to vector<2x128xf32>
    %57 = vector.extract_strided_slice %55 {offsets = [0, 0], sizes = [2, 128], strides = [1, 1]} : vector<2x384xf32> to vector<2x128xf32>
    %58 = arith.addf %56, %57 : vector<2x128xf32>
    %59 = arith.negf %58 : vector<2x128xf32>
    %60 = math.exp %59 : vector<2x128xf32>
    %cst_37 = arith.constant 1.000000e+00 : f32
    %61 = vector.broadcast %cst_37 : f32 to vector<2x128xf32>
    %62 = arith.addf %61, %60 : vector<2x128xf32>
    %63 = arith.divf %61, %62 : vector<2x128xf32>
    %64 = vector.extract_strided_slice %54 {offsets = [0, 128], sizes = [2, 128], strides = [1, 1]} : vector<2x384xf32> to vector<2x128xf32>
    %65 = vector.extract_strided_slice %55 {offsets = [0, 128], sizes = [2, 128], strides = [1, 1]} : vector<2x384xf32> to vector<2x128xf32>
    %66 = arith.addf %64, %65 : vector<2x128xf32>
    %67 = arith.negf %66 : vector<2x128xf32>
    %68 = math.exp %67 : vector<2x128xf32>
    %cst_38 = arith.constant 1.000000e+00 : f32
    %69 = vector.broadcast %cst_38 : f32 to vector<2x128xf32>
    %70 = arith.addf %69, %68 : vector<2x128xf32>
    %71 = arith.divf %69, %70 : vector<2x128xf32>
    %72 = vector.extract_strided_slice %54 {offsets = [0, 256], sizes = [2, 128], strides = [1, 1]} : vector<2x384xf32> to vector<2x128xf32>
    %73 = vector.extract_strided_slice %55 {offsets = [0, 256], sizes = [2, 128], strides = [1, 1]} : vector<2x384xf32> to vector<2x128xf32>
    %74 = vector.broadcast %7 : vector<1x128xf32> to vector<2x128xf32>
    %75 = arith.addf %73, %74 : vector<2x128xf32>
    %76 = arith.mulf %63, %75 : vector<2x128xf32>
    %77 = arith.addf %72, %76 : vector<2x128xf32>
    %78 = math.tanh %77 : vector<2x128xf32>
    %cst_39 = arith.constant 1.000000e+00 : f32
    %79 = vector.broadcast %cst_39 : f32 to vector<2x128xf32>
    %80 = arith.subf %79, %71 : vector<2x128xf32>
    %81 = arith.mulf %80, %78 : vector<2x128xf32>
    %82 = arith.mulf %71, %19 : vector<2x128xf32>
    %83 = arith.addf %81, %82 : vector<2x128xf32>
    %cst_40 = arith.constant dense<0.000000e+00> : vector<2x64xf32>
    %84 = tpu.matmul %83, %8, %cst_40 {dimension_numbers = #tpu.dot_dimension_numbers<[1], [0], [0], [1], [0, 0, 1, 1], [], []>} : vector<2x128xf32>, vector<128x64xf32>, vector<2x64xf32> -> vector<2x64xf32>
    %85 = vector.broadcast %9 : vector<1x64xf32> to vector<2x64xf32>
    %86 = arith.addf %84, %85 : vector<2x64xf32>
    %c0_41 = arith.constant 0 : index
    %c0_42 = arith.constant 0 : index
    %c0_43 = arith.constant 0 : index
    %87 = vector.load %arg15[%c0_41, %c0_42, %c0_43] : memref<8x2x64xf32, #tpu.memory_space<vmem>>, vector<1x2x64xf32>
    %88 = vector.shape_cast %87 : vector<1x2x64xf32> to vector<2x64xf32>
    %89 = vector.shape_cast %86 : vector<2x64xf32> to vector<1x2x64xf32>
    tpu.vector_store %arg15[%c0_41, %c0_42, %c0_43], %89 {strides = array<i32>} : memref<8x2x64xf32, #tpu.memory_space<vmem>>, vector<1x2x64xf32>,
    %c0_44 = arith.constant 0 : index
    %c0_45 = arith.constant 0 : index
    %c0_46 = arith.constant 0 : index
    %90 = vector.load %arg0[%c0_44, %c0_45, %c0_46] : memref<7x2x32xf32, #tpu.memory_space<vmem>>, vector<1x2x32xf32>
    %91 = vector.shape_cast %90 : vector<1x2x32xf32> to vector<2x32xf32>
    %cst_47 = arith.constant dense<0.000000e+00> : vector<2x384xf32>
    %92 = tpu.matmul %91, %0, %cst_47 {dimension_numbers = #tpu.dot_dimension_numbers<[1], [0], [0], [1], [0, 0, 1, 1], [], []>} : vector<2x32xf32>, vector<32x384xf32>, vector<2x384xf32> -> vector<2x384xf32>
    %93 = vector.broadcast %2 : vector<1x384xf32> to vector<2x384xf32>
    %94 = arith.addf %92, %93 : vector<2x384xf32>
    %cst_48 = arith.constant dense<0.000000e+00> : vector<2x384xf32>
    %95 = tpu.matmul %51, %1, %cst_48 {dimension_numbers = #tpu.dot_dimension_numbers<[1], [0], [0], [1], [0, 0, 1, 1], [], []>} : vector<2x128xf32>, vector<128x384xf32>, vector<2x384xf32> -> vector<2x384xf32>
    %96 = vector.extract_strided_slice %94 {offsets = [0, 0], sizes = [2, 128], strides = [1, 1]} : vector<2x384xf32> to vector<2x128xf32>
    %97 = vector.extract_strided_slice %95 {offsets = [0, 0], sizes = [2, 128], strides = [1, 1]} : vector<2x384xf32> to vector<2x128xf32>
    %98 = arith.addf %96, %97 : vector<2x128xf32>
    %99 = arith.negf %98 : vector<2x128xf32>
    %100 = math.exp %99 : vector<2x128xf32>
    %cst_49 = arith.constant 1.000000e+00 : f32
    %101 = vector.broadcast %cst_49 : f32 to vector<2x128xf32>
    %102 = arith.addf %101, %100 : vector<2x128xf32>
    %103 = arith.divf %101, %102 : vector<2x128xf32>
    %104 = vector.extract_strided_slice %94 {offsets = [0, 128], sizes = [2, 128], strides = [1, 1]} : vector<2x384xf32> to vector<2x128xf32>
    %105 = vector.extract_strided_slice %95 {offsets = [0, 128], sizes = [2, 128], strides = [1, 1]} : vector<2x384xf32> to vector<2x128xf32>
    %106 = arith.addf %104, %105 : vector<2x128xf32>
    %107 = arith.negf %106 : vector<2x128xf32>
    %108 = math.exp %107 : vector<2x128xf32>
    %cst_50 = arith.constant 1.000000e+00 : f32
    %109 = vector.broadcast %cst_50 : f32 to vector<2x128xf32>
    %110 = arith.addf %109, %108 : vector<2x128xf32>
    %111 = arith.divf %109, %110 : vector<2x128xf32>
    %112 = vector.extract_strided_slice %94 {offsets = [0, 256], sizes = [2, 128], strides = [1, 1]} : vector<2x384xf32> to vector<2x128xf32>
    %113 = vector.extract_strided_slice %95 {offsets = [0, 256], sizes = [2, 128], strides = [1, 1]} : vector<2x384xf32> to vector<2x128xf32>
    %114 = vector.broadcast %3 : vector<1x128xf32> to vector<2x128xf32>
    %115 = arith.addf %113, %114 : vector<2x128xf32>
    %116 = arith.mulf %103, %115 : vector<2x128xf32>
    %117 = arith.addf %112, %116 : vector<2x128xf32>
    %118 = math.tanh %117 : vector<2x128xf32>
    %cst_51 = arith.constant 1.000000e+00 : f32
    %119 = vector.broadcast %cst_51 : f32 to vector<2x128xf32>
    %120 = arith.subf %119, %111 : vector<2x128xf32>
    %121 = arith.mulf %120, %118 : vector<2x128xf32>
    %122 = arith.mulf %111, %51 : vector<2x128xf32>
    %123 = arith.addf %121, %122 : vector<2x128xf32>
    %cst_52 = arith.constant dense<0.000000e+00> : vector<2x384xf32>
    %124 = tpu.matmul %123, %4, %cst_52 {dimension_numbers = #tpu.dot_dimension_numbers<[1], [0], [0], [1], [0, 0, 1, 1], [], []>} : vector<2x128xf32>, vector<128x384xf32>, vector<2x384xf32> -> vector<2x384xf32>
    %125 = vector.broadcast %6 : vector<1x384xf32> to vector<2x384xf32>
    %126 = arith.addf %124, %125 : vector<2x384xf32>
    %cst_53 = arith.constant dense<0.000000e+00> : vector<2x384xf32>
    %127 = tpu.matmul %83, %5, %cst_53 {dimension_numbers = #tpu.dot_dimension_numbers<[1], [0], [0], [1], [0, 0, 1, 1], [], []>} : vector<2x128xf32>, vector<128x384xf32>, vector<2x384xf32> -> vector<2x384xf32>
    %128 = vector.extract_strided_slice %126 {offsets = [0, 0], sizes = [2, 128], strides = [1, 1]} : vector<2x384xf32> to vector<2x128xf32>
    %129 = vector.extract_strided_slice %127 {offsets = [0, 0], sizes = [2, 128], strides = [1, 1]} : vector<2x384xf32> to vector<2x128xf32>
    %130 = arith.addf %128, %129 : vector<2x128xf32>
    %131 = arith.negf %130 : vector<2x128xf32>
    %132 = math.exp %131 : vector<2x128xf32>
    %cst_54 = arith.constant 1.000000e+00 : f32
    %133 = vector.broadcast %cst_54 : f32 to vector<2x128xf32>
    %134 = arith.addf %133, %132 : vector<2x128xf32>
    %135 = arith.divf %133, %134 : vector<2x128xf32>
    %136 = vector.extract_strided_slice %126 {offsets = [0, 128], sizes = [2, 128], strides = [1, 1]} : vector<2x384xf32> to vector<2x128xf32>
    %137 = vector.extract_strided_slice %127 {offsets = [0, 128], sizes = [2, 128], strides = [1, 1]} : vector<2x384xf32> to vector<2x128xf32>
    %138 = arith.addf %136, %137 : vector<2x128xf32>
    %139 = arith.negf %138 : vector<2x128xf32>
    %140 = math.exp %139 : vector<2x128xf32>
    %cst_55 = arith.constant 1.000000e+00 : f32
    %141 = vector.broadcast %cst_55 : f32 to vector<2x128xf32>
    %142 = arith.addf %141, %140 : vector<2x128xf32>
    %143 = arith.divf %141, %142 : vector<2x128xf32>
    %144 = vector.extract_strided_slice %126 {offsets = [0, 256], sizes = [2, 128], strides = [1, 1]} : vector<2x384xf32> to vector<2x128xf32>
    %145 = vector.extract_strided_slice %127 {offsets = [0, 256], sizes = [2, 128], strides = [1, 1]} : vector<2x384xf32> to vector<2x128xf32>
    %146 = vector.broadcast %7 : vector<1x128xf32> to vector<2x128xf32>
    %147 = arith.addf %145, %146 : vector<2x128xf32>
    %148 = arith.mulf %135, %147 : vector<2x128xf32>
    %149 = arith.addf %144, %148 : vector<2x128xf32>
    %150 = math.tanh %149 : vector<2x128xf32>
    %cst_56 = arith.constant 1.000000e+00 : f32
    %151 = vector.broadcast %cst_56 : f32 to vector<2x128xf32>
    %152 = arith.subf %151, %143 : vector<2x128xf32>
    %153 = arith.mulf %152, %150 : vector<2x128xf32>
    %154 = arith.mulf %143, %83 : vector<2x128xf32>
    %155 = arith.addf %153, %154 : vector<2x128xf32>
    %cst_57 = arith.constant dense<0.000000e+00> : vector<2x64xf32>
    %156 = tpu.matmul %155, %8, %cst_57 {dimension_numbers = #tpu.dot_dimension_numbers<[1], [0], [0], [1], [0, 0, 1, 1], [], []>} : vector<2x128xf32>, vector<128x64xf32>, vector<2x64xf32> -> vector<2x64xf32>
    %157 = vector.broadcast %9 : vector<1x64xf32> to vector<2x64xf32>
    %158 = arith.addf %156, %157 : vector<2x64xf32>
    %c1_58 = arith.constant 1 : index
    %c0_59 = arith.constant 0 : index
    %c0_60 = arith.constant 0 : index
    %159 = vector.load %arg15[%c1_58, %c0_59, %c0_60] : memref<8x2x64xf32, #tpu.memory_space<vmem>>, vector<1x2x64xf32>
    %160 = vector.shape_cast %159 : vector<1x2x64xf32> to vector<2x64xf32>
    %161 = vector.shape_cast %158 : vector<2x64xf32> to vector<1x2x64xf32>
    tpu.vector_store %arg15[%c1_58, %c0_59, %c0_60], %161 {strides = array<i32>} : memref<8x2x64xf32, #tpu.memory_space<vmem>>, vector<1x2x64xf32>,
    %c1_61 = arith.constant 1 : index
    %c0_62 = arith.constant 0 : index
    %c0_63 = arith.constant 0 : index
    %162 = vector.load %arg0[%c1_61, %c0_62, %c0_63] : memref<7x2x32xf32, #tpu.memory_space<vmem>>, vector<1x2x32xf32>
    %163 = vector.shape_cast %162 : vector<1x2x32xf32> to vector<2x32xf32>
    %cst_64 = arith.constant dense<0.000000e+00> : vector<2x384xf32>
    %164 = tpu.matmul %163, %0, %cst_64 {dimension_numbers = #tpu.dot_dimension_numbers<[1], [0], [0], [1], [0, 0, 1, 1], [], []>} : vector<2x32xf32>, vector<32x384xf32>, vector<2x384xf32> -> vector<2x384xf32>
    %165 = vector.broadcast %2 : vector<1x384xf32> to vector<2x384xf32>
    %166 = arith.addf %164, %165 : vector<2x384xf32>
    %cst_65 = arith.constant dense<0.000000e+00> : vector<2x384xf32>
    %167 = tpu.matmul %123, %1, %cst_65 {dimension_numbers = #tpu.dot_dimension_numbers<[1], [0], [0], [1], [0, 0, 1, 1], [], []>} : vector<2x128xf32>, vector<128x384xf32>, vector<2x384xf32> -> vector<2x384xf32>
    %168 = vector.extract_strided_slice %166 {offsets = [0, 0], sizes = [2, 128], strides = [1, 1]} : vector<2x384xf32> to vector<2x128xf32>
    %169 = vector.extract_strided_slice %167 {offsets = [0, 0], sizes = [2, 128], strides = [1, 1]} : vector<2x384xf32> to vector<2x128xf32>
    %170 = arith.addf %168, %169 : vector<2x128xf32>
    %171 = arith.negf %170 : vector<2x128xf32>
    %172 = math.exp %171 : vector<2x128xf32>
    %cst_66 = arith.constant 1.000000e+00 : f32
    %173 = vector.broadcast %cst_66 : f32 to vector<2x128xf32>
    %174 = arith.addf %173, %172 : vector<2x128xf32>
    %175 = arith.divf %173, %174 : vector<2x128xf32>
    %176 = vector.extract_strided_slice %166 {offsets = [0, 128], sizes = [2, 128], strides = [1, 1]} : vector<2x384xf32> to vector<2x128xf32>
    %177 = vector.extract_strided_slice %167 {offsets = [0, 128], sizes = [2, 128], strides = [1, 1]} : vector<2x384xf32> to vector<2x128xf32>
    %178 = arith.addf %176, %177 : vector<2x128xf32>
    %179 = arith.negf %178 : vector<2x128xf32>
    %180 = math.exp %179 : vector<2x128xf32>
    %cst_67 = arith.constant 1.000000e+00 : f32
    %181 = vector.broadcast %cst_67 : f32 to vector<2x128xf32>
    %182 = arith.addf %181, %180 : vector<2x128xf32>
    %183 = arith.divf %181, %182 : vector<2x128xf32>
    %184 = vector.extract_strided_slice %166 {offsets = [0, 256], sizes = [2, 128], strides = [1, 1]} : vector<2x384xf32> to vector<2x128xf32>
    %185 = vector.extract_strided_slice %167 {offsets = [0, 256], sizes = [2, 128], strides = [1, 1]} : vector<2x384xf32> to vector<2x128xf32>
    %186 = vector.broadcast %3 : vector<1x128xf32> to vector<2x128xf32>
    %187 = arith.addf %185, %186 : vector<2x128xf32>
    %188 = arith.mulf %175, %187 : vector<2x128xf32>
    %189 = arith.addf %184, %188 : vector<2x128xf32>
    %190 = math.tanh %189 : vector<2x128xf32>
    %cst_68 = arith.constant 1.000000e+00 : f32
    %191 = vector.broadcast %cst_68 : f32 to vector<2x128xf32>
    %192 = arith.subf %191, %183 : vector<2x128xf32>
    %193 = arith.mulf %192, %190 : vector<2x128xf32>
    %194 = arith.mulf %183, %123 : vector<2x128xf32>
    %195 = arith.addf %193, %194 : vector<2x128xf32>
    %cst_69 = arith.constant dense<0.000000e+00> : vector<2x384xf32>
    %196 = tpu.matmul %195, %4, %cst_69 {dimension_numbers = #tpu.dot_dimension_numbers<[1], [0], [0], [1], [0, 0, 1, 1], [], []>} : vector<2x128xf32>, vector<128x384xf32>, vector<2x384xf32> -> vector<2x384xf32>
    %197 = vector.broadcast %6 : vector<1x384xf32> to vector<2x384xf32>
    %198 = arith.addf %196, %197 : vector<2x384xf32>
    %cst_70 = arith.constant dense<0.000000e+00> : vector<2x384xf32>
    %199 = tpu.matmul %155, %5, %cst_70 {dimension_numbers = #tpu.dot_dimension_numbers<[1], [0], [0], [1], [0, 0, 1, 1], [], []>} : vector<2x128xf32>, vector<128x384xf32>, vector<2x384xf32> -> vector<2x384xf32>
    %200 = vector.extract_strided_slice %198 {offsets = [0, 0], sizes = [2, 128], strides = [1, 1]} : vector<2x384xf32> to vector<2x128xf32>
    %201 = vector.extract_strided_slice %199 {offsets = [0, 0], sizes = [2, 128], strides = [1, 1]} : vector<2x384xf32> to vector<2x128xf32>
    %202 = arith.addf %200, %201 : vector<2x128xf32>
    %203 = arith.negf %202 : vector<2x128xf32>
    %204 = math.exp %203 : vector<2x128xf32>
    %cst_71 = arith.constant 1.000000e+00 : f32
    %205 = vector.broadcast %cst_71 : f32 to vector<2x128xf32>
    %206 = arith.addf %205, %204 : vector<2x128xf32>
    %207 = arith.divf %205, %206 : vector<2x128xf32>
    %208 = vector.extract_strided_slice %198 {offsets = [0, 128], sizes = [2, 128], strides = [1, 1]} : vector<2x384xf32> to vector<2x128xf32>
    %209 = vector.extract_strided_slice %199 {offsets = [0, 128], sizes = [2, 128], strides = [1, 1]} : vector<2x384xf32> to vector<2x128xf32>
    %210 = arith.addf %208, %209 : vector<2x128xf32>
    %211 = arith.negf %210 : vector<2x128xf32>
    %212 = math.exp %211 : vector<2x128xf32>
    %cst_72 = arith.constant 1.000000e+00 : f32
    %213 = vector.broadcast %cst_72 : f32 to vector<2x128xf32>
    %214 = arith.addf %213, %212 : vector<2x128xf32>
    %215 = arith.divf %213, %214 : vector<2x128xf32>
    %216 = vector.extract_strided_slice %198 {offsets = [0, 256], sizes = [2, 128], strides = [1, 1]} : vector<2x384xf32> to vector<2x128xf32>
    %217 = vector.extract_strided_slice %199 {offsets = [0, 256], sizes = [2, 128], strides = [1, 1]} : vector<2x384xf32> to vector<2x128xf32>
    %218 = vector.broadcast %7 : vector<1x128xf32> to vector<2x128xf32>
    %219 = arith.addf %217, %218 : vector<2x128xf32>
    %220 = arith.mulf %207, %219 : vector<2x128xf32>
    %221 = arith.addf %216, %220 : vector<2x128xf32>
    %222 = math.tanh %221 : vector<2x128xf32>
    %cst_73 = arith.constant 1.000000e+00 : f32
    %223 = vector.broadcast %cst_73 : f32 to vector<2x128xf32>
    %224 = arith.subf %223, %215 : vector<2x128xf32>
    %225 = arith.mulf %224, %222 : vector<2x128xf32>
    %226 = arith.mulf %215, %155 : vector<2x128xf32>
    %227 = arith.addf %225, %226 : vector<2x128xf32>
    %cst_74 = arith.constant dense<0.000000e+00> : vector<2x64xf32>
    %228 = tpu.matmul %227, %8, %cst_74 {dimension_numbers = #tpu.dot_dimension_numbers<[1], [0], [0], [1], [0, 0, 1, 1], [], []>} : vector<2x128xf32>, vector<128x64xf32>, vector<2x64xf32> -> vector<2x64xf32>
    %229 = vector.broadcast %9 : vector<1x64xf32> to vector<2x64xf32>
    %230 = arith.addf %228, %229 : vector<2x64xf32>
    %c2 = arith.constant 2 : index
    %c0_75 = arith.constant 0 : index
    %c0_76 = arith.constant 0 : index
    %231 = vector.load %arg15[%c2, %c0_75, %c0_76] : memref<8x2x64xf32, #tpu.memory_space<vmem>>, vector<1x2x64xf32>
    %232 = vector.shape_cast %231 : vector<1x2x64xf32> to vector<2x64xf32>
    %233 = vector.shape_cast %230 : vector<2x64xf32> to vector<1x2x64xf32>
    tpu.vector_store %arg15[%c2, %c0_75, %c0_76], %233 {strides = array<i32>} : memref<8x2x64xf32, #tpu.memory_space<vmem>>, vector<1x2x64xf32>,
    %c2_77 = arith.constant 2 : index
    %c0_78 = arith.constant 0 : index
    %c0_79 = arith.constant 0 : index
    %234 = vector.load %arg0[%c2_77, %c0_78, %c0_79] : memref<7x2x32xf32, #tpu.memory_space<vmem>>, vector<1x2x32xf32>
    %235 = vector.shape_cast %234 : vector<1x2x32xf32> to vector<2x32xf32>
    %cst_80 = arith.constant dense<0.000000e+00> : vector<2x384xf32>
    %236 = tpu.matmul %235, %0, %cst_80 {dimension_numbers = #tpu.dot_dimension_numbers<[1], [0], [0], [1], [0, 0, 1, 1], [], []>} : vector<2x32xf32>, vector<32x384xf32>, vector<2x384xf32> -> vector<2x384xf32>
    %237 = vector.broadcast %2 : vector<1x384xf32> to vector<2x384xf32>
    %238 = arith.addf %236, %237 : vector<2x384xf32>
    %cst_81 = arith.constant dense<0.000000e+00> : vector<2x384xf32>
    %239 = tpu.matmul %195, %1, %cst_81 {dimension_numbers = #tpu.dot_dimension_numbers<[1], [0], [0], [1], [0, 0, 1, 1], [], []>} : vector<2x128xf32>, vector<128x384xf32>, vector<2x384xf32> -> vector<2x384xf32>
    %240 = vector.extract_strided_slice %238 {offsets = [0, 0], sizes = [2, 128], strides = [1, 1]} : vector<2x384xf32> to vector<2x128xf32>
    %241 = vector.extract_strided_slice %239 {offsets = [0, 0], sizes = [2, 128], strides = [1, 1]} : vector<2x384xf32> to vector<2x128xf32>
    %242 = arith.addf %240, %241 : vector<2x128xf32>
    %243 = arith.negf %242 : vector<2x128xf32>
    %244 = math.exp %243 : vector<2x128xf32>
    %cst_82 = arith.constant 1.000000e+00 : f32
    %245 = vector.broadcast %cst_82 : f32 to vector<2x128xf32>
    %246 = arith.addf %245, %244 : vector<2x128xf32>
    %247 = arith.divf %245, %246 : vector<2x128xf32>
    %248 = vector.extract_strided_slice %238 {offsets = [0, 128], sizes = [2, 128], strides = [1, 1]} : vector<2x384xf32> to vector<2x128xf32>
    %249 = vector.extract_strided_slice %239 {offsets = [0, 128], sizes = [2, 128], strides = [1, 1]} : vector<2x384xf32> to vector<2x128xf32>
    %250 = arith.addf %248, %249 : vector<2x128xf32>
    %251 = arith.negf %250 : vector<2x128xf32>
    %252 = math.exp %251 : vector<2x128xf32>
    %cst_83 = arith.constant 1.000000e+00 : f32
    %253 = vector.broadcast %cst_83 : f32 to vector<2x128xf32>
    %254 = arith.addf %253, %252 : vector<2x128xf32>
    %255 = arith.divf %253, %254 : vector<2x128xf32>
    %256 = vector.extract_strided_slice %238 {offsets = [0, 256], sizes = [2, 128], strides = [1, 1]} : vector<2x384xf32> to vector<2x128xf32>
    %257 = vector.extract_strided_slice %239 {offsets = [0, 256], sizes = [2, 128], strides = [1, 1]} : vector<2x384xf32> to vector<2x128xf32>
    %258 = vector.broadcast %3 : vector<1x128xf32> to vector<2x128xf32>
    %259 = arith.addf %257, %258 : vector<2x128xf32>
    %260 = arith.mulf %247, %259 : vector<2x128xf32>
    %261 = arith.addf %256, %260 : vector<2x128xf32>
    %262 = math.tanh %261 : vector<2x128xf32>
    %cst_84 = arith.constant 1.000000e+00 : f32
    %263 = vector.broadcast %cst_84 : f32 to vector<2x128xf32>
    %264 = arith.subf %263, %255 : vector<2x128xf32>
    %265 = arith.mulf %264, %262 : vector<2x128xf32>
    %266 = arith.mulf %255, %195 : vector<2x128xf32>
    %267 = arith.addf %265, %266 : vector<2x128xf32>
    %cst_85 = arith.constant dense<0.000000e+00> : vector<2x384xf32>
    %268 = tpu.matmul %267, %4, %cst_85 {dimension_numbers = #tpu.dot_dimension_numbers<[1], [0], [0], [1], [0, 0, 1, 1], [], []>} : vector<2x128xf32>, vector<128x384xf32>, vector<2x384xf32> -> vector<2x384xf32>
    %269 = vector.broadcast %6 : vector<1x384xf32> to vector<2x384xf32>
    %270 = arith.addf %268, %269 : vector<2x384xf32>
    %cst_86 = arith.constant dense<0.000000e+00> : vector<2x384xf32>
    %271 = tpu.matmul %227, %5, %cst_86 {dimension_numbers = #tpu.dot_dimension_numbers<[1], [0], [0], [1], [0, 0, 1, 1], [], []>} : vector<2x128xf32>, vector<128x384xf32>, vector<2x384xf32> -> vector<2x384xf32>
    %272 = vector.extract_strided_slice %270 {offsets = [0, 0], sizes = [2, 128], strides = [1, 1]} : vector<2x384xf32> to vector<2x128xf32>
    %273 = vector.extract_strided_slice %271 {offsets = [0, 0], sizes = [2, 128], strides = [1, 1]} : vector<2x384xf32> to vector<2x128xf32>
    %274 = arith.addf %272, %273 : vector<2x128xf32>
    %275 = arith.negf %274 : vector<2x128xf32>
    %276 = math.exp %275 : vector<2x128xf32>
    %cst_87 = arith.constant 1.000000e+00 : f32
    %277 = vector.broadcast %cst_87 : f32 to vector<2x128xf32>
    %278 = arith.addf %277, %276 : vector<2x128xf32>
    %279 = arith.divf %277, %278 : vector<2x128xf32>
    %280 = vector.extract_strided_slice %270 {offsets = [0, 128], sizes = [2, 128], strides = [1, 1]} : vector<2x384xf32> to vector<2x128xf32>
    %281 = vector.extract_strided_slice %271 {offsets = [0, 128], sizes = [2, 128], strides = [1, 1]} : vector<2x384xf32> to vector<2x128xf32>
    %282 = arith.addf %280, %281 : vector<2x128xf32>
    %283 = arith.negf %282 : vector<2x128xf32>
    %284 = math.exp %283 : vector<2x128xf32>
    %cst_88 = arith.constant 1.000000e+00 : f32
    %285 = vector.broadcast %cst_88 : f32 to vector<2x128xf32>
    %286 = arith.addf %285, %284 : vector<2x128xf32>
    %287 = arith.divf %285, %286 : vector<2x128xf32>
    %288 = vector.extract_strided_slice %270 {offsets = [0, 256], sizes = [2, 128], strides = [1, 1]} : vector<2x384xf32> to vector<2x128xf32>
    %289 = vector.extract_strided_slice %271 {offsets = [0, 256], sizes = [2, 128], strides = [1, 1]} : vector<2x384xf32> to vector<2x128xf32>
    %290 = vector.broadcast %7 : vector<1x128xf32> to vector<2x128xf32>
    %291 = arith.addf %289, %290 : vector<2x128xf32>
    %292 = arith.mulf %279, %291 : vector<2x128xf32>
    %293 = arith.addf %288, %292 : vector<2x128xf32>
    %294 = math.tanh %293 : vector<2x128xf32>
    %cst_89 = arith.constant 1.000000e+00 : f32
    %295 = vector.broadcast %cst_89 : f32 to vector<2x128xf32>
    %296 = arith.subf %295, %287 : vector<2x128xf32>
    %297 = arith.mulf %296, %294 : vector<2x128xf32>
    %298 = arith.mulf %287, %227 : vector<2x128xf32>
    %299 = arith.addf %297, %298 : vector<2x128xf32>
    %cst_90 = arith.constant dense<0.000000e+00> : vector<2x64xf32>
    %300 = tpu.matmul %299, %8, %cst_90 {dimension_numbers = #tpu.dot_dimension_numbers<[1], [0], [0], [1], [0, 0, 1, 1], [], []>} : vector<2x128xf32>, vector<128x64xf32>, vector<2x64xf32> -> vector<2x64xf32>
    %301 = vector.broadcast %9 : vector<1x64xf32> to vector<2x64xf32>
    %302 = arith.addf %300, %301 : vector<2x64xf32>
    %c3 = arith.constant 3 : index
    %c0_91 = arith.constant 0 : index
    %c0_92 = arith.constant 0 : index
    %303 = vector.load %arg15[%c3, %c0_91, %c0_92] : memref<8x2x64xf32, #tpu.memory_space<vmem>>, vector<1x2x64xf32>
    %304 = vector.shape_cast %303 : vector<1x2x64xf32> to vector<2x64xf32>
    %305 = vector.shape_cast %302 : vector<2x64xf32> to vector<1x2x64xf32>
    tpu.vector_store %arg15[%c3, %c0_91, %c0_92], %305 {strides = array<i32>} : memref<8x2x64xf32, #tpu.memory_space<vmem>>, vector<1x2x64xf32>,
    %c3_93 = arith.constant 3 : index
    %c0_94 = arith.constant 0 : index
    %c0_95 = arith.constant 0 : index
    %306 = vector.load %arg0[%c3_93, %c0_94, %c0_95] : memref<7x2x32xf32, #tpu.memory_space<vmem>>, vector<1x2x32xf32>
    %307 = vector.shape_cast %306 : vector<1x2x32xf32> to vector<2x32xf32>
    %cst_96 = arith.constant dense<0.000000e+00> : vector<2x384xf32>
    %308 = tpu.matmul %307, %0, %cst_96 {dimension_numbers = #tpu.dot_dimension_numbers<[1], [0], [0], [1], [0, 0, 1, 1], [], []>} : vector<2x32xf32>, vector<32x384xf32>, vector<2x384xf32> -> vector<2x384xf32>
    %309 = vector.broadcast %2 : vector<1x384xf32> to vector<2x384xf32>
    %310 = arith.addf %308, %309 : vector<2x384xf32>
    %cst_97 = arith.constant dense<0.000000e+00> : vector<2x384xf32>
    %311 = tpu.matmul %267, %1, %cst_97 {dimension_numbers = #tpu.dot_dimension_numbers<[1], [0], [0], [1], [0, 0, 1, 1], [], []>} : vector<2x128xf32>, vector<128x384xf32>, vector<2x384xf32> -> vector<2x384xf32>
    %312 = vector.extract_strided_slice %310 {offsets = [0, 0], sizes = [2, 128], strides = [1, 1]} : vector<2x384xf32> to vector<2x128xf32>
    %313 = vector.extract_strided_slice %311 {offsets = [0, 0], sizes = [2, 128], strides = [1, 1]} : vector<2x384xf32> to vector<2x128xf32>
    %314 = arith.addf %312, %313 : vector<2x128xf32>
    %315 = arith.negf %314 : vector<2x128xf32>
    %316 = math.exp %315 : vector<2x128xf32>
    %cst_98 = arith.constant 1.000000e+00 : f32
    %317 = vector.broadcast %cst_98 : f32 to vector<2x128xf32>
    %318 = arith.addf %317, %316 : vector<2x128xf32>
    %319 = arith.divf %317, %318 : vector<2x128xf32>
    %320 = vector.extract_strided_slice %310 {offsets = [0, 128], sizes = [2, 128], strides = [1, 1]} : vector<2x384xf32> to vector<2x128xf32>
    %321 = vector.extract_strided_slice %311 {offsets = [0, 128], sizes = [2, 128], strides = [1, 1]} : vector<2x384xf32> to vector<2x128xf32>
    %322 = arith.addf %320, %321 : vector<2x128xf32>
    %323 = arith.negf %322 : vector<2x128xf32>
    %324 = math.exp %323 : vector<2x128xf32>
    %cst_99 = arith.constant 1.000000e+00 : f32
    %325 = vector.broadcast %cst_99 : f32 to vector<2x128xf32>
    %326 = arith.addf %325, %324 : vector<2x128xf32>
    %327 = arith.divf %325, %326 : vector<2x128xf32>
    %328 = vector.extract_strided_slice %310 {offsets = [0, 256], sizes = [2, 128], strides = [1, 1]} : vector<2x384xf32> to vector<2x128xf32>
    %329 = vector.extract_strided_slice %311 {offsets = [0, 256], sizes = [2, 128], strides = [1, 1]} : vector<2x384xf32> to vector<2x128xf32>
    %330 = vector.broadcast %3 : vector<1x128xf32> to vector<2x128xf32>
    %331 = arith.addf %329, %330 : vector<2x128xf32>
    %332 = arith.mulf %319, %331 : vector<2x128xf32>
    %333 = arith.addf %328, %332 : vector<2x128xf32>
    %334 = math.tanh %333 : vector<2x128xf32>
    %cst_100 = arith.constant 1.000000e+00 : f32
    %335 = vector.broadcast %cst_100 : f32 to vector<2x128xf32>
    %336 = arith.subf %335, %327 : vector<2x128xf32>
    %337 = arith.mulf %336, %334 : vector<2x128xf32>
    %338 = arith.mulf %327, %267 : vector<2x128xf32>
    %339 = arith.addf %337, %338 : vector<2x128xf32>
    %cst_101 = arith.constant dense<0.000000e+00> : vector<2x384xf32>
    %340 = tpu.matmul %339, %4, %cst_101 {dimension_numbers = #tpu.dot_dimension_numbers<[1], [0], [0], [1], [0, 0, 1, 1], [], []>} : vector<2x128xf32>, vector<128x384xf32>, vector<2x384xf32> -> vector<2x384xf32>
    %341 = vector.broadcast %6 : vector<1x384xf32> to vector<2x384xf32>
    %342 = arith.addf %340, %341 : vector<2x384xf32>
    %cst_102 = arith.constant dense<0.000000e+00> : vector<2x384xf32>
    %343 = tpu.matmul %299, %5, %cst_102 {dimension_numbers = #tpu.dot_dimension_numbers<[1], [0], [0], [1], [0, 0, 1, 1], [], []>} : vector<2x128xf32>, vector<128x384xf32>, vector<2x384xf32> -> vector<2x384xf32>
    %344 = vector.extract_strided_slice %342 {offsets = [0, 0], sizes = [2, 128], strides = [1, 1]} : vector<2x384xf32> to vector<2x128xf32>
    %345 = vector.extract_strided_slice %343 {offsets = [0, 0], sizes = [2, 128], strides = [1, 1]} : vector<2x384xf32> to vector<2x128xf32>
    %346 = arith.addf %344, %345 : vector<2x128xf32>
    %347 = arith.negf %346 : vector<2x128xf32>
    %348 = math.exp %347 : vector<2x128xf32>
    %cst_103 = arith.constant 1.000000e+00 : f32
    %349 = vector.broadcast %cst_103 : f32 to vector<2x128xf32>
    %350 = arith.addf %349, %348 : vector<2x128xf32>
    %351 = arith.divf %349, %350 : vector<2x128xf32>
    %352 = vector.extract_strided_slice %342 {offsets = [0, 128], sizes = [2, 128], strides = [1, 1]} : vector<2x384xf32> to vector<2x128xf32>
    %353 = vector.extract_strided_slice %343 {offsets = [0, 128], sizes = [2, 128], strides = [1, 1]} : vector<2x384xf32> to vector<2x128xf32>
    %354 = arith.addf %352, %353 : vector<2x128xf32>
    %355 = arith.negf %354 : vector<2x128xf32>
    %356 = math.exp %355 : vector<2x128xf32>
    %cst_104 = arith.constant 1.000000e+00 : f32
    %357 = vector.broadcast %cst_104 : f32 to vector<2x128xf32>
    %358 = arith.addf %357, %356 : vector<2x128xf32>
    %359 = arith.divf %357, %358 : vector<2x128xf32>
    %360 = vector.extract_strided_slice %342 {offsets = [0, 256], sizes = [2, 128], strides = [1, 1]} : vector<2x384xf32> to vector<2x128xf32>
    %361 = vector.extract_strided_slice %343 {offsets = [0, 256], sizes = [2, 128], strides = [1, 1]} : vector<2x384xf32> to vector<2x128xf32>
    %362 = vector.broadcast %7 : vector<1x128xf32> to vector<2x128xf32>
    %363 = arith.addf %361, %362 : vector<2x128xf32>
    %364 = arith.mulf %351, %363 : vector<2x128xf32>
    %365 = arith.addf %360, %364 : vector<2x128xf32>
    %366 = math.tanh %365 : vector<2x128xf32>
    %cst_105 = arith.constant 1.000000e+00 : f32
    %367 = vector.broadcast %cst_105 : f32 to vector<2x128xf32>
    %368 = arith.subf %367, %359 : vector<2x128xf32>
    %369 = arith.mulf %368, %366 : vector<2x128xf32>
    %370 = arith.mulf %359, %299 : vector<2x128xf32>
    %371 = arith.addf %369, %370 : vector<2x128xf32>
    %cst_106 = arith.constant dense<0.000000e+00> : vector<2x64xf32>
    %372 = tpu.matmul %371, %8, %cst_106 {dimension_numbers = #tpu.dot_dimension_numbers<[1], [0], [0], [1], [0, 0, 1, 1], [], []>} : vector<2x128xf32>, vector<128x64xf32>, vector<2x64xf32> -> vector<2x64xf32>
    %373 = vector.broadcast %9 : vector<1x64xf32> to vector<2x64xf32>
    %374 = arith.addf %372, %373 : vector<2x64xf32>
    %c4 = arith.constant 4 : index
    %c0_107 = arith.constant 0 : index
    %c0_108 = arith.constant 0 : index
    %375 = vector.load %arg15[%c4, %c0_107, %c0_108] : memref<8x2x64xf32, #tpu.memory_space<vmem>>, vector<1x2x64xf32>
    %376 = vector.shape_cast %375 : vector<1x2x64xf32> to vector<2x64xf32>
    %377 = vector.shape_cast %374 : vector<2x64xf32> to vector<1x2x64xf32>
    tpu.vector_store %arg15[%c4, %c0_107, %c0_108], %377 {strides = array<i32>} : memref<8x2x64xf32, #tpu.memory_space<vmem>>, vector<1x2x64xf32>,
    %c4_109 = arith.constant 4 : index
    %c0_110 = arith.constant 0 : index
    %c0_111 = arith.constant 0 : index
    %378 = vector.load %arg0[%c4_109, %c0_110, %c0_111] : memref<7x2x32xf32, #tpu.memory_space<vmem>>, vector<1x2x32xf32>
    %379 = vector.shape_cast %378 : vector<1x2x32xf32> to vector<2x32xf32>
    %cst_112 = arith.constant dense<0.000000e+00> : vector<2x384xf32>
    %380 = tpu.matmul %379, %0, %cst_112 {dimension_numbers = #tpu.dot_dimension_numbers<[1], [0], [0], [1], [0, 0, 1, 1], [], []>} : vector<2x32xf32>, vector<32x384xf32>, vector<2x384xf32> -> vector<2x384xf32>
    %381 = vector.broadcast %2 : vector<1x384xf32> to vector<2x384xf32>
    %382 = arith.addf %380, %381 : vector<2x384xf32>
    %cst_113 = arith.constant dense<0.000000e+00> : vector<2x384xf32>
    %383 = tpu.matmul %339, %1, %cst_113 {dimension_numbers = #tpu.dot_dimension_numbers<[1], [0], [0], [1], [0, 0, 1, 1], [], []>} : vector<2x128xf32>, vector<128x384xf32>, vector<2x384xf32> -> vector<2x384xf32>
    %384 = vector.extract_strided_slice %382 {offsets = [0, 0], sizes = [2, 128], strides = [1, 1]} : vector<2x384xf32> to vector<2x128xf32>
    %385 = vector.extract_strided_slice %383 {offsets = [0, 0], sizes = [2, 128], strides = [1, 1]} : vector<2x384xf32> to vector<2x128xf32>
    %386 = arith.addf %384, %385 : vector<2x128xf32>
    %387 = arith.negf %386 : vector<2x128xf32>
    %388 = math.exp %387 : vector<2x128xf32>
    %cst_114 = arith.constant 1.000000e+00 : f32
    %389 = vector.broadcast %cst_114 : f32 to vector<2x128xf32>
    %390 = arith.addf %389, %388 : vector<2x128xf32>
    %391 = arith.divf %389, %390 : vector<2x128xf32>
    %392 = vector.extract_strided_slice %382 {offsets = [0, 128], sizes = [2, 128], strides = [1, 1]} : vector<2x384xf32> to vector<2x128xf32>
    %393 = vector.extract_strided_slice %383 {offsets = [0, 128], sizes = [2, 128], strides = [1, 1]} : vector<2x384xf32> to vector<2x128xf32>
    %394 = arith.addf %392, %393 : vector<2x128xf32>
    %395 = arith.negf %394 : vector<2x128xf32>
    %396 = math.exp %395 : vector<2x128xf32>
    %cst_115 = arith.constant 1.000000e+00 : f32
    %397 = vector.broadcast %cst_115 : f32 to vector<2x128xf32>
    %398 = arith.addf %397, %396 : vector<2x128xf32>
    %399 = arith.divf %397, %398 : vector<2x128xf32>
    %400 = vector.extract_strided_slice %382 {offsets = [0, 256], sizes = [2, 128], strides = [1, 1]} : vector<2x384xf32> to vector<2x128xf32>
    %401 = vector.extract_strided_slice %383 {offsets = [0, 256], sizes = [2, 128], strides = [1, 1]} : vector<2x384xf32> to vector<2x128xf32>
    %402 = vector.broadcast %3 : vector<1x128xf32> to vector<2x128xf32>
    %403 = arith.addf %401, %402 : vector<2x128xf32>
    %404 = arith.mulf %391, %403 : vector<2x128xf32>
    %405 = arith.addf %400, %404 : vector<2x128xf32>
    %406 = math.tanh %405 : vector<2x128xf32>
    %cst_116 = arith.constant 1.000000e+00 : f32
    %407 = vector.broadcast %cst_116 : f32 to vector<2x128xf32>
    %408 = arith.subf %407, %399 : vector<2x128xf32>
    %409 = arith.mulf %408, %406 : vector<2x128xf32>
    %410 = arith.mulf %399, %339 : vector<2x128xf32>
    %411 = arith.addf %409, %410 : vector<2x128xf32>
    %cst_117 = arith.constant dense<0.000000e+00> : vector<2x384xf32>
    %412 = tpu.matmul %411, %4, %cst_117 {dimension_numbers = #tpu.dot_dimension_numbers<[1], [0], [0], [1], [0, 0, 1, 1], [], []>} : vector<2x128xf32>, vector<128x384xf32>, vector<2x384xf32> -> vector<2x384xf32>
    %413 = vector.broadcast %6 : vector<1x384xf32> to vector<2x384xf32>
    %414 = arith.addf %412, %413 : vector<2x384xf32>
    %cst_118 = arith.constant dense<0.000000e+00> : vector<2x384xf32>
    %415 = tpu.matmul %371, %5, %cst_118 {dimension_numbers = #tpu.dot_dimension_numbers<[1], [0], [0], [1], [0, 0, 1, 1], [], []>} : vector<2x128xf32>, vector<128x384xf32>, vector<2x384xf32> -> vector<2x384xf32>
    %416 = vector.extract_strided_slice %414 {offsets = [0, 0], sizes = [2, 128], strides = [1, 1]} : vector<2x384xf32> to vector<2x128xf32>
    %417 = vector.extract_strided_slice %415 {offsets = [0, 0], sizes = [2, 128], strides = [1, 1]} : vector<2x384xf32> to vector<2x128xf32>
    %418 = arith.addf %416, %417 : vector<2x128xf32>
    %419 = arith.negf %418 : vector<2x128xf32>
    %420 = math.exp %419 : vector<2x128xf32>
    %cst_119 = arith.constant 1.000000e+00 : f32
    %421 = vector.broadcast %cst_119 : f32 to vector<2x128xf32>
    %422 = arith.addf %421, %420 : vector<2x128xf32>
    %423 = arith.divf %421, %422 : vector<2x128xf32>
    %424 = vector.extract_strided_slice %414 {offsets = [0, 128], sizes = [2, 128], strides = [1, 1]} : vector<2x384xf32> to vector<2x128xf32>
    %425 = vector.extract_strided_slice %415 {offsets = [0, 128], sizes = [2, 128], strides = [1, 1]} : vector<2x384xf32> to vector<2x128xf32>
    %426 = arith.addf %424, %425 : vector<2x128xf32>
    %427 = arith.negf %426 : vector<2x128xf32>
    %428 = math.exp %427 : vector<2x128xf32>
    %cst_120 = arith.constant 1.000000e+00 : f32
    %429 = vector.broadcast %cst_120 : f32 to vector<2x128xf32>
    %430 = arith.addf %429, %428 : vector<2x128xf32>
    %431 = arith.divf %429, %430 : vector<2x128xf32>
    %432 = vector.extract_strided_slice %414 {offsets = [0, 256], sizes = [2, 128], strides = [1, 1]} : vector<2x384xf32> to vector<2x128xf32>
    %433 = vector.extract_strided_slice %415 {offsets = [0, 256], sizes = [2, 128], strides = [1, 1]} : vector<2x384xf32> to vector<2x128xf32>
    %434 = vector.broadcast %7 : vector<1x128xf32> to vector<2x128xf32>
    %435 = arith.addf %433, %434 : vector<2x128xf32>
    %436 = arith.mulf %423, %435 : vector<2x128xf32>
    %437 = arith.addf %432, %436 : vector<2x128xf32>
    %438 = math.tanh %437 : vector<2x128xf32>
    %cst_121 = arith.constant 1.000000e+00 : f32
    %439 = vector.broadcast %cst_121 : f32 to vector<2x128xf32>
    %440 = arith.subf %439, %431 : vector<2x128xf32>
    %441 = arith.mulf %440, %438 : vector<2x128xf32>
    %442 = arith.mulf %431, %371 : vector<2x128xf32>
    %443 = arith.addf %441, %442 : vector<2x128xf32>
    %cst_122 = arith.constant dense<0.000000e+00> : vector<2x64xf32>
    %444 = tpu.matmul %443, %8, %cst_122 {dimension_numbers = #tpu.dot_dimension_numbers<[1], [0], [0], [1], [0, 0, 1, 1], [], []>} : vector<2x128xf32>, vector<128x64xf32>, vector<2x64xf32> -> vector<2x64xf32>
    %445 = vector.broadcast %9 : vector<1x64xf32> to vector<2x64xf32>
    %446 = arith.addf %444, %445 : vector<2x64xf32>
    %c5 = arith.constant 5 : index
    %c0_123 = arith.constant 0 : index
    %c0_124 = arith.constant 0 : index
    %447 = vector.load %arg15[%c5, %c0_123, %c0_124] : memref<8x2x64xf32, #tpu.memory_space<vmem>>, vector<1x2x64xf32>
    %448 = vector.shape_cast %447 : vector<1x2x64xf32> to vector<2x64xf32>
    %449 = vector.shape_cast %446 : vector<2x64xf32> to vector<1x2x64xf32>
    tpu.vector_store %arg15[%c5, %c0_123, %c0_124], %449 {strides = array<i32>} : memref<8x2x64xf32, #tpu.memory_space<vmem>>, vector<1x2x64xf32>,
    %c5_125 = arith.constant 5 : index
    %c0_126 = arith.constant 0 : index
    %c0_127 = arith.constant 0 : index
    %450 = vector.load %arg0[%c5_125, %c0_126, %c0_127] : memref<7x2x32xf32, #tpu.memory_space<vmem>>, vector<1x2x32xf32>
    %451 = vector.shape_cast %450 : vector<1x2x32xf32> to vector<2x32xf32>
    %cst_128 = arith.constant dense<0.000000e+00> : vector<2x384xf32>
    %452 = tpu.matmul %451, %0, %cst_128 {dimension_numbers = #tpu.dot_dimension_numbers<[1], [0], [0], [1], [0, 0, 1, 1], [], []>} : vector<2x32xf32>, vector<32x384xf32>, vector<2x384xf32> -> vector<2x384xf32>
    %453 = vector.broadcast %2 : vector<1x384xf32> to vector<2x384xf32>
    %454 = arith.addf %452, %453 : vector<2x384xf32>
    %cst_129 = arith.constant dense<0.000000e+00> : vector<2x384xf32>
    %455 = tpu.matmul %411, %1, %cst_129 {dimension_numbers = #tpu.dot_dimension_numbers<[1], [0], [0], [1], [0, 0, 1, 1], [], []>} : vector<2x128xf32>, vector<128x384xf32>, vector<2x384xf32> -> vector<2x384xf32>
    %456 = vector.extract_strided_slice %454 {offsets = [0, 0], sizes = [2, 128], strides = [1, 1]} : vector<2x384xf32> to vector<2x128xf32>
    %457 = vector.extract_strided_slice %455 {offsets = [0, 0], sizes = [2, 128], strides = [1, 1]} : vector<2x384xf32> to vector<2x128xf32>
    %458 = arith.addf %456, %457 : vector<2x128xf32>
    %459 = arith.negf %458 : vector<2x128xf32>
    %460 = math.exp %459 : vector<2x128xf32>
    %cst_130 = arith.constant 1.000000e+00 : f32
    %461 = vector.broadcast %cst_130 : f32 to vector<2x128xf32>
    %462 = arith.addf %461, %460 : vector<2x128xf32>
    %463 = arith.divf %461, %462 : vector<2x128xf32>
    %464 = vector.extract_strided_slice %454 {offsets = [0, 128], sizes = [2, 128], strides = [1, 1]} : vector<2x384xf32> to vector<2x128xf32>
    %465 = vector.extract_strided_slice %455 {offsets = [0, 128], sizes = [2, 128], strides = [1, 1]} : vector<2x384xf32> to vector<2x128xf32>
    %466 = arith.addf %464, %465 : vector<2x128xf32>
    %467 = arith.negf %466 : vector<2x128xf32>
    %468 = math.exp %467 : vector<2x128xf32>
    %cst_131 = arith.constant 1.000000e+00 : f32
    %469 = vector.broadcast %cst_131 : f32 to vector<2x128xf32>
    %470 = arith.addf %469, %468 : vector<2x128xf32>
    %471 = arith.divf %469, %470 : vector<2x128xf32>
    %472 = vector.extract_strided_slice %454 {offsets = [0, 256], sizes = [2, 128], strides = [1, 1]} : vector<2x384xf32> to vector<2x128xf32>
    %473 = vector.extract_strided_slice %455 {offsets = [0, 256], sizes = [2, 128], strides = [1, 1]} : vector<2x384xf32> to vector<2x128xf32>
    %474 = vector.broadcast %3 : vector<1x128xf32> to vector<2x128xf32>
    %475 = arith.addf %473, %474 : vector<2x128xf32>
    %476 = arith.mulf %463, %475 : vector<2x128xf32>
    %477 = arith.addf %472, %476 : vector<2x128xf32>
    %478 = math.tanh %477 : vector<2x128xf32>
    %cst_132 = arith.constant 1.000000e+00 : f32
    %479 = vector.broadcast %cst_132 : f32 to vector<2x128xf32>
    %480 = arith.subf %479, %471 : vector<2x128xf32>
    %481 = arith.mulf %480, %478 : vector<2x128xf32>
    %482 = arith.mulf %471, %411 : vector<2x128xf32>
    %483 = arith.addf %481, %482 : vector<2x128xf32>
    %cst_133 = arith.constant dense<0.000000e+00> : vector<2x384xf32>
    %484 = tpu.matmul %483, %4, %cst_133 {dimension_numbers = #tpu.dot_dimension_numbers<[1], [0], [0], [1], [0, 0, 1, 1], [], []>} : vector<2x128xf32>, vector<128x384xf32>, vector<2x384xf32> -> vector<2x384xf32>
    %485 = vector.broadcast %6 : vector<1x384xf32> to vector<2x384xf32>
    %486 = arith.addf %484, %485 : vector<2x384xf32>
    %cst_134 = arith.constant dense<0.000000e+00> : vector<2x384xf32>
    %487 = tpu.matmul %443, %5, %cst_134 {dimension_numbers = #tpu.dot_dimension_numbers<[1], [0], [0], [1], [0, 0, 1, 1], [], []>} : vector<2x128xf32>, vector<128x384xf32>, vector<2x384xf32> -> vector<2x384xf32>
    %488 = vector.extract_strided_slice %486 {offsets = [0, 0], sizes = [2, 128], strides = [1, 1]} : vector<2x384xf32> to vector<2x128xf32>
    %489 = vector.extract_strided_slice %487 {offsets = [0, 0], sizes = [2, 128], strides = [1, 1]} : vector<2x384xf32> to vector<2x128xf32>
    %490 = arith.addf %488, %489 : vector<2x128xf32>
    %491 = arith.negf %490 : vector<2x128xf32>
    %492 = math.exp %491 : vector<2x128xf32>
    %cst_135 = arith.constant 1.000000e+00 : f32
    %493 = vector.broadcast %cst_135 : f32 to vector<2x128xf32>
    %494 = arith.addf %493, %492 : vector<2x128xf32>
    %495 = arith.divf %493, %494 : vector<2x128xf32>
    %496 = vector.extract_strided_slice %486 {offsets = [0, 128], sizes = [2, 128], strides = [1, 1]} : vector<2x384xf32> to vector<2x128xf32>
    %497 = vector.extract_strided_slice %487 {offsets = [0, 128], sizes = [2, 128], strides = [1, 1]} : vector<2x384xf32> to vector<2x128xf32>
    %498 = arith.addf %496, %497 : vector<2x128xf32>
    %499 = arith.negf %498 : vector<2x128xf32>
    %500 = math.exp %499 : vector<2x128xf32>
    %cst_136 = arith.constant 1.000000e+00 : f32
    %501 = vector.broadcast %cst_136 : f32 to vector<2x128xf32>
    %502 = arith.addf %501, %500 : vector<2x128xf32>
    %503 = arith.divf %501, %502 : vector<2x128xf32>
    %504 = vector.extract_strided_slice %486 {offsets = [0, 256], sizes = [2, 128], strides = [1, 1]} : vector<2x384xf32> to vector<2x128xf32>
    %505 = vector.extract_strided_slice %487 {offsets = [0, 256], sizes = [2, 128], strides = [1, 1]} : vector<2x384xf32> to vector<2x128xf32>
    %506 = vector.broadcast %7 : vector<1x128xf32> to vector<2x128xf32>
    %507 = arith.addf %505, %506 : vector<2x128xf32>
    %508 = arith.mulf %495, %507 : vector<2x128xf32>
    %509 = arith.addf %504, %508 : vector<2x128xf32>
    %510 = math.tanh %509 : vector<2x128xf32>
    %cst_137 = arith.constant 1.000000e+00 : f32
    %511 = vector.broadcast %cst_137 : f32 to vector<2x128xf32>
    %512 = arith.subf %511, %503 : vector<2x128xf32>
    %513 = arith.mulf %512, %510 : vector<2x128xf32>
    %514 = arith.mulf %503, %443 : vector<2x128xf32>
    %515 = arith.addf %513, %514 : vector<2x128xf32>
    %cst_138 = arith.constant dense<0.000000e+00> : vector<2x64xf32>
    %516 = tpu.matmul %515, %8, %cst_138 {dimension_numbers = #tpu.dot_dimension_numbers<[1], [0], [0], [1], [0, 0, 1, 1], [], []>} : vector<2x128xf32>, vector<128x64xf32>, vector<2x64xf32> -> vector<2x64xf32>
    %517 = vector.broadcast %9 : vector<1x64xf32> to vector<2x64xf32>
    %518 = arith.addf %516, %517 : vector<2x64xf32>
    %c6 = arith.constant 6 : index
    %c0_139 = arith.constant 0 : index
    %c0_140 = arith.constant 0 : index
    %519 = vector.load %arg15[%c6, %c0_139, %c0_140] : memref<8x2x64xf32, #tpu.memory_space<vmem>>, vector<1x2x64xf32>
    %520 = vector.shape_cast %519 : vector<1x2x64xf32> to vector<2x64xf32>
    %521 = vector.shape_cast %518 : vector<2x64xf32> to vector<1x2x64xf32>
    tpu.vector_store %arg15[%c6, %c0_139, %c0_140], %521 {strides = array<i32>} : memref<8x2x64xf32, #tpu.memory_space<vmem>>, vector<1x2x64xf32>,
    %c6_141 = arith.constant 6 : index
    %c0_142 = arith.constant 0 : index
    %c0_143 = arith.constant 0 : index
    %522 = vector.load %arg0[%c6_141, %c0_142, %c0_143] : memref<7x2x32xf32, #tpu.memory_space<vmem>>, vector<1x2x32xf32>
    %523 = vector.shape_cast %522 : vector<1x2x32xf32> to vector<2x32xf32>
    %cst_144 = arith.constant dense<0.000000e+00> : vector<2x384xf32>
    %524 = tpu.matmul %523, %0, %cst_144 {dimension_numbers = #tpu.dot_dimension_numbers<[1], [0], [0], [1], [0, 0, 1, 1], [], []>} : vector<2x32xf32>, vector<32x384xf32>, vector<2x384xf32> -> vector<2x384xf32>
    %525 = vector.broadcast %2 : vector<1x384xf32> to vector<2x384xf32>
    %526 = arith.addf %524, %525 : vector<2x384xf32>
    %cst_145 = arith.constant dense<0.000000e+00> : vector<2x384xf32>
    %527 = tpu.matmul %483, %1, %cst_145 {dimension_numbers = #tpu.dot_dimension_numbers<[1], [0], [0], [1], [0, 0, 1, 1], [], []>} : vector<2x128xf32>, vector<128x384xf32>, vector<2x384xf32> -> vector<2x384xf32>
    %528 = vector.extract_strided_slice %526 {offsets = [0, 0], sizes = [2, 128], strides = [1, 1]} : vector<2x384xf32> to vector<2x128xf32>
    %529 = vector.extract_strided_slice %527 {offsets = [0, 0], sizes = [2, 128], strides = [1, 1]} : vector<2x384xf32> to vector<2x128xf32>
    %530 = arith.addf %528, %529 : vector<2x128xf32>
    %531 = arith.negf %530 : vector<2x128xf32>
    %532 = math.exp %531 : vector<2x128xf32>
    %cst_146 = arith.constant 1.000000e+00 : f32
    %533 = vector.broadcast %cst_146 : f32 to vector<2x128xf32>
    %534 = arith.addf %533, %532 : vector<2x128xf32>
    %535 = arith.divf %533, %534 : vector<2x128xf32>
    %536 = vector.extract_strided_slice %526 {offsets = [0, 128], sizes = [2, 128], strides = [1, 1]} : vector<2x384xf32> to vector<2x128xf32>
    %537 = vector.extract_strided_slice %527 {offsets = [0, 128], sizes = [2, 128], strides = [1, 1]} : vector<2x384xf32> to vector<2x128xf32>
    %538 = arith.addf %536, %537 : vector<2x128xf32>
    %539 = arith.negf %538 : vector<2x128xf32>
    %540 = math.exp %539 : vector<2x128xf32>
    %cst_147 = arith.constant 1.000000e+00 : f32
    %541 = vector.broadcast %cst_147 : f32 to vector<2x128xf32>
    %542 = arith.addf %541, %540 : vector<2x128xf32>
    %543 = arith.divf %541, %542 : vector<2x128xf32>
    %544 = vector.extract_strided_slice %526 {offsets = [0, 256], sizes = [2, 128], strides = [1, 1]} : vector<2x384xf32> to vector<2x128xf32>
    %545 = vector.extract_strided_slice %527 {offsets = [0, 256], sizes = [2, 128], strides = [1, 1]} : vector<2x384xf32> to vector<2x128xf32>
    %546 = vector.broadcast %3 : vector<1x128xf32> to vector<2x128xf32>
    %547 = arith.addf %545, %546 : vector<2x128xf32>
    %548 = arith.mulf %535, %547 : vector<2x128xf32>
    %549 = arith.addf %544, %548 : vector<2x128xf32>
    %550 = math.tanh %549 : vector<2x128xf32>
    %cst_148 = arith.constant 1.000000e+00 : f32
    %551 = vector.broadcast %cst_148 : f32 to vector<2x128xf32>
    %552 = arith.subf %551, %543 : vector<2x128xf32>
    %553 = arith.mulf %552, %550 : vector<2x128xf32>
    %554 = arith.mulf %543, %483 : vector<2x128xf32>
    %555 = arith.addf %553, %554 : vector<2x128xf32>
    %cst_149 = arith.constant dense<0.000000e+00> : vector<2x384xf32>
    %556 = tpu.matmul %555, %4, %cst_149 {dimension_numbers = #tpu.dot_dimension_numbers<[1], [0], [0], [1], [0, 0, 1, 1], [], []>} : vector<2x128xf32>, vector<128x384xf32>, vector<2x384xf32> -> vector<2x384xf32>
    %557 = vector.broadcast %6 : vector<1x384xf32> to vector<2x384xf32>
    %558 = arith.addf %556, %557 : vector<2x384xf32>
    %cst_150 = arith.constant dense<0.000000e+00> : vector<2x384xf32>
    %559 = tpu.matmul %515, %5, %cst_150 {dimension_numbers = #tpu.dot_dimension_numbers<[1], [0], [0], [1], [0, 0, 1, 1], [], []>} : vector<2x128xf32>, vector<128x384xf32>, vector<2x384xf32> -> vector<2x384xf32>
    %560 = vector.extract_strided_slice %558 {offsets = [0, 0], sizes = [2, 128], strides = [1, 1]} : vector<2x384xf32> to vector<2x128xf32>
    %561 = vector.extract_strided_slice %559 {offsets = [0, 0], sizes = [2, 128], strides = [1, 1]} : vector<2x384xf32> to vector<2x128xf32>
    %562 = arith.addf %560, %561 : vector<2x128xf32>
    %563 = arith.negf %562 : vector<2x128xf32>
    %564 = math.exp %563 : vector<2x128xf32>
    %cst_151 = arith.constant 1.000000e+00 : f32
    %565 = vector.broadcast %cst_151 : f32 to vector<2x128xf32>
    %566 = arith.addf %565, %564 : vector<2x128xf32>
    %567 = arith.divf %565, %566 : vector<2x128xf32>
    %568 = vector.extract_strided_slice %558 {offsets = [0, 128], sizes = [2, 128], strides = [1, 1]} : vector<2x384xf32> to vector<2x128xf32>
    %569 = vector.extract_strided_slice %559 {offsets = [0, 128], sizes = [2, 128], strides = [1, 1]} : vector<2x384xf32> to vector<2x128xf32>
    %570 = arith.addf %568, %569 : vector<2x128xf32>
    %571 = arith.negf %570 : vector<2x128xf32>
    %572 = math.exp %571 : vector<2x128xf32>
    %cst_152 = arith.constant 1.000000e+00 : f32
    %573 = vector.broadcast %cst_152 : f32 to vector<2x128xf32>
    %574 = arith.addf %573, %572 : vector<2x128xf32>
    %575 = arith.divf %573, %574 : vector<2x128xf32>
    %576 = vector.extract_strided_slice %558 {offsets = [0, 256], sizes = [2, 128], strides = [1, 1]} : vector<2x384xf32> to vector<2x128xf32>
    %577 = vector.extract_strided_slice %559 {offsets = [0, 256], sizes = [2, 128], strides = [1, 1]} : vector<2x384xf32> to vector<2x128xf32>
    %578 = vector.broadcast %7 : vector<1x128xf32> to vector<2x128xf32>
    %579 = arith.addf %577, %578 : vector<2x128xf32>
    %580 = arith.mulf %567, %579 : vector<2x128xf32>
    %581 = arith.addf %576, %580 : vector<2x128xf32>
    %582 = math.tanh %581 : vector<2x128xf32>
    %cst_153 = arith.constant 1.000000e+00 : f32
    %583 = vector.broadcast %cst_153 : f32 to vector<2x128xf32>
    %584 = arith.subf %583, %575 : vector<2x128xf32>
    %585 = arith.mulf %584, %582 : vector<2x128xf32>
    %586 = arith.mulf %575, %515 : vector<2x128xf32>
    %587 = arith.addf %585, %586 : vector<2x128xf32>
    %cst_154 = arith.constant dense<0.000000e+00> : vector<2x64xf32>
    %588 = tpu.matmul %587, %8, %cst_154 {dimension_numbers = #tpu.dot_dimension_numbers<[1], [0], [0], [1], [0, 0, 1, 1], [], []>} : vector<2x128xf32>, vector<128x64xf32>, vector<2x64xf32> -> vector<2x64xf32>
    %589 = vector.broadcast %9 : vector<1x64xf32> to vector<2x64xf32>
    %590 = arith.addf %588, %589 : vector<2x64xf32>
    %c7 = arith.constant 7 : index
    %c0_155 = arith.constant 0 : index
    %c0_156 = arith.constant 0 : index
    %591 = vector.load %arg15[%c7, %c0_155, %c0_156] : memref<8x2x64xf32, #tpu.memory_space<vmem>>, vector<1x2x64xf32>
    %592 = vector.shape_cast %591 : vector<1x2x64xf32> to vector<2x64xf32>
    %593 = vector.shape_cast %590 : vector<2x64xf32> to vector<1x2x64xf32>
    tpu.vector_store %arg15[%c7, %c0_155, %c0_156], %593 {strides = array<i32>} : memref<8x2x64xf32, #tpu.memory_space<vmem>>, vector<1x2x64xf32>,
    return
  }
}

</mosaic_0001>

<llo_original>
// kernel: tpu_custom_call.1
$region0: #{tpu_custom_call.1}
  #allocation0 [shape = 'u32[]', space=smem, size = 0x4, offset = 0x4, fixed_abs, tag = 'smem constant byte address 0x4 - core index']
  #allocation1 [shape = 'u32[144,128]{1,0:T(1,128)}', space=vmem, size = 0x12000, scoped, tag = 'internal scratch']
  %s0 = inlined_call_operand.vmem [shape: f32[7,2,32], index: 0, kind: input, shape index: {}]
  %s1 = inlined_call_operand.vmem [shape: f32[2,64], index: 1, kind: input, shape index: {}]
  %s2 = inlined_call_operand.vmem [shape: f32[64,32], index: 2, kind: input, shape index: {}]
  %s3 = inlined_call_operand.vmem [shape: f32[1,32], index: 3, kind: input, shape index: {}]
  %s4 = inlined_call_operand.vmem [shape: f32[2,2,128], index: 4, kind: input, shape index: {}]
  %s5 = inlined_call_operand.vmem [shape: f32[32,384], index: 5, kind: input, shape index: {}]
  %s6 = inlined_call_operand.hbm [shape: f32[128,384], index: 6, kind: input, shape index: {}]
  %s7 = inlined_call_operand.vmem [shape: f32[1,384], index: 7, kind: input, shape index: {}]
  %s8 = inlined_call_operand.vmem [shape: f32[1,128], index: 8, kind: input, shape index: {}]
  %s9 = inlined_call_operand.hbm [shape: f32[128,384], index: 9, kind: input, shape index: {}]
  %s10 = inlined_call_operand.hbm [shape: f32[128,384], index: 10, kind: input, shape index: {}]
  %s11 = inlined_call_operand.vmem [shape: f32[1,384], index: 11, kind: input, shape index: {}]
  %s12 = inlined_call_operand.vmem [shape: f32[1,128], index: 12, kind: input, shape index: {}]
  %s13 = inlined_call_operand.vmem [shape: f32[128,64], index: 13, kind: input, shape index: {}]
  %s14 = inlined_call_operand.vmem [shape: f32[1,64], index: 14, kind: input, shape index: {}]
  %s15 = inlined_call_operand.hbm [shape: f32[8,2,64], index: 15, kind: output, shape index: {}]
  %s16 = sld [smem:[#allocation0]]
  $region82: #{tpu_custom_call.1} parent=0
    _
  %s18 = ssub.s32 1, %s16
  %s19 = scalar_select 0, %s18, %s16
  $region1: #{tpu_custom_call.1} parent=0
    #allocation2 [shape = 'u8[196608]{0}', space=vmem, size = 0x30000, scoped, tag = 'input window, operand 6, single buffered']
    #allocation3 [shape = 's32[1]{0}', space=sflag, size = 0x4, scoped, tag = 'scoped memory for tpu_custom_call.1']
    #allocation4 [shape = 's32[1]{0}', space=sflag, size = 0x4, scoped, tag = 'scoped memory for tpu_custom_call.1']
    #allocation5 [shape = 'u8[196608]{0}', space=vmem, size = 0x30000, scoped, tag = 'input window, operand 9, single buffered']
    #allocation6 [shape = 's32[1]{0}', space=sflag, size = 0x4, scoped, tag = 'scoped memory for tpu_custom_call.1']
    #allocation7 [shape = 'u8[196608]{0}', space=vmem, size = 0x30000, scoped, tag = 'input window, operand 10, single buffered']
    #allocation8 [shape = 'u8[8192]{0}', space=vmem, size = 0x2000, scoped, tag = 'output window, operand 0, single buffered']
    %20 = vsyncpa [#allocation3], 0
    %21 = vsyncpa [#allocation6], 0
    %22 = vsyncpa [#allocation4], 0
    // Predicated region
    $region2: #{tpu_custom_call.1} parent=1 // pred_check
      _
    $region3: #{tpu_custom_call.1} parent=1 // pred_check_branch
      %24 = sbr.rel (0) target = $region5
    $region4: #{tpu_custom_call.1} parent=1 // pred_region
      _
    $region5: #{tpu_custom_call.1} parent=1 // pred_fallthru
      _
    // Predicated region
    $region6: #{tpu_custom_call.1} parent=1 // pred_check
      _
    $region7: #{tpu_custom_call.1} parent=1 // pred_check_branch
      %26 = sbr.rel (0) target = $region9
    $region8: #{tpu_custom_call.1} parent=1 // pred_region
      _
    $region9: #{tpu_custom_call.1} parent=1 // pred_fallthru
      _
    // Predicated region
    $region10: #{tpu_custom_call.1} parent=1 // pred_check
      _
    $region11: #{tpu_custom_call.1} parent=1 // pred_check_branch
      %28 = sbr.rel (0) target = $region13
    $region12: #{tpu_custom_call.1} parent=1 // pred_region
      _
    $region13: #{tpu_custom_call.1} parent=1 // pred_fallthru
      _
    // Predicated region
    $region14: #{tpu_custom_call.1} parent=1 // pred_check
      _
    $region15: #{tpu_custom_call.1} parent=1 // pred_check_branch
      %30 = sbr.rel (0) target = $region17
    $region16: #{tpu_custom_call.1} parent=1 // pred_region
      _
    $region17: #{tpu_custom_call.1} parent=1 // pred_fallthru
      _
    // Predicated region
    $region18: #{tpu_custom_call.1} parent=1 // pred_check
      _
    $region19: #{tpu_custom_call.1} parent=1 // pred_check_branch
      %32 = sbr.rel (0) target = $region21
    $region20: #{tpu_custom_call.1} parent=1 // pred_region
      _
    $region21: #{tpu_custom_call.1} parent=1 // pred_fallthru
      _
    // Predicated region
    $region22: #{tpu_custom_call.1} parent=1 // pred_check
      _
    $region23: #{tpu_custom_call.1} parent=1 // pred_check_branch
      %34 = sbr.rel (0) target = $region25
    $region24: #{tpu_custom_call.1} parent=1 // pred_region
      _
    $region25: #{tpu_custom_call.1} parent=1 // pred_fallthru
      _
    // Predicated region
    $region26: #{tpu_custom_call.1} parent=1 // pred_check
      _
    $region27: #{tpu_custom_call.1} parent=1 // pred_check_branch
      %36 = sbr.rel (0) target = $region29
    $region28: #{tpu_custom_call.1} parent=1 // pred_region
      %s38 = ssub.s32 6144, 6144
      %39 = vsyncadd [#allocation3], %s38
      %s40 = sshll.u32 [#allocation2], 4
      %s41 = int_to_ptr.vmem [resolvable:$true] %s40
      %46 = dma.hbm_to_vmem [thread:$0]  %s6, 6144, %s41, [#allocation3], 384, 384, 24
    $region29: #{tpu_custom_call.1} parent=1 // pred_fallthru
      _
    // Predicated region
    $region30: #{tpu_custom_call.1} parent=1 // pred_check
      _
    $region31: #{tpu_custom_call.1} parent=1 // pred_check_branch
      %48 = sbr.rel (0) target = $region33
    $region32: #{tpu_custom_call.1} parent=1 // pred_region
      _
    $region33: #{tpu_custom_call.1} parent=1 // pred_fallthru
      _
    // Predicated region
    $region34: #{tpu_custom_call.1} parent=1 // pred_check
      _
    $region35: #{tpu_custom_call.1} parent=1 // pred_check_branch
      %50 = sbr.rel (0) target = $region37
    $region36: #{tpu_custom_call.1} parent=1 // pred_region
      _
    $region37: #{tpu_custom_call.1} parent=1 // pred_fallthru
      _
    // Predicated region
    $region38: #{tpu_custom_call.1} parent=1 // pred_check
      _
    $region39: #{tpu_custom_call.1} parent=1 // pred_check_branch
      %52 = sbr.rel (0) target = $region41
    $region40: #{tpu_custom_call.1} parent=1 // pred_region
      %s54 = ssub.s32 6144, 6144
      %55 = vsyncadd [#allocation6], %s54
      %s56 = sshll.u32 [#allocation5], 4
      %s57 = int_to_ptr.vmem [resolvable:$true] %s56
      %62 = dma.hbm_to_vmem [thread:$0]  %s9, 6144, %s57, [#allocation6], 384, 384, 24
    $region41: #{tpu_custom_call.1} parent=1 // pred_fallthru
      _
    // Predicated region
    $region42: #{tpu_custom_call.1} parent=1 // pred_check
      _
    $region43: #{tpu_custom_call.1} parent=1 // pred_check_branch
      %64 = sbr.rel (0) target = $region45
    $region44: #{tpu_custom_call.1} parent=1 // pred_region
      %s66 = ssub.s32 6144, 6144
      %67 = vsyncadd [#allocation6], %s66
      %s68 = sshll.u32 [#allocation7], 4
      %s69 = int_to_ptr.vmem [resolvable:$true] %s68
      %74 = dma.hbm_to_vmem [thread:$0]  %s10, 6144, %s69, [#allocation6], 384, 384, 24
    $region45: #{tpu_custom_call.1} parent=1 // pred_fallthru
      _
    // Predicated region
    $region46: #{tpu_custom_call.1} parent=1 // pred_check
      _
    $region47: #{tpu_custom_call.1} parent=1 // pred_check_branch
      %76 = sbr.rel (0) target = $region49
    $region48: #{tpu_custom_call.1} parent=1 // pred_region
      _
    $region49: #{tpu_custom_call.1} parent=1 // pred_fallthru
      _
    // Predicated region
    $region50: #{tpu_custom_call.1} parent=1 // pred_check
      _
    $region51: #{tpu_custom_call.1} parent=1 // pred_check_branch
      %78 = sbr.rel (0) target = $region53
    $region52: #{tpu_custom_call.1} parent=1 // pred_region
      _
    $region53: #{tpu_custom_call.1} parent=1 // pred_fallthru
      _
    // Predicated region
    $region54: #{tpu_custom_call.1} parent=1 // pred_check
      _
    $region55: #{tpu_custom_call.1} parent=1 // pred_check_branch
      %80 = sbr.rel (0) target = $region57
    $region56: #{tpu_custom_call.1} parent=1 // pred_region
      _
    $region57: #{tpu_custom_call.1} parent=1 // pred_fallthru
      _
    // Predicated region
    $region58: #{tpu_custom_call.1} parent=1 // pred_check
      _
    $region59: #{tpu_custom_call.1} parent=1 // pred_check_branch
      %82 = sbr.rel (0) target = $region61
    $region60: #{tpu_custom_call.1} parent=1 // pred_region
      _
    $region61: #{tpu_custom_call.1} parent=1 // pred_fallthru
      _
    // Predicated region
    $region62: #{tpu_custom_call.1} parent=1 // pred_check
      _
    $region63: #{tpu_custom_call.1} parent=1 // pred_check_branch
      %84 = sbr.rel (0) target = $region65
    $region64: #{tpu_custom_call.1} parent=1 // pred_region
      %85 = dma.done [#allocation3], 6144
    $region65: #{tpu_custom_call.1} parent=1 // pred_fallthru
      _
    // Predicated region
    $region66: #{tpu_custom_call.1} parent=1 // pred_check
      _
    $region67: #{tpu_custom_call.1} parent=1 // pred_check_branch
      %87 = sbr.rel (0) target = $region69
    $region68: #{tpu_custom_call.1} parent=1 // pred_region
      %88 = dma.done [#allocation6], 6144
    $region69: #{tpu_custom_call.1} parent=1 // pred_fallthru
      _
    // Predicated region
    $region70: #{tpu_custom_call.1} parent=1 // pred_check
      _
    $region71: #{tpu_custom_call.1} parent=1 // pred_check_branch
      %90 = sbr.rel (0) target = $region73
    $region72: #{tpu_custom_call.1} parent=1 // pred_region
      %91 = dma.done [#allocation6], 6144
    $region73: #{tpu_custom_call.1} parent=1 // pred_fallthru
      _
    %v92 = vld [vmem:[%s5] sm:$0xff]
    %v93 = vld [vmem:[%s5 + $0x8] sm:$0xff]
    %v94 = vld [vmem:[%s5 + $0x10] sm:$0xff]
    %v95 = vld [vmem:[%s5 + $0x18] sm:$0xff]
    %v96 = vld [vmem:[%s5 + $0x20] sm:$0xff]
    %v97 = vld [vmem:[%s5 + $0x28] sm:$0xff]
    %v98 = vld [vmem:[%s5 + $0x30] sm:$0xff]
    %v99 = vld [vmem:[%s5 + $0x38] sm:$0xff]
    %v100 = vld [vmem:[%s5 + $0x40] sm:$0xff]
    %v101 = vld [vmem:[%s5 + $0x48] sm:$0xff]
    %v102 = vld [vmem:[%s5 + $0x50] sm:$0xff]
    %v103 = vld [vmem:[%s5 + $0x58] sm:$0xff]
    %v104 = vld [vmem:[#allocation2] sm:$0xff]
    %v105 = vld [vmem:[#allocation2 + $0x8] sm:$0xff]
    %v106 = vld [vmem:[#allocation2 + $0x10] sm:$0xff]
    %v107 = vld [vmem:[#allocation2 + $0x18] sm:$0xff]
    %v108 = vld [vmem:[#allocation2 + $0x20] sm:$0xff]
    %v109 = vld [vmem:[#allocation2 + $0x28] sm:$0xff]
    %v110 = vld [vmem:[#allocation2 + $0x30] sm:$0xff]
    %v111 = vld [vmem:[#allocation2 + $0x38] sm:$0xff]
    %v112 = vld [vmem:[#allocation2 + $0x40] sm:$0xff]
    %v113 = vld [vmem:[#allocation2 + $0x48] sm:$0xff]
    %v114 = vld [vmem:[#allocation2 + $0x50] sm:$0xff]
    %v115 = vld [vmem:[#allocation2 + $0x58] sm:$0xff]
    %v116 = vld [vmem:[#allocation2 + $0x60] sm:$0xff]
    %v117 = vld [vmem:[#allocation2 + $0x68] sm:$0xff]
    %v118 = vld [vmem:[#allocation2 + $0x70] sm:$0xff]
    %v119 = vld [vmem:[#allocation2 + $0x78] sm:$0xff]
    %v120 = vld [vmem:[#allocation2 + $0x80] sm:$0xff]
    %v121 = vld [vmem:[#allocation2 + $0x88] sm:$0xff]
    %v122 = vld [vmem:[#allocation2 + $0x90] sm:$0xff]
    %v123 = vld [vmem:[#allocation2 + $0x98] sm:$0xff]
    %v124 = vld [vmem:[#allocation2 + $0xa0] sm:$0xff]
    %v125 = vld [vmem:[#allocation2 + $0xa8] sm:$0xff]
    %v126 = vld [vmem:[#allocation2 + $0xb0] sm:$0xff]
    %v127 = vld [vmem:[#allocation2 + $0xb8] sm:$0xff]
    %v128 = vld [vmem:[#allocation2 + $0xc0] sm:$0xff]
    %v129 = vld [vmem:[#allocation2 + $0xc8] sm:$0xff]
    %v130 = vld [vmem:[#allocation2 + $0xd0] sm:$0xff]
    %v131 = vld [vmem:[#allocation2 + $0xd8] sm:$0xff]
    %v132 = vld [vmem:[#allocation2 + $0xe0] sm:$0xff]
    %v133 = vld [vmem:[#allocation2 + $0xe8] sm:$0xff]
    %v134 = vld [vmem:[#allocation2 + $0xf0] sm:$0xff]
    %v135 = vld [vmem:[#allocation2 + $0xf8] sm:$0xff]
    %v136 = vld [vmem:[#allocation2 + $0x100] sm:$0xff]
    %v137 = vld [vmem:[#allocation2 + $0x108] sm:$0xff]
    %v138 = vld [vmem:[#allocation2 + $0x110] sm:$0xff]
    %v139 = vld [vmem:[#allocation2 + $0x118] sm:$0xff]
    %v140 = vld [vmem:[#allocation2 + $0x120] sm:$0xff]
    %v141 = vld [vmem:[#allocation2 + $0x128] sm:$0xff]
    %v142 = vld [vmem:[#allocation2 + $0x130] sm:$0xff]
    %v143 = vld [vmem:[#allocation2 + $0x138] sm:$0xff]
    %v144 = vld [vmem:[#allocation2 + $0x140] sm:$0xff]
    %v145 = vld [vmem:[#allocation2 + $0x148] sm:$0xff]
    %v146 = vld [vmem:[#allocation2 + $0x150] sm:$0xff]
    %v147 = vld [vmem:[#allocation2 + $0x158] sm:$0xff]
    %v148 = vld [vmem:[#allocation2 + $0x160] sm:$0xff]
    %v149 = vld [vmem:[#allocation2 + $0x168] sm:$0xff]
    %v150 = vld [vmem:[#allocation2 + $0x170] sm:$0xff]
    %v151 = vld [vmem:[#allocation2 + $0x178] sm:$0xff]
    %v152 = vld [vmem:[%s7] sm:$0x7]
    %v153 = vld [vmem:[%s8] sm:$0x1]
    %v154 = vld [vmem:[#allocation5] sm:$0xff]
    %v155 = vld [vmem:[#allocation5 + $0x8] sm:$0xff]
    %v156 = vld [vmem:[#allocation5 + $0x10] sm:$0xff]
    %v157 = vld [vmem:[#allocation5 + $0x18] sm:$0xff]
    %v158 = vld [vmem:[#allocation5 + $0x20] sm:$0xff]
    %v159 = vld [vmem:[#allocation5 + $0x28] sm:$0xff]
    %v160 = vld [vmem:[#allocation5 + $0x30] sm:$0xff]
    %v161 = vld [vmem:[#allocation5 + $0x38] sm:$0xff]
    %v162 = vld [vmem:[#allocation5 + $0x40] sm:$0xff]
    %v163 = vld [vmem:[#allocation5 + $0x48] sm:$0xff]
    %v164 = vld [vmem:[#allocation5 + $0x50] sm:$0xff]
    %v165 = vld [vmem:[#allocation5 + $0x58] sm:$0xff]
    %v166 = vld [vmem:[#allocation5 + $0x60] sm:$0xff]
    %v167 = vld [vmem:[#allocation5 + $0x68] sm:$0xff]
    %v168 = vld [vmem:[#allocation5 + $0x70] sm:$0xff]
    %v169 = vld [vmem:[#allocation5 + $0x78] sm:$0xff]
    %v170 = vld [vmem:[#allocation5 + $0x80] sm:$0xff]
    %v171 = vld [vmem:[#allocation5 + $0x88] sm:$0xff]
    %v172 = vld [vmem:[#allocation5 + $0x90] sm:$0xff]
    %v173 = vld [vmem:[#allocation5 + $0x98] sm:$0xff]
    %v174 = vld [vmem:[#allocation5 + $0xa0] sm:$0xff]
    %v175 = vld [vmem:[#allocation5 + $0xa8] sm:$0xff]
    %v176 = vld [vmem:[#allocation5 + $0xb0] sm:$0xff]
    %v177 = vld [vmem:[#allocation5 + $0xb8] sm:$0xff]
    %v178 = vld [vmem:[#allocation5 + $0xc0] sm:$0xff]
    %v179 = vld [vmem:[#allocation5 + $0xc8] sm:$0xff]
    %v180 = vld [vmem:[#allocation5 + $0xd0] sm:$0xff]
    %v181 = vld [vmem:[#allocation5 + $0xd8] sm:$0xff]
    %v182 = vld [vmem:[#allocation5 + $0xe0] sm:$0xff]
    %v183 = vld [vmem:[#allocation5 + $0xe8] sm:$0xff]
    %v184 = vld [vmem:[#allocation5 + $0xf0] sm:$0xff]
    %v185 = vld [vmem:[#allocation5 + $0xf8] sm:$0xff]
    %v186 = vld [vmem:[#allocation5 + $0x100] sm:$0xff]
    %v187 = vld [vmem:[#allocation5 + $0x108] sm:$0xff]
    %v188 = vld [vmem:[#allocation5 + $0x110] sm:$0xff]
    %v189 = vld [vmem:[#allocation5 + $0x118] sm:$0xff]
    %v190 = vld [vmem:[#allocation5 + $0x120] sm:$0xff]
    %v191 = vld [vmem:[#allocation5 + $0x128] sm:$0xff]
    %v192 = vld [vmem:[#allocation5 + $0x130] sm:$0xff]
    %v193 = vld [vmem:[#allocation5 + $0x138] sm:$0xff]
    %v194 = vld [vmem:[#allocation5 + $0x140] sm:$0xff]
    %v195 = vld [vmem:[#allocation5 + $0x148] sm:$0xff]
    %v196 = vld [vmem:[#allocation5 + $0x150] sm:$0xff]
    %v197 = vld [vmem:[#allocation5 + $0x158] sm:$0xff]
    %v198 = vld [vmem:[#allocation5 + $0x160] sm:$0xff]
    %v199 = vld [vmem:[#allocation5 + $0x168] sm:$0xff]
    %v200 = vld [vmem:[#allocation5 + $0x170] sm:$0xff]
    %v201 = vld [vmem:[#allocation5 + $0x178] sm:$0xff]
    %v202 = vld [vmem:[#allocation7] sm:$0xff]
    %v203 = vld [vmem:[#allocation7 + $0x8] sm:$0xff]
    %v204 = vld [vmem:[#allocation7 + $0x10] sm:$0xff]
    %v205 = vld [vmem:[#allocation7 + $0x18] sm:$0xff]
    %v206 = vld [vmem:[#allocation7 + $0x20] sm:$0xff]
    %v207 = vld [vmem:[#allocation7 + $0x28] sm:$0xff]
    %v208 = vld [vmem:[#allocation7 + $0x30] sm:$0xff]
    %v209 = vld [vmem:[#allocation7 + $0x38] sm:$0xff]
    %v210 = vld [vmem:[#allocation7 + $0x40] sm:$0xff]
    %v211 = vld [vmem:[#allocation7 + $0x48] sm:$0xff]
    %v212 = vld [vmem:[#allocation7 + $0x50] sm:$0xff]
    %v213 = vld [vmem:[#allocation7 + $0x58] sm:$0xff]
    %v214 = vld [vmem:[#allocation7 + $0x60] sm:$0xff]
    %v215 = vld [vmem:[#allocation7 + $0x68] sm:$0xff]
    %v216 = vld [vmem:[#allocation7 + $0x70] sm:$0xff]
    %v217 = vld [vmem:[#allocation7 + $0x78] sm:$0xff]
    %v218 = vld [vmem:[#allocation7 + $0x80] sm:$0xff]
    %v219 = vld [vmem:[#allocation7 + $0x88] sm:$0xff]
    %v220 = vld [vmem:[#allocation7 + $0x90] sm:$0xff]
    %v221 = vld [vmem:[#allocation7 + $0x98] sm:$0xff]
    %v222 = vld [vmem:[#allocation7 + $0xa0] sm:$0xff]
    %v223 = vld [vmem:[#allocation7 + $0xa8] sm:$0xff]
    %v224 = vld [vmem:[#allocation7 + $0xb0] sm:$0xff]
    %v225 = vld [vmem:[#allocation7 + $0xb8] sm:$0xff]
    %v226 = vld [vmem:[#allocation7 + $0xc0] sm:$0xff]
    %v227 = vld [vmem:[#allocation7 + $0xc8] sm:$0xff]
    %v228 = vld [vmem:[#allocation7 + $0xd0] sm:$0xff]
    %v229 = vld [vmem:[#allocation7 + $0xd8] sm:$0xff]
    %v230 = vld [vmem:[#allocation7 + $0xe0] sm:$0xff]
    %v231 = vld [vmem:[#allocation7 + $0xe8] sm:$0xff]
    %v232 = vld [vmem:[#allocation7 + $0xf0] sm:$0xff]
    %v233 = vld [vmem:[#allocation7 + $0xf8] sm:$0xff]
    %v234 = vld [vmem:[#allocation7 + $0x100] sm:$0xff]
    %v235 = vld [vmem:[#allocation7 + $0x108] sm:$0xff]
    %v236 = vld [vmem:[#allocation7 + $0x110] sm:$0xff]
    %v237 = vld [vmem:[#allocation7 + $0x118] sm:$0xff]
    %v238 = vld [vmem:[#allocation7 + $0x120] sm:$0xff]
    %v239 = vld [vmem:[#allocation7 + $0x128] sm:$0xff]
    %v240 = vld [vmem:[#allocation7 + $0x130] sm:$0xff]
    %v241 = vld [vmem:[#allocation7 + $0x138] sm:$0xff]
    %v242 = vld [vmem:[#allocation7 + $0x140] sm:$0xff]
    %v243 = vld [vmem:[#allocation7 + $0x148] sm:$0xff]
    %v244 = vld [vmem:[#allocation7 + $0x150] sm:$0xff]
    %v245 = vld [vmem:[#allocation7 + $0x158] sm:$0xff]
    %v246 = vld [vmem:[#allocation7 + $0x160] sm:$0xff]
    %v247 = vld [vmem:[#allocation7 + $0x168] sm:$0xff]
    %v248 = vld [vmem:[#allocation7 + $0x170] sm:$0xff]
    %v249 = vld [vmem:[#allocation7 + $0x178] sm:$0xff]
    %v250 = vld [vmem:[%s11] sm:$0x7]
    %v251 = vld [vmem:[%s12] sm:$0x1]
    %v252 = vld [vmem:[%s13] sm:$0xff]
    %v253 = vld [vmem:[%s13 + $0x8] sm:$0xff]
    %v254 = vld [vmem:[%s13 + $0x10] sm:$0xff]
    %v255 = vld [vmem:[%s13 + $0x18] sm:$0xff]
    %v256 = vld [vmem:[%s13 + $0x20] sm:$0xff]
    %v257 = vld [vmem:[%s13 + $0x28] sm:$0xff]
    %v258 = vld [vmem:[%s13 + $0x30] sm:$0xff]
    %v259 = vld [vmem:[%s13 + $0x38] sm:$0xff]
    %v260 = vld [vmem:[%s13 + $0x40] sm:$0xff]
    %v261 = vld [vmem:[%s13 + $0x48] sm:$0xff]
    %v262 = vld [vmem:[%s13 + $0x50] sm:$0xff]
    %v263 = vld [vmem:[%s13 + $0x58] sm:$0xff]
    %v264 = vld [vmem:[%s13 + $0x60] sm:$0xff]
    %v265 = vld [vmem:[%s13 + $0x68] sm:$0xff]
    %v266 = vld [vmem:[%s13 + $0x70] sm:$0xff]
    %v267 = vld [vmem:[%s13 + $0x78] sm:$0xff]
    %v268 = vld [vmem:[%s14] sm:$0x1]
    %v269 = vld [vmem:[%s1] sm:$0x3]
    %v270 = vld [vmem:[%s2] sm:$0xff]
    %v271 = vld [vmem:[%s2 + $0x8] sm:$0xff]
    %v272 = vld [vmem:[%s2 + $0x10] sm:$0xff]
    %v273 = vld [vmem:[%s2 + $0x18] sm:$0xff]
    %v274 = vld [vmem:[%s2 + $0x20] sm:$0xff]
    %v275 = vld [vmem:[%s2 + $0x28] sm:$0xff]
    %v276 = vld [vmem:[%s2 + $0x30] sm:$0xff]
    %v277 = vld [vmem:[%s2 + $0x38] sm:$0xff]
    %v278 = vld [vmem:[%s3] sm:$0x1]
    %v280 = vlaneseq
    %v281 = vshrl.u32 %v280, 7
    %v282 = vsub.s32 0, %v281
    %v283 = vrot.slane %v278, %v282
    %vm285 = vcmask 523264
    %v287 = vsel %vm285, %v269, 0
    %289 = vmatprep.subr.mxu0 0.0
    %290 = vmatpush1.msra.mxu0 %v270
    %291 = vmatprep.subr.mxu0 0.0
    %292 = vmatpush1.msra.mxu0 %v271
    %293 = vmatprep.subr.mxu0 0.0
    %294 = vmatpush1.msra.mxu0 %v272
    %295 = vmatprep.subr.mxu0 0.0
    %296 = vmatpush1.msra.mxu0 %v273
    %297 = vmatprep.subr.mxu0 0.0
    %298 = vmatpush1.msra.mxu0 %v274
    %299 = vmatprep.subr.mxu0 0.0
    %300 = vmatpush1.msra.mxu0 %v275
    %301 = vmatprep.subr.mxu0 0.0
    %302 = vmatpush1.msra.mxu0 %v276
    %303 = vmatprep.subr.mxu0 0.0
    %304 = vmatpush1.msra.mxu0 %v277
    %305 = vmatprep.subr.mxu0 0.0
    %306 = vmatpush1.msra.mxu0 0.0
    %307 = vmatprep.subr.mxu0 0.0
    %308 = vmatpush1.msra.mxu0 0.0
    %309 = vmatprep.subr.mxu0 0.0
    %310 = vmatpush1.msra.mxu0 0.0
    %311 = vmatprep.subr.mxu0 0.0
    %312 = vmatpush1.msra.mxu0 0.0
    %313 = vmatprep.subr.mxu0 0.0
    %314 = vmatpush1.msra.mxu0 0.0
    %315 = vmatprep.subr.mxu0 0.0
    %316 = vmatpush1.msra.mxu0 0.0
    %317 = vmatprep.subr.mxu0 0.0
    %318 = vmatpush1.msra.mxu0 0.0
    %319 = vmatprep.subr.mxu0 0.0
    %320 = vmatpush1.msra.mxu0 0.0
    %321 = vmatprep.subr.mxu0 0.0
    %322 = vmatpush1.msra.mxu0 0.0
    %323 = vmatprep.subr.mxu0 0.0
    %324 = vmatpush1.msra.mxu0 0.0
    %325 = vmatprep.subr.mxu0 0.0
    %326 = vmatpush1.msra.mxu0 0.0
    %327 = vmatprep.subr.mxu0 0.0
    %328 = vmatpush1.msra.mxu0 0.0
    %329 = vmatprep.subr.mxu0 0.0
    %330 = vmatpush1.msra.mxu0 0.0
    %331 = vmatprep.subr.mxu0 0.0
    %332 = vmatpush1.msra.mxu0 0.0
    %333 = vmatprep.subr.mxu0 0.0
    %334 = vmatpush1.msra.mxu0 0.0
    %335 = vmatprep.subr.mxu0 0.0
    %336 = vmatpush1.msra.mxu0 0.0
    %337 = vmatprep.subr.mxu0 0.0
    %338 = vmatpush1.msra.mxu0 0.0
    %339 = vmatprep.subr.mxu0 0.0
    %340 = vmatpush1.msra.mxu0 0.0
    %341 = vmatprep.subr.mxu0 0.0
    %342 = vmatpush1.msra.mxu0 0.0
    %343 = vmatprep.subr.mxu0 0.0
    %344 = vmatpush1.msra.mxu0 0.0
    %345 = vmatprep.subr.mxu0 0.0
    %346 = vmatpush1.msra.mxu0 0.0
    %347 = vmatprep.subr.mxu0 0.0
    %348 = vmatpush1.msra.mxu0 0.0
    %349 = vmatprep.subr.mxu0 0.0
    %350 = vmatpush1.msra.mxu0 0.0
    %351 = vmatprep.subr.mxu0 0.0
    %352 = vmatpush1.msra.mxu0 0.0
    %353 = vmatprep.mubr.f32.mxu0 0.0
    %354 = vmatmul.mubr.f32.gmra.mrb[0].mxu0 %v287
    %v355 = vpop.f32.mrb[0].mxu0
    %v356 = vadd.f32 %v283, %v355
    %v357 = vpop.f32.mrb[0].mxu0
    %358 = vdwg.mxu0
    %v359 = vld [vmem:[%s4] sm:$0x3]
    %s360 = scalar_lea.vmem %s4, 2
    %v361 = vld [vmem:[%s360] sm:$0x3]
    %v363 = vlaneseq
    %v364 = vshrl.u32 %v363, 7
    %v365 = vsub.s32 0, %v364
    %v366 = vrot.slane %v152, %v365
    %v367 = vlaneseq
    %v368 = vshrl.u32 %v367, 7
    %v369 = vsub.s32 1, %v368
    %v370 = vrot.slane %v152, %v369
    %v371 = vlaneseq
    %v372 = vshrl.u32 %v371, 7
    %v373 = vsub.s32 2, %v372
    %v374 = vrot.slane %v152, %v373
    %vm378 = vcmask 261120
    %v380 = vsel %vm378, %v356, 0
    %382 = vmatprep.subr.mxu0 %v93
    %383 = vmatpush1.msra.mxu0 %v92
    %384 = vmatprep.subr.mxu0 %v96
    %385 = vmatpush1.msra.mxu0 %v95
    %386 = vmatprep.subr.mxu0 %v99
    %387 = vmatpush1.msra.mxu0 %v98
    %388 = vmatprep.subr.mxu0 %v102
    %389 = vmatpush1.msra.mxu0 %v101
    %390 = vmatprep.subr.mxu0 0.0
    %391 = vmatpush1.msra.mxu0 0.0
    %392 = vmatprep.subr.mxu0 0.0
    %393 = vmatpush1.msra.mxu0 0.0
    %394 = vmatprep.subr.mxu0 0.0
    %395 = vmatpush1.msra.mxu0 0.0
    %396 = vmatprep.subr.mxu0 0.0
    %397 = vmatpush1.msra.mxu0 0.0
    %398 = vmatprep.subr.mxu0 0.0
    %399 = vmatpush1.msra.mxu0 0.0
    %400 = vmatprep.subr.mxu0 0.0
    %401 = vmatpush1.msra.mxu0 0.0
    %402 = vmatprep.subr.mxu0 0.0
    %403 = vmatpush1.msra.mxu0 0.0
    %404 = vmatprep.subr.mxu0 0.0
    %405 = vmatpush1.msra.mxu0 0.0
    %406 = vmatprep.subr.mxu0 0.0
    %407 = vmatpush1.msra.mxu0 0.0
    %408 = vmatprep.subr.mxu0 0.0
    %409 = vmatpush1.msra.mxu0 0.0
    %410 = vmatprep.subr.mxu0 0.0
    %411 = vmatpush1.msra.mxu0 0.0
    %412 = vmatprep.subr.mxu0 0.0
    %413 = vmatpush1.msra.mxu0 0.0
    %414 = vmatprep.subr.mxu0 0.0
    %415 = vmatpush1.msra.mxu0 0.0
    %416 = vmatprep.subr.mxu0 0.0
    %417 = vmatpush1.msra.mxu0 0.0
    %418 = vmatprep.subr.mxu0 0.0
    %419 = vmatpush1.msra.mxu0 0.0
    %420 = vmatprep.subr.mxu0 0.0
    %421 = vmatpush1.msra.mxu0 0.0
    %422 = vmatprep.subr.mxu0 0.0
    %423 = vmatpush1.msra.mxu0 0.0
    %424 = vmatprep.subr.mxu0 0.0
    %425 = vmatpush1.msra.mxu0 0.0
    %426 = vmatprep.subr.mxu0 0.0
    %427 = vmatpush1.msra.mxu0 0.0
    %428 = vmatprep.subr.mxu0 0.0
    %429 = vmatpush1.msra.mxu0 0.0
    %430 = vmatprep.subr.mxu0 0.0
    %431 = vmatpush1.msra.mxu0 0.0
    %432 = vmatprep.subr.mxu0 0.0
    %433 = vmatpush1.msra.mxu0 0.0
    %434 = vmatprep.subr.mxu0 0.0
    %435 = vmatpush1.msra.mxu0 0.0
    %436 = vmatprep.subr.mxu0 0.0
    %437 = vmatpush1.msra.mxu0 0.0
    %438 = vmatprep.subr.mxu0 0.0
    %439 = vmatpush1.msra.mxu0 0.0
    %440 = vmatprep.subr.mxu0 0.0
    %441 = vmatpush1.msra.mxu0 0.0
    %442 = vmatprep.subr.mxu0 0.0
    %443 = vmatpush1.msra.mxu0 0.0
    %444 = vmatprep.subr.mxu0 0.0
    %445 = vmatpush1.msra.mxu0 0.0
    %446 = vmatprep.mubr.f32.mxu0 0.0
    %447 = vmatmul.mubr.f32.gmra.mrb[0].mxu0 %v380
    %v448 = vpop.f32.mrb[0].mxu0
    %v449 = vadd.f32 %v366, %v448
    %v450 = vpop.f32.mrb[0].mxu0
    %v451 = vadd.f32 %v370, %v450
    %452 = vdwg.mxu0
    %453 = vmatprep.subr.mxu0 0.0
    %454 = vmatpush1.msra.mxu0 %v94
    %455 = vmatprep.subr.mxu0 0.0
    %456 = vmatpush1.msra.mxu0 %v97
    %457 = vmatprep.subr.mxu0 0.0
    %458 = vmatpush1.msra.mxu0 %v100
    %459 = vmatprep.subr.mxu0 0.0
    %460 = vmatpush1.msra.mxu0 %v103
    %461 = vmatprep.subr.mxu0 0.0
    %462 = vmatpush1.msra.mxu0 0.0
    %463 = vmatprep.subr.mxu0 0.0
    %464 = vmatpush1.msra.mxu0 0.0
    %465 = vmatprep.subr.mxu0 0.0
    %466 = vmatpush1.msra.mxu0 0.0
    %467 = vmatprep.subr.mxu0 0.0
    %468 = vmatpush1.msra.mxu0 0.0
    %469 = vmatprep.subr.mxu0 0.0
    %470 = vmatpush1.msra.mxu0 0.0
    %471 = vmatprep.subr.mxu0 0.0
    %472 = vmatpush1.msra.mxu0 0.0
    %473 = vmatprep.subr.mxu0 0.0
    %474 = vmatpush1.msra.mxu0 0.0
    %475 = vmatprep.subr.mxu0 0.0
    %476 = vmatpush1.msra.mxu0 0.0
    %477 = vmatprep.subr.mxu0 0.0
    %478 = vmatpush1.msra.mxu0 0.0
    %479 = vmatprep.subr.mxu0 0.0
    %480 = vmatpush1.msra.mxu0 0.0
    %481 = vmatprep.subr.mxu0 0.0
    %482 = vmatpush1.msra.mxu0 0.0
    %483 = vmatprep.subr.mxu0 0.0
    %484 = vmatpush1.msra.mxu0 0.0
    %485 = vmatprep.subr.mxu0 0.0
    %486 = vmatpush1.msra.mxu0 0.0
    %487 = vmatprep.subr.mxu0 0.0
    %488 = vmatpush1.msra.mxu0 0.0
    %489 = vmatprep.subr.mxu0 0.0
    %490 = vmatpush1.msra.mxu0 0.0
    %491 = vmatprep.subr.mxu0 0.0
    %492 = vmatpush1.msra.mxu0 0.0
    %493 = vmatprep.subr.mxu0 0.0
    %494 = vmatpush1.msra.mxu0 0.0
    %495 = vmatprep.subr.mxu0 0.0
    %496 = vmatpush1.msra.mxu0 0.0
    %497 = vmatprep.subr.mxu0 0.0
    %498 = vmatpush1.msra.mxu0 0.0
    %499 = vmatprep.subr.mxu0 0.0
    %500 = vmatpush1.msra.mxu0 0.0
    %501 = vmatprep.subr.mxu0 0.0
    %502 = vmatpush1.msra.mxu0 0.0
    %503 = vmatprep.subr.mxu0 0.0
    %504 = vmatpush1.msra.mxu0 0.0
    %505 = vmatprep.subr.mxu0 0.0
    %506 = vmatpush1.msra.mxu0 0.0
    %507 = vmatprep.subr.mxu0 0.0
    %508 = vmatpush1.msra.mxu0 0.0
    %509 = vmatprep.subr.mxu0 0.0
    %510 = vmatpush1.msra.mxu0 0.0
    %511 = vmatprep.subr.mxu0 0.0
    %512 = vmatpush1.msra.mxu0 0.0
    %513 = vmatprep.subr.mxu0 0.0
    %514 = vmatpush1.msra.mxu0 0.0
    %515 = vmatprep.subr.mxu0 0.0
    %516 = vmatpush1.msra.mxu0 0.0
    %517 = vmatprep.mubr.f32.mxu0 0.0
    %518 = vmatmul.mubr.f32.gmra.mrb[0].mxu0 %v380
    %v519 = vpop.f32.mrb[0].mxu0
    %v520 = vadd.f32 %v374, %v519
    %v521 = vpop.f32.mrb[0].mxu0
    %522 = vdwg.mxu0
    %523 = vmatprep.subr.mxu0 %v105
    %524 = vmatpush1.msra.mxu0 %v104
    %525 = vmatprep.subr.mxu0 %v108
    %526 = vmatpush1.msra.mxu0 %v107
    %527 = vmatprep.subr.mxu0 %v111
    %528 = vmatpush1.msra.mxu0 %v110
    %529 = vmatprep.subr.mxu0 %v114
    %530 = vmatpush1.msra.mxu0 %v113
    %531 = vmatprep.subr.mxu0 %v117
    %532 = vmatpush1.msra.mxu0 %v116
    %533 = vmatprep.subr.mxu0 %v120
    %534 = vmatpush1.msra.mxu0 %v119
    %535 = vmatprep.subr.mxu0 %v123
    %536 = vmatpush1.msra.mxu0 %v122
    %537 = vmatprep.subr.mxu0 %v126
    %538 = vmatpush1.msra.mxu0 %v125
    %539 = vmatprep.subr.mxu0 %v129
    %540 = vmatpush1.msra.mxu0 %v128
    %541 = vmatprep.subr.mxu0 %v132
    %542 = vmatpush1.msra.mxu0 %v131
    %543 = vmatprep.subr.mxu0 %v135
    %544 = vmatpush1.msra.mxu0 %v134
    %545 = vmatprep.subr.mxu0 %v138
    %546 = vmatpush1.msra.mxu0 %v137
    %547 = vmatprep.subr.mxu0 %v141
    %548 = vmatpush1.msra.mxu0 %v140
    %549 = vmatprep.subr.mxu0 %v144
    %550 = vmatpush1.msra.mxu0 %v143
    %551 = vmatprep.subr.mxu0 %v147
    %552 = vmatpush1.msra.mxu0 %v146
    %553 = vmatprep.subr.mxu0 %v150
    %554 = vmatpush1.msra.mxu0 %v149
    %555 = vmatprep.subr.mxu0 0.0
    %556 = vmatpush1.msra.mxu0 0.0
    %557 = vmatprep.subr.mxu0 0.0
    %558 = vmatpush1.msra.mxu0 0.0
    %559 = vmatprep.subr.mxu0 0.0
    %560 = vmatpush1.msra.mxu0 0.0
    %561 = vmatprep.subr.mxu0 0.0
    %562 = vmatpush1.msra.mxu0 0.0
    %563 = vmatprep.subr.mxu0 0.0
    %564 = vmatpush1.msra.mxu0 0.0
    %565 = vmatprep.subr.mxu0 0.0
    %566 = vmatpush1.msra.mxu0 0.0
    %567 = vmatprep.subr.mxu0 0.0
    %568 = vmatpush1.msra.mxu0 0.0
    %569 = vmatprep.subr.mxu0 0.0
    %570 = vmatpush1.msra.mxu0 0.0
    %571 = vmatprep.subr.mxu0 0.0
    %572 = vmatpush1.msra.mxu0 0.0
    %573 = vmatprep.subr.mxu0 0.0
    %574 = vmatpush1.msra.mxu0 0.0
    %575 = vmatprep.subr.mxu0 0.0
    %576 = vmatpush1.msra.mxu0 0.0
    %577 = vmatprep.subr.mxu0 0.0
    %578 = vmatpush1.msra.mxu0 0.0
    %579 = vmatprep.subr.mxu0 0.0
    %580 = vmatpush1.msra.mxu0 0.0
    %581 = vmatprep.subr.mxu0 0.0
    %582 = vmatpush1.msra.mxu0 0.0
    %583 = vmatprep.subr.mxu0 0.0
    %584 = vmatpush1.msra.mxu0 0.0
    %585 = vmatprep.subr.mxu0 0.0
    %586 = vmatpush1.msra.mxu0 0.0
    %587 = vmatprep.mubr.f32.mxu0 0.0
    %588 = vmatmul.mubr.f32.gmra.mrb[0].mxu0 %v359
    %v589 = vpop.f32.mrb[0].mxu0
    %v590 = vadd.f32 0.0, %v589
    %v591 = vpop.f32.mrb[0].mxu0
    %v592 = vadd.f32 0.0, %v591
    %593 = vdwg.mxu0
    %594 = vmatprep.subr.mxu0 0.0
    %595 = vmatpush1.msra.mxu0 %v106
    %596 = vmatprep.subr.mxu0 0.0
    %597 = vmatpush1.msra.mxu0 %v109
    %598 = vmatprep.subr.mxu0 0.0
    %599 = vmatpush1.msra.mxu0 %v112
    %600 = vmatprep.subr.mxu0 0.0
    %601 = vmatpush1.msra.mxu0 %v115
    %602 = vmatprep.subr.mxu0 0.0
    %603 = vmatpush1.msra.mxu0 %v118
    %604 = vmatprep.subr.mxu0 0.0
    %605 = vmatpush1.msra.mxu0 %v121
    %606 = vmatprep.subr.mxu0 0.0
    %607 = vmatpush1.msra.mxu0 %v124
    %608 = vmatprep.subr.mxu0 0.0
    %609 = vmatpush1.msra.mxu0 %v127
    %610 = vmatprep.subr.mxu0 0.0
    %611 = vmatpush1.msra.mxu0 %v130
    %612 = vmatprep.subr.mxu0 0.0
    %613 = vmatpush1.msra.mxu0 %v133
    %614 = vmatprep.subr.mxu0 0.0
    %615 = vmatpush1.msra.mxu0 %v136
    %616 = vmatprep.subr.mxu0 0.0
    %617 = vmatpush1.msra.mxu0 %v139
    %618 = vmatprep.subr.mxu0 0.0
    %619 = vmatpush1.msra.mxu0 %v142
    %620 = vmatprep.subr.mxu0 0.0
    %621 = vmatpush1.msra.mxu0 %v145
    %622 = vmatprep.subr.mxu0 0.0
    %623 = vmatpush1.msra.mxu0 %v148
    %624 = vmatprep.subr.mxu0 0.0
    %625 = vmatpush1.msra.mxu0 %v151
    %626 = vmatprep.subr.mxu0 0.0
    %627 = vmatpush1.msra.mxu0 0.0
    %628 = vmatprep.subr.mxu0 0.0
    %629 = vmatpush1.msra.mxu0 0.0
    %630 = vmatprep.subr.mxu0 0.0
    %631 = vmatpush1.msra.mxu0 0.0
    %632 = vmatprep.subr.mxu0 0.0
    %633 = vmatpush1.msra.mxu0 0.0
    %634 = vmatprep.subr.mxu0 0.0
    %635 = vmatpush1.msra.mxu0 0.0
    %636 = vmatprep.subr.mxu0 0.0
    %637 = vmatpush1.msra.mxu0 0.0
    %638 = vmatprep.subr.mxu0 0.0
    %639 = vmatpush1.msra.mxu0 0.0
    %640 = vmatprep.subr.mxu0 0.0
    %641 = vmatpush1.msra.mxu0 0.0
    %642 = vmatprep.subr.mxu0 0.0
    %643 = vmatpush1.msra.mxu0 0.0
    %644 = vmatprep.subr.mxu0 0.0
    %645 = vmatpush1.msra.mxu0 0.0
    %646 = vmatprep.subr.mxu0 0.0
    %647 = vmatpush1.msra.mxu0 0.0
    %648 = vmatprep.subr.mxu0 0.0
    %649 = vmatpush1.msra.mxu0 0.0
    %650 = vmatprep.subr.mxu0 0.0
    %651 = vmatpush1.msra.mxu0 0.0
    %652 = vmatprep.subr.mxu0 0.0
    %653 = vmatpush1.msra.mxu0 0.0
    %654 = vmatprep.subr.mxu0 0.0
    %655 = vmatpush1.msra.mxu0 0.0
    %656 = vmatprep.subr.mxu0 0.0
    %657 = vmatpush1.msra.mxu0 0.0
    %658 = vmatprep.mubr.f32.mxu0 0.0
    %659 = vmatmul.mubr.f32.gmra.mrb[0].mxu0 %v359
    %v660 = vpop.f32.mrb[0].mxu0
    %v661 = vadd.f32 0.0, %v660
    %v662 = vpop.f32.mrb[0].mxu0
    %663 = vdwg.mxu0
    %v664 = vadd.f32 %v449, %v590
    %v665 = vxor.u32 %v664, 2147483648
    %v666 = vmul.f32 %v665, 1.442695
    %v667 = vpow.pop %v666
    %v668 = vadd.f32 %v667, 1.0
    %v669 = vrcp.pop %v668
    %v670 = vmul.f32 1.0, %v669
    %v671 = vadd.f32 %v451, %v592
    %v672 = vxor.u32 %v671, 2147483648
    %v673 = vmul.f32 %v672, 1.442695
    %v674 = vpow.pop %v673
    %v675 = vadd.f32 %v674, 1.0
    %v676 = vrcp.pop %v675
    %v677 = vmul.f32 1.0, %v676
    %v679 = vlaneseq
    %v680 = vshrl.u32 %v679, 7
    %v681 = vsub.s32 0, %v680
    %v682 = vrot.slane %v153, %v681
    %v684 = vadd.f32 %v661, %v682
    %v685 = vmul.f32 %v670, %v684
    %v686 = vadd.f32 %v520, %v685
    %v687 = vtanh.pop %v686
    %v688 = vsub.f32 1.0, %v677
    %v689 = vmul.f32 %v688, %v687
    %v690 = vmul.f32 %v677, %v359
    %v691 = vadd.f32 %v689, %v690
    %v693 = vlaneseq
    %v694 = vshrl.u32 %v693, 7
    %v695 = vsub.s32 0, %v694
    %v696 = vrot.slane %v250, %v695
    %v697 = vlaneseq
    %v698 = vshrl.u32 %v697, 7
    %v699 = vsub.s32 1, %v698
    %v700 = vrot.slane %v250, %v699
    %v701 = vlaneseq
    %v702 = vshrl.u32 %v701, 7
    %v703 = vsub.s32 2, %v702
    %v704 = vrot.slane %v250, %v703
    %708 = vmatprep.subr.mxu0 %v155
    %709 = vmatpush1.msra.mxu0 %v154
    %710 = vmatprep.subr.mxu0 %v158
    %711 = vmatpush1.msra.mxu0 %v157
    %712 = vmatprep.subr.mxu0 %v161
    %713 = vmatpush1.msra.mxu0 %v160
    %714 = vmatprep.subr.mxu0 %v164
    %715 = vmatpush1.msra.mxu0 %v163
    %716 = vmatprep.subr.mxu0 %v167
    %717 = vmatpush1.msra.mxu0 %v166
    %718 = vmatprep.subr.mxu0 %v170
    %719 = vmatpush1.msra.mxu0 %v169
    %720 = vmatprep.subr.mxu0 %v173
    %721 = vmatpush1.msra.mxu0 %v172
    %722 = vmatprep.subr.mxu0 %v176
    %723 = vmatpush1.msra.mxu0 %v175
    %724 = vmatprep.subr.mxu0 %v179
    %725 = vmatpush1.msra.mxu0 %v178
    %726 = vmatprep.subr.mxu0 %v182
    %727 = vmatpush1.msra.mxu0 %v181
    %728 = vmatprep.subr.mxu0 %v185
    %729 = vmatpush1.msra.mxu0 %v184
    %730 = vmatprep.subr.mxu0 %v188
    %731 = vmatpush1.msra.mxu0 %v187
    %732 = vmatprep.subr.mxu0 %v191
    %733 = vmatpush1.msra.mxu0 %v190
    %734 = vmatprep.subr.mxu0 %v194
    %735 = vmatpush1.msra.mxu0 %v193
    %736 = vmatprep.subr.mxu0 %v197
    %737 = vmatpush1.msra.mxu0 %v196
    %738 = vmatprep.subr.mxu0 %v200
    %739 = vmatpush1.msra.mxu0 %v199
    %740 = vmatprep.subr.mxu0 0.0
    %741 = vmatpush1.msra.mxu0 0.0
    %742 = vmatprep.subr.mxu0 0.0
    %743 = vmatpush1.msra.mxu0 0.0
    %744 = vmatprep.subr.mxu0 0.0
    %745 = vmatpush1.msra.mxu0 0.0
    %746 = vmatprep.subr.mxu0 0.0
    %747 = vmatpush1.msra.mxu0 0.0
    %748 = vmatprep.subr.mxu0 0.0
    %749 = vmatpush1.msra.mxu0 0.0
    %750 = vmatprep.subr.mxu0 0.0
    %751 = vmatpush1.msra.mxu0 0.0
    %752 = vmatprep.subr.mxu0 0.0
    %753 = vmatpush1.msra.mxu0 0.0
    %754 = vmatprep.subr.mxu0 0.0
    %755 = vmatpush1.msra.mxu0 0.0
    %756 = vmatprep.subr.mxu0 0.0
    %757 = vmatpush1.msra.mxu0 0.0
    %758 = vmatprep.subr.mxu0 0.0
    %759 = vmatpush1.msra.mxu0 0.0
    %760 = vmatprep.subr.mxu0 0.0
    %761 = vmatpush1.msra.mxu0 0.0
    %762 = vmatprep.subr.mxu0 0.0
    %763 = vmatpush1.msra.mxu0 0.0
    %764 = vmatprep.subr.mxu0 0.0
    %765 = vmatpush1.msra.mxu0 0.0
    %766 = vmatprep.subr.mxu0 0.0
    %767 = vmatpush1.msra.mxu0 0.0
    %768 = vmatprep.subr.mxu0 0.0
    %769 = vmatpush1.msra.mxu0 0.0
    %770 = vmatprep.subr.mxu0 0.0
    %771 = vmatpush1.msra.mxu0 0.0
    %772 = vmatprep.mubr.f32.mxu0 0.0
    %773 = vmatmul.mubr.f32.gmra.mrb[0].mxu0 %v691
    %v774 = vpop.f32.mrb[0].mxu0
    %v775 = vadd.f32 %v696, %v774
    %v776 = vpop.f32.mrb[0].mxu0
    %v777 = vadd.f32 %v700, %v776
    %778 = vdwg.mxu0
    %779 = vmatprep.subr.mxu0 0.0
    %780 = vmatpush1.msra.mxu0 %v156
    %781 = vmatprep.subr.mxu0 0.0
    %782 = vmatpush1.msra.mxu0 %v159
    %783 = vmatprep.subr.mxu0 0.0
    %784 = vmatpush1.msra.mxu0 %v162
    %785 = vmatprep.subr.mxu0 0.0
    %786 = vmatpush1.msra.mxu0 %v165
    %787 = vmatprep.subr.mxu0 0.0
    %788 = vmatpush1.msra.mxu0 %v168
    %789 = vmatprep.subr.mxu0 0.0
    %790 = vmatpush1.msra.mxu0 %v171
    %791 = vmatprep.subr.mxu0 0.0
    %792 = vmatpush1.msra.mxu0 %v174
    %793 = vmatprep.subr.mxu0 0.0
    %794 = vmatpush1.msra.mxu0 %v177
    %795 = vmatprep.subr.mxu0 0.0
    %796 = vmatpush1.msra.mxu0 %v180
    %797 = vmatprep.subr.mxu0 0.0
    %798 = vmatpush1.msra.mxu0 %v183
    %799 = vmatprep.subr.mxu0 0.0
    %800 = vmatpush1.msra.mxu0 %v186
    %801 = vmatprep.subr.mxu0 0.0
    %802 = vmatpush1.msra.mxu0 %v189
    %803 = vmatprep.subr.mxu0 0.0
    %804 = vmatpush1.msra.mxu0 %v192
    %805 = vmatprep.subr.mxu0 0.0
    %806 = vmatpush1.msra.mxu0 %v195
    %807 = vmatprep.subr.mxu0 0.0
    %808 = vmatpush1.msra.mxu0 %v198
    %809 = vmatprep.subr.mxu0 0.0
    %810 = vmatpush1.msra.mxu0 %v201
    %811 = vmatprep.subr.mxu0 0.0
    %812 = vmatpush1.msra.mxu0 0.0
    %813 = vmatprep.subr.mxu0 0.0
    %814 = vmatpush1.msra.mxu0 0.0
    %815 = vmatprep.subr.mxu0 0.0
    %816 = vmatpush1.msra.mxu0 0.0
    %817 = vmatprep.subr.mxu0 0.0
    %818 = vmatpush1.msra.mxu0 0.0
    %819 = vmatprep.subr.mxu0 0.0
    %820 = vmatpush1.msra.mxu0 0.0
    %821 = vmatprep.subr.mxu0 0.0
    %822 = vmatpush1.msra.mxu0 0.0
    %823 = vmatprep.subr.mxu0 0.0
    %824 = vmatpush1.msra.mxu0 0.0
    %825 = vmatprep.subr.mxu0 0.0
    %826 = vmatpush1.msra.mxu0 0.0
    %827 = vmatprep.subr.mxu0 0.0
    %828 = vmatpush1.msra.mxu0 0.0
    %829 = vmatprep.subr.mxu0 0.0
    %830 = vmatpush1.msra.mxu0 0.0
    %831 = vmatprep.subr.mxu0 0.0
    %832 = vmatpush1.msra.mxu0 0.0
    %833 = vmatprep.subr.mxu0 0.0
    %834 = vmatpush1.msra.mxu0 0.0
    %835 = vmatprep.subr.mxu0 0.0
    %836 = vmatpush1.msra.mxu0 0.0
    %837 = vmatprep.subr.mxu0 0.0
    %838 = vmatpush1.msra.mxu0 0.0
    %839 = vmatprep.subr.mxu0 0.0
    %840 = vmatpush1.msra.mxu0 0.0
    %841 = vmatprep.subr.mxu0 0.0
    %842 = vmatpush1.msra.mxu0 0.0
    %843 = vmatprep.mubr.f32.mxu0 0.0
    %844 = vmatmul.mubr.f32.gmra.mrb[0].mxu0 %v691
    %v845 = vpop.f32.mrb[0].mxu0
    %v846 = vadd.f32 %v704, %v845
    %v847 = vpop.f32.mrb[0].mxu0
    %848 = vdwg.mxu0
    %849 = vmatprep.subr.mxu0 %v203
    %850 = vmatpush1.msra.mxu0 %v202
    %851 = vmatprep.subr.mxu0 %v206
    %852 = vmatpush1.msra.mxu0 %v205
    %853 = vmatprep.subr.mxu0 %v209
    %854 = vmatpush1.msra.mxu0 %v208
    %855 = vmatprep.subr.mxu0 %v212
    %856 = vmatpush1.msra.mxu0 %v211
    %857 = vmatprep.subr.mxu0 %v215
    %858 = vmatpush1.msra.mxu0 %v214
    %859 = vmatprep.subr.mxu0 %v218
    %860 = vmatpush1.msra.mxu0 %v217
    %861 = vmatprep.subr.mxu0 %v221
    %862 = vmatpush1.msra.mxu0 %v220
    %863 = vmatprep.subr.mxu0 %v224
    %864 = vmatpush1.msra.mxu0 %v223
    %865 = vmatprep.subr.mxu0 %v227
    %866 = vmatpush1.msra.mxu0 %v226
    %867 = vmatprep.subr.mxu0 %v230
    %868 = vmatpush1.msra.mxu0 %v229
    %869 = vmatprep.subr.mxu0 %v233
    %870 = vmatpush1.msra.mxu0 %v232
    %871 = vmatprep.subr.mxu0 %v236
    %872 = vmatpush1.msra.mxu0 %v235
    %873 = vmatprep.subr.mxu0 %v239
    %874 = vmatpush1.msra.mxu0 %v238
    %875 = vmatprep.subr.mxu0 %v242
    %876 = vmatpush1.msra.mxu0 %v241
    %877 = vmatprep.subr.mxu0 %v245
    %878 = vmatpush1.msra.mxu0 %v244
    %879 = vmatprep.subr.mxu0 %v248
    %880 = vmatpush1.msra.mxu0 %v247
    %881 = vmatprep.subr.mxu0 0.0
    %882 = vmatpush1.msra.mxu0 0.0
    %883 = vmatprep.subr.mxu0 0.0
    %884 = vmatpush1.msra.mxu0 0.0
    %885 = vmatprep.subr.mxu0 0.0
    %886 = vmatpush1.msra.mxu0 0.0
    %887 = vmatprep.subr.mxu0 0.0
    %888 = vmatpush1.msra.mxu0 0.0
    %889 = vmatprep.subr.mxu0 0.0
    %890 = vmatpush1.msra.mxu0 0.0
    %891 = vmatprep.subr.mxu0 0.0
    %892 = vmatpush1.msra.mxu0 0.0
    %893 = vmatprep.subr.mxu0 0.0
    %894 = vmatpush1.msra.mxu0 0.0
    %895 = vmatprep.subr.mxu0 0.0
    %896 = vmatpush1.msra.mxu0 0.0
    %897 = vmatprep.subr.mxu0 0.0
    %898 = vmatpush1.msra.mxu0 0.0
    %899 = vmatprep.subr.mxu0 0.0
    %900 = vmatpush1.msra.mxu0 0.0
    %901 = vmatprep.subr.mxu0 0.0
    %902 = vmatpush1.msra.mxu0 0.0
    %903 = vmatprep.subr.mxu0 0.0
    %904 = vmatpush1.msra.mxu0 0.0
    %905 = vmatprep.subr.mxu0 0.0
    %906 = vmatpush1.msra.mxu0 0.0
    %907 = vmatprep.subr.mxu0 0.0
    %908 = vmatpush1.msra.mxu0 0.0
    %909 = vmatprep.subr.mxu0 0.0
    %910 = vmatpush1.msra.mxu0 0.0
    %911 = vmatprep.subr.mxu0 0.0
    %912 = vmatpush1.msra.mxu0 0.0
    %913 = vmatprep.mubr.f32.mxu0 0.0
    %914 = vmatmul.mubr.f32.gmra.mrb[0].mxu0 %v361
    %v915 = vpop.f32.mrb[0].mxu0
    %v916 = vadd.f32 0.0, %v915
    %v917 = vpop.f32.mrb[0].mxu0
    %v918 = vadd.f32 0.0, %v917
    %919 = vdwg.mxu0
    %920 = vmatprep.subr.mxu0 0.0
    %921 = vmatpush1.msra.mxu0 %v204
    %922 = vmatprep.subr.mxu0 0.0
    %923 = vmatpush1.msra.mxu0 %v207
    %924 = vmatprep.subr.mxu0 0.0
    %925 = vmatpush1.msra.mxu0 %v210
    %926 = vmatprep.subr.mxu0 0.0
    %927 = vmatpush1.msra.mxu0 %v213
    %928 = vmatprep.subr.mxu0 0.0
    %929 = vmatpush1.msra.mxu0 %v216
    %930 = vmatprep.subr.mxu0 0.0
    %931 = vmatpush1.msra.mxu0 %v219
    %932 = vmatprep.subr.mxu0 0.0
    %933 = vmatpush1.msra.mxu0 %v222
    %934 = vmatprep.subr.mxu0 0.0
    %935 = vmatpush1.msra.mxu0 %v225
    %936 = vmatprep.subr.mxu0 0.0
    %937 = vmatpush1.msra.mxu0 %v228
    %938 = vmatprep.subr.mxu0 0.0
    %939 = vmatpush1.msra.mxu0 %v231
    %940 = vmatprep.subr.mxu0 0.0
    %941 = vmatpush1.msra.mxu0 %v234
    %942 = vmatprep.subr.mxu0 0.0
    %943 = vmatpush1.msra.mxu0 %v237
    %944 = vmatprep.subr.mxu0 0.0
    %945 = vmatpush1.msra.mxu0 %v240
    %946 = vmatprep.subr.mxu0 0.0
    %947 = vmatpush1.msra.mxu0 %v243
    %948 = vmatprep.subr.mxu0 0.0
    %949 = vmatpush1.msra.mxu0 %v246
    %950 = vmatprep.subr.mxu0 0.0
    %951 = vmatpush1.msra.mxu0 %v249
    %952 = vmatprep.subr.mxu0 0.0
    %953 = vmatpush1.msra.mxu0 0.0
    %954 = vmatprep.subr.mxu0 0.0
    %955 = vmatpush1.msra.mxu0 0.0
    %956 = vmatprep.subr.mxu0 0.0
    %957 = vmatpush1.msra.mxu0 0.0
    %958 = vmatprep.subr.mxu0 0.0
    %959 = vmatpush1.msra.mxu0 0.0
    %960 = vmatprep.subr.mxu0 0.0
    %961 = vmatpush1.msra.mxu0 0.0
    %962 = vmatprep.subr.mxu0 0.0
    %963 = vmatpush1.msra.mxu0 0.0
    %964 = vmatprep.subr.mxu0 0.0
    %965 = vmatpush1.msra.mxu0 0.0
    %966 = vmatprep.subr.mxu0 0.0
    %967 = vmatpush1.msra.mxu0 0.0
    %968 = vmatprep.subr.mxu0 0.0
    %969 = vmatpush1.msra.mxu0 0.0
    %970 = vmatprep.subr.mxu0 0.0
    %971 = vmatpush1.msra.mxu0 0.0
    %972 = vmatprep.subr.mxu0 0.0
    %973 = vmatpush1.msra.mxu0 0.0
    %974 = vmatprep.subr.mxu0 0.0
    %975 = vmatpush1.msra.mxu0 0.0
    %976 = vmatprep.subr.mxu0 0.0
    %977 = vmatpush1.msra.mxu0 0.0
    %978 = vmatprep.subr.mxu0 0.0
    %979 = vmatpush1.msra.mxu0 0.0
    %980 = vmatprep.subr.mxu0 0.0
    %981 = vmatpush1.msra.mxu0 0.0
    %982 = vmatprep.subr.mxu0 0.0
    %983 = vmatpush1.msra.mxu0 0.0
    %984 = vmatprep.mubr.f32.mxu0 0.0
    %985 = vmatmul.mubr.f32.gmra.mrb[0].mxu0 %v361
    %v986 = vpop.f32.mrb[0].mxu0
    %v987 = vadd.f32 0.0, %v986
    %v988 = vpop.f32.mrb[0].mxu0
    %989 = vdwg.mxu0
    %v990 = vadd.f32 %v775, %v916
    %v991 = vxor.u32 %v990, 2147483648
    %v992 = vmul.f32 %v991, 1.442695
    %v993 = vpow.pop %v992
    %v994 = vadd.f32 %v993, 1.0
    %v995 = vrcp.pop %v994
    %v996 = vmul.f32 1.0, %v995
    %v997 = vadd.f32 %v777, %v918
    %v998 = vxor.u32 %v997, 2147483648
    %v999 = vmul.f32 %v998, 1.442695
    %v1000 = vpow.pop %v999
    %v1001 = vadd.f32 %v1000, 1.0
    %v1002 = vrcp.pop %v1001
    %v1003 = vmul.f32 1.0, %v1002
    %v1005 = vlaneseq
    %v1006 = vshrl.u32 %v1005, 7
    %v1007 = vsub.s32 0, %v1006
    %v1008 = vrot.slane %v251, %v1007
    %v1010 = vadd.f32 %v987, %v1008
    %v1011 = vmul.f32 %v996, %v1010
    %v1012 = vadd.f32 %v846, %v1011
    %v1013 = vtanh.pop %v1012
    %v1014 = vsub.f32 1.0, %v1003
    %v1015 = vmul.f32 %v1014, %v1013
    %v1016 = vmul.f32 %v1003, %v361
    %v1017 = vadd.f32 %v1015, %v1016
    %v1019 = vlaneseq
    %v1020 = vshrl.u32 %v1019, 7
    %v1021 = vsub.s32 0, %v1020
    %v1022 = vrot.slane %v268, %v1021
    %1024 = vmatprep.subr.mxu0 0.0
    %1025 = vmatpush1.msra.mxu0 %v252
    %1026 = vmatprep.subr.mxu0 0.0
    %1027 = vmatpush1.msra.mxu0 %v253
    %1028 = vmatprep.subr.mxu0 0.0
    %1029 = vmatpush1.msra.mxu0 %v254
    %1030 = vmatprep.subr.mxu0 0.0
    %1031 = vmatpush1.msra.mxu0 %v255
    %1032 = vmatprep.subr.mxu0 0.0
    %1033 = vmatpush1.msra.mxu0 %v256
    %1034 = vmatprep.subr.mxu0 0.0
    %1035 = vmatpush1.msra.mxu0 %v257
    %1036 = vmatprep.subr.mxu0 0.0
    %1037 = vmatpush1.msra.mxu0 %v258
    %1038 = vmatprep.subr.mxu0 0.0
    %1039 = vmatpush1.msra.mxu0 %v259
    %1040 = vmatprep.subr.mxu0 0.0
    %1041 = vmatpush1.msra.mxu0 %v260
    %1042 = vmatprep.subr.mxu0 0.0
    %1043 = vmatpush1.msra.mxu0 %v261
    %1044 = vmatprep.subr.mxu0 0.0
    %1045 = vmatpush1.msra.mxu0 %v262
    %1046 = vmatprep.subr.mxu0 0.0
    %1047 = vmatpush1.msra.mxu0 %v263
    %1048 = vmatprep.subr.mxu0 0.0
    %1049 = vmatpush1.msra.mxu0 %v264
    %1050 = vmatprep.subr.mxu0 0.0
    %1051 = vmatpush1.msra.mxu0 %v265
    %1052 = vmatprep.subr.mxu0 0.0
    %1053 = vmatpush1.msra.mxu0 %v266
    %1054 = vmatprep.subr.mxu0 0.0
    %1055 = vmatpush1.msra.mxu0 %v267
    %1056 = vmatprep.subr.mxu0 0.0
    %1057 = vmatpush1.msra.mxu0 0.0
    %1058 = vmatprep.subr.mxu0 0.0
    %1059 = vmatpush1.msra.mxu0 0.0
    %1060 = vmatprep.subr.mxu0 0.0
    %1061 = vmatpush1.msra.mxu0 0.0
    %1062 = vmatprep.subr.mxu0 0.0
    %1063 = vmatpush1.msra.mxu0 0.0
    %1064 = vmatprep.subr.mxu0 0.0
    %1065 = vmatpush1.msra.mxu0 0.0
    %1066 = vmatprep.subr.mxu0 0.0
    %1067 = vmatpush1.msra.mxu0 0.0
    %1068 = vmatprep.subr.mxu0 0.0
    %1069 = vmatpush1.msra.mxu0 0.0
    %1070 = vmatprep.subr.mxu0 0.0
    %1071 = vmatpush1.msra.mxu0 0.0
    %1072 = vmatprep.subr.mxu0 0.0
    %1073 = vmatpush1.msra.mxu0 0.0
    %1074 = vmatprep.subr.mxu0 0.0
    %1075 = vmatpush1.msra.mxu0 0.0
    %1076 = vmatprep.subr.mxu0 0.0
    %1077 = vmatpush1.msra.mxu0 0.0
    %1078 = vmatprep.subr.mxu0 0.0
    %1079 = vmatpush1.msra.mxu0 0.0
    %1080 = vmatprep.subr.mxu0 0.0
    %1081 = vmatpush1.msra.mxu0 0.0
    %1082 = vmatprep.subr.mxu0 0.0
    %1083 = vmatpush1.msra.mxu0 0.0
    %1084 = vmatprep.subr.mxu0 0.0
    %1085 = vmatpush1.msra.mxu0 0.0
    %1086 = vmatprep.subr.mxu0 0.0
    %1087 = vmatpush1.msra.mxu0 0.0
    %1088 = vmatprep.mubr.f32.mxu0 0.0
    %1089 = vmatmul.mubr.f32.gmra.mrb[0].mxu0 %v1017
    %v1090 = vpop.f32.mrb[0].mxu0
    %v1091 = vadd.f32 %v1022, %v1090
    %v1092 = vpop.f32.mrb[0].mxu0
    %1093 = vdwg.mxu0
    %vm1094 = vcmask 517120
    %1095 = vst.msk [vmem:[#allocation8] sm:$0x3] %vm1094, %v1091
    %v1096 = vld [vmem:[%s0] sm:$0x3]
    %v1098 = vsel %vm378, %v1096, 0
    %1100 = vmatprep.subr.mxu0 %v93
    %1101 = vmatpush1.msra.mxu0 %v92
    %1102 = vmatprep.subr.mxu0 %v96
    %1103 = vmatpush1.msra.mxu0 %v95
    %1104 = vmatprep.subr.mxu0 %v99
    %1105 = vmatpush1.msra.mxu0 %v98
    %1106 = vmatprep.subr.mxu0 %v102
    %1107 = vmatpush1.msra.mxu0 %v101
    %1108 = vmatprep.subr.mxu0 0.0
    %1109 = vmatpush1.msra.mxu0 0.0
    %1110 = vmatprep.subr.mxu0 0.0
    %1111 = vmatpush1.msra.mxu0 0.0
    %1112 = vmatprep.subr.mxu0 0.0
    %1113 = vmatpush1.msra.mxu0 0.0
    %1114 = vmatprep.subr.mxu0 0.0
    %1115 = vmatpush1.msra.mxu0 0.0
    %1116 = vmatprep.subr.mxu0 0.0
    %1117 = vmatpush1.msra.mxu0 0.0
    %1118 = vmatprep.subr.mxu0 0.0
    %1119 = vmatpush1.msra.mxu0 0.0
    %1120 = vmatprep.subr.mxu0 0.0
    %1121 = vmatpush1.msra.mxu0 0.0
    %1122 = vmatprep.subr.mxu0 0.0
    %1123 = vmatpush1.msra.mxu0 0.0
    %1124 = vmatprep.subr.mxu0 0.0
    %1125 = vmatpush1.msra.mxu0 0.0
    %1126 = vmatprep.subr.mxu0 0.0
    %1127 = vmatpush1.msra.mxu0 0.0
    %1128 = vmatprep.subr.mxu0 0.0
    %1129 = vmatpush1.msra.mxu0 0.0
    %1130 = vmatprep.subr.mxu0 0.0
    %1131 = vmatpush1.msra.mxu0 0.0
    %1132 = vmatprep.subr.mxu0 0.0
    %1133 = vmatpush1.msra.mxu0 0.0
    %1134 = vmatprep.subr.mxu0 0.0
    %1135 = vmatpush1.msra.mxu0 0.0
    %1136 = vmatprep.subr.mxu0 0.0
    %1137 = vmatpush1.msra.mxu0 0.0
    %1138 = vmatprep.subr.mxu0 0.0
    %1139 = vmatpush1.msra.mxu0 0.0
    %1140 = vmatprep.subr.mxu0 0.0
    %1141 = vmatpush1.msra.mxu0 0.0
    %1142 = vmatprep.subr.mxu0 0.0
    %1143 = vmatpush1.msra.mxu0 0.0
    %1144 = vmatprep.subr.mxu0 0.0
    %1145 = vmatpush1.msra.mxu0 0.0
    %1146 = vmatprep.subr.mxu0 0.0
    %1147 = vmatpush1.msra.mxu0 0.0
    %1148 = vmatprep.subr.mxu0 0.0
    %1149 = vmatpush1.msra.mxu0 0.0
    %1150 = vmatprep.subr.mxu0 0.0
    %1151 = vmatpush1.msra.mxu0 0.0
    %1152 = vmatprep.subr.mxu0 0.0
    %1153 = vmatpush1.msra.mxu0 0.0
    %1154 = vmatprep.subr.mxu0 0.0
    %1155 = vmatpush1.msra.mxu0 0.0
    %1156 = vmatprep.subr.mxu0 0.0
    %1157 = vmatpush1.msra.mxu0 0.0
    %1158 = vmatprep.subr.mxu0 0.0
    %1159 = vmatpush1.msra.mxu0 0.0
    %1160 = vmatprep.subr.mxu0 0.0
    %1161 = vmatpush1.msra.mxu0 0.0
    %1162 = vmatprep.subr.mxu0 0.0
    %1163 = vmatpush1.msra.mxu0 0.0
    %1164 = vmatprep.mubr.f32.mxu0 0.0
    %1165 = vmatmul.mubr.f32.gmra.mrb[0].mxu0 %v1098
    %v1166 = vpop.f32.mrb[0].mxu0
    %v1167 = vadd.f32 %v366, %v1166
    %v1168 = vpop.f32.mrb[0].mxu0
    %v1169 = vadd.f32 %v370, %v1168
    %1170 = vdwg.mxu0
    %1171 = vmatprep.subr.mxu0 0.0
    %1172 = vmatpush1.msra.mxu0 %v94
    %1173 = vmatprep.subr.mxu0 0.0
    %1174 = vmatpush1.msra.mxu0 %v97
    %1175 = vmatprep.subr.mxu0 0.0
    %1176 = vmatpush1.msra.mxu0 %v100
    %1177 = vmatprep.subr.mxu0 0.0
    %1178 = vmatpush1.msra.mxu0 %v103
    %1179 = vmatprep.subr.mxu0 0.0
    %1180 = vmatpush1.msra.mxu0 0.0
    %1181 = vmatprep.subr.mxu0 0.0
    %1182 = vmatpush1.msra.mxu0 0.0
    %1183 = vmatprep.subr.mxu0 0.0
    %1184 = vmatpush1.msra.mxu0 0.0
    %1185 = vmatprep.subr.mxu0 0.0
    %1186 = vmatpush1.msra.mxu0 0.0
    %1187 = vmatprep.subr.mxu0 0.0
    %1188 = vmatpush1.msra.mxu0 0.0
    %1189 = vmatprep.subr.mxu0 0.0
    %1190 = vmatpush1.msra.mxu0 0.0
    %1191 = vmatprep.subr.mxu0 0.0
    %1192 = vmatpush1.msra.mxu0 0.0
    %1193 = vmatprep.subr.mxu0 0.0
    %1194 = vmatpush1.msra.mxu0 0.0
    %1195 = vmatprep.subr.mxu0 0.0
    %1196 = vmatpush1.msra.mxu0 0.0
    %1197 = vmatprep.subr.mxu0 0.0
    %1198 = vmatpush1.msra.mxu0 0.0
    %1199 = vmatprep.subr.mxu0 0.0
    %1200 = vmatpush1.msra.mxu0 0.0
    %1201 = vmatprep.subr.mxu0 0.0
    %1202 = vmatpush1.msra.mxu0 0.0
    %1203 = vmatprep.subr.mxu0 0.0
    %1204 = vmatpush1.msra.mxu0 0.0
    %1205 = vmatprep.subr.mxu0 0.0
    %1206 = vmatpush1.msra.mxu0 0.0
    %1207 = vmatprep.subr.mxu0 0.0
    %1208 = vmatpush1.msra.mxu0 0.0
    %1209 = vmatprep.subr.mxu0 0.0
    %1210 = vmatpush1.msra.mxu0 0.0
    %1211 = vmatprep.subr.mxu0 0.0
    %1212 = vmatpush1.msra.mxu0 0.0
    %1213 = vmatprep.subr.mxu0 0.0
    %1214 = vmatpush1.msra.mxu0 0.0
    %1215 = vmatprep.subr.mxu0 0.0
    %1216 = vmatpush1.msra.mxu0 0.0
    %1217 = vmatprep.subr.mxu0 0.0
    %1218 = vmatpush1.msra.mxu0 0.0
    %1219 = vmatprep.subr.mxu0 0.0
    %1220 = vmatpush1.msra.mxu0 0.0
    %1221 = vmatprep.subr.mxu0 0.0
    %1222 = vmatpush1.msra.mxu0 0.0
    %1223 = vmatprep.subr.mxu0 0.0
    %1224 = vmatpush1.msra.mxu0 0.0
    %1225 = vmatprep.subr.mxu0 0.0
    %1226 = vmatpush1.msra.mxu0 0.0
    %1227 = vmatprep.subr.mxu0 0.0
    %1228 = vmatpush1.msra.mxu0 0.0
    %1229 = vmatprep.subr.mxu0 0.0
    %1230 = vmatpush1.msra.mxu0 0.0
    %1231 = vmatprep.subr.mxu0 0.0
    %1232 = vmatpush1.msra.mxu0 0.0
    %1233 = vmatprep.subr.mxu0 0.0
    %1234 = vmatpush1.msra.mxu0 0.0
    %1235 = vmatprep.mubr.f32.mxu0 0.0
    %1236 = vmatmul.mubr.f32.gmra.mrb[0].mxu0 %v1098
    %v1237 = vpop.f32.mrb[0].mxu0
    %v1238 = vadd.f32 %v374, %v1237
    %v1239 = vpop.f32.mrb[0].mxu0
    %1240 = vdwg.mxu0
    %1241 = vmatprep.subr.mxu0 %v105
    %1242 = vmatpush1.msra.mxu0 %v104
    %1243 = vmatprep.subr.mxu0 %v108
    %1244 = vmatpush1.msra.mxu0 %v107
    %1245 = vmatprep.subr.mxu0 %v111
    %1246 = vmatpush1.msra.mxu0 %v110
    %1247 = vmatprep.subr.mxu0 %v114
    %1248 = vmatpush1.msra.mxu0 %v113
    %1249 = vmatprep.subr.mxu0 %v117
    %1250 = vmatpush1.msra.mxu0 %v116
    %1251 = vmatprep.subr.mxu0 %v120
    %1252 = vmatpush1.msra.mxu0 %v119
    %1253 = vmatprep.subr.mxu0 %v123
    %1254 = vmatpush1.msra.mxu0 %v122
    %1255 = vmatprep.subr.mxu0 %v126
    %1256 = vmatpush1.msra.mxu0 %v125
    %1257 = vmatprep.subr.mxu0 %v129
    %1258 = vmatpush1.msra.mxu0 %v128
    %1259 = vmatprep.subr.mxu0 %v132
    %1260 = vmatpush1.msra.mxu0 %v131
    %1261 = vmatprep.subr.mxu0 %v135
    %1262 = vmatpush1.msra.mxu0 %v134
    %1263 = vmatprep.subr.mxu0 %v138
    %1264 = vmatpush1.msra.mxu0 %v137
    %1265 = vmatprep.subr.mxu0 %v141
    %1266 = vmatpush1.msra.mxu0 %v140
    %1267 = vmatprep.subr.mxu0 %v144
    %1268 = vmatpush1.msra.mxu0 %v143
    %1269 = vmatprep.subr.mxu0 %v147
    %1270 = vmatpush1.msra.mxu0 %v146
    %1271 = vmatprep.subr.mxu0 %v150
    %1272 = vmatpush1.msra.mxu0 %v149
    %1273 = vmatprep.subr.mxu0 0.0
    %1274 = vmatpush1.msra.mxu0 0.0
    %1275 = vmatprep.subr.mxu0 0.0
    %1276 = vmatpush1.msra.mxu0 0.0
    %1277 = vmatprep.subr.mxu0 0.0
    %1278 = vmatpush1.msra.mxu0 0.0
    %1279 = vmatprep.subr.mxu0 0.0
    %1280 = vmatpush1.msra.mxu0 0.0
    %1281 = vmatprep.subr.mxu0 0.0
    %1282 = vmatpush1.msra.mxu0 0.0
    %1283 = vmatprep.subr.mxu0 0.0
    %1284 = vmatpush1.msra.mxu0 0.0
    %1285 = vmatprep.subr.mxu0 0.0
    %1286 = vmatpush1.msra.mxu0 0.0
    %1287 = vmatprep.subr.mxu0 0.0
    %1288 = vmatpush1.msra.mxu0 0.0
    %1289 = vmatprep.subr.mxu0 0.0
    %1290 = vmatpush1.msra.mxu0 0.0
    %1291 = vmatprep.subr.mxu0 0.0
    %1292 = vmatpush1.msra.mxu0 0.0
    %1293 = vmatprep.subr.mxu0 0.0
    %1294 = vmatpush1.msra.mxu0 0.0
    %1295 = vmatprep.subr.mxu0 0.0
    %1296 = vmatpush1.msra.mxu0 0.0
    %1297 = vmatprep.subr.mxu0 0.0
    %1298 = vmatpush1.msra.mxu0 0.0
    %1299 = vmatprep.subr.mxu0 0.0
    %1300 = vmatpush1.msra.mxu0 0.0
    %1301 = vmatprep.subr.mxu0 0.0
    %1302 = vmatpush1.msra.mxu0 0.0
    %1303 = vmatprep.subr.mxu0 0.0
    %1304 = vmatpush1.msra.mxu0 0.0
    %1305 = vmatprep.mubr.f32.mxu0 0.0
    %1306 = vmatmul.mubr.f32.gmra.mrb[0].mxu0 %v691
    %v1307 = vpop.f32.mrb[0].mxu0
    %v1308 = vadd.f32 0.0, %v1307
    %v1309 = vpop.f32.mrb[0].mxu0
    %v1310 = vadd.f32 0.0, %v1309
    %1311 = vdwg.mxu0
    %1312 = vmatprep.subr.mxu0 0.0
    %1313 = vmatpush1.msra.mxu0 %v106
    %1314 = vmatprep.subr.mxu0 0.0
    %1315 = vmatpush1.msra.mxu0 %v109
    %1316 = vmatprep.subr.mxu0 0.0
    %1317 = vmatpush1.msra.mxu0 %v112
    %1318 = vmatprep.subr.mxu0 0.0
    %1319 = vmatpush1.msra.mxu0 %v115
    %1320 = vmatprep.subr.mxu0 0.0
    %1321 = vmatpush1.msra.mxu0 %v118
    %1322 = vmatprep.subr.mxu0 0.0
    %1323 = vmatpush1.msra.mxu0 %v121
    %1324 = vmatprep.subr.mxu0 0.0
    %1325 = vmatpush1.msra.mxu0 %v124
    %1326 = vmatprep.subr.mxu0 0.0
    %1327 = vmatpush1.msra.mxu0 %v127
    %1328 = vmatprep.subr.mxu0 0.0
    %1329 = vmatpush1.msra.mxu0 %v130
    %1330 = vmatprep.subr.mxu0 0.0
    %1331 = vmatpush1.msra.mxu0 %v133
    %1332 = vmatprep.subr.mxu0 0.0
    %1333 = vmatpush1.msra.mxu0 %v136
    %1334 = vmatprep.subr.mxu0 0.0
    %1335 = vmatpush1.msra.mxu0 %v139
    %1336 = vmatprep.subr.mxu0 0.0
    %1337 = vmatpush1.msra.mxu0 %v142
    %1338 = vmatprep.subr.mxu0 0.0
    %1339 = vmatpush1.msra.mxu0 %v145
    %1340 = vmatprep.subr.mxu0 0.0
    %1341 = vmatpush1.msra.mxu0 %v148
    %1342 = vmatprep.subr.mxu0 0.0
    %1343 = vmatpush1.msra.mxu0 %v151
    %1344 = vmatprep.subr.mxu0 0.0
    %1345 = vmatpush1.msra.mxu0 0.0
    %1346 = vmatprep.subr.mxu0 0.0
    %1347 = vmatpush1.msra.mxu0 0.0
    %1348 = vmatprep.subr.mxu0 0.0
    %1349 = vmatpush1.msra.mxu0 0.0
    %1350 = vmatprep.subr.mxu0 0.0
    %1351 = vmatpush1.msra.mxu0 0.0
    %1352 = vmatprep.subr.mxu0 0.0
    %1353 = vmatpush1.msra.mxu0 0.0
    %1354 = vmatprep.subr.mxu0 0.0
    %1355 = vmatpush1.msra.mxu0 0.0
    %1356 = vmatprep.subr.mxu0 0.0
    %1357 = vmatpush1.msra.mxu0 0.0
    %1358 = vmatprep.subr.mxu0 0.0
    %1359 = vmatpush1.msra.mxu0 0.0
    %1360 = vmatprep.subr.mxu0 0.0
    %1361 = vmatpush1.msra.mxu0 0.0
    %1362 = vmatprep.subr.mxu0 0.0
    %1363 = vmatpush1.msra.mxu0 0.0
    %1364 = vmatprep.subr.mxu0 0.0
    %1365 = vmatpush1.msra.mxu0 0.0
    %1366 = vmatprep.subr.mxu0 0.0
    %1367 = vmatpush1.msra.mxu0 0.0
    %1368 = vmatprep.subr.mxu0 0.0
    %1369 = vmatpush1.msra.mxu0 0.0
    %1370 = vmatprep.subr.mxu0 0.0
    %1371 = vmatpush1.msra.mxu0 0.0
    %1372 = vmatprep.subr.mxu0 0.0
    %1373 = vmatpush1.msra.mxu0 0.0
    %1374 = vmatprep.subr.mxu0 0.0
    %1375 = vmatpush1.msra.mxu0 0.0
    %1376 = vmatprep.mubr.f32.mxu0 0.0
    %1377 = vmatmul.mubr.f32.gmra.mrb[0].mxu0 %v691
    %v1378 = vpop.f32.mrb[0].mxu0
    %v1379 = vadd.f32 0.0, %v1378
    %v1380 = vpop.f32.mrb[0].mxu0
    %1381 = vdwg.mxu0
    %v1382 = vadd.f32 %v1167, %v1308
    %v1383 = vxor.u32 %v1382, 2147483648
    %v1384 = vmul.f32 %v1383, 1.442695
    %v1385 = vpow.pop %v1384
    %v1386 = vadd.f32 %v1385, 1.0
    %v1387 = vrcp.pop %v1386
    %v1388 = vmul.f32 1.0, %v1387
    %v1389 = vadd.f32 %v1169, %v1310
    %v1390 = vxor.u32 %v1389, 2147483648
    %v1391 = vmul.f32 %v1390, 1.442695
    %v1392 = vpow.pop %v1391
    %v1393 = vadd.f32 %v1392, 1.0
    %v1394 = vrcp.pop %v1393
    %v1395 = vmul.f32 1.0, %v1394
    %v1396 = vadd.f32 %v1379, %v682
    %v1397 = vmul.f32 %v1388, %v1396
    %v1398 = vadd.f32 %v1238, %v1397
    %v1399 = vtanh.pop %v1398
    %v1400 = vsub.f32 1.0, %v1395
    %v1401 = vmul.f32 %v1400, %v1399
    %v1402 = vmul.f32 %v1395, %v691
    %v1403 = vadd.f32 %v1401, %v1402
    %1404 = vmatprep.subr.mxu0 %v155
    %1405 = vmatpush1.msra.mxu0 %v154
    %1406 = vmatprep.subr.mxu0 %v158
    %1407 = vmatpush1.msra.mxu0 %v157
    %1408 = vmatprep.subr.mxu0 %v161
    %1409 = vmatpush1.msra.mxu0 %v160
    %1410 = vmatprep.subr.mxu0 %v164
    %1411 = vmatpush1.msra.mxu0 %v163
    %1412 = vmatprep.subr.mxu0 %v167
    %1413 = vmatpush1.msra.mxu0 %v166
    %1414 = vmatprep.subr.mxu0 %v170
    %1415 = vmatpush1.msra.mxu0 %v169
    %1416 = vmatprep.subr.mxu0 %v173
    %1417 = vmatpush1.msra.mxu0 %v172
    %1418 = vmatprep.subr.mxu0 %v176
    %1419 = vmatpush1.msra.mxu0 %v175
    %1420 = vmatprep.subr.mxu0 %v179
    %1421 = vmatpush1.msra.mxu0 %v178
    %1422 = vmatprep.subr.mxu0 %v182
    %1423 = vmatpush1.msra.mxu0 %v181
    %1424 = vmatprep.subr.mxu0 %v185
    %1425 = vmatpush1.msra.mxu0 %v184
    %1426 = vmatprep.subr.mxu0 %v188
    %1427 = vmatpush1.msra.mxu0 %v187
    %1428 = vmatprep.subr.mxu0 %v191
    %1429 = vmatpush1.msra.mxu0 %v190
    %1430 = vmatprep.subr.mxu0 %v194
    %1431 = vmatpush1.msra.mxu0 %v193
    %1432 = vmatprep.subr.mxu0 %v197
    %1433 = vmatpush1.msra.mxu0 %v196
    %1434 = vmatprep.subr.mxu0 %v200
    %1435 = vmatpush1.msra.mxu0 %v199
    %1436 = vmatprep.subr.mxu0 0.0
    %1437 = vmatpush1.msra.mxu0 0.0
    %1438 = vmatprep.subr.mxu0 0.0
    %1439 = vmatpush1.msra.mxu0 0.0
    %1440 = vmatprep.subr.mxu0 0.0
    %1441 = vmatpush1.msra.mxu0 0.0
    %1442 = vmatprep.subr.mxu0 0.0
    %1443 = vmatpush1.msra.mxu0 0.0
    %1444 = vmatprep.subr.mxu0 0.0
    %1445 = vmatpush1.msra.mxu0 0.0
    %1446 = vmatprep.subr.mxu0 0.0
    %1447 = vmatpush1.msra.mxu0 0.0
    %1448 = vmatprep.subr.mxu0 0.0
    %1449 = vmatpush1.msra.mxu0 0.0
    %1450 = vmatprep.subr.mxu0 0.0
    %1451 = vmatpush1.msra.mxu0 0.0
    %1452 = vmatprep.subr.mxu0 0.0
    %1453 = vmatpush1.msra.mxu0 0.0
    %1454 = vmatprep.subr.mxu0 0.0
    %1455 = vmatpush1.msra.mxu0 0.0
    %1456 = vmatprep.subr.mxu0 0.0
    %1457 = vmatpush1.msra.mxu0 0.0
    %1458 = vmatprep.subr.mxu0 0.0
    %1459 = vmatpush1.msra.mxu0 0.0
    %1460 = vmatprep.subr.mxu0 0.0
    %1461 = vmatpush1.msra.mxu0 0.0
    %1462 = vmatprep.subr.mxu0 0.0
    %1463 = vmatpush1.msra.mxu0 0.0
    %1464 = vmatprep.subr.mxu0 0.0
    %1465 = vmatpush1.msra.mxu0 0.0
    %1466 = vmatprep.subr.mxu0 0.0
    %1467 = vmatpush1.msra.mxu0 0.0
    %1468 = vmatprep.mubr.f32.mxu0 0.0
    %1469 = vmatmul.mubr.f32.gmra.mrb[0].mxu0 %v1403
    %v1470 = vpop.f32.mrb[0].mxu0
    %v1471 = vadd.f32 %v696, %v1470
    %v1472 = vpop.f32.mrb[0].mxu0
    %v1473 = vadd.f32 %v700, %v1472
    %1474 = vdwg.mxu0
    %1475 = vmatprep.subr.mxu0 0.0
    %1476 = vmatpush1.msra.mxu0 %v156
    %1477 = vmatprep.subr.mxu0 0.0
    %1478 = vmatpush1.msra.mxu0 %v159
    %1479 = vmatprep.subr.mxu0 0.0
    %1480 = vmatpush1.msra.mxu0 %v162
    %1481 = vmatprep.subr.mxu0 0.0
    %1482 = vmatpush1.msra.mxu0 %v165
    %1483 = vmatprep.subr.mxu0 0.0
    %1484 = vmatpush1.msra.mxu0 %v168
    %1485 = vmatprep.subr.mxu0 0.0
    %1486 = vmatpush1.msra.mxu0 %v171
    %1487 = vmatprep.subr.mxu0 0.0
    %1488 = vmatpush1.msra.mxu0 %v174
    %1489 = vmatprep.subr.mxu0 0.0
    %1490 = vmatpush1.msra.mxu0 %v177
    %1491 = vmatprep.subr.mxu0 0.0
    %1492 = vmatpush1.msra.mxu0 %v180
    %1493 = vmatprep.subr.mxu0 0.0
    %1494 = vmatpush1.msra.mxu0 %v183
    %1495 = vmatprep.subr.mxu0 0.0
    %1496 = vmatpush1.msra.mxu0 %v186
    %1497 = vmatprep.subr.mxu0 0.0
    %1498 = vmatpush1.msra.mxu0 %v189
    %1499 = vmatprep.subr.mxu0 0.0
    %1500 = vmatpush1.msra.mxu0 %v192
    %1501 = vmatprep.subr.mxu0 0.0
    %1502 = vmatpush1.msra.mxu0 %v195
    %1503 = vmatprep.subr.mxu0 0.0
    %1504 = vmatpush1.msra.mxu0 %v198
    %1505 = vmatprep.subr.mxu0 0.0
    %1506 = vmatpush1.msra.mxu0 %v201
    %1507 = vmatprep.subr.mxu0 0.0
    %1508 = vmatpush1.msra.mxu0 0.0
    %1509 = vmatprep.subr.mxu0 0.0
    %1510 = vmatpush1.msra.mxu0 0.0
    %1511 = vmatprep.subr.mxu0 0.0
    %1512 = vmatpush1.msra.mxu0 0.0
    %1513 = vmatprep.subr.mxu0 0.0
    %1514 = vmatpush1.msra.mxu0 0.0
    %1515 = vmatprep.subr.mxu0 0.0
    %1516 = vmatpush1.msra.mxu0 0.0
    %1517 = vmatprep.subr.mxu0 0.0
    %1518 = vmatpush1.msra.mxu0 0.0
    %1519 = vmatprep.subr.mxu0 0.0
    %1520 = vmatpush1.msra.mxu0 0.0
    %1521 = vmatprep.subr.mxu0 0.0
    %1522 = vmatpush1.msra.mxu0 0.0
    %1523 = vmatprep.subr.mxu0 0.0
    %1524 = vmatpush1.msra.mxu0 0.0
    %1525 = vmatprep.subr.mxu0 0.0
    %1526 = vmatpush1.msra.mxu0 0.0
    %1527 = vmatprep.subr.mxu0 0.0
    %1528 = vmatpush1.msra.mxu0 0.0
    %1529 = vmatprep.subr.mxu0 0.0
    %1530 = vmatpush1.msra.mxu0 0.0
    %1531 = vmatprep.subr.mxu0 0.0
    %1532 = vmatpush1.msra.mxu0 0.0
    %1533 = vmatprep.subr.mxu0 0.0
    %1534 = vmatpush1.msra.mxu0 0.0
    %1535 = vmatprep.subr.mxu0 0.0
    %1536 = vmatpush1.msra.mxu0 0.0
    %1537 = vmatprep.subr.mxu0 0.0
    %1538 = vmatpush1.msra.mxu0 0.0
    %1539 = vmatprep.mubr.f32.mxu0 0.0
    %1540 = vmatmul.mubr.f32.gmra.mrb[0].mxu0 %v1403
    %v1541 = vpop.f32.mrb[0].mxu0
    %v1542 = vadd.f32 %v704, %v1541
    %v1543 = vpop.f32.mrb[0].mxu0
    %1544 = vdwg.mxu0
    %1545 = vmatprep.subr.mxu0 %v203
    %1546 = vmatpush1.msra.mxu0 %v202
    %1547 = vmatprep.subr.mxu0 %v206
    %1548 = vmatpush1.msra.mxu0 %v205
    %1549 = vmatprep.subr.mxu0 %v209
    %1550 = vmatpush1.msra.mxu0 %v208
    %1551 = vmatprep.subr.mxu0 %v212
    %1552 = vmatpush1.msra.mxu0 %v211
    %1553 = vmatprep.subr.mxu0 %v215
    %1554 = vmatpush1.msra.mxu0 %v214
    %1555 = vmatprep.subr.mxu0 %v218
    %1556 = vmatpush1.msra.mxu0 %v217
    %1557 = vmatprep.subr.mxu0 %v221
    %1558 = vmatpush1.msra.mxu0 %v220
    %1559 = vmatprep.subr.mxu0 %v224
    %1560 = vmatpush1.msra.mxu0 %v223
    %1561 = vmatprep.subr.mxu0 %v227
    %1562 = vmatpush1.msra.mxu0 %v226
    %1563 = vmatprep.subr.mxu0 %v230
    %1564 = vmatpush1.msra.mxu0 %v229
    %1565 = vmatprep.subr.mxu0 %v233
    %1566 = vmatpush1.msra.mxu0 %v232
    %1567 = vmatprep.subr.mxu0 %v236
    %1568 = vmatpush1.msra.mxu0 %v235
    %1569 = vmatprep.subr.mxu0 %v239
    %1570 = vmatpush1.msra.mxu0 %v238
    %1571 = vmatprep.subr.mxu0 %v242
    %1572 = vmatpush1.msra.mxu0 %v241
    %1573 = vmatprep.subr.mxu0 %v245
    %1574 = vmatpush1.msra.mxu0 %v244
    %1575 = vmatprep.subr.mxu0 %v248
    %1576 = vmatpush1.msra.mxu0 %v247
    %1577 = vmatprep.subr.mxu0 0.0
    %1578 = vmatpush1.msra.mxu0 0.0
    %1579 = vmatprep.subr.mxu0 0.0
    %1580 = vmatpush1.msra.mxu0 0.0
    %1581 = vmatprep.subr.mxu0 0.0
    %1582 = vmatpush1.msra.mxu0 0.0
    %1583 = vmatprep.subr.mxu0 0.0
    %1584 = vmatpush1.msra.mxu0 0.0
    %1585 = vmatprep.subr.mxu0 0.0
    %1586 = vmatpush1.msra.mxu0 0.0
    %1587 = vmatprep.subr.mxu0 0.0
    %1588 = vmatpush1.msra.mxu0 0.0
    %1589 = vmatprep.subr.mxu0 0.0
    %1590 = vmatpush1.msra.mxu0 0.0
    %1591 = vmatprep.subr.mxu0 0.0
    %1592 = vmatpush1.msra.mxu0 0.0
    %1593 = vmatprep.subr.mxu0 0.0
    %1594 = vmatpush1.msra.mxu0 0.0
    %1595 = vmatprep.subr.mxu0 0.0
    %1596 = vmatpush1.msra.mxu0 0.0
    %1597 = vmatprep.subr.mxu0 0.0
    %1598 = vmatpush1.msra.mxu0 0.0
    %1599 = vmatprep.subr.mxu0 0.0
    %1600 = vmatpush1.msra.mxu0 0.0
    %1601 = vmatprep.subr.mxu0 0.0
    %1602 = vmatpush1.msra.mxu0 0.0
    %1603 = vmatprep.subr.mxu0 0.0
    %1604 = vmatpush1.msra.mxu0 0.0
    %1605 = vmatprep.subr.mxu0 0.0
    %1606 = vmatpush1.msra.mxu0 0.0
    %1607 = vmatprep.subr.mxu0 0.0
    %1608 = vmatpush1.msra.mxu0 0.0
    %1609 = vmatprep.mubr.f32.mxu0 0.0
    %1610 = vmatmul.mubr.f32.gmra.mrb[0].mxu0 %v1017
    %v1611 = vpop.f32.mrb[0].mxu0
    %v1612 = vadd.f32 0.0, %v1611
    %v1613 = vpop.f32.mrb[0].mxu0
    %v1614 = vadd.f32 0.0, %v1613
    %1615 = vdwg.mxu0
    %1616 = vmatprep.subr.mxu0 0.0
    %1617 = vmatpush1.msra.mxu0 %v204
    %1618 = vmatprep.subr.mxu0 0.0
    %1619 = vmatpush1.msra.mxu0 %v207
    %1620 = vmatprep.subr.mxu0 0.0
    %1621 = vmatpush1.msra.mxu0 %v210
    %1622 = vmatprep.subr.mxu0 0.0
    %1623 = vmatpush1.msra.mxu0 %v213
    %1624 = vmatprep.subr.mxu0 0.0
    %1625 = vmatpush1.msra.mxu0 %v216
    %1626 = vmatprep.subr.mxu0 0.0
    %1627 = vmatpush1.msra.mxu0 %v219
    %1628 = vmatprep.subr.mxu0 0.0
    %1629 = vmatpush1.msra.mxu0 %v222
    %1630 = vmatprep.subr.mxu0 0.0
    %1631 = vmatpush1.msra.mxu0 %v225
    %1632 = vmatprep.subr.mxu0 0.0
    %1633 = vmatpush1.msra.mxu0 %v228
    %1634 = vmatprep.subr.mxu0 0.0
    %1635 = vmatpush1.msra.mxu0 %v231
    %1636 = vmatprep.subr.mxu0 0.0
    %1637 = vmatpush1.msra.mxu0 %v234
    %1638 = vmatprep.subr.mxu0 0.0
    %1639 = vmatpush1.msra.mxu0 %v237
    %1640 = vmatprep.subr.mxu0 0.0
    %1641 = vmatpush1.msra.mxu0 %v240
    %1642 = vmatprep.subr.mxu0 0.0
    %1643 = vmatpush1.msra.mxu0 %v243
    %1644 = vmatprep.subr.mxu0 0.0
    %1645 = vmatpush1.msra.mxu0 %v246
    %1646 = vmatprep.subr.mxu0 0.0
    %1647 = vmatpush1.msra.mxu0 %v249
    %1648 = vmatprep.subr.mxu0 0.0
    %1649 = vmatpush1.msra.mxu0 0.0
    %1650 = vmatprep.subr.mxu0 0.0
    %1651 = vmatpush1.msra.mxu0 0.0
    %1652 = vmatprep.subr.mxu0 0.0
    %1653 = vmatpush1.msra.mxu0 0.0
    %1654 = vmatprep.subr.mxu0 0.0
    %1655 = vmatpush1.msra.mxu0 0.0
    %1656 = vmatprep.subr.mxu0 0.0
    %1657 = vmatpush1.msra.mxu0 0.0
    %1658 = vmatprep.subr.mxu0 0.0
    %1659 = vmatpush1.msra.mxu0 0.0
    %1660 = vmatprep.subr.mxu0 0.0
    %1661 = vmatpush1.msra.mxu0 0.0
    %1662 = vmatprep.subr.mxu0 0.0
    %1663 = vmatpush1.msra.mxu0 0.0
    %1664 = vmatprep.subr.mxu0 0.0
    %1665 = vmatpush1.msra.mxu0 0.0
    %1666 = vmatprep.subr.mxu0 0.0
    %1667 = vmatpush1.msra.mxu0 0.0
    %1668 = vmatprep.subr.mxu0 0.0
    %1669 = vmatpush1.msra.mxu0 0.0
    %1670 = vmatprep.subr.mxu0 0.0
    %1671 = vmatpush1.msra.mxu0 0.0
    %1672 = vmatprep.subr.mxu0 0.0
    %1673 = vmatpush1.msra.mxu0 0.0
    %1674 = vmatprep.subr.mxu0 0.0
    %1675 = vmatpush1.msra.mxu0 0.0
    %1676 = vmatprep.subr.mxu0 0.0
    %1677 = vmatpush1.msra.mxu0 0.0
    %1678 = vmatprep.subr.mxu0 0.0
    %1679 = vmatpush1.msra.mxu0 0.0
    %1680 = vmatprep.mubr.f32.mxu0 0.0
    %1681 = vmatmul.mubr.f32.gmra.mrb[0].mxu0 %v1017
    %v1682 = vpop.f32.mrb[0].mxu0
    %v1683 = vadd.f32 0.0, %v1682
    %v1684 = vpop.f32.mrb[0].mxu0
    %1685 = vdwg.mxu0
    %v1686 = vadd.f32 %v1471, %v1612
    %v1687 = vxor.u32 %v1686, 2147483648
    %v1688 = vmul.f32 %v1687, 1.442695
    %v1689 = vpow.pop %v1688
    %v1690 = vadd.f32 %v1689, 1.0
    %v1691 = vrcp.pop %v1690
    %v1692 = vmul.f32 1.0, %v1691
    %v1693 = vadd.f32 %v1473, %v1614
    %v1694 = vxor.u32 %v1693, 2147483648
    %v1695 = vmul.f32 %v1694, 1.442695
    %v1696 = vpow.pop %v1695
    %v1697 = vadd.f32 %v1696, 1.0
    %v1698 = vrcp.pop %v1697
    %v1699 = vmul.f32 1.0, %v1698
    %v1700 = vadd.f32 %v1683, %v1008
    %v1701 = vmul.f32 %v1692, %v1700
    %v1702 = vadd.f32 %v1542, %v1701
    %v1703 = vtanh.pop %v1702
    %v1704 = vsub.f32 1.0, %v1699
    %v1705 = vmul.f32 %v1704, %v1703
    %v1706 = vmul.f32 %v1699, %v1017
    %v1707 = vadd.f32 %v1705, %v1706
    %1708 = vmatprep.subr.mxu0 0.0
    %1709 = vmatpush1.msra.mxu0 %v252
    %1710 = vmatprep.subr.mxu0 0.0
    %1711 = vmatpush1.msra.mxu0 %v253
    %1712 = vmatprep.subr.mxu0 0.0
    %1713 = vmatpush1.msra.mxu0 %v254
    %1714 = vmatprep.subr.mxu0 0.0
    %1715 = vmatpush1.msra.mxu0 %v255
    %1716 = vmatprep.subr.mxu0 0.0
    %1717 = vmatpush1.msra.mxu0 %v256
    %1718 = vmatprep.subr.mxu0 0.0
    %1719 = vmatpush1.msra.mxu0 %v257
    %1720 = vmatprep.subr.mxu0 0.0
    %1721 = vmatpush1.msra.mxu0 %v258
    %1722 = vmatprep.subr.mxu0 0.0
    %1723 = vmatpush1.msra.mxu0 %v259
    %1724 = vmatprep.subr.mxu0 0.0
    %1725 = vmatpush1.msra.mxu0 %v260
    %1726 = vmatprep.subr.mxu0 0.0
    %1727 = vmatpush1.msra.mxu0 %v261
    %1728 = vmatprep.subr.mxu0 0.0
    %1729 = vmatpush1.msra.mxu0 %v262
    %1730 = vmatprep.subr.mxu0 0.0
    %1731 = vmatpush1.msra.mxu0 %v263
    %1732 = vmatprep.subr.mxu0 0.0
    %1733 = vmatpush1.msra.mxu0 %v264
    %1734 = vmatprep.subr.mxu0 0.0
    %1735 = vmatpush1.msra.mxu0 %v265
    %1736 = vmatprep.subr.mxu0 0.0
    %1737 = vmatpush1.msra.mxu0 %v266
    %1738 = vmatprep.subr.mxu0 0.0
    %1739 = vmatpush1.msra.mxu0 %v267
    %1740 = vmatprep.subr.mxu0 0.0
    %1741 = vmatpush1.msra.mxu0 0.0
    %1742 = vmatprep.subr.mxu0 0.0
    %1743 = vmatpush1.msra.mxu0 0.0
    %1744 = vmatprep.subr.mxu0 0.0
    %1745 = vmatpush1.msra.mxu0 0.0
    %1746 = vmatprep.subr.mxu0 0.0
    %1747 = vmatpush1.msra.mxu0 0.0
    %1748 = vmatprep.subr.mxu0 0.0
    %1749 = vmatpush1.msra.mxu0 0.0
    %1750 = vmatprep.subr.mxu0 0.0
    %1751 = vmatpush1.msra.mxu0 0.0
    %1752 = vmatprep.subr.mxu0 0.0
    %1753 = vmatpush1.msra.mxu0 0.0
    %1754 = vmatprep.subr.mxu0 0.0
    %1755 = vmatpush1.msra.mxu0 0.0
    %1756 = vmatprep.subr.mxu0 0.0
    %1757 = vmatpush1.msra.mxu0 0.0
    %1758 = vmatprep.subr.mxu0 0.0
    %1759 = vmatpush1.msra.mxu0 0.0
    %1760 = vmatprep.subr.mxu0 0.0
    %1761 = vmatpush1.msra.mxu0 0.0
    %1762 = vmatprep.subr.mxu0 0.0
    %1763 = vmatpush1.msra.mxu0 0.0
    %1764 = vmatprep.subr.mxu0 0.0
    %1765 = vmatpush1.msra.mxu0 0.0
    %1766 = vmatprep.subr.mxu0 0.0
    %1767 = vmatpush1.msra.mxu0 0.0
    %1768 = vmatprep.subr.mxu0 0.0
    %1769 = vmatpush1.msra.mxu0 0.0
    %1770 = vmatprep.subr.mxu0 0.0
    %1771 = vmatpush1.msra.mxu0 0.0
    %1772 = vmatprep.mubr.f32.mxu0 0.0
    %1773 = vmatmul.mubr.f32.gmra.mrb[0].mxu0 %v1707
    %v1774 = vpop.f32.mrb[0].mxu0
    %v1775 = vadd.f32 %v1022, %v1774
    %v1776 = vpop.f32.mrb[0].mxu0
    %1777 = vdwg.mxu0
    %s1778 = scalar_lea.vmem [#allocation8], 2
    %1779 = vst.msk [vmem:[%s1778] sm:$0x3] %vm1094, %v1775
    %s1780 = scalar_lea.vmem %s0, 2
    %v1781 = vld [vmem:[%s1780] sm:$0x3]
    %v1783 = vsel %vm378, %v1781, 0
    %1785 = vmatprep.subr.mxu0 %v93
    %1786 = vmatpush1.msra.mxu0 %v92
    %1787 = vmatprep.subr.mxu0 %v96
    %1788 = vmatpush1.msra.mxu0 %v95
    %1789 = vmatprep.subr.mxu0 %v99
    %1790 = vmatpush1.msra.mxu0 %v98
    %1791 = vmatprep.subr.mxu0 %v102
    %1792 = vmatpush1.msra.mxu0 %v101
    %1793 = vmatprep.subr.mxu0 0.0
    %1794 = vmatpush1.msra.mxu0 0.0
    %1795 = vmatprep.subr.mxu0 0.0
    %1796 = vmatpush1.msra.mxu0 0.0
    %1797 = vmatprep.subr.mxu0 0.0
    %1798 = vmatpush1.msra.mxu0 0.0
    %1799 = vmatprep.subr.mxu0 0.0
    %1800 = vmatpush1.msra.mxu0 0.0
    %1801 = vmatprep.subr.mxu0 0.0
    %1802 = vmatpush1.msra.mxu0 0.0
    %1803 = vmatprep.subr.mxu0 0.0
    %1804 = vmatpush1.msra.mxu0 0.0
    %1805 = vmatprep.subr.mxu0 0.0
    %1806 = vmatpush1.msra.mxu0 0.0
    %1807 = vmatprep.subr.mxu0 0.0
    %1808 = vmatpush1.msra.mxu0 0.0
    %1809 = vmatprep.subr.mxu0 0.0
    %1810 = vmatpush1.msra.mxu0 0.0
    %1811 = vmatprep.subr.mxu0 0.0
    %1812 = vmatpush1.msra.mxu0 0.0
    %1813 = vmatprep.subr.mxu0 0.0
    %1814 = vmatpush1.msra.mxu0 0.0
    %1815 = vmatprep.subr.mxu0 0.0
    %1816 = vmatpush1.msra.mxu0 0.0
    %1817 = vmatprep.subr.mxu0 0.0
    %1818 = vmatpush1.msra.mxu0 0.0
    %1819 = vmatprep.subr.mxu0 0.0
    %1820 = vmatpush1.msra.mxu0 0.0
    %1821 = vmatprep.subr.mxu0 0.0
    %1822 = vmatpush1.msra.mxu0 0.0
    %1823 = vmatprep.subr.mxu0 0.0
    %1824 = vmatpush1.msra.mxu0 0.0
    %1825 = vmatprep.subr.mxu0 0.0
    %1826 = vmatpush1.msra.mxu0 0.0
    %1827 = vmatprep.subr.mxu0 0.0
    %1828 = vmatpush1.msra.mxu0 0.0
    %1829 = vmatprep.subr.mxu0 0.0
    %1830 = vmatpush1.msra.mxu0 0.0
    %1831 = vmatprep.subr.mxu0 0.0
    %1832 = vmatpush1.msra.mxu0 0.0
    %1833 = vmatprep.subr.mxu0 0.0
    %1834 = vmatpush1.msra.mxu0 0.0
    %1835 = vmatprep.subr.mxu0 0.0
    %1836 = vmatpush1.msra.mxu0 0.0
    %1837 = vmatprep.subr.mxu0 0.0
    %1838 = vmatpush1.msra.mxu0 0.0
    %1839 = vmatprep.subr.mxu0 0.0
    %1840 = vmatpush1.msra.mxu0 0.0
    %1841 = vmatprep.subr.mxu0 0.0
    %1842 = vmatpush1.msra.mxu0 0.0
    %1843 = vmatprep.subr.mxu0 0.0
    %1844 = vmatpush1.msra.mxu0 0.0
    %1845 = vmatprep.subr.mxu0 0.0
    %1846 = vmatpush1.msra.mxu0 0.0
    %1847 = vmatprep.subr.mxu0 0.0
    %1848 = vmatpush1.msra.mxu0 0.0
    %1849 = vmatprep.mubr.f32.mxu0 0.0
    %1850 = vmatmul.mubr.f32.gmra.mrb[0].mxu0 %v1783
    %v1851 = vpop.f32.mrb[0].mxu0
    %v1852 = vadd.f32 %v366, %v1851
    %v1853 = vpop.f32.mrb[0].mxu0
    %v1854 = vadd.f32 %v370, %v1853
    %1855 = vdwg.mxu0
    %1856 = vmatprep.subr.mxu0 0.0
    %1857 = vmatpush1.msra.mxu0 %v94
    %1858 = vmatprep.subr.mxu0 0.0
    %1859 = vmatpush1.msra.mxu0 %v97
    %1860 = vmatprep.subr.mxu0 0.0
    %1861 = vmatpush1.msra.mxu0 %v100
    %1862 = vmatprep.subr.mxu0 0.0
    %1863 = vmatpush1.msra.mxu0 %v103
    %1864 = vmatprep.subr.mxu0 0.0
    %1865 = vmatpush1.msra.mxu0 0.0
    %1866 = vmatprep.subr.mxu0 0.0
    %1867 = vmatpush1.msra.mxu0 0.0
    %1868 = vmatprep.subr.mxu0 0.0
    %1869 = vmatpush1.msra.mxu0 0.0
    %1870 = vmatprep.subr.mxu0 0.0
    %1871 = vmatpush1.msra.mxu0 0.0
    %1872 = vmatprep.subr.mxu0 0.0
    %1873 = vmatpush1.msra.mxu0 0.0
    %1874 = vmatprep.subr.mxu0 0.0
    %1875 = vmatpush1.msra.mxu0 0.0
    %1876 = vmatprep.subr.mxu0 0.0
    %1877 = vmatpush1.msra.mxu0 0.0
    %1878 = vmatprep.subr.mxu0 0.0
    %1879 = vmatpush1.msra.mxu0 0.0
    %1880 = vmatprep.subr.mxu0 0.0
    %1881 = vmatpush1.msra.mxu0 0.0
    %1882 = vmatprep.subr.mxu0 0.0
    %1883 = vmatpush1.msra.mxu0 0.0
    %1884 = vmatprep.subr.mxu0 0.0
    %1885 = vmatpush1.msra.mxu0 0.0
    %1886 = vmatprep.subr.mxu0 0.0
    %1887 = vmatpush1.msra.mxu0 0.0
    %1888 = vmatprep.subr.mxu0 0.0
    %1889 = vmatpush1.msra.mxu0 0.0
    %1890 = vmatprep.subr.mxu0 0.0
    %1891 = vmatpush1.msra.mxu0 0.0
    %1892 = vmatprep.subr.mxu0 0.0
    %1893 = vmatpush1.msra.mxu0 0.0
    %1894 = vmatprep.subr.mxu0 0.0
    %1895 = vmatpush1.msra.mxu0 0.0
    %1896 = vmatprep.subr.mxu0 0.0
    %1897 = vmatpush1.msra.mxu0 0.0
    %1898 = vmatprep.subr.mxu0 0.0
    %1899 = vmatpush1.msra.mxu0 0.0
    %1900 = vmatprep.subr.mxu0 0.0
    %1901 = vmatpush1.msra.mxu0 0.0
    %1902 = vmatprep.subr.mxu0 0.0
    %1903 = vmatpush1.msra.mxu0 0.0
    %1904 = vmatprep.subr.mxu0 0.0
    %1905 = vmatpush1.msra.mxu0 0.0
    %1906 = vmatprep.subr.mxu0 0.0
    %1907 = vmatpush1.msra.mxu0 0.0
    %1908 = vmatprep.subr.mxu0 0.0
    %1909 = vmatpush1.msra.mxu0 0.0
    %1910 = vmatprep.subr.mxu0 0.0
    %1911 = vmatpush1.msra.mxu0 0.0
    %1912 = vmatprep.subr.mxu0 0.0
    %1913 = vmatpush1.msra.mxu0 0.0
    %1914 = vmatprep.subr.mxu0 0.0
    %1915 = vmatpush1.msra.mxu0 0.0
    %1916 = vmatprep.subr.mxu0 0.0
    %1917 = vmatpush1.msra.mxu0 0.0
    %1918 = vmatprep.subr.mxu0 0.0
    %1919 = vmatpush1.msra.mxu0 0.0
    %1920 = vmatprep.mubr.f32.mxu0 0.0
    %1921 = vmatmul.mubr.f32.gmra.mrb[0].mxu0 %v1783
    %v1922 = vpop.f32.mrb[0].mxu0
    %v1923 = vadd.f32 %v374, %v1922
    %v1924 = vpop.f32.mrb[0].mxu0
    %1925 = vdwg.mxu0
    %1926 = vmatprep.subr.mxu0 %v105
    %1927 = vmatpush1.msra.mxu0 %v104
    %1928 = vmatprep.subr.mxu0 %v108
    %1929 = vmatpush1.msra.mxu0 %v107
    %1930 = vmatprep.subr.mxu0 %v111
    %1931 = vmatpush1.msra.mxu0 %v110
    %1932 = vmatprep.subr.mxu0 %v114
    %1933 = vmatpush1.msra.mxu0 %v113
    %1934 = vmatprep.subr.mxu0 %v117
    %1935 = vmatpush1.msra.mxu0 %v116
    %1936 = vmatprep.subr.mxu0 %v120
    %1937 = vmatpush1.msra.mxu0 %v119
    %1938 = vmatprep.subr.mxu0 %v123
    %1939 = vmatpush1.msra.mxu0 %v122
    %1940 = vmatprep.subr.mxu0 %v126
    %1941 = vmatpush1.msra.mxu0 %v125
    %1942 = vmatprep.subr.mxu0 %v129
    %1943 = vmatpush1.msra.mxu0 %v128
    %1944 = vmatprep.subr.mxu0 %v132
    %1945 = vmatpush1.msra.mxu0 %v131
    %1946 = vmatprep.subr.mxu0 %v135
    %1947 = vmatpush1.msra.mxu0 %v134
    %1948 = vmatprep.subr.mxu0 %v138
    %1949 = vmatpush1.msra.mxu0 %v137
    %1950 = vmatprep.subr.mxu0 %v141
    %1951 = vmatpush1.msra.mxu0 %v140
    %1952 = vmatprep.subr.mxu0 %v144
    %1953 = vmatpush1.msra.mxu0 %v143
    %1954 = vmatprep.subr.mxu0 %v147
    %1955 = vmatpush1.msra.mxu0 %v146
    %1956 = vmatprep.subr.mxu0 %v150
    %1957 = vmatpush1.msra.mxu0 %v149
    %1958 = vmatprep.subr.mxu0 0.0
    %1959 = vmatpush1.msra.mxu0 0.0
    %1960 = vmatprep.subr.mxu0 0.0
    %1961 = vmatpush1.msra.mxu0 0.0
    %1962 = vmatprep.subr.mxu0 0.0
    %1963 = vmatpush1.msra.mxu0 0.0
    %1964 = vmatprep.subr.mxu0 0.0
    %1965 = vmatpush1.msra.mxu0 0.0
    %1966 = vmatprep.subr.mxu0 0.0
    %1967 = vmatpush1.msra.mxu0 0.0
    %1968 = vmatprep.subr.mxu0 0.0
    %1969 = vmatpush1.msra.mxu0 0.0
    %1970 = vmatprep.subr.mxu0 0.0
    %1971 = vmatpush1.msra.mxu0 0.0
    %1972 = vmatprep.subr.mxu0 0.0
    %1973 = vmatpush1.msra.mxu0 0.0
    %1974 = vmatprep.subr.mxu0 0.0
    %1975 = vmatpush1.msra.mxu0 0.0
    %1976 = vmatprep.subr.mxu0 0.0
    %1977 = vmatpush1.msra.mxu0 0.0
    %1978 = vmatprep.subr.mxu0 0.0
    %1979 = vmatpush1.msra.mxu0 0.0
    %1980 = vmatprep.subr.mxu0 0.0
    %1981 = vmatpush1.msra.mxu0 0.0
    %1982 = vmatprep.subr.mxu0 0.0
    %1983 = vmatpush1.msra.mxu0 0.0
    %1984 = vmatprep.subr.mxu0 0.0
    %1985 = vmatpush1.msra.mxu0 0.0
    %1986 = vmatprep.subr.mxu0 0.0
    %1987 = vmatpush1.msra.mxu0 0.0
    %1988 = vmatprep.subr.mxu0 0.0
    %1989 = vmatpush1.msra.mxu0 0.0
    %1990 = vmatprep.mubr.f32.mxu0 0.0
    %1991 = vmatmul.mubr.f32.gmra.mrb[0].mxu0 %v1403
    %v1992 = vpop.f32.mrb[0].mxu0
    %v1993 = vadd.f32 0.0, %v1992
    %v1994 = vpop.f32.mrb[0].mxu0
    %v1995 = vadd.f32 0.0, %v1994
    %1996 = vdwg.mxu0
    %1997 = vmatprep.subr.mxu0 0.0
    %1998 = vmatpush1.msra.mxu0 %v106
    %1999 = vmatprep.subr.mxu0 0.0
    %2000 = vmatpush1.msra.mxu0 %v109
    %2001 = vmatprep.subr.mxu0 0.0
    %2002 = vmatpush1.msra.mxu0 %v112
    %2003 = vmatprep.subr.mxu0 0.0
    %2004 = vmatpush1.msra.mxu0 %v115
    %2005 = vmatprep.subr.mxu0 0.0
    %2006 = vmatpush1.msra.mxu0 %v118
    %2007 = vmatprep.subr.mxu0 0.0
    %2008 = vmatpush1.msra.mxu0 %v121
    %2009 = vmatprep.subr.mxu0 0.0
    %2010 = vmatpush1.msra.mxu0 %v124
    %2011 = vmatprep.subr.mxu0 0.0
    %2012 = vmatpush1.msra.mxu0 %v127
    %2013 = vmatprep.subr.mxu0 0.0
    %2014 = vmatpush1.msra.mxu0 %v130
    %2015 = vmatprep.subr.mxu0 0.0
    %2016 = vmatpush1.msra.mxu0 %v133
    %2017 = vmatprep.subr.mxu0 0.0
    %2018 = vmatpush1.msra.mxu0 %v136
    %2019 = vmatprep.subr.mxu0 0.0
    %2020 = vmatpush1.msra.mxu0 %v139
    %2021 = vmatprep.subr.mxu0 0.0
    %2022 = vmatpush1.msra.mxu0 %v142
    %2023 = vmatprep.subr.mxu0 0.0
    %2024 = vmatpush1.msra.mxu0 %v145
    %2025 = vmatprep.subr.mxu0 0.0
    %2026 = vmatpush1.msra.mxu0 %v148
    %2027 = vmatprep.subr.mxu0 0.0
    %2028 = vmatpush1.msra.mxu0 %v151
    %2029 = vmatprep.subr.mxu0 0.0
    %2030 = vmatpush1.msra.mxu0 0.0
    %2031 = vmatprep.subr.mxu0 0.0
    %2032 = vmatpush1.msra.mxu0 0.0
    %2033 = vmatprep.subr.mxu0 0.0
    %2034 = vmatpush1.msra.mxu0 0.0
    %2035 = vmatprep.subr.mxu0 0.0
    %2036 = vmatpush1.msra.mxu0 0.0
    %2037 = vmatprep.subr.mxu0 0.0
    %2038 = vmatpush1.msra.mxu0 0.0
    %2039 = vmatprep.subr.mxu0 0.0
    %2040 = vmatpush1.msra.mxu0 0.0
    %2041 = vmatprep.subr.mxu0 0.0
    %2042 = vmatpush1.msra.mxu0 0.0
    %2043 = vmatprep.subr.mxu0 0.0
    %2044 = vmatpush1.msra.mxu0 0.0
    %2045 = vmatprep.subr.mxu0 0.0
    %2046 = vmatpush1.msra.mxu0 0.0
    %2047 = vmatprep.subr.mxu0 0.0
    %2048 = vmatpush1.msra.mxu0 0.0
    %2049 = vmatprep.subr.mxu0 0.0
    %2050 = vmatpush1.msra.mxu0 0.0
    %2051 = vmatprep.subr.mxu0 0.0
    %2052 = vmatpush1.msra.mxu0 0.0
    %2053 = vmatprep.subr.mxu0 0.0
    %2054 = vmatpush1.msra.mxu0 0.0
    %2055 = vmatprep.subr.mxu0 0.0
    %2056 = vmatpush1.msra.mxu0 0.0
    %2057 = vmatprep.subr.mxu0 0.0
    %2058 = vmatpush1.msra.mxu0 0.0
    %2059 = vmatprep.subr.mxu0 0.0
    %2060 = vmatpush1.msra.mxu0 0.0
    %2061 = vmatprep.mubr.f32.mxu0 0.0
    %2062 = vmatmul.mubr.f32.gmra.mrb[0].mxu0 %v1403
    %v2063 = vpop.f32.mrb[0].mxu0
    %v2064 = vadd.f32 0.0, %v2063
    %v2065 = vpop.f32.mrb[0].mxu0
    %2066 = vdwg.mxu0
    %v2067 = vadd.f32 %v1852, %v1993
    %v2068 = vxor.u32 %v2067, 2147483648
    %v2069 = vmul.f32 %v2068, 1.442695
    %v2070 = vpow.pop %v2069
    %v2071 = vadd.f32 %v2070, 1.0
    %v2072 = vrcp.pop %v2071
    %v2073 = vmul.f32 1.0, %v2072
    %v2074 = vadd.f32 %v1854, %v1995
    %v2075 = vxor.u32 %v2074, 2147483648
    %v2076 = vmul.f32 %v2075, 1.442695
    %v2077 = vpow.pop %v2076
    %v2078 = vadd.f32 %v2077, 1.0
    %v2079 = vrcp.pop %v2078
    %v2080 = vmul.f32 1.0, %v2079
    %v2081 = vadd.f32 %v2064, %v682
    %v2082 = vmul.f32 %v2073, %v2081
    %v2083 = vadd.f32 %v1923, %v2082
    %v2084 = vtanh.pop %v2083
    %v2085 = vsub.f32 1.0, %v2080
    %v2086 = vmul.f32 %v2085, %v2084
    %v2087 = vmul.f32 %v2080, %v1403
    %v2088 = vadd.f32 %v2086, %v2087
    %2089 = vmatprep.subr.mxu0 %v155
    %2090 = vmatpush1.msra.mxu0 %v154
    %2091 = vmatprep.subr.mxu0 %v158
    %2092 = vmatpush1.msra.mxu0 %v157
    %2093 = vmatprep.subr.mxu0 %v161
    %2094 = vmatpush1.msra.mxu0 %v160
    %2095 = vmatprep.subr.mxu0 %v164
    %2096 = vmatpush1.msra.mxu0 %v163
    %2097 = vmatprep.subr.mxu0 %v167
    %2098 = vmatpush1.msra.mxu0 %v166
    %2099 = vmatprep.subr.mxu0 %v170
    %2100 = vmatpush1.msra.mxu0 %v169
    %2101 = vmatprep.subr.mxu0 %v173
    %2102 = vmatpush1.msra.mxu0 %v172
    %2103 = vmatprep.subr.mxu0 %v176
    %2104 = vmatpush1.msra.mxu0 %v175
    %2105 = vmatprep.subr.mxu0 %v179
    %2106 = vmatpush1.msra.mxu0 %v178
    %2107 = vmatprep.subr.mxu0 %v182
    %2108 = vmatpush1.msra.mxu0 %v181
    %2109 = vmatprep.subr.mxu0 %v185
    %2110 = vmatpush1.msra.mxu0 %v184
    %2111 = vmatprep.subr.mxu0 %v188
    %2112 = vmatpush1.msra.mxu0 %v187
    %2113 = vmatprep.subr.mxu0 %v191
    %2114 = vmatpush1.msra.mxu0 %v190
    %2115 = vmatprep.subr.mxu0 %v194
    %2116 = vmatpush1.msra.mxu0 %v193
    %2117 = vmatprep.subr.mxu0 %v197
    %2118 = vmatpush1.msra.mxu0 %v196
    %2119 = vmatprep.subr.mxu0 %v200
    %2120 = vmatpush1.msra.mxu0 %v199
    %2121 = vmatprep.subr.mxu0 0.0
    %2122 = vmatpush1.msra.mxu0 0.0
    %2123 = vmatprep.subr.mxu0 0.0
    %2124 = vmatpush1.msra.mxu0 0.0
    %2125 = vmatprep.subr.mxu0 0.0
    %2126 = vmatpush1.msra.mxu0 0.0
    %2127 = vmatprep.subr.mxu0 0.0
    %2128 = vmatpush1.msra.mxu0 0.0
    %2129 = vmatprep.subr.mxu0 0.0
    %2130 = vmatpush1.msra.mxu0 0.0
    %2131 = vmatprep.subr.mxu0 0.0
    %2132 = vmatpush1.msra.mxu0 0.0
    %2133 = vmatprep.subr.mxu0 0.0
    %2134 = vmatpush1.msra.mxu0 0.0
    %2135 = vmatprep.subr.mxu0 0.0
    %2136 = vmatpush1.msra.mxu0 0.0
    %2137 = vmatprep.subr.mxu0 0.0
    %2138 = vmatpush1.msra.mxu0 0.0
    %2139 = vmatprep.subr.mxu0 0.0
    %2140 = vmatpush1.msra.mxu0 0.0
    %2141 = vmatprep.subr.mxu0 0.0
    %2142 = vmatpush1.msra.mxu0 0.0
    %2143 = vmatprep.subr.mxu0 0.0
    %2144 = vmatpush1.msra.mxu0 0.0
    %2145 = vmatprep.subr.mxu0 0.0
    %2146 = vmatpush1.msra.mxu0 0.0
    %2147 = vmatprep.subr.mxu0 0.0
    %2148 = vmatpush1.msra.mxu0 0.0
    %2149 = vmatprep.subr.mxu0 0.0
    %2150 = vmatpush1.msra.mxu0 0.0
    %2151 = vmatprep.subr.mxu0 0.0
    %2152 = vmatpush1.msra.mxu0 0.0
    %2153 = vmatprep.mubr.f32.mxu0 0.0
    %2154 = vmatmul.mubr.f32.gmra.mrb[0].mxu0 %v2088
    %v2155 = vpop.f32.mrb[0].mxu0
    %v2156 = vadd.f32 %v696, %v2155
    %v2157 = vpop.f32.mrb[0].mxu0
    %v2158 = vadd.f32 %v700, %v2157
    %2159 = vdwg.mxu0
    %2160 = vmatprep.subr.mxu0 0.0
    %2161 = vmatpush1.msra.mxu0 %v156
    %2162 = vmatprep.subr.mxu0 0.0
    %2163 = vmatpush1.msra.mxu0 %v159
    %2164 = vmatprep.subr.mxu0 0.0
    %2165 = vmatpush1.msra.mxu0 %v162
    %2166 = vmatprep.subr.mxu0 0.0
    %2167 = vmatpush1.msra.mxu0 %v165
    %2168 = vmatprep.subr.mxu0 0.0
    %2169 = vmatpush1.msra.mxu0 %v168
    %2170 = vmatprep.subr.mxu0 0.0
    %2171 = vmatpush1.msra.mxu0 %v171
    %2172 = vmatprep.subr.mxu0 0.0
    %2173 = vmatpush1.msra.mxu0 %v174
    %2174 = vmatprep.subr.mxu0 0.0
    %2175 = vmatpush1.msra.mxu0 %v177
    %2176 = vmatprep.subr.mxu0 0.0
    %2177 = vmatpush1.msra.mxu0 %v180
    %2178 = vmatprep.subr.mxu0 0.0
    %2179 = vmatpush1.msra.mxu0 %v183
    %2180 = vmatprep.subr.mxu0 0.0
    %2181 = vmatpush1.msra.mxu0 %v186
    %2182 = vmatprep.subr.mxu0 0.0
    %2183 = vmatpush1.msra.mxu0 %v189
    %2184 = vmatprep.subr.mxu0 0.0
    %2185 = vmatpush1.msra.mxu0 %v192
    %2186 = vmatprep.subr.mxu0 0.0
    %2187 = vmatpush1.msra.mxu0 %v195
    %2188 = vmatprep.subr.mxu0 0.0
    %2189 = vmatpush1.msra.mxu0 %v198
    %2190 = vmatprep.subr.mxu0 0.0
    %2191 = vmatpush1.msra.mxu0 %v201
    %2192 = vmatprep.subr.mxu0 0.0
    %2193 = vmatpush1.msra.mxu0 0.0
    %2194 = vmatprep.subr.mxu0 0.0
    %2195 = vmatpush1.msra.mxu0 0.0
    %2196 = vmatprep.subr.mxu0 0.0
    %2197 = vmatpush1.msra.mxu0 0.0
    %2198 = vmatprep.subr.mxu0 0.0
    %2199 = vmatpush1.msra.mxu0 0.0
    %2200 = vmatprep.subr.mxu0 0.0
    %2201 = vmatpush1.msra.mxu0 0.0
    %2202 = vmatprep.subr.mxu0 0.0
    %2203 = vmatpush1.msra.mxu0 0.0
    %2204 = vmatprep.subr.mxu0 0.0
    %2205 = vmatpush1.msra.mxu0 0.0
    %2206 = vmatprep.subr.mxu0 0.0
    %2207 = vmatpush1.msra.mxu0 0.0
    %2208 = vmatprep.subr.mxu0 0.0
    %2209 = vmatpush1.msra.mxu0 0.0
    %2210 = vmatprep.subr.mxu0 0.0
    %2211 = vmatpush1.msra.mxu0 0.0
    %2212 = vmatprep.subr.mxu0 0.0
    %2213 = vmatpush1.msra.mxu0 0.0
    %2214 = vmatprep.subr.mxu0 0.0
    %2215 = vmatpush1.msra.mxu0 0.0
    %2216 = vmatprep.subr.mxu0 0.0
    %2217 = vmatpush1.msra.mxu0 0.0
    %2218 = vmatprep.subr.mxu0 0.0
    %2219 = vmatpush1.msra.mxu0 0.0
    %2220 = vmatprep.subr.mxu0 0.0
    %2221 = vmatpush1.msra.mxu0 0.0
    %2222 = vmatprep.subr.mxu0 0.0
    %2223 = vmatpush1.msra.mxu0 0.0
    %2224 = vmatprep.mubr.f32.mxu0 0.0
    %2225 = vmatmul.mubr.f32.gmra.mrb[0].mxu0 %v2088
    %v2226 = vpop.f32.mrb[0].mxu0
    %v2227 = vadd.f32 %v704, %v2226
    %v2228 = vpop.f32.mrb[0].mxu0
    %2229 = vdwg.mxu0
    %2230 = vmatprep.subr.mxu0 %v203
    %2231 = vmatpush1.msra.mxu0 %v202
    %2232 = vmatprep.subr.mxu0 %v206
    %2233 = vmatpush1.msra.mxu0 %v205
    %2234 = vmatprep.subr.mxu0 %v209
    %2235 = vmatpush1.msra.mxu0 %v208
    %2236 = vmatprep.subr.mxu0 %v212
    %2237 = vmatpush1.msra.mxu0 %v211
    %2238 = vmatprep.subr.mxu0 %v215
    %2239 = vmatpush1.msra.mxu0 %v214
    %2240 = vmatprep.subr.mxu0 %v218
    %2241 = vmatpush1.msra.mxu0 %v217
    %2242 = vmatprep.subr.mxu0 %v221
    %2243 = vmatpush1.msra.mxu0 %v220
    %2244 = vmatprep.subr.mxu0 %v224
    %2245 = vmatpush1.msra.mxu0 %v223
    %2246 = vmatprep.subr.mxu0 %v227
    %2247 = vmatpush1.msra.mxu0 %v226
    %2248 = vmatprep.subr.mxu0 %v230
    %2249 = vmatpush1.msra.mxu0 %v229
    %2250 = vmatprep.subr.mxu0 %v233
    %2251 = vmatpush1.msra.mxu0 %v232
    %2252 = vmatprep.subr.mxu0 %v236
    %2253 = vmatpush1.msra.mxu0 %v235
    %2254 = vmatprep.subr.mxu0 %v239
    %2255 = vmatpush1.msra.mxu0 %v238
    %2256 = vmatprep.subr.mxu0 %v242
    %2257 = vmatpush1.msra.mxu0 %v241
    %2258 = vmatprep.subr.mxu0 %v245
    %2259 = vmatpush1.msra.mxu0 %v244
    %2260 = vmatprep.subr.mxu0 %v248
    %2261 = vmatpush1.msra.mxu0 %v247
    %2262 = vmatprep.subr.mxu0 0.0
    %2263 = vmatpush1.msra.mxu0 0.0
    %2264 = vmatprep.subr.mxu0 0.0
    %2265 = vmatpush1.msra.mxu0 0.0
    %2266 = vmatprep.subr.mxu0 0.0
    %2267 = vmatpush1.msra.mxu0 0.0
    %2268 = vmatprep.subr.mxu0 0.0
    %2269 = vmatpush1.msra.mxu0 0.0
    %2270 = vmatprep.subr.mxu0 0.0
    %2271 = vmatpush1.msra.mxu0 0.0
    %2272 = vmatprep.subr.mxu0 0.0
    %2273 = vmatpush1.msra.mxu0 0.0
    %2274 = vmatprep.subr.mxu0 0.0
    %2275 = vmatpush1.msra.mxu0 0.0
    %2276 = vmatprep.subr.mxu0 0.0
    %2277 = vmatpush1.msra.mxu0 0.0
    %2278 = vmatprep.subr.mxu0 0.0
    %2279 = vmatpush1.msra.mxu0 0.0
    %2280 = vmatprep.subr.mxu0 0.0
    %2281 = vmatpush1.msra.mxu0 0.0
    %2282 = vmatprep.subr.mxu0 0.0
    %2283 = vmatpush1.msra.mxu0 0.0
    %2284 = vmatprep.subr.mxu0 0.0
    %2285 = vmatpush1.msra.mxu0 0.0
    %2286 = vmatprep.subr.mxu0 0.0
    %2287 = vmatpush1.msra.mxu0 0.0
    %2288 = vmatprep.subr.mxu0 0.0
    %2289 = vmatpush1.msra.mxu0 0.0
    %2290 = vmatprep.subr.mxu0 0.0
    %2291 = vmatpush1.msra.mxu0 0.0
    %2292 = vmatprep.subr.mxu0 0.0
    %2293 = vmatpush1.msra.mxu0 0.0
    %2294 = vmatprep.mubr.f32.mxu0 0.0
    %2295 = vmatmul.mubr.f32.gmra.mrb[0].mxu0 %v1707
    %v2296 = vpop.f32.mrb[0].mxu0
    %v2297 = vadd.f32 0.0, %v2296
    %v2298 = vpop.f32.mrb[0].mxu0
    %v2299 = vadd.f32 0.0, %v2298
    %2300 = vdwg.mxu0
    %2301 = vmatprep.subr.mxu0 0.0
    %2302 = vmatpush1.msra.mxu0 %v204
    %2303 = vmatprep.subr.mxu0 0.0
    %2304 = vmatpush1.msra.mxu0 %v207
    %2305 = vmatprep.subr.mxu0 0.0
    %2306 = vmatpush1.msra.mxu0 %v210
    %2307 = vmatprep.subr.mxu0 0.0
    %2308 = vmatpush1.msra.mxu0 %v213
    %2309 = vmatprep.subr.mxu0 0.0
    %2310 = vmatpush1.msra.mxu0 %v216
    %2311 = vmatprep.subr.mxu0 0.0
    %2312 = vmatpush1.msra.mxu0 %v219
    %2313 = vmatprep.subr.mxu0 0.0
    %2314 = vmatpush1.msra.mxu0 %v222
    %2315 = vmatprep.subr.mxu0 0.0
    %2316 = vmatpush1.msra.mxu0 %v225
    %2317 = vmatprep.subr.mxu0 0.0
    %2318 = vmatpush1.msra.mxu0 %v228
    %2319 = vmatprep.subr.mxu0 0.0
    %2320 = vmatpush1.msra.mxu0 %v231
    %2321 = vmatprep.subr.mxu0 0.0
    %2322 = vmatpush1.msra.mxu0 %v234
    %2323 = vmatprep.subr.mxu0 0.0
    %2324 = vmatpush1.msra.mxu0 %v237
    %2325 = vmatprep.subr.mxu0 0.0
    %2326 = vmatpush1.msra.mxu0 %v240
    %2327 = vmatprep.subr.mxu0 0.0
    %2328 = vmatpush1.msra.mxu0 %v243
    %2329 = vmatprep.subr.mxu0 0.0
    %2330 = vmatpush1.msra.mxu0 %v246
    %2331 = vmatprep.subr.mxu0 0.0
    %2332 = vmatpush1.msra.mxu0 %v249
    %2333 = vmatprep.subr.mxu0 0.0
    %2334 = vmatpush1.msra.mxu0 0.0
    %2335 = vmatprep.subr.mxu0 0.0
    %2336 = vmatpush1.msra.mxu0 0.0
    %2337 = vmatprep.subr.mxu0 0.0
    %2338 = vmatpush1.msra.mxu0 0.0
    %2339 = vmatprep.subr.mxu0 0.0
    %2340 = vmatpush1.msra.mxu0 0.0
    %2341 = vmatprep.subr.mxu0 0.0
    %2342 = vmatpush1.msra.mxu0 0.0
    %2343 = vmatprep.subr.mxu0 0.0
    %2344 = vmatpush1.msra.mxu0 0.0
    %2345 = vmatprep.subr.mxu0 0.0
    %2346 = vmatpush1.msra.mxu0 0.0
    %2347 = vmatprep.subr.mxu0 0.0
    %2348 = vmatpush1.msra.mxu0 0.0
    %2349 = vmatprep.subr.mxu0 0.0
    %2350 = vmatpush1.msra.mxu0 0.0
    %2351 = vmatprep.subr.mxu0 0.0
    %2352 = vmatpush1.msra.mxu0 0.0
    %2353 = vmatprep.subr.mxu0 0.0
    %2354 = vmatpush1.msra.mxu0 0.0
    %2355 = vmatprep.subr.mxu0 0.0
    %2356 = vmatpush1.msra.mxu0 0.0
    %2357 = vmatprep.subr.mxu0 0.0
    %2358 = vmatpush1.msra.mxu0 0.0
    %2359 = vmatprep.subr.mxu0 0.0
    %2360 = vmatpush1.msra.mxu0 0.0
    %2361 = vmatprep.subr.mxu0 0.0
    %2362 = vmatpush1.msra.mxu0 0.0
    %2363 = vmatprep.subr.mxu0 0.0
    %2364 = vmatpush1.msra.mxu0 0.0
    %2365 = vmatprep.mubr.f32.mxu0 0.0
    %2366 = vmatmul.mubr.f32.gmra.mrb[0].mxu0 %v1707
    %v2367 = vpop.f32.mrb[0].mxu0
    %v2368 = vadd.f32 0.0, %v2367
    %v2369 = vpop.f32.mrb[0].mxu0
    %2370 = vdwg.mxu0
    %v2371 = vadd.f32 %v2156, %v2297
    %v2372 = vxor.u32 %v2371, 2147483648
    %v2373 = vmul.f32 %v2372, 1.442695
    %v2374 = vpow.pop %v2373
    %v2375 = vadd.f32 %v2374, 1.0
    %v2376 = vrcp.pop %v2375
    %v2377 = vmul.f32 1.0, %v2376
    %v2378 = vadd.f32 %v2158, %v2299
    %v2379 = vxor.u32 %v2378, 2147483648
    %v2380 = vmul.f32 %v2379, 1.442695
    %v2381 = vpow.pop %v2380
    %v2382 = vadd.f32 %v2381, 1.0
    %v2383 = vrcp.pop %v2382
    %v2384 = vmul.f32 1.0, %v2383
    %v2385 = vadd.f32 %v2368, %v1008
    %v2386 = vmul.f32 %v2377, %v2385
    %v2387 = vadd.f32 %v2227, %v2386
    %v2388 = vtanh.pop %v2387
    %v2389 = vsub.f32 1.0, %v2384
    %v2390 = vmul.f32 %v2389, %v2388
    %v2391 = vmul.f32 %v2384, %v1707
    %v2392 = vadd.f32 %v2390, %v2391
    %2393 = vmatprep.subr.mxu0 0.0
    %2394 = vmatpush1.msra.mxu0 %v252
    %2395 = vmatprep.subr.mxu0 0.0
    %2396 = vmatpush1.msra.mxu0 %v253
    %2397 = vmatprep.subr.mxu0 0.0
    %2398 = vmatpush1.msra.mxu0 %v254
    %2399 = vmatprep.subr.mxu0 0.0
    %2400 = vmatpush1.msra.mxu0 %v255
    %2401 = vmatprep.subr.mxu0 0.0
    %2402 = vmatpush1.msra.mxu0 %v256
    %2403 = vmatprep.subr.mxu0 0.0
    %2404 = vmatpush1.msra.mxu0 %v257
    %2405 = vmatprep.subr.mxu0 0.0
    %2406 = vmatpush1.msra.mxu0 %v258
    %2407 = vmatprep.subr.mxu0 0.0
    %2408 = vmatpush1.msra.mxu0 %v259
    %2409 = vmatprep.subr.mxu0 0.0
    %2410 = vmatpush1.msra.mxu0 %v260
    %2411 = vmatprep.subr.mxu0 0.0
    %2412 = vmatpush1.msra.mxu0 %v261
    %2413 = vmatprep.subr.mxu0 0.0
    %2414 = vmatpush1.msra.mxu0 %v262
    %2415 = vmatprep.subr.mxu0 0.0
    %2416 = vmatpush1.msra.mxu0 %v263
    %2417 = vmatprep.subr.mxu0 0.0
    %2418 = vmatpush1.msra.mxu0 %v264
    %2419 = vmatprep.subr.mxu0 0.0
    %2420 = vmatpush1.msra.mxu0 %v265
    %2421 = vmatprep.subr.mxu0 0.0
    %2422 = vmatpush1.msra.mxu0 %v266
    %2423 = vmatprep.subr.mxu0 0.0
    %2424 = vmatpush1.msra.mxu0 %v267
    %2425 = vmatprep.subr.mxu0 0.0
    %2426 = vmatpush1.msra.mxu0 0.0
    %2427 = vmatprep.subr.mxu0 0.0
    %2428 = vmatpush1.msra.mxu0 0.0
    %2429 = vmatprep.subr.mxu0 0.0
    %2430 = vmatpush1.msra.mxu0 0.0
    %2431 = vmatprep.subr.mxu0 0.0
    %2432 = vmatpush1.msra.mxu0 0.0
    %2433 = vmatprep.subr.mxu0 0.0
    %2434 = vmatpush1.msra.mxu0 0.0
    %2435 = vmatprep.subr.mxu0 0.0
    %2436 = vmatpush1.msra.mxu0 0.0
    %2437 = vmatprep.subr.mxu0 0.0
    %2438 = vmatpush1.msra.mxu0 0.0
    %2439 = vmatprep.subr.mxu0 0.0
    %2440 = vmatpush1.msra.mxu0 0.0
    %2441 = vmatprep.subr.mxu0 0.0
    %2442 = vmatpush1.msra.mxu0 0.0
    %2443 = vmatprep.subr.mxu0 0.0
    %2444 = vmatpush1.msra.mxu0 0.0
    %2445 = vmatprep.subr.mxu0 0.0
    %2446 = vmatpush1.msra.mxu0 0.0
    %2447 = vmatprep.subr.mxu0 0.0
    %2448 = vmatpush1.msra.mxu0 0.0
    %2449 = vmatprep.subr.mxu0 0.0
    %2450 = vmatpush1.msra.mxu0 0.0
    %2451 = vmatprep.subr.mxu0 0.0
    %2452 = vmatpush1.msra.mxu0 0.0
    %2453 = vmatprep.subr.mxu0 0.0
    %2454 = vmatpush1.msra.mxu0 0.0
    %2455 = vmatprep.subr.mxu0 0.0
    %2456 = vmatpush1.msra.mxu0 0.0
    %2457 = vmatprep.mubr.f32.mxu0 0.0
    %2458 = vmatmul.mubr.f32.gmra.mrb[0].mxu0 %v2392
    %v2459 = vpop.f32.mrb[0].mxu0
    %v2460 = vadd.f32 %v1022, %v2459
    %v2461 = vpop.f32.mrb[0].mxu0
    %2462 = vdwg.mxu0
    %s2463 = scalar_lea.vmem [#allocation8], 4
    %2464 = vst.msk [vmem:[%s2463] sm:$0x3] %vm1094, %v2460
    %s2465 = scalar_lea.vmem %s0, 4
    %v2466 = vld [vmem:[%s2465] sm:$0x3]
    %v2468 = vsel %vm378, %v2466, 0
    %2470 = vmatprep.subr.mxu0 %v93
    %2471 = vmatpush1.msra.mxu0 %v92
    %2472 = vmatprep.subr.mxu0 %v96
    %2473 = vmatpush1.msra.mxu0 %v95
    %2474 = vmatprep.subr.mxu0 %v99
    %2475 = vmatpush1.msra.mxu0 %v98
    %2476 = vmatprep.subr.mxu0 %v102
    %2477 = vmatpush1.msra.mxu0 %v101
    %2478 = vmatprep.subr.mxu0 0.0
    %2479 = vmatpush1.msra.mxu0 0.0
    %2480 = vmatprep.subr.mxu0 0.0
    %2481 = vmatpush1.msra.mxu0 0.0
    %2482 = vmatprep.subr.mxu0 0.0
    %2483 = vmatpush1.msra.mxu0 0.0
    %2484 = vmatprep.subr.mxu0 0.0
    %2485 = vmatpush1.msra.mxu0 0.0
    %2486 = vmatprep.subr.mxu0 0.0
    %2487 = vmatpush1.msra.mxu0 0.0
    %2488 = vmatprep.subr.mxu0 0.0
    %2489 = vmatpush1.msra.mxu0 0.0
    %2490 = vmatprep.subr.mxu0 0.0
    %2491 = vmatpush1.msra.mxu0 0.0
    %2492 = vmatprep.subr.mxu0 0.0
    %2493 = vmatpush1.msra.mxu0 0.0
    %2494 = vmatprep.subr.mxu0 0.0
    %2495 = vmatpush1.msra.mxu0 0.0
    %2496 = vmatprep.subr.mxu0 0.0
    %2497 = vmatpush1.msra.mxu0 0.0
    %2498 = vmatprep.subr.mxu0 0.0
    %2499 = vmatpush1.msra.mxu0 0.0
    %2500 = vmatprep.subr.mxu0 0.0
    %2501 = vmatpush1.msra.mxu0 0.0
    %2502 = vmatprep.subr.mxu0 0.0
    %2503 = vmatpush1.msra.mxu0 0.0
    %2504 = vmatprep.subr.mxu0 0.0
    %2505 = vmatpush1.msra.mxu0 0.0
    %2506 = vmatprep.subr.mxu0 0.0
    %2507 = vmatpush1.msra.mxu0 0.0
    %2508 = vmatprep.subr.mxu0 0.0
    %2509 = vmatpush1.msra.mxu0 0.0
    %2510 = vmatprep.subr.mxu0 0.0
    %2511 = vmatpush1.msra.mxu0 0.0
    %2512 = vmatprep.subr.mxu0 0.0
    %2513 = vmatpush1.msra.mxu0 0.0
    %2514 = vmatprep.subr.mxu0 0.0
    %2515 = vmatpush1.msra.mxu0 0.0
    %2516 = vmatprep.subr.mxu0 0.0
    %2517 = vmatpush1.msra.mxu0 0.0
    %2518 = vmatprep.subr.mxu0 0.0
    %2519 = vmatpush1.msra.mxu0 0.0
    %2520 = vmatprep.subr.mxu0 0.0
    %2521 = vmatpush1.msra.mxu0 0.0
    %2522 = vmatprep.subr.mxu0 0.0
    %2523 = vmatpush1.msra.mxu0 0.0
    %2524 = vmatprep.subr.mxu0 0.0
    %2525 = vmatpush1.msra.mxu0 0.0
    %2526 = vmatprep.subr.mxu0 0.0
    %2527 = vmatpush1.msra.mxu0 0.0
    %2528 = vmatprep.subr.mxu0 0.0
    %2529 = vmatpush1.msra.mxu0 0.0
    %2530 = vmatprep.subr.mxu0 0.0
    %2531 = vmatpush1.msra.mxu0 0.0
    %2532 = vmatprep.subr.mxu0 0.0
    %2533 = vmatpush1.msra.mxu0 0.0
    %2534 = vmatprep.mubr.f32.mxu0 0.0
    %2535 = vmatmul.mubr.f32.gmra.mrb[0].mxu0 %v2468
    %v2536 = vpop.f32.mrb[0].mxu0
    %v2537 = vadd.f32 %v366, %v2536
    %v2538 = vpop.f32.mrb[0].mxu0
    %v2539 = vadd.f32 %v370, %v2538
    %2540 = vdwg.mxu0
    %2541 = vmatprep.subr.mxu0 0.0
    %2542 = vmatpush1.msra.mxu0 %v94
    %2543 = vmatprep.subr.mxu0 0.0
    %2544 = vmatpush1.msra.mxu0 %v97
    %2545 = vmatprep.subr.mxu0 0.0
    %2546 = vmatpush1.msra.mxu0 %v100
    %2547 = vmatprep.subr.mxu0 0.0
    %2548 = vmatpush1.msra.mxu0 %v103
    %2549 = vmatprep.subr.mxu0 0.0
    %2550 = vmatpush1.msra.mxu0 0.0
    %2551 = vmatprep.subr.mxu0 0.0
    %2552 = vmatpush1.msra.mxu0 0.0
    %2553 = vmatprep.subr.mxu0 0.0
    %2554 = vmatpush1.msra.mxu0 0.0
    %2555 = vmatprep.subr.mxu0 0.0
    %2556 = vmatpush1.msra.mxu0 0.0
    %2557 = vmatprep.subr.mxu0 0.0
    %2558 = vmatpush1.msra.mxu0 0.0
    %2559 = vmatprep.subr.mxu0 0.0
    %2560 = vmatpush1.msra.mxu0 0.0
    %2561 = vmatprep.subr.mxu0 0.0
    %2562 = vmatpush1.msra.mxu0 0.0
    %2563 = vmatprep.subr.mxu0 0.0
    %2564 = vmatpush1.msra.mxu0 0.0
    %2565 = vmatprep.subr.mxu0 0.0
    %2566 = vmatpush1.msra.mxu0 0.0
    %2567 = vmatprep.subr.mxu0 0.0
    %2568 = vmatpush1.msra.mxu0 0.0
    %2569 = vmatprep.subr.mxu0 0.0
    %2570 = vmatpush1.msra.mxu0 0.0
    %2571 = vmatprep.subr.mxu0 0.0
    %2572 = vmatpush1.msra.mxu0 0.0
    %2573 = vmatprep.subr.mxu0 0.0
    %2574 = vmatpush1.msra.mxu0 0.0
    %2575 = vmatprep.subr.mxu0 0.0
    %2576 = vmatpush1.msra.mxu0 0.0
    %2577 = vmatprep.subr.mxu0 0.0
    %2578 = vmatpush1.msra.mxu0 0.0
    %2579 = vmatprep.subr.mxu0 0.0
    %2580 = vmatpush1.msra.mxu0 0.0
    %2581 = vmatprep.subr.mxu0 0.0
    %2582 = vmatpush1.msra.mxu0 0.0
    %2583 = vmatprep.subr.mxu0 0.0
    %2584 = vmatpush1.msra.mxu0 0.0
    %2585 = vmatprep.subr.mxu0 0.0
    %2586 = vmatpush1.msra.mxu0 0.0
    %2587 = vmatprep.subr.mxu0 0.0
    %2588 = vmatpush1.msra.mxu0 0.0
    %2589 = vmatprep.subr.mxu0 0.0
    %2590 = vmatpush1.msra.mxu0 0.0
    %2591 = vmatprep.subr.mxu0 0.0
    %2592 = vmatpush1.msra.mxu0 0.0
    %2593 = vmatprep.subr.mxu0 0.0
    %2594 = vmatpush1.msra.mxu0 0.0
    %2595 = vmatprep.subr.mxu0 0.0
    %2596 = vmatpush1.msra.mxu0 0.0
    %2597 = vmatprep.subr.mxu0 0.0
    %2598 = vmatpush1.msra.mxu0 0.0
    %2599 = vmatprep.subr.mxu0 0.0
    %2600 = vmatpush1.msra.mxu0 0.0
    %2601 = vmatprep.subr.mxu0 0.0
    %2602 = vmatpush1.msra.mxu0 0.0
    %2603 = vmatprep.subr.mxu0 0.0
    %2604 = vmatpush1.msra.mxu0 0.0
    %2605 = vmatprep.mubr.f32.mxu0 0.0
    %2606 = vmatmul.mubr.f32.gmra.mrb[0].mxu0 %v2468
    %v2607 = vpop.f32.mrb[0].mxu0
    %v2608 = vadd.f32 %v374, %v2607
    %v2609 = vpop.f32.mrb[0].mxu0
    %2610 = vdwg.mxu0
    %2611 = vmatprep.subr.mxu0 %v105
    %2612 = vmatpush1.msra.mxu0 %v104
    %2613 = vmatprep.subr.mxu0 %v108
    %2614 = vmatpush1.msra.mxu0 %v107
    %2615 = vmatprep.subr.mxu0 %v111
    %2616 = vmatpush1.msra.mxu0 %v110
    %2617 = vmatprep.subr.mxu0 %v114
    %2618 = vmatpush1.msra.mxu0 %v113
    %2619 = vmatprep.subr.mxu0 %v117
    %2620 = vmatpush1.msra.mxu0 %v116
    %2621 = vmatprep.subr.mxu0 %v120
    %2622 = vmatpush1.msra.mxu0 %v119
    %2623 = vmatprep.subr.mxu0 %v123
    %2624 = vmatpush1.msra.mxu0 %v122
    %2625 = vmatprep.subr.mxu0 %v126
    %2626 = vmatpush1.msra.mxu0 %v125
    %2627 = vmatprep.subr.mxu0 %v129
    %2628 = vmatpush1.msra.mxu0 %v128
    %2629 = vmatprep.subr.mxu0 %v132
    %2630 = vmatpush1.msra.mxu0 %v131
    %2631 = vmatprep.subr.mxu0 %v135
    %2632 = vmatpush1.msra.mxu0 %v134
    %2633 = vmatprep.subr.mxu0 %v138
    %2634 = vmatpush1.msra.mxu0 %v137
    %2635 = vmatprep.subr.mxu0 %v141
    %2636 = vmatpush1.msra.mxu0 %v140
    %2637 = vmatprep.subr.mxu0 %v144
    %2638 = vmatpush1.msra.mxu0 %v143
    %2639 = vmatprep.subr.mxu0 %v147
    %2640 = vmatpush1.msra.mxu0 %v146
    %2641 = vmatprep.subr.mxu0 %v150
    %2642 = vmatpush1.msra.mxu0 %v149
    %2643 = vmatprep.subr.mxu0 0.0
    %2644 = vmatpush1.msra.mxu0 0.0
    %2645 = vmatprep.subr.mxu0 0.0
    %2646 = vmatpush1.msra.mxu0 0.0
    %2647 = vmatprep.subr.mxu0 0.0
    %2648 = vmatpush1.msra.mxu0 0.0
    %2649 = vmatprep.subr.mxu0 0.0
    %2650 = vmatpush1.msra.mxu0 0.0
    %2651 = vmatprep.subr.mxu0 0.0
    %2652 = vmatpush1.msra.mxu0 0.0
    %2653 = vmatprep.subr.mxu0 0.0
    %2654 = vmatpush1.msra.mxu0 0.0
    %2655 = vmatprep.subr.mxu0 0.0
    %2656 = vmatpush1.msra.mxu0 0.0
    %2657 = vmatprep.subr.mxu0 0.0
    %2658 = vmatpush1.msra.mxu0 0.0
    %2659 = vmatprep.subr.mxu0 0.0
    %2660 = vmatpush1.msra.mxu0 0.0
    %2661 = vmatprep.subr.mxu0 0.0
    %2662 = vmatpush1.msra.mxu0 0.0
    %2663 = vmatprep.subr.mxu0 0.0
    %2664 = vmatpush1.msra.mxu0 0.0
    %2665 = vmatprep.subr.mxu0 0.0
    %2666 = vmatpush1.msra.mxu0 0.0
    %2667 = vmatprep.subr.mxu0 0.0
    %2668 = vmatpush1.msra.mxu0 0.0
    %2669 = vmatprep.subr.mxu0 0.0
    %2670 = vmatpush1.msra.mxu0 0.0
    %2671 = vmatprep.subr.mxu0 0.0
    %2672 = vmatpush1.msra.mxu0 0.0
    %2673 = vmatprep.subr.mxu0 0.0
    %2674 = vmatpush1.msra.mxu0 0.0
    %2675 = vmatprep.mubr.f32.mxu0 0.0
    %2676 = vmatmul.mubr.f32.gmra.mrb[0].mxu0 %v2088
    %v2677 = vpop.f32.mrb[0].mxu0
    %v2678 = vadd.f32 0.0, %v2677
    %v2679 = vpop.f32.mrb[0].mxu0
    %v2680 = vadd.f32 0.0, %v2679
    %2681 = vdwg.mxu0
    %2682 = vmatprep.subr.mxu0 0.0
    %2683 = vmatpush1.msra.mxu0 %v106
    %2684 = vmatprep.subr.mxu0 0.0
    %2685 = vmatpush1.msra.mxu0 %v109
    %2686 = vmatprep.subr.mxu0 0.0
    %2687 = vmatpush1.msra.mxu0 %v112
    %2688 = vmatprep.subr.mxu0 0.0
    %2689 = vmatpush1.msra.mxu0 %v115
    %2690 = vmatprep.subr.mxu0 0.0
    %2691 = vmatpush1.msra.mxu0 %v118
    %2692 = vmatprep.subr.mxu0 0.0
    %2693 = vmatpush1.msra.mxu0 %v121
    %2694 = vmatprep.subr.mxu0 0.0
    %2695 = vmatpush1.msra.mxu0 %v124
    %2696 = vmatprep.subr.mxu0 0.0
    %2697 = vmatpush1.msra.mxu0 %v127
    %2698 = vmatprep.subr.mxu0 0.0
    %2699 = vmatpush1.msra.mxu0 %v130
    %2700 = vmatprep.subr.mxu0 0.0
    %2701 = vmatpush1.msra.mxu0 %v133
    %2702 = vmatprep.subr.mxu0 0.0
    %2703 = vmatpush1.msra.mxu0 %v136
    %2704 = vmatprep.subr.mxu0 0.0
    %2705 = vmatpush1.msra.mxu0 %v139
    %2706 = vmatprep.subr.mxu0 0.0
    %2707 = vmatpush1.msra.mxu0 %v142
    %2708 = vmatprep.subr.mxu0 0.0
    %2709 = vmatpush1.msra.mxu0 %v145
    %2710 = vmatprep.subr.mxu0 0.0
    %2711 = vmatpush1.msra.mxu0 %v148
    %2712 = vmatprep.subr.mxu0 0.0
    %2713 = vmatpush1.msra.mxu0 %v151
    %2714 = vmatprep.subr.mxu0 0.0
    %2715 = vmatpush1.msra.mxu0 0.0
    %2716 = vmatprep.subr.mxu0 0.0
    %2717 = vmatpush1.msra.mxu0 0.0
    %2718 = vmatprep.subr.mxu0 0.0
    %2719 = vmatpush1.msra.mxu0 0.0
    %2720 = vmatprep.subr.mxu0 0.0
    %2721 = vmatpush1.msra.mxu0 0.0
    %2722 = vmatprep.subr.mxu0 0.0
    %2723 = vmatpush1.msra.mxu0 0.0
    %2724 = vmatprep.subr.mxu0 0.0
    %2725 = vmatpush1.msra.mxu0 0.0
    %2726 = vmatprep.subr.mxu0 0.0
    %2727 = vmatpush1.msra.mxu0 0.0
    %2728 = vmatprep.subr.mxu0 0.0
    %2729 = vmatpush1.msra.mxu0 0.0
    %2730 = vmatprep.subr.mxu0 0.0
    %2731 = vmatpush1.msra.mxu0 0.0
    %2732 = vmatprep.subr.mxu0 0.0
    %2733 = vmatpush1.msra.mxu0 0.0
    %2734 = vmatprep.subr.mxu0 0.0
    %2735 = vmatpush1.msra.mxu0 0.0
    %2736 = vmatprep.subr.mxu0 0.0
    %2737 = vmatpush1.msra.mxu0 0.0
    %2738 = vmatprep.subr.mxu0 0.0
    %2739 = vmatpush1.msra.mxu0 0.0
    %2740 = vmatprep.subr.mxu0 0.0
    %2741 = vmatpush1.msra.mxu0 0.0
    %2742 = vmatprep.subr.mxu0 0.0
    %2743 = vmatpush1.msra.mxu0 0.0
    %2744 = vmatprep.subr.mxu0 0.0
    %2745 = vmatpush1.msra.mxu0 0.0
    %2746 = vmatprep.mubr.f32.mxu0 0.0
    %2747 = vmatmul.mubr.f32.gmra.mrb[0].mxu0 %v2088
    %v2748 = vpop.f32.mrb[0].mxu0
    %v2749 = vadd.f32 0.0, %v2748
    %v2750 = vpop.f32.mrb[0].mxu0
    %2751 = vdwg.mxu0
    %v2752 = vadd.f32 %v2537, %v2678
    %v2753 = vxor.u32 %v2752, 2147483648
    %v2754 = vmul.f32 %v2753, 1.442695
    %v2755 = vpow.pop %v2754
    %v2756 = vadd.f32 %v2755, 1.0
    %v2757 = vrcp.pop %v2756
    %v2758 = vmul.f32 1.0, %v2757
    %v2759 = vadd.f32 %v2539, %v2680
    %v2760 = vxor.u32 %v2759, 2147483648
    %v2761 = vmul.f32 %v2760, 1.442695
    %v2762 = vpow.pop %v2761
    %v2763 = vadd.f32 %v2762, 1.0
    %v2764 = vrcp.pop %v2763
    %v2765 = vmul.f32 1.0, %v2764
    %v2766 = vadd.f32 %v2749, %v682
    %v2767 = vmul.f32 %v2758, %v2766
    %v2768 = vadd.f32 %v2608, %v2767
    %v2769 = vtanh.pop %v2768
    %v2770 = vsub.f32 1.0, %v2765
    %v2771 = vmul.f32 %v2770, %v2769
    %v2772 = vmul.f32 %v2765, %v2088
    %v2773 = vadd.f32 %v2771, %v2772
    %2774 = vmatprep.subr.mxu0 %v155
    %2775 = vmatpush1.msra.mxu0 %v154
    %2776 = vmatprep.subr.mxu0 %v158
    %2777 = vmatpush1.msra.mxu0 %v157
    %2778 = vmatprep.subr.mxu0 %v161
    %2779 = vmatpush1.msra.mxu0 %v160
    %2780 = vmatprep.subr.mxu0 %v164
    %2781 = vmatpush1.msra.mxu0 %v163
    %2782 = vmatprep.subr.mxu0 %v167
    %2783 = vmatpush1.msra.mxu0 %v166
    %2784 = vmatprep.subr.mxu0 %v170
    %2785 = vmatpush1.msra.mxu0 %v169
    %2786 = vmatprep.subr.mxu0 %v173
    %2787 = vmatpush1.msra.mxu0 %v172
    %2788 = vmatprep.subr.mxu0 %v176
    %2789 = vmatpush1.msra.mxu0 %v175
    %2790 = vmatprep.subr.mxu0 %v179
    %2791 = vmatpush1.msra.mxu0 %v178
    %2792 = vmatprep.subr.mxu0 %v182
    %2793 = vmatpush1.msra.mxu0 %v181
    %2794 = vmatprep.subr.mxu0 %v185
    %2795 = vmatpush1.msra.mxu0 %v184
    %2796 = vmatprep.subr.mxu0 %v188
    %2797 = vmatpush1.msra.mxu0 %v187
    %2798 = vmatprep.subr.mxu0 %v191
    %2799 = vmatpush1.msra.mxu0 %v190
    %2800 = vmatprep.subr.mxu0 %v194
    %2801 = vmatpush1.msra.mxu0 %v193
    %2802 = vmatprep.subr.mxu0 %v197
    %2803 = vmatpush1.msra.mxu0 %v196
    %2804 = vmatprep.subr.mxu0 %v200
    %2805 = vmatpush1.msra.mxu0 %v199
    %2806 = vmatprep.subr.mxu0 0.0
    %2807 = vmatpush1.msra.mxu0 0.0
    %2808 = vmatprep.subr.mxu0 0.0
    %2809 = vmatpush1.msra.mxu0 0.0
    %2810 = vmatprep.subr.mxu0 0.0
    %2811 = vmatpush1.msra.mxu0 0.0
    %2812 = vmatprep.subr.mxu0 0.0
    %2813 = vmatpush1.msra.mxu0 0.0
    %2814 = vmatprep.subr.mxu0 0.0
    %2815 = vmatpush1.msra.mxu0 0.0
    %2816 = vmatprep.subr.mxu0 0.0
    %2817 = vmatpush1.msra.mxu0 0.0
    %2818 = vmatprep.subr.mxu0 0.0
    %2819 = vmatpush1.msra.mxu0 0.0
    %2820 = vmatprep.subr.mxu0 0.0
    %2821 = vmatpush1.msra.mxu0 0.0
    %2822 = vmatprep.subr.mxu0 0.0
    %2823 = vmatpush1.msra.mxu0 0.0
    %2824 = vmatprep.subr.mxu0 0.0
    %2825 = vmatpush1.msra.mxu0 0.0
    %2826 = vmatprep.subr.mxu0 0.0
    %2827 = vmatpush1.msra.mxu0 0.0
    %2828 = vmatprep.subr.mxu0 0.0
    %2829 = vmatpush1.msra.mxu0 0.0
    %2830 = vmatprep.subr.mxu0 0.0
    %2831 = vmatpush1.msra.mxu0 0.0
    %2832 = vmatprep.subr.mxu0 0.0
    %2833 = vmatpush1.msra.mxu0 0.0
    %2834 = vmatprep.subr.mxu0 0.0
    %2835 = vmatpush1.msra.mxu0 0.0
    %2836 = vmatprep.subr.mxu0 0.0
    %2837 = vmatpush1.msra.mxu0 0.0
    %2838 = vmatprep.mubr.f32.mxu0 0.0
    %2839 = vmatmul.mubr.f32.gmra.mrb[0].mxu0 %v2773
    %v2840 = vpop.f32.mrb[0].mxu0
    %v2841 = vadd.f32 %v696, %v2840
    %v2842 = vpop.f32.mrb[0].mxu0
    %v2843 = vadd.f32 %v700, %v2842
    %2844 = vdwg.mxu0
    %2845 = vmatprep.subr.mxu0 0.0
    %2846 = vmatpush1.msra.mxu0 %v156
    %2847 = vmatprep.subr.mxu0 0.0
    %2848 = vmatpush1.msra.mxu0 %v159
    %2849 = vmatprep.subr.mxu0 0.0
    %2850 = vmatpush1.msra.mxu0 %v162
    %2851 = vmatprep.subr.mxu0 0.0
    %2852 = vmatpush1.msra.mxu0 %v165
    %2853 = vmatprep.subr.mxu0 0.0
    %2854 = vmatpush1.msra.mxu0 %v168
    %2855 = vmatprep.subr.mxu0 0.0
    %2856 = vmatpush1.msra.mxu0 %v171
    %2857 = vmatprep.subr.mxu0 0.0
    %2858 = vmatpush1.msra.mxu0 %v174
    %2859 = vmatprep.subr.mxu0 0.0
    %2860 = vmatpush1.msra.mxu0 %v177
    %2861 = vmatprep.subr.mxu0 0.0
    %2862 = vmatpush1.msra.mxu0 %v180
    %2863 = vmatprep.subr.mxu0 0.0
    %2864 = vmatpush1.msra.mxu0 %v183
    %2865 = vmatprep.subr.mxu0 0.0
    %2866 = vmatpush1.msra.mxu0 %v186
    %2867 = vmatprep.subr.mxu0 0.0
    %2868 = vmatpush1.msra.mxu0 %v189
    %2869 = vmatprep.subr.mxu0 0.0
    %2870 = vmatpush1.msra.mxu0 %v192
    %2871 = vmatprep.subr.mxu0 0.0
    %2872 = vmatpush1.msra.mxu0 %v195
    %2873 = vmatprep.subr.mxu0 0.0
    %2874 = vmatpush1.msra.mxu0 %v198
    %2875 = vmatprep.subr.mxu0 0.0
    %2876 = vmatpush1.msra.mxu0 %v201
    %2877 = vmatprep.subr.mxu0 0.0
    %2878 = vmatpush1.msra.mxu0 0.0
    %2879 = vmatprep.subr.mxu0 0.0
    %2880 = vmatpush1.msra.mxu0 0.0
    %2881 = vmatprep.subr.mxu0 0.0
    %2882 = vmatpush1.msra.mxu0 0.0
    %2883 = vmatprep.subr.mxu0 0.0
    %2884 = vmatpush1.msra.mxu0 0.0
    %2885 = vmatprep.subr.mxu0 0.0
    %2886 = vmatpush1.msra.mxu0 0.0
    %2887 = vmatprep.subr.mxu0 0.0
    %2888 = vmatpush1.msra.mxu0 0.0
    %2889 = vmatprep.subr.mxu0 0.0
    %2890 = vmatpush1.msra.mxu0 0.0
    %2891 = vmatprep.subr.mxu0 0.0
    %2892 = vmatpush1.msra.mxu0 0.0
    %2893 = vmatprep.subr.mxu0 0.0
    %2894 = vmatpush1.msra.mxu0 0.0
    %2895 = vmatprep.subr.mxu0 0.0
    %2896 = vmatpush1.msra.mxu0 0.0
    %2897 = vmatprep.subr.mxu0 0.0
    %2898 = vmatpush1.msra.mxu0 0.0
    %2899 = vmatprep.subr.mxu0 0.0
    %2900 = vmatpush1.msra.mxu0 0.0
    %2901 = vmatprep.subr.mxu0 0.0
    %2902 = vmatpush1.msra.mxu0 0.0
    %2903 = vmatprep.subr.mxu0 0.0
    %2904 = vmatpush1.msra.mxu0 0.0
    %2905 = vmatprep.subr.mxu0 0.0
    %2906 = vmatpush1.msra.mxu0 0.0
    %2907 = vmatprep.subr.mxu0 0.0
    %2908 = vmatpush1.msra.mxu0 0.0
    %2909 = vmatprep.mubr.f32.mxu0 0.0
    %2910 = vmatmul.mubr.f32.gmra.mrb[0].mxu0 %v2773
    %v2911 = vpop.f32.mrb[0].mxu0
    %v2912 = vadd.f32 %v704, %v2911
    %v2913 = vpop.f32.mrb[0].mxu0
    %2914 = vdwg.mxu0
    %2915 = vmatprep.subr.mxu0 %v203
    %2916 = vmatpush1.msra.mxu0 %v202
    %2917 = vmatprep.subr.mxu0 %v206
    %2918 = vmatpush1.msra.mxu0 %v205
    %2919 = vmatprep.subr.mxu0 %v209
    %2920 = vmatpush1.msra.mxu0 %v208
    %2921 = vmatprep.subr.mxu0 %v212
    %2922 = vmatpush1.msra.mxu0 %v211
    %2923 = vmatprep.subr.mxu0 %v215
    %2924 = vmatpush1.msra.mxu0 %v214
    %2925 = vmatprep.subr.mxu0 %v218
    %2926 = vmatpush1.msra.mxu0 %v217
    %2927 = vmatprep.subr.mxu0 %v221
    %2928 = vmatpush1.msra.mxu0 %v220
    %2929 = vmatprep.subr.mxu0 %v224
    %2930 = vmatpush1.msra.mxu0 %v223
    %2931 = vmatprep.subr.mxu0 %v227
    %2932 = vmatpush1.msra.mxu0 %v226
    %2933 = vmatprep.subr.mxu0 %v230
    %2934 = vmatpush1.msra.mxu0 %v229
    %2935 = vmatprep.subr.mxu0 %v233
    %2936 = vmatpush1.msra.mxu0 %v232
    %2937 = vmatprep.subr.mxu0 %v236
    %2938 = vmatpush1.msra.mxu0 %v235
    %2939 = vmatprep.subr.mxu0 %v239
    %2940 = vmatpush1.msra.mxu0 %v238
    %2941 = vmatprep.subr.mxu0 %v242
    %2942 = vmatpush1.msra.mxu0 %v241
    %2943 = vmatprep.subr.mxu0 %v245
    %2944 = vmatpush1.msra.mxu0 %v244
    %2945 = vmatprep.subr.mxu0 %v248
    %2946 = vmatpush1.msra.mxu0 %v247
    %2947 = vmatprep.subr.mxu0 0.0
    %2948 = vmatpush1.msra.mxu0 0.0
    %2949 = vmatprep.subr.mxu0 0.0
    %2950 = vmatpush1.msra.mxu0 0.0
    %2951 = vmatprep.subr.mxu0 0.0
    %2952 = vmatpush1.msra.mxu0 0.0
    %2953 = vmatprep.subr.mxu0 0.0
    %2954 = vmatpush1.msra.mxu0 0.0
    %2955 = vmatprep.subr.mxu0 0.0
    %2956 = vmatpush1.msra.mxu0 0.0
    %2957 = vmatprep.subr.mxu0 0.0
    %2958 = vmatpush1.msra.mxu0 0.0
    %2959 = vmatprep.subr.mxu0 0.0
    %2960 = vmatpush1.msra.mxu0 0.0
    %2961 = vmatprep.subr.mxu0 0.0
    %2962 = vmatpush1.msra.mxu0 0.0
    %2963 = vmatprep.subr.mxu0 0.0
    %2964 = vmatpush1.msra.mxu0 0.0
    %2965 = vmatprep.subr.mxu0 0.0
    %2966 = vmatpush1.msra.mxu0 0.0
    %2967 = vmatprep.subr.mxu0 0.0
    %2968 = vmatpush1.msra.mxu0 0.0
    %2969 = vmatprep.subr.mxu0 0.0
    %2970 = vmatpush1.msra.mxu0 0.0
    %2971 = vmatprep.subr.mxu0 0.0
    %2972 = vmatpush1.msra.mxu0 0.0
    %2973 = vmatprep.subr.mxu0 0.0
    %2974 = vmatpush1.msra.mxu0 0.0
    %2975 = vmatprep.subr.mxu0 0.0
    %2976 = vmatpush1.msra.mxu0 0.0
    %2977 = vmatprep.subr.mxu0 0.0
    %2978 = vmatpush1.msra.mxu0 0.0
    %2979 = vmatprep.mubr.f32.mxu0 0.0
    %2980 = vmatmul.mubr.f32.gmra.mrb[0].mxu0 %v2392
    %v2981 = vpop.f32.mrb[0].mxu0
    %v2982 = vadd.f32 0.0, %v2981
    %v2983 = vpop.f32.mrb[0].mxu0
    %v2984 = vadd.f32 0.0, %v2983
    %2985 = vdwg.mxu0
    %2986 = vmatprep.subr.mxu0 0.0
    %2987 = vmatpush1.msra.mxu0 %v204
    %2988 = vmatprep.subr.mxu0 0.0
    %2989 = vmatpush1.msra.mxu0 %v207
    %2990 = vmatprep.subr.mxu0 0.0
    %2991 = vmatpush1.msra.mxu0 %v210
    %2992 = vmatprep.subr.mxu0 0.0
    %2993 = vmatpush1.msra.mxu0 %v213
    %2994 = vmatprep.subr.mxu0 0.0
    %2995 = vmatpush1.msra.mxu0 %v216
    %2996 = vmatprep.subr.mxu0 0.0
    %2997 = vmatpush1.msra.mxu0 %v219
    %2998 = vmatprep.subr.mxu0 0.0
    %2999 = vmatpush1.msra.mxu0 %v222
    %3000 = vmatprep.subr.mxu0 0.0
    %3001 = vmatpush1.msra.mxu0 %v225
    %3002 = vmatprep.subr.mxu0 0.0
    %3003 = vmatpush1.msra.mxu0 %v228
    %3004 = vmatprep.subr.mxu0 0.0
    %3005 = vmatpush1.msra.mxu0 %v231
    %3006 = vmatprep.subr.mxu0 0.0
    %3007 = vmatpush1.msra.mxu0 %v234
    %3008 = vmatprep.subr.mxu0 0.0
    %3009 = vmatpush1.msra.mxu0 %v237
    %3010 = vmatprep.subr.mxu0 0.0
    %3011 = vmatpush1.msra.mxu0 %v240
    %3012 = vmatprep.subr.mxu0 0.0
    %3013 = vmatpush1.msra.mxu0 %v243
    %3014 = vmatprep.subr.mxu0 0.0
    %3015 = vmatpush1.msra.mxu0 %v246
    %3016 = vmatprep.subr.mxu0 0.0
    %3017 = vmatpush1.msra.mxu0 %v249
    %3018 = vmatprep.subr.mxu0 0.0
    %3019 = vmatpush1.msra.mxu0 0.0
    %3020 = vmatprep.subr.mxu0 0.0
    %3021 = vmatpush1.msra.mxu0 0.0
    %3022 = vmatprep.subr.mxu0 0.0
    %3023 = vmatpush1.msra.mxu0 0.0
    %3024 = vmatprep.subr.mxu0 0.0
    %3025 = vmatpush1.msra.mxu0 0.0
    %3026 = vmatprep.subr.mxu0 0.0
    %3027 = vmatpush1.msra.mxu0 0.0
    %3028 = vmatprep.subr.mxu0 0.0
    %3029 = vmatpush1.msra.mxu0 0.0
    %3030 = vmatprep.subr.mxu0 0.0
    %3031 = vmatpush1.msra.mxu0 0.0
    %3032 = vmatprep.subr.mxu0 0.0
    %3033 = vmatpush1.msra.mxu0 0.0
    %3034 = vmatprep.subr.mxu0 0.0
    %3035 = vmatpush1.msra.mxu0 0.0
    %3036 = vmatprep.subr.mxu0 0.0
    %3037 = vmatpush1.msra.mxu0 0.0
    %3038 = vmatprep.subr.mxu0 0.0
    %3039 = vmatpush1.msra.mxu0 0.0
    %3040 = vmatprep.subr.mxu0 0.0
    %3041 = vmatpush1.msra.mxu0 0.0
    %3042 = vmatprep.subr.mxu0 0.0
    %3043 = vmatpush1.msra.mxu0 0.0
    %3044 = vmatprep.subr.mxu0 0.0
    %3045 = vmatpush1.msra.mxu0 0.0
    %3046 = vmatprep.subr.mxu0 0.0
    %3047 = vmatpush1.msra.mxu0 0.0
    %3048 = vmatprep.subr.mxu0 0.0
    %3049 = vmatpush1.msra.mxu0 0.0
    %3050 = vmatprep.mubr.f32.mxu0 0.0
    %3051 = vmatmul.mubr.f32.gmra.mrb[0].mxu0 %v2392
    %v3052 = vpop.f32.mrb[0].mxu0
    %v3053 = vadd.f32 0.0, %v3052
    %v3054 = vpop.f32.mrb[0].mxu0
    %3055 = vdwg.mxu0
    %v3056 = vadd.f32 %v2841, %v2982
    %v3057 = vxor.u32 %v3056, 2147483648
    %v3058 = vmul.f32 %v3057, 1.442695
    %v3059 = vpow.pop %v3058
    %v3060 = vadd.f32 %v3059, 1.0
    %v3061 = vrcp.pop %v3060
    %v3062 = vmul.f32 1.0, %v3061
    %v3063 = vadd.f32 %v2843, %v2984
    %v3064 = vxor.u32 %v3063, 2147483648
    %v3065 = vmul.f32 %v3064, 1.442695
    %v3066 = vpow.pop %v3065
    %v3067 = vadd.f32 %v3066, 1.0
    %v3068 = vrcp.pop %v3067
    %v3069 = vmul.f32 1.0, %v3068
    %v3070 = vadd.f32 %v3053, %v1008
    %v3071 = vmul.f32 %v3062, %v3070
    %v3072 = vadd.f32 %v2912, %v3071
    %v3073 = vtanh.pop %v3072
    %v3074 = vsub.f32 1.0, %v3069
    %v3075 = vmul.f32 %v3074, %v3073
    %v3076 = vmul.f32 %v3069, %v2392
    %v3077 = vadd.f32 %v3075, %v3076
    %3078 = vmatprep.subr.mxu0 0.0
    %3079 = vmatpush1.msra.mxu0 %v252
    %3080 = vmatprep.subr.mxu0 0.0
    %3081 = vmatpush1.msra.mxu0 %v253
    %3082 = vmatprep.subr.mxu0 0.0
    %3083 = vmatpush1.msra.mxu0 %v254
    %3084 = vmatprep.subr.mxu0 0.0
    %3085 = vmatpush1.msra.mxu0 %v255
    %3086 = vmatprep.subr.mxu0 0.0
    %3087 = vmatpush1.msra.mxu0 %v256
    %3088 = vmatprep.subr.mxu0 0.0
    %3089 = vmatpush1.msra.mxu0 %v257
    %3090 = vmatprep.subr.mxu0 0.0
    %3091 = vmatpush1.msra.mxu0 %v258
    %3092 = vmatprep.subr.mxu0 0.0
    %3093 = vmatpush1.msra.mxu0 %v259
    %3094 = vmatprep.subr.mxu0 0.0
    %3095 = vmatpush1.msra.mxu0 %v260
    %3096 = vmatprep.subr.mxu0 0.0
    %3097 = vmatpush1.msra.mxu0 %v261
    %3098 = vmatprep.subr.mxu0 0.0
    %3099 = vmatpush1.msra.mxu0 %v262
    %3100 = vmatprep.subr.mxu0 0.0
    %3101 = vmatpush1.msra.mxu0 %v263
    %3102 = vmatprep.subr.mxu0 0.0
    %3103 = vmatpush1.msra.mxu0 %v264
    %3104 = vmatprep.subr.mxu0 0.0
    %3105 = vmatpush1.msra.mxu0 %v265
    %3106 = vmatprep.subr.mxu0 0.0
    %3107 = vmatpush1.msra.mxu0 %v266
    %3108 = vmatprep.subr.mxu0 0.0
    %3109 = vmatpush1.msra.mxu0 %v267
    %3110 = vmatprep.subr.mxu0 0.0
    %3111 = vmatpush1.msra.mxu0 0.0
    %3112 = vmatprep.subr.mxu0 0.0
    %3113 = vmatpush1.msra.mxu0 0.0
    %3114 = vmatprep.subr.mxu0 0.0
    %3115 = vmatpush1.msra.mxu0 0.0
    %3116 = vmatprep.subr.mxu0 0.0
    %3117 = vmatpush1.msra.mxu0 0.0
    %3118 = vmatprep.subr.mxu0 0.0
    %3119 = vmatpush1.msra.mxu0 0.0
    %3120 = vmatprep.subr.mxu0 0.0
    %3121 = vmatpush1.msra.mxu0 0.0
    %3122 = vmatprep.subr.mxu0 0.0
    %3123 = vmatpush1.msra.mxu0 0.0
    %3124 = vmatprep.subr.mxu0 0.0
    %3125 = vmatpush1.msra.mxu0 0.0
    %3126 = vmatprep.subr.mxu0 0.0
    %3127 = vmatpush1.msra.mxu0 0.0
    %3128 = vmatprep.subr.mxu0 0.0
    %3129 = vmatpush1.msra.mxu0 0.0
    %3130 = vmatprep.subr.mxu0 0.0
    %3131 = vmatpush1.msra.mxu0 0.0
    %3132 = vmatprep.subr.mxu0 0.0
    %3133 = vmatpush1.msra.mxu0 0.0
    %3134 = vmatprep.subr.mxu0 0.0
    %3135 = vmatpush1.msra.mxu0 0.0
    %3136 = vmatprep.subr.mxu0 0.0
    %3137 = vmatpush1.msra.mxu0 0.0
    %3138 = vmatprep.subr.mxu0 0.0
    %3139 = vmatpush1.msra.mxu0 0.0
    %3140 = vmatprep.subr.mxu0 0.0
    %3141 = vmatpush1.msra.mxu0 0.0
    %3142 = vmatprep.mubr.f32.mxu0 0.0
    %3143 = vmatmul.mubr.f32.gmra.mrb[0].mxu0 %v3077
    %v3144 = vpop.f32.mrb[0].mxu0
    %v3145 = vadd.f32 %v1022, %v3144
    %v3146 = vpop.f32.mrb[0].mxu0
    %3147 = vdwg.mxu0
    %s3148 = scalar_lea.vmem [#allocation8], 6
    %3149 = vst.msk [vmem:[%s3148] sm:$0x3] %vm1094, %v3145
    %s3150 = scalar_lea.vmem %s0, 6
    %v3151 = vld [vmem:[%s3150] sm:$0x3]
    %v3153 = vsel %vm378, %v3151, 0
    %3155 = vmatprep.subr.mxu0 %v93
    %3156 = vmatpush1.msra.mxu0 %v92
    %3157 = vmatprep.subr.mxu0 %v96
    %3158 = vmatpush1.msra.mxu0 %v95
    %3159 = vmatprep.subr.mxu0 %v99
    %3160 = vmatpush1.msra.mxu0 %v98
    %3161 = vmatprep.subr.mxu0 %v102
    %3162 = vmatpush1.msra.mxu0 %v101
    %3163 = vmatprep.subr.mxu0 0.0
    %3164 = vmatpush1.msra.mxu0 0.0
    %3165 = vmatprep.subr.mxu0 0.0
    %3166 = vmatpush1.msra.mxu0 0.0
    %3167 = vmatprep.subr.mxu0 0.0
    %3168 = vmatpush1.msra.mxu0 0.0
    %3169 = vmatprep.subr.mxu0 0.0
    %3170 = vmatpush1.msra.mxu0 0.0
    %3171 = vmatprep.subr.mxu0 0.0
    %3172 = vmatpush1.msra.mxu0 0.0
    %3173 = vmatprep.subr.mxu0 0.0
    %3174 = vmatpush1.msra.mxu0 0.0
    %3175 = vmatprep.subr.mxu0 0.0
    %3176 = vmatpush1.msra.mxu0 0.0
    %3177 = vmatprep.subr.mxu0 0.0
    %3178 = vmatpush1.msra.mxu0 0.0
    %3179 = vmatprep.subr.mxu0 0.0
    %3180 = vmatpush1.msra.mxu0 0.0
    %3181 = vmatprep.subr.mxu0 0.0
    %3182 = vmatpush1.msra.mxu0 0.0
    %3183 = vmatprep.subr.mxu0 0.0
    %3184 = vmatpush1.msra.mxu0 0.0
    %3185 = vmatprep.subr.mxu0 0.0
    %3186 = vmatpush1.msra.mxu0 0.0
    %3187 = vmatprep.subr.mxu0 0.0
    %3188 = vmatpush1.msra.mxu0 0.0
    %3189 = vmatprep.subr.mxu0 0.0
    %3190 = vmatpush1.msra.mxu0 0.0
    %3191 = vmatprep.subr.mxu0 0.0
    %3192 = vmatpush1.msra.mxu0 0.0
    %3193 = vmatprep.subr.mxu0 0.0
    %3194 = vmatpush1.msra.mxu0 0.0
    %3195 = vmatprep.subr.mxu0 0.0
    %3196 = vmatpush1.msra.mxu0 0.0
    %3197 = vmatprep.subr.mxu0 0.0
    %3198 = vmatpush1.msra.mxu0 0.0
    %3199 = vmatprep.subr.mxu0 0.0
    %3200 = vmatpush1.msra.mxu0 0.0
    %3201 = vmatprep.subr.mxu0 0.0
    %3202 = vmatpush1.msra.mxu0 0.0
    %3203 = vmatprep.subr.mxu0 0.0
    %3204 = vmatpush1.msra.mxu0 0.0
    %3205 = vmatprep.subr.mxu0 0.0
    %3206 = vmatpush1.msra.mxu0 0.0
    %3207 = vmatprep.subr.mxu0 0.0
    %3208 = vmatpush1.msra.mxu0 0.0
    %3209 = vmatprep.subr.mxu0 0.0
    %3210 = vmatpush1.msra.mxu0 0.0
    %3211 = vmatprep.subr.mxu0 0.0
    %3212 = vmatpush1.msra.mxu0 0.0
    %3213 = vmatprep.subr.mxu0 0.0
    %3214 = vmatpush1.msra.mxu0 0.0
    %3215 = vmatprep.subr.mxu0 0.0
    %3216 = vmatpush1.msra.mxu0 0.0
    %3217 = vmatprep.subr.mxu0 0.0
    %3218 = vmatpush1.msra.mxu0 0.0
    %3219 = vmatprep.mubr.f32.mxu0 0.0
    %3220 = vmatmul.mubr.f32.gmra.mrb[0].mxu0 %v3153
    %v3221 = vpop.f32.mrb[0].mxu0
    %v3222 = vadd.f32 %v366, %v3221
    %v3223 = vpop.f32.mrb[0].mxu0
    %v3224 = vadd.f32 %v370, %v3223
    %3225 = vdwg.mxu0
    %3226 = vmatprep.subr.mxu0 0.0
    %3227 = vmatpush1.msra.mxu0 %v94
    %3228 = vmatprep.subr.mxu0 0.0
    %3229 = vmatpush1.msra.mxu0 %v97
    %3230 = vmatprep.subr.mxu0 0.0
    %3231 = vmatpush1.msra.mxu0 %v100
    %3232 = vmatprep.subr.mxu0 0.0
    %3233 = vmatpush1.msra.mxu0 %v103
    %3234 = vmatprep.subr.mxu0 0.0
    %3235 = vmatpush1.msra.mxu0 0.0
    %3236 = vmatprep.subr.mxu0 0.0
    %3237 = vmatpush1.msra.mxu0 0.0
    %3238 = vmatprep.subr.mxu0 0.0
    %3239 = vmatpush1.msra.mxu0 0.0
    %3240 = vmatprep.subr.mxu0 0.0
    %3241 = vmatpush1.msra.mxu0 0.0
    %3242 = vmatprep.subr.mxu0 0.0
    %3243 = vmatpush1.msra.mxu0 0.0
    %3244 = vmatprep.subr.mxu0 0.0
    %3245 = vmatpush1.msra.mxu0 0.0
    %3246 = vmatprep.subr.mxu0 0.0
    %3247 = vmatpush1.msra.mxu0 0.0
    %3248 = vmatprep.subr.mxu0 0.0
    %3249 = vmatpush1.msra.mxu0 0.0
    %3250 = vmatprep.subr.mxu0 0.0
    %3251 = vmatpush1.msra.mxu0 0.0
    %3252 = vmatprep.subr.mxu0 0.0
    %3253 = vmatpush1.msra.mxu0 0.0
    %3254 = vmatprep.subr.mxu0 0.0
    %3255 = vmatpush1.msra.mxu0 0.0
    %3256 = vmatprep.subr.mxu0 0.0
    %3257 = vmatpush1.msra.mxu0 0.0
    %3258 = vmatprep.subr.mxu0 0.0
    %3259 = vmatpush1.msra.mxu0 0.0
    %3260 = vmatprep.subr.mxu0 0.0
    %3261 = vmatpush1.msra.mxu0 0.0
    %3262 = vmatprep.subr.mxu0 0.0
    %3263 = vmatpush1.msra.mxu0 0.0
    %3264 = vmatprep.subr.mxu0 0.0
    %3265 = vmatpush1.msra.mxu0 0.0
    %3266 = vmatprep.subr.mxu0 0.0
    %3267 = vmatpush1.msra.mxu0 0.0
    %3268 = vmatprep.subr.mxu0 0.0
    %3269 = vmatpush1.msra.mxu0 0.0
    %3270 = vmatprep.subr.mxu0 0.0
    %3271 = vmatpush1.msra.mxu0 0.0
    %3272 = vmatprep.subr.mxu0 0.0
    %3273 = vmatpush1.msra.mxu0 0.0
    %3274 = vmatprep.subr.mxu0 0.0
    %3275 = vmatpush1.msra.mxu0 0.0
    %3276 = vmatprep.subr.mxu0 0.0
    %3277 = vmatpush1.msra.mxu0 0.0
    %3278 = vmatprep.subr.mxu0 0.0
    %3279 = vmatpush1.msra.mxu0 0.0
    %3280 = vmatprep.subr.mxu0 0.0
    %3281 = vmatpush1.msra.mxu0 0.0
    %3282 = vmatprep.subr.mxu0 0.0
    %3283 = vmatpush1.msra.mxu0 0.0
    %3284 = vmatprep.subr.mxu0 0.0
    %3285 = vmatpush1.msra.mxu0 0.0
    %3286 = vmatprep.subr.mxu0 0.0
    %3287 = vmatpush1.msra.mxu0 0.0
    %3288 = vmatprep.subr.mxu0 0.0
    %3289 = vmatpush1.msra.mxu0 0.0
    %3290 = vmatprep.mubr.f32.mxu0 0.0
    %3291 = vmatmul.mubr.f32.gmra.mrb[0].mxu0 %v3153
    %v3292 = vpop.f32.mrb[0].mxu0
    %v3293 = vadd.f32 %v374, %v3292
    %v3294 = vpop.f32.mrb[0].mxu0
    %3295 = vdwg.mxu0
    %3296 = vmatprep.subr.mxu0 %v105
    %3297 = vmatpush1.msra.mxu0 %v104
    %3298 = vmatprep.subr.mxu0 %v108
    %3299 = vmatpush1.msra.mxu0 %v107
    %3300 = vmatprep.subr.mxu0 %v111
    %3301 = vmatpush1.msra.mxu0 %v110
    %3302 = vmatprep.subr.mxu0 %v114
    %3303 = vmatpush1.msra.mxu0 %v113
    %3304 = vmatprep.subr.mxu0 %v117
    %3305 = vmatpush1.msra.mxu0 %v116
    %3306 = vmatprep.subr.mxu0 %v120
    %3307 = vmatpush1.msra.mxu0 %v119
    %3308 = vmatprep.subr.mxu0 %v123
    %3309 = vmatpush1.msra.mxu0 %v122
    %3310 = vmatprep.subr.mxu0 %v126
    %3311 = vmatpush1.msra.mxu0 %v125
    %3312 = vmatprep.subr.mxu0 %v129
    %3313 = vmatpush1.msra.mxu0 %v128
    %3314 = vmatprep.subr.mxu0 %v132
    %3315 = vmatpush1.msra.mxu0 %v131
    %3316 = vmatprep.subr.mxu0 %v135
    %3317 = vmatpush1.msra.mxu0 %v134
    %3318 = vmatprep.subr.mxu0 %v138
    %3319 = vmatpush1.msra.mxu0 %v137
    %3320 = vmatprep.subr.mxu0 %v141
    %3321 = vmatpush1.msra.mxu0 %v140
    %3322 = vmatprep.subr.mxu0 %v144
    %3323 = vmatpush1.msra.mxu0 %v143
    %3324 = vmatprep.subr.mxu0 %v147
    %3325 = vmatpush1.msra.mxu0 %v146
    %3326 = vmatprep.subr.mxu0 %v150
    %3327 = vmatpush1.msra.mxu0 %v149
    %3328 = vmatprep.subr.mxu0 0.0
    %3329 = vmatpush1.msra.mxu0 0.0
    %3330 = vmatprep.subr.mxu0 0.0
    %3331 = vmatpush1.msra.mxu0 0.0
    %3332 = vmatprep.subr.mxu0 0.0
    %3333 = vmatpush1.msra.mxu0 0.0
    %3334 = vmatprep.subr.mxu0 0.0
    %3335 = vmatpush1.msra.mxu0 0.0
    %3336 = vmatprep.subr.mxu0 0.0
    %3337 = vmatpush1.msra.mxu0 0.0
    %3338 = vmatprep.subr.mxu0 0.0
    %3339 = vmatpush1.msra.mxu0 0.0
    %3340 = vmatprep.subr.mxu0 0.0
    %3341 = vmatpush1.msra.mxu0 0.0
    %3342 = vmatprep.subr.mxu0 0.0
    %3343 = vmatpush1.msra.mxu0 0.0
    %3344 = vmatprep.subr.mxu0 0.0
    %3345 = vmatpush1.msra.mxu0 0.0
    %3346 = vmatprep.subr.mxu0 0.0
    %3347 = vmatpush1.msra.mxu0 0.0
    %3348 = vmatprep.subr.mxu0 0.0
    %3349 = vmatpush1.msra.mxu0 0.0
    %3350 = vmatprep.subr.mxu0 0.0
    %3351 = vmatpush1.msra.mxu0 0.0
    %3352 = vmatprep.subr.mxu0 0.0
    %3353 = vmatpush1.msra.mxu0 0.0
    %3354 = vmatprep.subr.mxu0 0.0
    %3355 = vmatpush1.msra.mxu0 0.0
    %3356 = vmatprep.subr.mxu0 0.0
    %3357 = vmatpush1.msra.mxu0 0.0
    %3358 = vmatprep.subr.mxu0 0.0
    %3359 = vmatpush1.msra.mxu0 0.0
    %3360 = vmatprep.mubr.f32.mxu0 0.0
    %3361 = vmatmul.mubr.f32.gmra.mrb[0].mxu0 %v2773
    %v3362 = vpop.f32.mrb[0].mxu0
    %v3363 = vadd.f32 0.0, %v3362
    %v3364 = vpop.f32.mrb[0].mxu0
    %v3365 = vadd.f32 0.0, %v3364
    %3366 = vdwg.mxu0
    %3367 = vmatprep.subr.mxu0 0.0
    %3368 = vmatpush1.msra.mxu0 %v106
    %3369 = vmatprep.subr.mxu0 0.0
    %3370 = vmatpush1.msra.mxu0 %v109
    %3371 = vmatprep.subr.mxu0 0.0
    %3372 = vmatpush1.msra.mxu0 %v112
    %3373 = vmatprep.subr.mxu0 0.0
    %3374 = vmatpush1.msra.mxu0 %v115
    %3375 = vmatprep.subr.mxu0 0.0
    %3376 = vmatpush1.msra.mxu0 %v118
    %3377 = vmatprep.subr.mxu0 0.0
    %3378 = vmatpush1.msra.mxu0 %v121
    %3379 = vmatprep.subr.mxu0 0.0
    %3380 = vmatpush1.msra.mxu0 %v124
    %3381 = vmatprep.subr.mxu0 0.0
    %3382 = vmatpush1.msra.mxu0 %v127
    %3383 = vmatprep.subr.mxu0 0.0
    %3384 = vmatpush1.msra.mxu0 %v130
    %3385 = vmatprep.subr.mxu0 0.0
    %3386 = vmatpush1.msra.mxu0 %v133
    %3387 = vmatprep.subr.mxu0 0.0
    %3388 = vmatpush1.msra.mxu0 %v136
    %3389 = vmatprep.subr.mxu0 0.0
    %3390 = vmatpush1.msra.mxu0 %v139
    %3391 = vmatprep.subr.mxu0 0.0
    %3392 = vmatpush1.msra.mxu0 %v142
    %3393 = vmatprep.subr.mxu0 0.0
    %3394 = vmatpush1.msra.mxu0 %v145
    %3395 = vmatprep.subr.mxu0 0.0
    %3396 = vmatpush1.msra.mxu0 %v148
    %3397 = vmatprep.subr.mxu0 0.0
    %3398 = vmatpush1.msra.mxu0 %v151
    %3399 = vmatprep.subr.mxu0 0.0
    %3400 = vmatpush1.msra.mxu0 0.0
    %3401 = vmatprep.subr.mxu0 0.0
    %3402 = vmatpush1.msra.mxu0 0.0
    %3403 = vmatprep.subr.mxu0 0.0
    %3404 = vmatpush1.msra.mxu0 0.0
    %3405 = vmatprep.subr.mxu0 0.0
    %3406 = vmatpush1.msra.mxu0 0.0
    %3407 = vmatprep.subr.mxu0 0.0
    %3408 = vmatpush1.msra.mxu0 0.0
    %3409 = vmatprep.subr.mxu0 0.0
    %3410 = vmatpush1.msra.mxu0 0.0
    %3411 = vmatprep.subr.mxu0 0.0
    %3412 = vmatpush1.msra.mxu0 0.0
    %3413 = vmatprep.subr.mxu0 0.0
    %3414 = vmatpush1.msra.mxu0 0.0
    %3415 = vmatprep.subr.mxu0 0.0
    %3416 = vmatpush1.msra.mxu0 0.0
    %3417 = vmatprep.subr.mxu0 0.0
    %3418 = vmatpush1.msra.mxu0 0.0
    %3419 = vmatprep.subr.mxu0 0.0
    %3420 = vmatpush1.msra.mxu0 0.0
    %3421 = vmatprep.subr.mxu0 0.0
    %3422 = vmatpush1.msra.mxu0 0.0
    %3423 = vmatprep.subr.mxu0 0.0
    %3424 = vmatpush1.msra.mxu0 0.0
    %3425 = vmatprep.subr.mxu0 0.0
    %3426 = vmatpush1.msra.mxu0 0.0
    %3427 = vmatprep.subr.mxu0 0.0
    %3428 = vmatpush1.msra.mxu0 0.0
    %3429 = vmatprep.subr.mxu0 0.0
    %3430 = vmatpush1.msra.mxu0 0.0
    %3431 = vmatprep.mubr.f32.mxu0 0.0
    %3432 = vmatmul.mubr.f32.gmra.mrb[0].mxu0 %v2773
    %v3433 = vpop.f32.mrb[0].mxu0
    %v3434 = vadd.f32 0.0, %v3433
    %v3435 = vpop.f32.mrb[0].mxu0
    %3436 = vdwg.mxu0
    %v3437 = vadd.f32 %v3222, %v3363
    %v3438 = vxor.u32 %v3437, 2147483648
    %v3439 = vmul.f32 %v3438, 1.442695
    %v3440 = vpow.pop %v3439
    %v3441 = vadd.f32 %v3440, 1.0
    %v3442 = vrcp.pop %v3441
    %v3443 = vmul.f32 1.0, %v3442
    %v3444 = vadd.f32 %v3224, %v3365
    %v3445 = vxor.u32 %v3444, 2147483648
    %v3446 = vmul.f32 %v3445, 1.442695
    %v3447 = vpow.pop %v3446
    %v3448 = vadd.f32 %v3447, 1.0
    %v3449 = vrcp.pop %v3448
    %v3450 = vmul.f32 1.0, %v3449
    %v3451 = vadd.f32 %v3434, %v682
    %v3452 = vmul.f32 %v3443, %v3451
    %v3453 = vadd.f32 %v3293, %v3452
    %v3454 = vtanh.pop %v3453
    %v3455 = vsub.f32 1.0, %v3450
    %v3456 = vmul.f32 %v3455, %v3454
    %v3457 = vmul.f32 %v3450, %v2773
    %v3458 = vadd.f32 %v3456, %v3457
    %3459 = vmatprep.subr.mxu0 %v155
    %3460 = vmatpush1.msra.mxu0 %v154
    %3461 = vmatprep.subr.mxu0 %v158
    %3462 = vmatpush1.msra.mxu0 %v157
    %3463 = vmatprep.subr.mxu0 %v161
    %3464 = vmatpush1.msra.mxu0 %v160
    %3465 = vmatprep.subr.mxu0 %v164
    %3466 = vmatpush1.msra.mxu0 %v163
    %3467 = vmatprep.subr.mxu0 %v167
    %3468 = vmatpush1.msra.mxu0 %v166
    %3469 = vmatprep.subr.mxu0 %v170
    %3470 = vmatpush1.msra.mxu0 %v169
    %3471 = vmatprep.subr.mxu0 %v173
    %3472 = vmatpush1.msra.mxu0 %v172
    %3473 = vmatprep.subr.mxu0 %v176
    %3474 = vmatpush1.msra.mxu0 %v175
    %3475 = vmatprep.subr.mxu0 %v179
    %3476 = vmatpush1.msra.mxu0 %v178
    %3477 = vmatprep.subr.mxu0 %v182
    %3478 = vmatpush1.msra.mxu0 %v181
    %3479 = vmatprep.subr.mxu0 %v185
    %3480 = vmatpush1.msra.mxu0 %v184
    %3481 = vmatprep.subr.mxu0 %v188
    %3482 = vmatpush1.msra.mxu0 %v187
    %3483 = vmatprep.subr.mxu0 %v191
    %3484 = vmatpush1.msra.mxu0 %v190
    %3485 = vmatprep.subr.mxu0 %v194
    %3486 = vmatpush1.msra.mxu0 %v193
    %3487 = vmatprep.subr.mxu0 %v197
    %3488 = vmatpush1.msra.mxu0 %v196
    %3489 = vmatprep.subr.mxu0 %v200
    %3490 = vmatpush1.msra.mxu0 %v199
    %3491 = vmatprep.subr.mxu0 0.0
    %3492 = vmatpush1.msra.mxu0 0.0
    %3493 = vmatprep.subr.mxu0 0.0
    %3494 = vmatpush1.msra.mxu0 0.0
    %3495 = vmatprep.subr.mxu0 0.0
    %3496 = vmatpush1.msra.mxu0 0.0
    %3497 = vmatprep.subr.mxu0 0.0
    %3498 = vmatpush1.msra.mxu0 0.0
    %3499 = vmatprep.subr.mxu0 0.0
    %3500 = vmatpush1.msra.mxu0 0.0
    %3501 = vmatprep.subr.mxu0 0.0
    %3502 = vmatpush1.msra.mxu0 0.0
    %3503 = vmatprep.subr.mxu0 0.0
    %3504 = vmatpush1.msra.mxu0 0.0
    %3505 = vmatprep.subr.mxu0 0.0
    %3506 = vmatpush1.msra.mxu0 0.0
    %3507 = vmatprep.subr.mxu0 0.0
    %3508 = vmatpush1.msra.mxu0 0.0
    %3509 = vmatprep.subr.mxu0 0.0
    %3510 = vmatpush1.msra.mxu0 0.0
    %3511 = vmatprep.subr.mxu0 0.0
    %3512 = vmatpush1.msra.mxu0 0.0
    %3513 = vmatprep.subr.mxu0 0.0
    %3514 = vmatpush1.msra.mxu0 0.0
    %3515 = vmatprep.subr.mxu0 0.0
    %3516 = vmatpush1.msra.mxu0 0.0
    %3517 = vmatprep.subr.mxu0 0.0
    %3518 = vmatpush1.msra.mxu0 0.0
    %3519 = vmatprep.subr.mxu0 0.0
    %3520 = vmatpush1.msra.mxu0 0.0
    %3521 = vmatprep.subr.mxu0 0.0
    %3522 = vmatpush1.msra.mxu0 0.0
    %3523 = vmatprep.mubr.f32.mxu0 0.0
    %3524 = vmatmul.mubr.f32.gmra.mrb[0].mxu0 %v3458
    %v3525 = vpop.f32.mrb[0].mxu0
    %v3526 = vadd.f32 %v696, %v3525
    %v3527 = vpop.f32.mrb[0].mxu0
    %v3528 = vadd.f32 %v700, %v3527
    %3529 = vdwg.mxu0
    %3530 = vmatprep.subr.mxu0 0.0
    %3531 = vmatpush1.msra.mxu0 %v156
    %3532 = vmatprep.subr.mxu0 0.0
    %3533 = vmatpush1.msra.mxu0 %v159
    %3534 = vmatprep.subr.mxu0 0.0
    %3535 = vmatpush1.msra.mxu0 %v162
    %3536 = vmatprep.subr.mxu0 0.0
    %3537 = vmatpush1.msra.mxu0 %v165
    %3538 = vmatprep.subr.mxu0 0.0
    %3539 = vmatpush1.msra.mxu0 %v168
    %3540 = vmatprep.subr.mxu0 0.0
    %3541 = vmatpush1.msra.mxu0 %v171
    %3542 = vmatprep.subr.mxu0 0.0
    %3543 = vmatpush1.msra.mxu0 %v174
    %3544 = vmatprep.subr.mxu0 0.0
    %3545 = vmatpush1.msra.mxu0 %v177
    %3546 = vmatprep.subr.mxu0 0.0
    %3547 = vmatpush1.msra.mxu0 %v180
    %3548 = vmatprep.subr.mxu0 0.0
    %3549 = vmatpush1.msra.mxu0 %v183
    %3550 = vmatprep.subr.mxu0 0.0
    %3551 = vmatpush1.msra.mxu0 %v186
    %3552 = vmatprep.subr.mxu0 0.0
    %3553 = vmatpush1.msra.mxu0 %v189
    %3554 = vmatprep.subr.mxu0 0.0
    %3555 = vmatpush1.msra.mxu0 %v192
    %3556 = vmatprep.subr.mxu0 0.0
    %3557 = vmatpush1.msra.mxu0 %v195
    %3558 = vmatprep.subr.mxu0 0.0
    %3559 = vmatpush1.msra.mxu0 %v198
    %3560 = vmatprep.subr.mxu0 0.0
    %3561 = vmatpush1.msra.mxu0 %v201
    %3562 = vmatprep.subr.mxu0 0.0
    %3563 = vmatpush1.msra.mxu0 0.0
    %3564 = vmatprep.subr.mxu0 0.0
    %3565 = vmatpush1.msra.mxu0 0.0
    %3566 = vmatprep.subr.mxu0 0.0
    %3567 = vmatpush1.msra.mxu0 0.0
    %3568 = vmatprep.subr.mxu0 0.0
    %3569 = vmatpush1.msra.mxu0 0.0
    %3570 = vmatprep.subr.mxu0 0.0
    %3571 = vmatpush1.msra.mxu0 0.0
    %3572 = vmatprep.subr.mxu0 0.0
    %3573 = vmatpush1.msra.mxu0 0.0
    %3574 = vmatprep.subr.mxu0 0.0
    %3575 = vmatpush1.msra.mxu0 0.0
    %3576 = vmatprep.subr.mxu0 0.0
    %3577 = vmatpush1.msra.mxu0 0.0
    %3578 = vmatprep.subr.mxu0 0.0
    %3579 = vmatpush1.msra.mxu0 0.0
    %3580 = vmatprep.subr.mxu0 0.0
    %3581 = vmatpush1.msra.mxu0 0.0
    %3582 = vmatprep.subr.mxu0 0.0
    %3583 = vmatpush1.msra.mxu0 0.0
    %3584 = vmatprep.subr.mxu0 0.0
    %3585 = vmatpush1.msra.mxu0 0.0
    %3586 = vmatprep.subr.mxu0 0.0
    %3587 = vmatpush1.msra.mxu0 0.0
    %3588 = vmatprep.subr.mxu0 0.0
    %3589 = vmatpush1.msra.mxu0 0.0
    %3590 = vmatprep.subr.mxu0 0.0
    %3591 = vmatpush1.msra.mxu0 0.0
    %3592 = vmatprep.subr.mxu0 0.0
    %3593 = vmatpush1.msra.mxu0 0.0
    %3594 = vmatprep.mubr.f32.mxu0 0.0
    %3595 = vmatmul.mubr.f32.gmra.mrb[0].mxu0 %v3458
    %v3596 = vpop.f32.mrb[0].mxu0
    %v3597 = vadd.f32 %v704, %v3596
    %v3598 = vpop.f32.mrb[0].mxu0
    %3599 = vdwg.mxu0
    %3600 = vmatprep.subr.mxu0 %v203
    %3601 = vmatpush1.msra.mxu0 %v202
    %3602 = vmatprep.subr.mxu0 %v206
    %3603 = vmatpush1.msra.mxu0 %v205
    %3604 = vmatprep.subr.mxu0 %v209
    %3605 = vmatpush1.msra.mxu0 %v208
    %3606 = vmatprep.subr.mxu0 %v212
    %3607 = vmatpush1.msra.mxu0 %v211
    %3608 = vmatprep.subr.mxu0 %v215
    %3609 = vmatpush1.msra.mxu0 %v214
    %3610 = vmatprep.subr.mxu0 %v218
    %3611 = vmatpush1.msra.mxu0 %v217
    %3612 = vmatprep.subr.mxu0 %v221
    %3613 = vmatpush1.msra.mxu0 %v220
    %3614 = vmatprep.subr.mxu0 %v224
    %3615 = vmatpush1.msra.mxu0 %v223
    %3616 = vmatprep.subr.mxu0 %v227
    %3617 = vmatpush1.msra.mxu0 %v226
    %3618 = vmatprep.subr.mxu0 %v230
    %3619 = vmatpush1.msra.mxu0 %v229
    %3620 = vmatprep.subr.mxu0 %v233
    %3621 = vmatpush1.msra.mxu0 %v232
    %3622 = vmatprep.subr.mxu0 %v236
    %3623 = vmatpush1.msra.mxu0 %v235
    %3624 = vmatprep.subr.mxu0 %v239
    %3625 = vmatpush1.msra.mxu0 %v238
    %3626 = vmatprep.subr.mxu0 %v242
    %3627 = vmatpush1.msra.mxu0 %v241
    %3628 = vmatprep.subr.mxu0 %v245
    %3629 = vmatpush1.msra.mxu0 %v244
    %3630 = vmatprep.subr.mxu0 %v248
    %3631 = vmatpush1.msra.mxu0 %v247
    %3632 = vmatprep.subr.mxu0 0.0
    %3633 = vmatpush1.msra.mxu0 0.0
    %3634 = vmatprep.subr.mxu0 0.0
    %3635 = vmatpush1.msra.mxu0 0.0
    %3636 = vmatprep.subr.mxu0 0.0
    %3637 = vmatpush1.msra.mxu0 0.0
    %3638 = vmatprep.subr.mxu0 0.0
    %3639 = vmatpush1.msra.mxu0 0.0
    %3640 = vmatprep.subr.mxu0 0.0
    %3641 = vmatpush1.msra.mxu0 0.0
    %3642 = vmatprep.subr.mxu0 0.0
    %3643 = vmatpush1.msra.mxu0 0.0
    %3644 = vmatprep.subr.mxu0 0.0
    %3645 = vmatpush1.msra.mxu0 0.0
    %3646 = vmatprep.subr.mxu0 0.0
    %3647 = vmatpush1.msra.mxu0 0.0
    %3648 = vmatprep.subr.mxu0 0.0
    %3649 = vmatpush1.msra.mxu0 0.0
    %3650 = vmatprep.subr.mxu0 0.0
    %3651 = vmatpush1.msra.mxu0 0.0
    %3652 = vmatprep.subr.mxu0 0.0
    %3653 = vmatpush1.msra.mxu0 0.0
    %3654 = vmatprep.subr.mxu0 0.0
    %3655 = vmatpush1.msra.mxu0 0.0
    %3656 = vmatprep.subr.mxu0 0.0
    %3657 = vmatpush1.msra.mxu0 0.0
    %3658 = vmatprep.subr.mxu0 0.0
    %3659 = vmatpush1.msra.mxu0 0.0
    %3660 = vmatprep.subr.mxu0 0.0
    %3661 = vmatpush1.msra.mxu0 0.0
    %3662 = vmatprep.subr.mxu0 0.0
    %3663 = vmatpush1.msra.mxu0 0.0
    %3664 = vmatprep.mubr.f32.mxu0 0.0
    %3665 = vmatmul.mubr.f32.gmra.mrb[0].mxu0 %v3077
    %v3666 = vpop.f32.mrb[0].mxu0
    %v3667 = vadd.f32 0.0, %v3666
    %v3668 = vpop.f32.mrb[0].mxu0
    %v3669 = vadd.f32 0.0, %v3668
    %3670 = vdwg.mxu0
    %3671 = vmatprep.subr.mxu0 0.0
    %3672 = vmatpush1.msra.mxu0 %v204
    %3673 = vmatprep.subr.mxu0 0.0
    %3674 = vmatpush1.msra.mxu0 %v207
    %3675 = vmatprep.subr.mxu0 0.0
    %3676 = vmatpush1.msra.mxu0 %v210
    %3677 = vmatprep.subr.mxu0 0.0
    %3678 = vmatpush1.msra.mxu0 %v213
    %3679 = vmatprep.subr.mxu0 0.0
    %3680 = vmatpush1.msra.mxu0 %v216
    %3681 = vmatprep.subr.mxu0 0.0
    %3682 = vmatpush1.msra.mxu0 %v219
    %3683 = vmatprep.subr.mxu0 0.0
    %3684 = vmatpush1.msra.mxu0 %v222
    %3685 = vmatprep.subr.mxu0 0.0
    %3686 = vmatpush1.msra.mxu0 %v225
    %3687 = vmatprep.subr.mxu0 0.0
    %3688 = vmatpush1.msra.mxu0 %v228
    %3689 = vmatprep.subr.mxu0 0.0
    %3690 = vmatpush1.msra.mxu0 %v231
    %3691 = vmatprep.subr.mxu0 0.0
    %3692 = vmatpush1.msra.mxu0 %v234
    %3693 = vmatprep.subr.mxu0 0.0
    %3694 = vmatpush1.msra.mxu0 %v237
    %3695 = vmatprep.subr.mxu0 0.0
    %3696 = vmatpush1.msra.mxu0 %v240
    %3697 = vmatprep.subr.mxu0 0.0
    %3698 = vmatpush1.msra.mxu0 %v243
    %3699 = vmatprep.subr.mxu0 0.0
    %3700 = vmatpush1.msra.mxu0 %v246
    %3701 = vmatprep.subr.mxu0 0.0
    %3702 = vmatpush1.msra.mxu0 %v249
    %3703 = vmatprep.subr.mxu0 0.0
    %3704 = vmatpush1.msra.mxu0 0.0
    %3705 = vmatprep.subr.mxu0 0.0
    %3706 = vmatpush1.msra.mxu0 0.0
    %3707 = vmatprep.subr.mxu0 0.0
    %3708 = vmatpush1.msra.mxu0 0.0
    %3709 = vmatprep.subr.mxu0 0.0
    %3710 = vmatpush1.msra.mxu0 0.0
    %3711 = vmatprep.subr.mxu0 0.0
    %3712 = vmatpush1.msra.mxu0 0.0
    %3713 = vmatprep.subr.mxu0 0.0
    %3714 = vmatpush1.msra.mxu0 0.0
    %3715 = vmatprep.subr.mxu0 0.0
    %3716 = vmatpush1.msra.mxu0 0.0
    %3717 = vmatprep.subr.mxu0 0.0
    %3718 = vmatpush1.msra.mxu0 0.0
    %3719 = vmatprep.subr.mxu0 0.0
    %3720 = vmatpush1.msra.mxu0 0.0
    %3721 = vmatprep.subr.mxu0 0.0
    %3722 = vmatpush1.msra.mxu0 0.0
    %3723 = vmatprep.subr.mxu0 0.0
    %3724 = vmatpush1.msra.mxu0 0.0
    %3725 = vmatprep.subr.mxu0 0.0
    %3726 = vmatpush1.msra.mxu0 0.0
    %3727 = vmatprep.subr.mxu0 0.0
    %3728 = vmatpush1.msra.mxu0 0.0
    %3729 = vmatprep.subr.mxu0 0.0
    %3730 = vmatpush1.msra.mxu0 0.0
    %3731 = vmatprep.subr.mxu0 0.0
    %3732 = vmatpush1.msra.mxu0 0.0
    %3733 = vmatprep.subr.mxu0 0.0
    %3734 = vmatpush1.msra.mxu0 0.0
    %3735 = vmatprep.mubr.f32.mxu0 0.0
    %3736 = vmatmul.mubr.f32.gmra.mrb[0].mxu0 %v3077
    %v3737 = vpop.f32.mrb[0].mxu0
    %v3738 = vadd.f32 0.0, %v3737
    %v3739 = vpop.f32.mrb[0].mxu0
    %3740 = vdwg.mxu0
    %v3741 = vadd.f32 %v3526, %v3667
    %v3742 = vxor.u32 %v3741, 2147483648
    %v3743 = vmul.f32 %v3742, 1.442695
    %v3744 = vpow.pop %v3743
    %v3745 = vadd.f32 %v3744, 1.0
    %v3746 = vrcp.pop %v3745
    %v3747 = vmul.f32 1.0, %v3746
    %v3748 = vadd.f32 %v3528, %v3669
    %v3749 = vxor.u32 %v3748, 2147483648
    %v3750 = vmul.f32 %v3749, 1.442695
    %v3751 = vpow.pop %v3750
    %v3752 = vadd.f32 %v3751, 1.0
    %v3753 = vrcp.pop %v3752
    %v3754 = vmul.f32 1.0, %v3753
    %v3755 = vadd.f32 %v3738, %v1008
    %v3756 = vmul.f32 %v3747, %v3755
    %v3757 = vadd.f32 %v3597, %v3756
    %v3758 = vtanh.pop %v3757
    %v3759 = vsub.f32 1.0, %v3754
    %v3760 = vmul.f32 %v3759, %v3758
    %v3761 = vmul.f32 %v3754, %v3077
    %v3762 = vadd.f32 %v3760, %v3761
    %3763 = vmatprep.subr.mxu0 0.0
    %3764 = vmatpush1.msra.mxu0 %v252
    %3765 = vmatprep.subr.mxu0 0.0
    %3766 = vmatpush1.msra.mxu0 %v253
    %3767 = vmatprep.subr.mxu0 0.0
    %3768 = vmatpush1.msra.mxu0 %v254
    %3769 = vmatprep.subr.mxu0 0.0
    %3770 = vmatpush1.msra.mxu0 %v255
    %3771 = vmatprep.subr.mxu0 0.0
    %3772 = vmatpush1.msra.mxu0 %v256
    %3773 = vmatprep.subr.mxu0 0.0
    %3774 = vmatpush1.msra.mxu0 %v257
    %3775 = vmatprep.subr.mxu0 0.0
    %3776 = vmatpush1.msra.mxu0 %v258
    %3777 = vmatprep.subr.mxu0 0.0
    %3778 = vmatpush1.msra.mxu0 %v259
    %3779 = vmatprep.subr.mxu0 0.0
    %3780 = vmatpush1.msra.mxu0 %v260
    %3781 = vmatprep.subr.mxu0 0.0
    %3782 = vmatpush1.msra.mxu0 %v261
    %3783 = vmatprep.subr.mxu0 0.0
    %3784 = vmatpush1.msra.mxu0 %v262
    %3785 = vmatprep.subr.mxu0 0.0
    %3786 = vmatpush1.msra.mxu0 %v263
    %3787 = vmatprep.subr.mxu0 0.0
    %3788 = vmatpush1.msra.mxu0 %v264
    %3789 = vmatprep.subr.mxu0 0.0
    %3790 = vmatpush1.msra.mxu0 %v265
    %3791 = vmatprep.subr.mxu0 0.0
    %3792 = vmatpush1.msra.mxu0 %v266
    %3793 = vmatprep.subr.mxu0 0.0
    %3794 = vmatpush1.msra.mxu0 %v267
    %3795 = vmatprep.subr.mxu0 0.0
    %3796 = vmatpush1.msra.mxu0 0.0
    %3797 = vmatprep.subr.mxu0 0.0
    %3798 = vmatpush1.msra.mxu0 0.0
    %3799 = vmatprep.subr.mxu0 0.0
    %3800 = vmatpush1.msra.mxu0 0.0
    %3801 = vmatprep.subr.mxu0 0.0
    %3802 = vmatpush1.msra.mxu0 0.0
    %3803 = vmatprep.subr.mxu0 0.0
    %3804 = vmatpush1.msra.mxu0 0.0
    %3805 = vmatprep.subr.mxu0 0.0
    %3806 = vmatpush1.msra.mxu0 0.0
    %3807 = vmatprep.subr.mxu0 0.0
    %3808 = vmatpush1.msra.mxu0 0.0
    %3809 = vmatprep.subr.mxu0 0.0
    %3810 = vmatpush1.msra.mxu0 0.0
    %3811 = vmatprep.subr.mxu0 0.0
    %3812 = vmatpush1.msra.mxu0 0.0
    %3813 = vmatprep.subr.mxu0 0.0
    %3814 = vmatpush1.msra.mxu0 0.0
    %3815 = vmatprep.subr.mxu0 0.0
    %3816 = vmatpush1.msra.mxu0 0.0
    %3817 = vmatprep.subr.mxu0 0.0
    %3818 = vmatpush1.msra.mxu0 0.0
    %3819 = vmatprep.subr.mxu0 0.0
    %3820 = vmatpush1.msra.mxu0 0.0
    %3821 = vmatprep.subr.mxu0 0.0
    %3822 = vmatpush1.msra.mxu0 0.0
    %3823 = vmatprep.subr.mxu0 0.0
    %3824 = vmatpush1.msra.mxu0 0.0
    %3825 = vmatprep.subr.mxu0 0.0
    %3826 = vmatpush1.msra.mxu0 0.0
    %3827 = vmatprep.mubr.f32.mxu0 0.0
    %3828 = vmatmul.mubr.f32.gmra.mrb[0].mxu0 %v3762
    %v3829 = vpop.f32.mrb[0].mxu0
    %v3830 = vadd.f32 %v1022, %v3829
    %v3831 = vpop.f32.mrb[0].mxu0
    %3832 = vdwg.mxu0
    %s3833 = scalar_lea.vmem [#allocation8], 8
    %3834 = vst.msk [vmem:[%s3833] sm:$0x3] %vm1094, %v3830
    %s3835 = scalar_lea.vmem %s0, 8
    %v3836 = vld [vmem:[%s3835] sm:$0x3]
    %v3838 = vsel %vm378, %v3836, 0
    %3840 = vmatprep.subr.mxu0 %v93
    %3841 = vmatpush1.msra.mxu0 %v92
    %3842 = vmatprep.subr.mxu0 %v96
    %3843 = vmatpush1.msra.mxu0 %v95
    %3844 = vmatprep.subr.mxu0 %v99
    %3845 = vmatpush1.msra.mxu0 %v98
    %3846 = vmatprep.subr.mxu0 %v102
    %3847 = vmatpush1.msra.mxu0 %v101
    %3848 = vmatprep.subr.mxu0 0.0
    %3849 = vmatpush1.msra.mxu0 0.0
    %3850 = vmatprep.subr.mxu0 0.0
    %3851 = vmatpush1.msra.mxu0 0.0
    %3852 = vmatprep.subr.mxu0 0.0
    %3853 = vmatpush1.msra.mxu0 0.0
    %3854 = vmatprep.subr.mxu0 0.0
    %3855 = vmatpush1.msra.mxu0 0.0
    %3856 = vmatprep.subr.mxu0 0.0
    %3857 = vmatpush1.msra.mxu0 0.0
    %3858 = vmatprep.subr.mxu0 0.0
    %3859 = vmatpush1.msra.mxu0 0.0
    %3860 = vmatprep.subr.mxu0 0.0
    %3861 = vmatpush1.msra.mxu0 0.0
    %3862 = vmatprep.subr.mxu0 0.0
    %3863 = vmatpush1.msra.mxu0 0.0
    %3864 = vmatprep.subr.mxu0 0.0
    %3865 = vmatpush1.msra.mxu0 0.0
    %3866 = vmatprep.subr.mxu0 0.0
    %3867 = vmatpush1.msra.mxu0 0.0
    %3868 = vmatprep.subr.mxu0 0.0
    %3869 = vmatpush1.msra.mxu0 0.0
    %3870 = vmatprep.subr.mxu0 0.0
    %3871 = vmatpush1.msra.mxu0 0.0
    %3872 = vmatprep.subr.mxu0 0.0
    %3873 = vmatpush1.msra.mxu0 0.0
    %3874 = vmatprep.subr.mxu0 0.0
    %3875 = vmatpush1.msra.mxu0 0.0
    %3876 = vmatprep.subr.mxu0 0.0
    %3877 = vmatpush1.msra.mxu0 0.0
    %3878 = vmatprep.subr.mxu0 0.0
    %3879 = vmatpush1.msra.mxu0 0.0
    %3880 = vmatprep.subr.mxu0 0.0
    %3881 = vmatpush1.msra.mxu0 0.0
    %3882 = vmatprep.subr.mxu0 0.0
    %3883 = vmatpush1.msra.mxu0 0.0
    %3884 = vmatprep.subr.mxu0 0.0
    %3885 = vmatpush1.msra.mxu0 0.0
    %3886 = vmatprep.subr.mxu0 0.0
    %3887 = vmatpush1.msra.mxu0 0.0
    %3888 = vmatprep.subr.mxu0 0.0
    %3889 = vmatpush1.msra.mxu0 0.0
    %3890 = vmatprep.subr.mxu0 0.0
    %3891 = vmatpush1.msra.mxu0 0.0
    %3892 = vmatprep.subr.mxu0 0.0
    %3893 = vmatpush1.msra.mxu0 0.0
    %3894 = vmatprep.subr.mxu0 0.0
    %3895 = vmatpush1.msra.mxu0 0.0
    %3896 = vmatprep.subr.mxu0 0.0
    %3897 = vmatpush1.msra.mxu0 0.0
    %3898 = vmatprep.subr.mxu0 0.0
    %3899 = vmatpush1.msra.mxu0 0.0
    %3900 = vmatprep.subr.mxu0 0.0
    %3901 = vmatpush1.msra.mxu0 0.0
    %3902 = vmatprep.subr.mxu0 0.0
    %3903 = vmatpush1.msra.mxu0 0.0
    %3904 = vmatprep.mubr.f32.mxu0 0.0
    %3905 = vmatmul.mubr.f32.gmra.mrb[0].mxu0 %v3838
    %v3906 = vpop.f32.mrb[0].mxu0
    %v3907 = vadd.f32 %v366, %v3906
    %v3908 = vpop.f32.mrb[0].mxu0
    %v3909 = vadd.f32 %v370, %v3908
    %3910 = vdwg.mxu0
    %3911 = vmatprep.subr.mxu0 0.0
    %3912 = vmatpush1.msra.mxu0 %v94
    %3913 = vmatprep.subr.mxu0 0.0
    %3914 = vmatpush1.msra.mxu0 %v97
    %3915 = vmatprep.subr.mxu0 0.0
    %3916 = vmatpush1.msra.mxu0 %v100
    %3917 = vmatprep.subr.mxu0 0.0
    %3918 = vmatpush1.msra.mxu0 %v103
    %3919 = vmatprep.subr.mxu0 0.0
    %3920 = vmatpush1.msra.mxu0 0.0
    %3921 = vmatprep.subr.mxu0 0.0
    %3922 = vmatpush1.msra.mxu0 0.0
    %3923 = vmatprep.subr.mxu0 0.0
    %3924 = vmatpush1.msra.mxu0 0.0
    %3925 = vmatprep.subr.mxu0 0.0
    %3926 = vmatpush1.msra.mxu0 0.0
    %3927 = vmatprep.subr.mxu0 0.0
    %3928 = vmatpush1.msra.mxu0 0.0
    %3929 = vmatprep.subr.mxu0 0.0
    %3930 = vmatpush1.msra.mxu0 0.0
    %3931 = vmatprep.subr.mxu0 0.0
    %3932 = vmatpush1.msra.mxu0 0.0
    %3933 = vmatprep.subr.mxu0 0.0
    %3934 = vmatpush1.msra.mxu0 0.0
    %3935 = vmatprep.subr.mxu0 0.0
    %3936 = vmatpush1.msra.mxu0 0.0
    %3937 = vmatprep.subr.mxu0 0.0
    %3938 = vmatpush1.msra.mxu0 0.0
    %3939 = vmatprep.subr.mxu0 0.0
    %3940 = vmatpush1.msra.mxu0 0.0
    %3941 = vmatprep.subr.mxu0 0.0
    %3942 = vmatpush1.msra.mxu0 0.0
    %3943 = vmatprep.subr.mxu0 0.0
    %3944 = vmatpush1.msra.mxu0 0.0
    %3945 = vmatprep.subr.mxu0 0.0
    %3946 = vmatpush1.msra.mxu0 0.0
    %3947 = vmatprep.subr.mxu0 0.0
    %3948 = vmatpush1.msra.mxu0 0.0
    %3949 = vmatprep.subr.mxu0 0.0
    %3950 = vmatpush1.msra.mxu0 0.0
    %3951 = vmatprep.subr.mxu0 0.0
    %3952 = vmatpush1.msra.mxu0 0.0
    %3953 = vmatprep.subr.mxu0 0.0
    %3954 = vmatpush1.msra.mxu0 0.0
    %3955 = vmatprep.subr.mxu0 0.0
    %3956 = vmatpush1.msra.mxu0 0.0
    %3957 = vmatprep.subr.mxu0 0.0
    %3958 = vmatpush1.msra.mxu0 0.0
    %3959 = vmatprep.subr.mxu0 0.0
    %3960 = vmatpush1.msra.mxu0 0.0
    %3961 = vmatprep.subr.mxu0 0.0
    %3962 = vmatpush1.msra.mxu0 0.0
    %3963 = vmatprep.subr.mxu0 0.0
    %3964 = vmatpush1.msra.mxu0 0.0
    %3965 = vmatprep.subr.mxu0 0.0
    %3966 = vmatpush1.msra.mxu0 0.0
    %3967 = vmatprep.subr.mxu0 0.0
    %3968 = vmatpush1.msra.mxu0 0.0
    %3969 = vmatprep.subr.mxu0 0.0
    %3970 = vmatpush1.msra.mxu0 0.0
    %3971 = vmatprep.subr.mxu0 0.0
    %3972 = vmatpush1.msra.mxu0 0.0
    %3973 = vmatprep.subr.mxu0 0.0
    %3974 = vmatpush1.msra.mxu0 0.0
    %3975 = vmatprep.mubr.f32.mxu0 0.0
    %3976 = vmatmul.mubr.f32.gmra.mrb[0].mxu0 %v3838
    %v3977 = vpop.f32.mrb[0].mxu0
    %v3978 = vadd.f32 %v374, %v3977
    %v3979 = vpop.f32.mrb[0].mxu0
    %3980 = vdwg.mxu0
    %3981 = vmatprep.subr.mxu0 %v105
    %3982 = vmatpush1.msra.mxu0 %v104
    %3983 = vmatprep.subr.mxu0 %v108
    %3984 = vmatpush1.msra.mxu0 %v107
    %3985 = vmatprep.subr.mxu0 %v111
    %3986 = vmatpush1.msra.mxu0 %v110
    %3987 = vmatprep.subr.mxu0 %v114
    %3988 = vmatpush1.msra.mxu0 %v113
    %3989 = vmatprep.subr.mxu0 %v117
    %3990 = vmatpush1.msra.mxu0 %v116
    %3991 = vmatprep.subr.mxu0 %v120
    %3992 = vmatpush1.msra.mxu0 %v119
    %3993 = vmatprep.subr.mxu0 %v123
    %3994 = vmatpush1.msra.mxu0 %v122
    %3995 = vmatprep.subr.mxu0 %v126
    %3996 = vmatpush1.msra.mxu0 %v125
    %3997 = vmatprep.subr.mxu0 %v129
    %3998 = vmatpush1.msra.mxu0 %v128
    %3999 = vmatprep.subr.mxu0 %v132
    %4000 = vmatpush1.msra.mxu0 %v131
    %4001 = vmatprep.subr.mxu0 %v135
    %4002 = vmatpush1.msra.mxu0 %v134
    %4003 = vmatprep.subr.mxu0 %v138
    %4004 = vmatpush1.msra.mxu0 %v137
    %4005 = vmatprep.subr.mxu0 %v141
    %4006 = vmatpush1.msra.mxu0 %v140
    %4007 = vmatprep.subr.mxu0 %v144
    %4008 = vmatpush1.msra.mxu0 %v143
    %4009 = vmatprep.subr.mxu0 %v147
    %4010 = vmatpush1.msra.mxu0 %v146
    %4011 = vmatprep.subr.mxu0 %v150
    %4012 = vmatpush1.msra.mxu0 %v149
    %4013 = vmatprep.subr.mxu0 0.0
    %4014 = vmatpush1.msra.mxu0 0.0
    %4015 = vmatprep.subr.mxu0 0.0
    %4016 = vmatpush1.msra.mxu0 0.0
    %4017 = vmatprep.subr.mxu0 0.0
    %4018 = vmatpush1.msra.mxu0 0.0
    %4019 = vmatprep.subr.mxu0 0.0
    %4020 = vmatpush1.msra.mxu0 0.0
    %4021 = vmatprep.subr.mxu0 0.0
    %4022 = vmatpush1.msra.mxu0 0.0
    %4023 = vmatprep.subr.mxu0 0.0
    %4024 = vmatpush1.msra.mxu0 0.0
    %4025 = vmatprep.subr.mxu0 0.0
    %4026 = vmatpush1.msra.mxu0 0.0
    %4027 = vmatprep.subr.mxu0 0.0
    %4028 = vmatpush1.msra.mxu0 0.0
    %4029 = vmatprep.subr.mxu0 0.0
    %4030 = vmatpush1.msra.mxu0 0.0
    %4031 = vmatprep.subr.mxu0 0.0
    %4032 = vmatpush1.msra.mxu0 0.0
    %4033 = vmatprep.subr.mxu0 0.0
    %4034 = vmatpush1.msra.mxu0 0.0
    %4035 = vmatprep.subr.mxu0 0.0
    %4036 = vmatpush1.msra.mxu0 0.0
    %4037 = vmatprep.subr.mxu0 0.0
    %4038 = vmatpush1.msra.mxu0 0.0
    %4039 = vmatprep.subr.mxu0 0.0
    %4040 = vmatpush1.msra.mxu0 0.0
    %4041 = vmatprep.subr.mxu0 0.0
    %4042 = vmatpush1.msra.mxu0 0.0
    %4043 = vmatprep.subr.mxu0 0.0
    %4044 = vmatpush1.msra.mxu0 0.0
    %4045 = vmatprep.mubr.f32.mxu0 0.0
    %4046 = vmatmul.mubr.f32.gmra.mrb[0].mxu0 %v3458
    %v4047 = vpop.f32.mrb[0].mxu0
    %v4048 = vadd.f32 0.0, %v4047
    %v4049 = vpop.f32.mrb[0].mxu0
    %v4050 = vadd.f32 0.0, %v4049
    %4051 = vdwg.mxu0
    %4052 = vmatprep.subr.mxu0 0.0
    %4053 = vmatpush1.msra.mxu0 %v106
    %4054 = vmatprep.subr.mxu0 0.0
    %4055 = vmatpush1.msra.mxu0 %v109
    %4056 = vmatprep.subr.mxu0 0.0
    %4057 = vmatpush1.msra.mxu0 %v112
    %4058 = vmatprep.subr.mxu0 0.0
    %4059 = vmatpush1.msra.mxu0 %v115
    %4060 = vmatprep.subr.mxu0 0.0
    %4061 = vmatpush1.msra.mxu0 %v118
    %4062 = vmatprep.subr.mxu0 0.0
    %4063 = vmatpush1.msra.mxu0 %v121
    %4064 = vmatprep.subr.mxu0 0.0
    %4065 = vmatpush1.msra.mxu0 %v124
    %4066 = vmatprep.subr.mxu0 0.0
    %4067 = vmatpush1.msra.mxu0 %v127
    %4068 = vmatprep.subr.mxu0 0.0
    %4069 = vmatpush1.msra.mxu0 %v130
    %4070 = vmatprep.subr.mxu0 0.0
    %4071 = vmatpush1.msra.mxu0 %v133
    %4072 = vmatprep.subr.mxu0 0.0
    %4073 = vmatpush1.msra.mxu0 %v136
    %4074 = vmatprep.subr.mxu0 0.0
    %4075 = vmatpush1.msra.mxu0 %v139
    %4076 = vmatprep.subr.mxu0 0.0
    %4077 = vmatpush1.msra.mxu0 %v142
    %4078 = vmatprep.subr.mxu0 0.0
    %4079 = vmatpush1.msra.mxu0 %v145
    %4080 = vmatprep.subr.mxu0 0.0
    %4081 = vmatpush1.msra.mxu0 %v148
    %4082 = vmatprep.subr.mxu0 0.0
    %4083 = vmatpush1.msra.mxu0 %v151
    %4084 = vmatprep.subr.mxu0 0.0
    %4085 = vmatpush1.msra.mxu0 0.0
    %4086 = vmatprep.subr.mxu0 0.0
    %4087 = vmatpush1.msra.mxu0 0.0
    %4088 = vmatprep.subr.mxu0 0.0
    %4089 = vmatpush1.msra.mxu0 0.0
    %4090 = vmatprep.subr.mxu0 0.0
    %4091 = vmatpush1.msra.mxu0 0.0
    %4092 = vmatprep.subr.mxu0 0.0
    %4093 = vmatpush1.msra.mxu0 0.0
    %4094 = vmatprep.subr.mxu0 0.0
    %4095 = vmatpush1.msra.mxu0 0.0
    %4096 = vmatprep.subr.mxu0 0.0
    %4097 = vmatpush1.msra.mxu0 0.0
    %4098 = vmatprep.subr.mxu0 0.0
    %4099 = vmatpush1.msra.mxu0 0.0
    %4100 = vmatprep.subr.mxu0 0.0
    %4101 = vmatpush1.msra.mxu0 0.0
    %4102 = vmatprep.subr.mxu0 0.0
    %4103 = vmatpush1.msra.mxu0 0.0
    %4104 = vmatprep.subr.mxu0 0.0
    %4105 = vmatpush1.msra.mxu0 0.0
    %4106 = vmatprep.subr.mxu0 0.0
    %4107 = vmatpush1.msra.mxu0 0.0
    %4108 = vmatprep.subr.mxu0 0.0
    %4109 = vmatpush1.msra.mxu0 0.0
    %4110 = vmatprep.subr.mxu0 0.0
    %4111 = vmatpush1.msra.mxu0 0.0
    %4112 = vmatprep.subr.mxu0 0.0
    %4113 = vmatpush1.msra.mxu0 0.0
    %4114 = vmatprep.subr.mxu0 0.0
    %4115 = vmatpush1.msra.mxu0 0.0
    %4116 = vmatprep.mubr.f32.mxu0 0.0
    %4117 = vmatmul.mubr.f32.gmra.mrb[0].mxu0 %v3458
    %v4118 = vpop.f32.mrb[0].mxu0
    %v4119 = vadd.f32 0.0, %v4118
    %v4120 = vpop.f32.mrb[0].mxu0
    %4121 = vdwg.mxu0
    %v4122 = vadd.f32 %v3907, %v4048
    %v4123 = vxor.u32 %v4122, 2147483648
    %v4124 = vmul.f32 %v4123, 1.442695
    %v4125 = vpow.pop %v4124
    %v4126 = vadd.f32 %v4125, 1.0
    %v4127 = vrcp.pop %v4126
    %v4128 = vmul.f32 1.0, %v4127
    %v4129 = vadd.f32 %v3909, %v4050
    %v4130 = vxor.u32 %v4129, 2147483648
    %v4131 = vmul.f32 %v4130, 1.442695
    %v4132 = vpow.pop %v4131
    %v4133 = vadd.f32 %v4132, 1.0
    %v4134 = vrcp.pop %v4133
    %v4135 = vmul.f32 1.0, %v4134
    %v4136 = vadd.f32 %v4119, %v682
    %v4137 = vmul.f32 %v4128, %v4136
    %v4138 = vadd.f32 %v3978, %v4137
    %v4139 = vtanh.pop %v4138
    %v4140 = vsub.f32 1.0, %v4135
    %v4141 = vmul.f32 %v4140, %v4139
    %v4142 = vmul.f32 %v4135, %v3458
    %v4143 = vadd.f32 %v4141, %v4142
    %4144 = vmatprep.subr.mxu0 %v155
    %4145 = vmatpush1.msra.mxu0 %v154
    %4146 = vmatprep.subr.mxu0 %v158
    %4147 = vmatpush1.msra.mxu0 %v157
    %4148 = vmatprep.subr.mxu0 %v161
    %4149 = vmatpush1.msra.mxu0 %v160
    %4150 = vmatprep.subr.mxu0 %v164
    %4151 = vmatpush1.msra.mxu0 %v163
    %4152 = vmatprep.subr.mxu0 %v167
    %4153 = vmatpush1.msra.mxu0 %v166
    %4154 = vmatprep.subr.mxu0 %v170
    %4155 = vmatpush1.msra.mxu0 %v169
    %4156 = vmatprep.subr.mxu0 %v173
    %4157 = vmatpush1.msra.mxu0 %v172
    %4158 = vmatprep.subr.mxu0 %v176
    %4159 = vmatpush1.msra.mxu0 %v175
    %4160 = vmatprep.subr.mxu0 %v179
    %4161 = vmatpush1.msra.mxu0 %v178
    %4162 = vmatprep.subr.mxu0 %v182
    %4163 = vmatpush1.msra.mxu0 %v181
    %4164 = vmatprep.subr.mxu0 %v185
    %4165 = vmatpush1.msra.mxu0 %v184
    %4166 = vmatprep.subr.mxu0 %v188
    %4167 = vmatpush1.msra.mxu0 %v187
    %4168 = vmatprep.subr.mxu0 %v191
    %4169 = vmatpush1.msra.mxu0 %v190
    %4170 = vmatprep.subr.mxu0 %v194
    %4171 = vmatpush1.msra.mxu0 %v193
    %4172 = vmatprep.subr.mxu0 %v197
    %4173 = vmatpush1.msra.mxu0 %v196
    %4174 = vmatprep.subr.mxu0 %v200
    %4175 = vmatpush1.msra.mxu0 %v199
    %4176 = vmatprep.subr.mxu0 0.0
    %4177 = vmatpush1.msra.mxu0 0.0
    %4178 = vmatprep.subr.mxu0 0.0
    %4179 = vmatpush1.msra.mxu0 0.0
    %4180 = vmatprep.subr.mxu0 0.0
    %4181 = vmatpush1.msra.mxu0 0.0
    %4182 = vmatprep.subr.mxu0 0.0
    %4183 = vmatpush1.msra.mxu0 0.0
    %4184 = vmatprep.subr.mxu0 0.0
    %4185 = vmatpush1.msra.mxu0 0.0
    %4186 = vmatprep.subr.mxu0 0.0
    %4187 = vmatpush1.msra.mxu0 0.0
    %4188 = vmatprep.subr.mxu0 0.0
    %4189 = vmatpush1.msra.mxu0 0.0
    %4190 = vmatprep.subr.mxu0 0.0
    %4191 = vmatpush1.msra.mxu0 0.0
    %4192 = vmatprep.subr.mxu0 0.0
    %4193 = vmatpush1.msra.mxu0 0.0
    %4194 = vmatprep.subr.mxu0 0.0
    %4195 = vmatpush1.msra.mxu0 0.0
    %4196 = vmatprep.subr.mxu0 0.0
    %4197 = vmatpush1.msra.mxu0 0.0
    %4198 = vmatprep.subr.mxu0 0.0
    %4199 = vmatpush1.msra.mxu0 0.0
    %4200 = vmatprep.subr.mxu0 0.0
    %4201 = vmatpush1.msra.mxu0 0.0
    %4202 = vmatprep.subr.mxu0 0.0
    %4203 = vmatpush1.msra.mxu0 0.0
    %4204 = vmatprep.subr.mxu0 0.0
    %4205 = vmatpush1.msra.mxu0 0.0
    %4206 = vmatprep.subr.mxu0 0.0
    %4207 = vmatpush1.msra.mxu0 0.0
    %4208 = vmatprep.mubr.f32.mxu0 0.0
    %4209 = vmatmul.mubr.f32.gmra.mrb[0].mxu0 %v4143
    %v4210 = vpop.f32.mrb[0].mxu0
    %v4211 = vadd.f32 %v696, %v4210
    %v4212 = vpop.f32.mrb[0].mxu0
    %v4213 = vadd.f32 %v700, %v4212
    %4214 = vdwg.mxu0
    %4215 = vmatprep.subr.mxu0 0.0
    %4216 = vmatpush1.msra.mxu0 %v156
    %4217 = vmatprep.subr.mxu0 0.0
    %4218 = vmatpush1.msra.mxu0 %v159
    %4219 = vmatprep.subr.mxu0 0.0
    %4220 = vmatpush1.msra.mxu0 %v162
    %4221 = vmatprep.subr.mxu0 0.0
    %4222 = vmatpush1.msra.mxu0 %v165
    %4223 = vmatprep.subr.mxu0 0.0
    %4224 = vmatpush1.msra.mxu0 %v168
    %4225 = vmatprep.subr.mxu0 0.0
    %4226 = vmatpush1.msra.mxu0 %v171
    %4227 = vmatprep.subr.mxu0 0.0
    %4228 = vmatpush1.msra.mxu0 %v174
    %4229 = vmatprep.subr.mxu0 0.0
    %4230 = vmatpush1.msra.mxu0 %v177
    %4231 = vmatprep.subr.mxu0 0.0
    %4232 = vmatpush1.msra.mxu0 %v180
    %4233 = vmatprep.subr.mxu0 0.0
    %4234 = vmatpush1.msra.mxu0 %v183
    %4235 = vmatprep.subr.mxu0 0.0
    %4236 = vmatpush1.msra.mxu0 %v186
    %4237 = vmatprep.subr.mxu0 0.0
    %4238 = vmatpush1.msra.mxu0 %v189
    %4239 = vmatprep.subr.mxu0 0.0
    %4240 = vmatpush1.msra.mxu0 %v192
    %4241 = vmatprep.subr.mxu0 0.0
    %4242 = vmatpush1.msra.mxu0 %v195
    %4243 = vmatprep.subr.mxu0 0.0
    %4244 = vmatpush1.msra.mxu0 %v198
    %4245 = vmatprep.subr.mxu0 0.0
    %4246 = vmatpush1.msra.mxu0 %v201
    %4247 = vmatprep.subr.mxu0 0.0
    %4248 = vmatpush1.msra.mxu0 0.0
    %4249 = vmatprep.subr.mxu0 0.0
    %4250 = vmatpush1.msra.mxu0 0.0
    %4251 = vmatprep.subr.mxu0 0.0
    %4252 = vmatpush1.msra.mxu0 0.0
    %4253 = vmatprep.subr.mxu0 0.0
    %4254 = vmatpush1.msra.mxu0 0.0
    %4255 = vmatprep.subr.mxu0 0.0
    %4256 = vmatpush1.msra.mxu0 0.0
    %4257 = vmatprep.subr.mxu0 0.0
    %4258 = vmatpush1.msra.mxu0 0.0
    %4259 = vmatprep.subr.mxu0 0.0
    %4260 = vmatpush1.msra.mxu0 0.0
    %4261 = vmatprep.subr.mxu0 0.0
    %4262 = vmatpush1.msra.mxu0 0.0
    %4263 = vmatprep.subr.mxu0 0.0
    %4264 = vmatpush1.msra.mxu0 0.0
    %4265 = vmatprep.subr.mxu0 0.0
    %4266 = vmatpush1.msra.mxu0 0.0
    %4267 = vmatprep.subr.mxu0 0.0
    %4268 = vmatpush1.msra.mxu0 0.0
    %4269 = vmatprep.subr.mxu0 0.0
    %4270 = vmatpush1.msra.mxu0 0.0
    %4271 = vmatprep.subr.mxu0 0.0
    %4272 = vmatpush1.msra.mxu0 0.0
    %4273 = vmatprep.subr.mxu0 0.0
    %4274 = vmatpush1.msra.mxu0 0.0
    %4275 = vmatprep.subr.mxu0 0.0
    %4276 = vmatpush1.msra.mxu0 0.0
    %4277 = vmatprep.subr.mxu0 0.0
    %4278 = vmatpush1.msra.mxu0 0.0
    %4279 = vmatprep.mubr.f32.mxu0 0.0
    %4280 = vmatmul.mubr.f32.gmra.mrb[0].mxu0 %v4143
    %v4281 = vpop.f32.mrb[0].mxu0
    %v4282 = vadd.f32 %v704, %v4281
    %v4283 = vpop.f32.mrb[0].mxu0
    %4284 = vdwg.mxu0
    %4285 = vmatprep.subr.mxu0 %v203
    %4286 = vmatpush1.msra.mxu0 %v202
    %4287 = vmatprep.subr.mxu0 %v206
    %4288 = vmatpush1.msra.mxu0 %v205
    %4289 = vmatprep.subr.mxu0 %v209
    %4290 = vmatpush1.msra.mxu0 %v208
    %4291 = vmatprep.subr.mxu0 %v212
    %4292 = vmatpush1.msra.mxu0 %v211
    %4293 = vmatprep.subr.mxu0 %v215
    %4294 = vmatpush1.msra.mxu0 %v214
    %4295 = vmatprep.subr.mxu0 %v218
    %4296 = vmatpush1.msra.mxu0 %v217
    %4297 = vmatprep.subr.mxu0 %v221
    %4298 = vmatpush1.msra.mxu0 %v220
    %4299 = vmatprep.subr.mxu0 %v224
    %4300 = vmatpush1.msra.mxu0 %v223
    %4301 = vmatprep.subr.mxu0 %v227
    %4302 = vmatpush1.msra.mxu0 %v226
    %4303 = vmatprep.subr.mxu0 %v230
    %4304 = vmatpush1.msra.mxu0 %v229
    %4305 = vmatprep.subr.mxu0 %v233
    %4306 = vmatpush1.msra.mxu0 %v232
    %4307 = vmatprep.subr.mxu0 %v236
    %4308 = vmatpush1.msra.mxu0 %v235
    %4309 = vmatprep.subr.mxu0 %v239
    %4310 = vmatpush1.msra.mxu0 %v238
    %4311 = vmatprep.subr.mxu0 %v242
    %4312 = vmatpush1.msra.mxu0 %v241
    %4313 = vmatprep.subr.mxu0 %v245
    %4314 = vmatpush1.msra.mxu0 %v244
    %4315 = vmatprep.subr.mxu0 %v248
    %4316 = vmatpush1.msra.mxu0 %v247
    %4317 = vmatprep.subr.mxu0 0.0
    %4318 = vmatpush1.msra.mxu0 0.0
    %4319 = vmatprep.subr.mxu0 0.0
    %4320 = vmatpush1.msra.mxu0 0.0
    %4321 = vmatprep.subr.mxu0 0.0
    %4322 = vmatpush1.msra.mxu0 0.0
    %4323 = vmatprep.subr.mxu0 0.0
    %4324 = vmatpush1.msra.mxu0 0.0
    %4325 = vmatprep.subr.mxu0 0.0
    %4326 = vmatpush1.msra.mxu0 0.0
    %4327 = vmatprep.subr.mxu0 0.0
    %4328 = vmatpush1.msra.mxu0 0.0
    %4329 = vmatprep.subr.mxu0 0.0
    %4330 = vmatpush1.msra.mxu0 0.0
    %4331 = vmatprep.subr.mxu0 0.0
    %4332 = vmatpush1.msra.mxu0 0.0
    %4333 = vmatprep.subr.mxu0 0.0
    %4334 = vmatpush1.msra.mxu0 0.0
    %4335 = vmatprep.subr.mxu0 0.0
    %4336 = vmatpush1.msra.mxu0 0.0
    %4337 = vmatprep.subr.mxu0 0.0
    %4338 = vmatpush1.msra.mxu0 0.0
    %4339 = vmatprep.subr.mxu0 0.0
    %4340 = vmatpush1.msra.mxu0 0.0
    %4341 = vmatprep.subr.mxu0 0.0
    %4342 = vmatpush1.msra.mxu0 0.0
    %4343 = vmatprep.subr.mxu0 0.0
    %4344 = vmatpush1.msra.mxu0 0.0
    %4345 = vmatprep.subr.mxu0 0.0
    %4346 = vmatpush1.msra.mxu0 0.0
    %4347 = vmatprep.subr.mxu0 0.0
    %4348 = vmatpush1.msra.mxu0 0.0
    %4349 = vmatprep.mubr.f32.mxu0 0.0
    %4350 = vmatmul.mubr.f32.gmra.mrb[0].mxu0 %v3762
    %v4351 = vpop.f32.mrb[0].mxu0
    %v4352 = vadd.f32 0.0, %v4351
    %v4353 = vpop.f32.mrb[0].mxu0
    %v4354 = vadd.f32 0.0, %v4353
    %4355 = vdwg.mxu0
    %4356 = vmatprep.subr.mxu0 0.0
    %4357 = vmatpush1.msra.mxu0 %v204
    %4358 = vmatprep.subr.mxu0 0.0
    %4359 = vmatpush1.msra.mxu0 %v207
    %4360 = vmatprep.subr.mxu0 0.0
    %4361 = vmatpush1.msra.mxu0 %v210
    %4362 = vmatprep.subr.mxu0 0.0
    %4363 = vmatpush1.msra.mxu0 %v213
    %4364 = vmatprep.subr.mxu0 0.0
    %4365 = vmatpush1.msra.mxu0 %v216
    %4366 = vmatprep.subr.mxu0 0.0
    %4367 = vmatpush1.msra.mxu0 %v219
    %4368 = vmatprep.subr.mxu0 0.0
    %4369 = vmatpush1.msra.mxu0 %v222
    %4370 = vmatprep.subr.mxu0 0.0
    %4371 = vmatpush1.msra.mxu0 %v225
    %4372 = vmatprep.subr.mxu0 0.0
    %4373 = vmatpush1.msra.mxu0 %v228
    %4374 = vmatprep.subr.mxu0 0.0
    %4375 = vmatpush1.msra.mxu0 %v231
    %4376 = vmatprep.subr.mxu0 0.0
    %4377 = vmatpush1.msra.mxu0 %v234
    %4378 = vmatprep.subr.mxu0 0.0
    %4379 = vmatpush1.msra.mxu0 %v237
    %4380 = vmatprep.subr.mxu0 0.0
    %4381 = vmatpush1.msra.mxu0 %v240
    %4382 = vmatprep.subr.mxu0 0.0
    %4383 = vmatpush1.msra.mxu0 %v243
    %4384 = vmatprep.subr.mxu0 0.0
    %4385 = vmatpush1.msra.mxu0 %v246
    %4386 = vmatprep.subr.mxu0 0.0
    %4387 = vmatpush1.msra.mxu0 %v249
    %4388 = vmatprep.subr.mxu0 0.0
    %4389 = vmatpush1.msra.mxu0 0.0
    %4390 = vmatprep.subr.mxu0 0.0
    %4391 = vmatpush1.msra.mxu0 0.0
    %4392 = vmatprep.subr.mxu0 0.0
    %4393 = vmatpush1.msra.mxu0 0.0
    %4394 = vmatprep.subr.mxu0 0.0
    %4395 = vmatpush1.msra.mxu0 0.0
    %4396 = vmatprep.subr.mxu0 0.0
    %4397 = vmatpush1.msra.mxu0 0.0
    %4398 = vmatprep.subr.mxu0 0.0
    %4399 = vmatpush1.msra.mxu0 0.0
    %4400 = vmatprep.subr.mxu0 0.0
    %4401 = vmatpush1.msra.mxu0 0.0
    %4402 = vmatprep.subr.mxu0 0.0
    %4403 = vmatpush1.msra.mxu0 0.0
    %4404 = vmatprep.subr.mxu0 0.0
    %4405 = vmatpush1.msra.mxu0 0.0
    %4406 = vmatprep.subr.mxu0 0.0
    %4407 = vmatpush1.msra.mxu0 0.0
    %4408 = vmatprep.subr.mxu0 0.0
    %4409 = vmatpush1.msra.mxu0 0.0
    %4410 = vmatprep.subr.mxu0 0.0
    %4411 = vmatpush1.msra.mxu0 0.0
    %4412 = vmatprep.subr.mxu0 0.0
    %4413 = vmatpush1.msra.mxu0 0.0
    %4414 = vmatprep.subr.mxu0 0.0
    %4415 = vmatpush1.msra.mxu0 0.0
    %4416 = vmatprep.subr.mxu0 0.0
    %4417 = vmatpush1.msra.mxu0 0.0
    %4418 = vmatprep.subr.mxu0 0.0
    %4419 = vmatpush1.msra.mxu0 0.0
    %4420 = vmatprep.mubr.f32.mxu0 0.0
    %4421 = vmatmul.mubr.f32.gmra.mrb[0].mxu0 %v3762
    %v4422 = vpop.f32.mrb[0].mxu0
    %v4423 = vadd.f32 0.0, %v4422
    %v4424 = vpop.f32.mrb[0].mxu0
    %4425 = vdwg.mxu0
    %v4426 = vadd.f32 %v4211, %v4352
    %v4427 = vxor.u32 %v4426, 2147483648
    %v4428 = vmul.f32 %v4427, 1.442695
    %v4429 = vpow.pop %v4428
    %v4430 = vadd.f32 %v4429, 1.0
    %v4431 = vrcp.pop %v4430
    %v4432 = vmul.f32 1.0, %v4431
    %v4433 = vadd.f32 %v4213, %v4354
    %v4434 = vxor.u32 %v4433, 2147483648
    %v4435 = vmul.f32 %v4434, 1.442695
    %v4436 = vpow.pop %v4435
    %v4437 = vadd.f32 %v4436, 1.0
    %v4438 = vrcp.pop %v4437
    %v4439 = vmul.f32 1.0, %v4438
    %v4440 = vadd.f32 %v4423, %v1008
    %v4441 = vmul.f32 %v4432, %v4440
    %v4442 = vadd.f32 %v4282, %v4441
    %v4443 = vtanh.pop %v4442
    %v4444 = vsub.f32 1.0, %v4439
    %v4445 = vmul.f32 %v4444, %v4443
    %v4446 = vmul.f32 %v4439, %v3762
    %v4447 = vadd.f32 %v4445, %v4446
    %4448 = vmatprep.subr.mxu0 0.0
    %4449 = vmatpush1.msra.mxu0 %v252
    %4450 = vmatprep.subr.mxu0 0.0
    %4451 = vmatpush1.msra.mxu0 %v253
    %4452 = vmatprep.subr.mxu0 0.0
    %4453 = vmatpush1.msra.mxu0 %v254
    %4454 = vmatprep.subr.mxu0 0.0
    %4455 = vmatpush1.msra.mxu0 %v255
    %4456 = vmatprep.subr.mxu0 0.0
    %4457 = vmatpush1.msra.mxu0 %v256
    %4458 = vmatprep.subr.mxu0 0.0
    %4459 = vmatpush1.msra.mxu0 %v257
    %4460 = vmatprep.subr.mxu0 0.0
    %4461 = vmatpush1.msra.mxu0 %v258
    %4462 = vmatprep.subr.mxu0 0.0
    %4463 = vmatpush1.msra.mxu0 %v259
    %4464 = vmatprep.subr.mxu0 0.0
    %4465 = vmatpush1.msra.mxu0 %v260
    %4466 = vmatprep.subr.mxu0 0.0
    %4467 = vmatpush1.msra.mxu0 %v261
    %4468 = vmatprep.subr.mxu0 0.0
    %4469 = vmatpush1.msra.mxu0 %v262
    %4470 = vmatprep.subr.mxu0 0.0
    %4471 = vmatpush1.msra.mxu0 %v263
    %4472 = vmatprep.subr.mxu0 0.0
    %4473 = vmatpush1.msra.mxu0 %v264
    %4474 = vmatprep.subr.mxu0 0.0
    %4475 = vmatpush1.msra.mxu0 %v265
    %4476 = vmatprep.subr.mxu0 0.0
    %4477 = vmatpush1.msra.mxu0 %v266
    %4478 = vmatprep.subr.mxu0 0.0
    %4479 = vmatpush1.msra.mxu0 %v267
    %4480 = vmatprep.subr.mxu0 0.0
    %4481 = vmatpush1.msra.mxu0 0.0
    %4482 = vmatprep.subr.mxu0 0.0
    %4483 = vmatpush1.msra.mxu0 0.0
    %4484 = vmatprep.subr.mxu0 0.0
    %4485 = vmatpush1.msra.mxu0 0.0
    %4486 = vmatprep.subr.mxu0 0.0
    %4487 = vmatpush1.msra.mxu0 0.0
    %4488 = vmatprep.subr.mxu0 0.0
    %4489 = vmatpush1.msra.mxu0 0.0
    %4490 = vmatprep.subr.mxu0 0.0
    %4491 = vmatpush1.msra.mxu0 0.0
    %4492 = vmatprep.subr.mxu0 0.0
    %4493 = vmatpush1.msra.mxu0 0.0
    %4494 = vmatprep.subr.mxu0 0.0
    %4495 = vmatpush1.msra.mxu0 0.0
    %4496 = vmatprep.subr.mxu0 0.0
    %4497 = vmatpush1.msra.mxu0 0.0
    %4498 = vmatprep.subr.mxu0 0.0
    %4499 = vmatpush1.msra.mxu0 0.0
    %4500 = vmatprep.subr.mxu0 0.0
    %4501 = vmatpush1.msra.mxu0 0.0
    %4502 = vmatprep.subr.mxu0 0.0
    %4503 = vmatpush1.msra.mxu0 0.0
    %4504 = vmatprep.subr.mxu0 0.0
    %4505 = vmatpush1.msra.mxu0 0.0
    %4506 = vmatprep.subr.mxu0 0.0
    %4507 = vmatpush1.msra.mxu0 0.0
    %4508 = vmatprep.subr.mxu0 0.0
    %4509 = vmatpush1.msra.mxu0 0.0
    %4510 = vmatprep.subr.mxu0 0.0
    %4511 = vmatpush1.msra.mxu0 0.0
    %4512 = vmatprep.mubr.f32.mxu0 0.0
    %4513 = vmatmul.mubr.f32.gmra.mrb[0].mxu0 %v4447
    %v4514 = vpop.f32.mrb[0].mxu0
    %v4515 = vadd.f32 %v1022, %v4514
    %v4516 = vpop.f32.mrb[0].mxu0
    %4517 = vdwg.mxu0
    %s4518 = scalar_lea.vmem [#allocation8], 10
    %4519 = vst.msk [vmem:[%s4518] sm:$0x3] %vm1094, %v4515
    %s4520 = scalar_lea.vmem %s0, 10
    %v4521 = vld [vmem:[%s4520] sm:$0x3]
    %v4523 = vsel %vm378, %v4521, 0
    %4525 = vmatprep.subr.mxu0 %v93
    %4526 = vmatpush1.msra.mxu0 %v92
    %4527 = vmatprep.subr.mxu0 %v96
    %4528 = vmatpush1.msra.mxu0 %v95
    %4529 = vmatprep.subr.mxu0 %v99
    %4530 = vmatpush1.msra.mxu0 %v98
    %4531 = vmatprep.subr.mxu0 %v102
    %4532 = vmatpush1.msra.mxu0 %v101
    %4533 = vmatprep.subr.mxu0 0.0
    %4534 = vmatpush1.msra.mxu0 0.0
    %4535 = vmatprep.subr.mxu0 0.0
    %4536 = vmatpush1.msra.mxu0 0.0
    %4537 = vmatprep.subr.mxu0 0.0
    %4538 = vmatpush1.msra.mxu0 0.0
    %4539 = vmatprep.subr.mxu0 0.0
    %4540 = vmatpush1.msra.mxu0 0.0
    %4541 = vmatprep.subr.mxu0 0.0
    %4542 = vmatpush1.msra.mxu0 0.0
    %4543 = vmatprep.subr.mxu0 0.0
    %4544 = vmatpush1.msra.mxu0 0.0
    %4545 = vmatprep.subr.mxu0 0.0
    %4546 = vmatpush1.msra.mxu0 0.0
    %4547 = vmatprep.subr.mxu0 0.0
    %4548 = vmatpush1.msra.mxu0 0.0
    %4549 = vmatprep.subr.mxu0 0.0
    %4550 = vmatpush1.msra.mxu0 0.0
    %4551 = vmatprep.subr.mxu0 0.0
    %4552 = vmatpush1.msra.mxu0 0.0
    %4553 = vmatprep.subr.mxu0 0.0
    %4554 = vmatpush1.msra.mxu0 0.0
    %4555 = vmatprep.subr.mxu0 0.0
    %4556 = vmatpush1.msra.mxu0 0.0
    %4557 = vmatprep.subr.mxu0 0.0
    %4558 = vmatpush1.msra.mxu0 0.0
    %4559 = vmatprep.subr.mxu0 0.0
    %4560 = vmatpush1.msra.mxu0 0.0
    %4561 = vmatprep.subr.mxu0 0.0
    %4562 = vmatpush1.msra.mxu0 0.0
    %4563 = vmatprep.subr.mxu0 0.0
    %4564 = vmatpush1.msra.mxu0 0.0
    %4565 = vmatprep.subr.mxu0 0.0
    %4566 = vmatpush1.msra.mxu0 0.0
    %4567 = vmatprep.subr.mxu0 0.0
    %4568 = vmatpush1.msra.mxu0 0.0
    %4569 = vmatprep.subr.mxu0 0.0
    %4570 = vmatpush1.msra.mxu0 0.0
    %4571 = vmatprep.subr.mxu0 0.0
    %4572 = vmatpush1.msra.mxu0 0.0
    %4573 = vmatprep.subr.mxu0 0.0
    %4574 = vmatpush1.msra.mxu0 0.0
    %4575 = vmatprep.subr.mxu0 0.0
    %4576 = vmatpush1.msra.mxu0 0.0
    %4577 = vmatprep.subr.mxu0 0.0
    %4578 = vmatpush1.msra.mxu0 0.0
    %4579 = vmatprep.subr.mxu0 0.0
    %4580 = vmatpush1.msra.mxu0 0.0
    %4581 = vmatprep.subr.mxu0 0.0
    %4582 = vmatpush1.msra.mxu0 0.0
    %4583 = vmatprep.subr.mxu0 0.0
    %4584 = vmatpush1.msra.mxu0 0.0
    %4585 = vmatprep.subr.mxu0 0.0
    %4586 = vmatpush1.msra.mxu0 0.0
    %4587 = vmatprep.subr.mxu0 0.0
    %4588 = vmatpush1.msra.mxu0 0.0
    %4589 = vmatprep.mubr.f32.mxu0 0.0
    %4590 = vmatmul.mubr.f32.gmra.mrb[0].mxu0 %v4523
    %v4591 = vpop.f32.mrb[0].mxu0
    %v4592 = vadd.f32 %v366, %v4591
    %v4593 = vpop.f32.mrb[0].mxu0
    %v4594 = vadd.f32 %v370, %v4593
    %4595 = vdwg.mxu0
    %4596 = vmatprep.subr.mxu0 0.0
    %4597 = vmatpush1.msra.mxu0 %v94
    %4598 = vmatprep.subr.mxu0 0.0
    %4599 = vmatpush1.msra.mxu0 %v97
    %4600 = vmatprep.subr.mxu0 0.0
    %4601 = vmatpush1.msra.mxu0 %v100
    %4602 = vmatprep.subr.mxu0 0.0
    %4603 = vmatpush1.msra.mxu0 %v103
    %4604 = vmatprep.subr.mxu0 0.0
    %4605 = vmatpush1.msra.mxu0 0.0
    %4606 = vmatprep.subr.mxu0 0.0
    %4607 = vmatpush1.msra.mxu0 0.0
    %4608 = vmatprep.subr.mxu0 0.0
    %4609 = vmatpush1.msra.mxu0 0.0
    %4610 = vmatprep.subr.mxu0 0.0
    %4611 = vmatpush1.msra.mxu0 0.0
    %4612 = vmatprep.subr.mxu0 0.0
    %4613 = vmatpush1.msra.mxu0 0.0
    %4614 = vmatprep.subr.mxu0 0.0
    %4615 = vmatpush1.msra.mxu0 0.0
    %4616 = vmatprep.subr.mxu0 0.0
    %4617 = vmatpush1.msra.mxu0 0.0
    %4618 = vmatprep.subr.mxu0 0.0
    %4619 = vmatpush1.msra.mxu0 0.0
    %4620 = vmatprep.subr.mxu0 0.0
    %4621 = vmatpush1.msra.mxu0 0.0
    %4622 = vmatprep.subr.mxu0 0.0
    %4623 = vmatpush1.msra.mxu0 0.0
    %4624 = vmatprep.subr.mxu0 0.0
    %4625 = vmatpush1.msra.mxu0 0.0
    %4626 = vmatprep.subr.mxu0 0.0
    %4627 = vmatpush1.msra.mxu0 0.0
    %4628 = vmatprep.subr.mxu0 0.0
    %4629 = vmatpush1.msra.mxu0 0.0
    %4630 = vmatprep.subr.mxu0 0.0
    %4631 = vmatpush1.msra.mxu0 0.0
    %4632 = vmatprep.subr.mxu0 0.0
    %4633 = vmatpush1.msra.mxu0 0.0
    %4634 = vmatprep.subr.mxu0 0.0
    %4635 = vmatpush1.msra.mxu0 0.0
    %4636 = vmatprep.subr.mxu0 0.0
    %4637 = vmatpush1.msra.mxu0 0.0
    %4638 = vmatprep.subr.mxu0 0.0
    %4639 = vmatpush1.msra.mxu0 0.0
    %4640 = vmatprep.subr.mxu0 0.0
    %4641 = vmatpush1.msra.mxu0 0.0
    %4642 = vmatprep.subr.mxu0 0.0
    %4643 = vmatpush1.msra.mxu0 0.0
    %4644 = vmatprep.subr.mxu0 0.0
    %4645 = vmatpush1.msra.mxu0 0.0
    %4646 = vmatprep.subr.mxu0 0.0
    %4647 = vmatpush1.msra.mxu0 0.0
    %4648 = vmatprep.subr.mxu0 0.0
    %4649 = vmatpush1.msra.mxu0 0.0
    %4650 = vmatprep.subr.mxu0 0.0
    %4651 = vmatpush1.msra.mxu0 0.0
    %4652 = vmatprep.subr.mxu0 0.0
    %4653 = vmatpush1.msra.mxu0 0.0
    %4654 = vmatprep.subr.mxu0 0.0
    %4655 = vmatpush1.msra.mxu0 0.0
    %4656 = vmatprep.subr.mxu0 0.0
    %4657 = vmatpush1.msra.mxu0 0.0
    %4658 = vmatprep.subr.mxu0 0.0
    %4659 = vmatpush1.msra.mxu0 0.0
    %4660 = vmatprep.mubr.f32.mxu0 0.0
    %4661 = vmatmul.mubr.f32.gmra.mrb[0].mxu0 %v4523
    %v4662 = vpop.f32.mrb[0].mxu0
    %v4663 = vadd.f32 %v374, %v4662
    %v4664 = vpop.f32.mrb[0].mxu0
    %4665 = vdwg.mxu0
    %4666 = vmatprep.subr.mxu0 %v105
    %4667 = vmatpush1.msra.mxu0 %v104
    %4668 = vmatprep.subr.mxu0 %v108
    %4669 = vmatpush1.msra.mxu0 %v107
    %4670 = vmatprep.subr.mxu0 %v111
    %4671 = vmatpush1.msra.mxu0 %v110
    %4672 = vmatprep.subr.mxu0 %v114
    %4673 = vmatpush1.msra.mxu0 %v113
    %4674 = vmatprep.subr.mxu0 %v117
    %4675 = vmatpush1.msra.mxu0 %v116
    %4676 = vmatprep.subr.mxu0 %v120
    %4677 = vmatpush1.msra.mxu0 %v119
    %4678 = vmatprep.subr.mxu0 %v123
    %4679 = vmatpush1.msra.mxu0 %v122
    %4680 = vmatprep.subr.mxu0 %v126
    %4681 = vmatpush1.msra.mxu0 %v125
    %4682 = vmatprep.subr.mxu0 %v129
    %4683 = vmatpush1.msra.mxu0 %v128
    %4684 = vmatprep.subr.mxu0 %v132
    %4685 = vmatpush1.msra.mxu0 %v131
    %4686 = vmatprep.subr.mxu0 %v135
    %4687 = vmatpush1.msra.mxu0 %v134
    %4688 = vmatprep.subr.mxu0 %v138
    %4689 = vmatpush1.msra.mxu0 %v137
    %4690 = vmatprep.subr.mxu0 %v141
    %4691 = vmatpush1.msra.mxu0 %v140
    %4692 = vmatprep.subr.mxu0 %v144
    %4693 = vmatpush1.msra.mxu0 %v143
    %4694 = vmatprep.subr.mxu0 %v147
    %4695 = vmatpush1.msra.mxu0 %v146
    %4696 = vmatprep.subr.mxu0 %v150
    %4697 = vmatpush1.msra.mxu0 %v149
    %4698 = vmatprep.subr.mxu0 0.0
    %4699 = vmatpush1.msra.mxu0 0.0
    %4700 = vmatprep.subr.mxu0 0.0
    %4701 = vmatpush1.msra.mxu0 0.0
    %4702 = vmatprep.subr.mxu0 0.0
    %4703 = vmatpush1.msra.mxu0 0.0
    %4704 = vmatprep.subr.mxu0 0.0
    %4705 = vmatpush1.msra.mxu0 0.0
    %4706 = vmatprep.subr.mxu0 0.0
    %4707 = vmatpush1.msra.mxu0 0.0
    %4708 = vmatprep.subr.mxu0 0.0
    %4709 = vmatpush1.msra.mxu0 0.0
    %4710 = vmatprep.subr.mxu0 0.0
    %4711 = vmatpush1.msra.mxu0 0.0
    %4712 = vmatprep.subr.mxu0 0.0
    %4713 = vmatpush1.msra.mxu0 0.0
    %4714 = vmatprep.subr.mxu0 0.0
    %4715 = vmatpush1.msra.mxu0 0.0
    %4716 = vmatprep.subr.mxu0 0.0
    %4717 = vmatpush1.msra.mxu0 0.0
    %4718 = vmatprep.subr.mxu0 0.0
    %4719 = vmatpush1.msra.mxu0 0.0
    %4720 = vmatprep.subr.mxu0 0.0
    %4721 = vmatpush1.msra.mxu0 0.0
    %4722 = vmatprep.subr.mxu0 0.0
    %4723 = vmatpush1.msra.mxu0 0.0
    %4724 = vmatprep.subr.mxu0 0.0
    %4725 = vmatpush1.msra.mxu0 0.0
    %4726 = vmatprep.subr.mxu0 0.0
    %4727 = vmatpush1.msra.mxu0 0.0
    %4728 = vmatprep.subr.mxu0 0.0
    %4729 = vmatpush1.msra.mxu0 0.0
    %4730 = vmatprep.mubr.f32.mxu0 0.0
    %4731 = vmatmul.mubr.f32.gmra.mrb[0].mxu0 %v4143
    %v4732 = vpop.f32.mrb[0].mxu0
    %v4733 = vadd.f32 0.0, %v4732
    %v4734 = vpop.f32.mrb[0].mxu0
    %v4735 = vadd.f32 0.0, %v4734
    %4736 = vdwg.mxu0
    %4737 = vmatprep.subr.mxu0 0.0
    %4738 = vmatpush1.msra.mxu0 %v106
    %4739 = vmatprep.subr.mxu0 0.0
    %4740 = vmatpush1.msra.mxu0 %v109
    %4741 = vmatprep.subr.mxu0 0.0
    %4742 = vmatpush1.msra.mxu0 %v112
    %4743 = vmatprep.subr.mxu0 0.0
    %4744 = vmatpush1.msra.mxu0 %v115
    %4745 = vmatprep.subr.mxu0 0.0
    %4746 = vmatpush1.msra.mxu0 %v118
    %4747 = vmatprep.subr.mxu0 0.0
    %4748 = vmatpush1.msra.mxu0 %v121
    %4749 = vmatprep.subr.mxu0 0.0
    %4750 = vmatpush1.msra.mxu0 %v124
    %4751 = vmatprep.subr.mxu0 0.0
    %4752 = vmatpush1.msra.mxu0 %v127
    %4753 = vmatprep.subr.mxu0 0.0
    %4754 = vmatpush1.msra.mxu0 %v130
    %4755 = vmatprep.subr.mxu0 0.0
    %4756 = vmatpush1.msra.mxu0 %v133
    %4757 = vmatprep.subr.mxu0 0.0
    %4758 = vmatpush1.msra.mxu0 %v136
    %4759 = vmatprep.subr.mxu0 0.0
    %4760 = vmatpush1.msra.mxu0 %v139
    %4761 = vmatprep.subr.mxu0 0.0
    %4762 = vmatpush1.msra.mxu0 %v142
    %4763 = vmatprep.subr.mxu0 0.0
    %4764 = vmatpush1.msra.mxu0 %v145
    %4765 = vmatprep.subr.mxu0 0.0
    %4766 = vmatpush1.msra.mxu0 %v148
    %4767 = vmatprep.subr.mxu0 0.0
    %4768 = vmatpush1.msra.mxu0 %v151
    %4769 = vmatprep.subr.mxu0 0.0
    %4770 = vmatpush1.msra.mxu0 0.0
    %4771 = vmatprep.subr.mxu0 0.0
    %4772 = vmatpush1.msra.mxu0 0.0
    %4773 = vmatprep.subr.mxu0 0.0
    %4774 = vmatpush1.msra.mxu0 0.0
    %4775 = vmatprep.subr.mxu0 0.0
    %4776 = vmatpush1.msra.mxu0 0.0
    %4777 = vmatprep.subr.mxu0 0.0
    %4778 = vmatpush1.msra.mxu0 0.0
    %4779 = vmatprep.subr.mxu0 0.0
    %4780 = vmatpush1.msra.mxu0 0.0
    %4781 = vmatprep.subr.mxu0 0.0
    %4782 = vmatpush1.msra.mxu0 0.0
    %4783 = vmatprep.subr.mxu0 0.0
    %4784 = vmatpush1.msra.mxu0 0.0
    %4785 = vmatprep.subr.mxu0 0.0
    %4786 = vmatpush1.msra.mxu0 0.0
    %4787 = vmatprep.subr.mxu0 0.0
    %4788 = vmatpush1.msra.mxu0 0.0
    %4789 = vmatprep.subr.mxu0 0.0
    %4790 = vmatpush1.msra.mxu0 0.0
    %4791 = vmatprep.subr.mxu0 0.0
    %4792 = vmatpush1.msra.mxu0 0.0
    %4793 = vmatprep.subr.mxu0 0.0
    %4794 = vmatpush1.msra.mxu0 0.0
    %4795 = vmatprep.subr.mxu0 0.0
    %4796 = vmatpush1.msra.mxu0 0.0
    %4797 = vmatprep.subr.mxu0 0.0
    %4798 = vmatpush1.msra.mxu0 0.0
    %4799 = vmatprep.subr.mxu0 0.0
    %4800 = vmatpush1.msra.mxu0 0.0
    %4801 = vmatprep.mubr.f32.mxu0 0.0
    %4802 = vmatmul.mubr.f32.gmra.mrb[0].mxu0 %v4143
    %v4803 = vpop.f32.mrb[0].mxu0
    %v4804 = vadd.f32 0.0, %v4803
    %v4805 = vpop.f32.mrb[0].mxu0
    %4806 = vdwg.mxu0
    %v4807 = vadd.f32 %v4592, %v4733
    %v4808 = vxor.u32 %v4807, 2147483648
    %v4809 = vmul.f32 %v4808, 1.442695
    %v4810 = vpow.pop %v4809
    %v4811 = vadd.f32 %v4810, 1.0
    %v4812 = vrcp.pop %v4811
    %v4813 = vmul.f32 1.0, %v4812
    %v4814 = vadd.f32 %v4594, %v4735
    %v4815 = vxor.u32 %v4814, 2147483648
    %v4816 = vmul.f32 %v4815, 1.442695
    %v4817 = vpow.pop %v4816
    %v4818 = vadd.f32 %v4817, 1.0
    %v4819 = vrcp.pop %v4818
    %v4820 = vmul.f32 1.0, %v4819
    %v4821 = vadd.f32 %v4804, %v682
    %v4822 = vmul.f32 %v4813, %v4821
    %v4823 = vadd.f32 %v4663, %v4822
    %v4824 = vtanh.pop %v4823
    %v4825 = vsub.f32 1.0, %v4820
    %v4826 = vmul.f32 %v4825, %v4824
    %v4827 = vmul.f32 %v4820, %v4143
    %v4828 = vadd.f32 %v4826, %v4827
    %4829 = vmatprep.subr.mxu0 %v155
    %4830 = vmatpush1.msra.mxu0 %v154
    %4831 = vmatprep.subr.mxu0 %v158
    %4832 = vmatpush1.msra.mxu0 %v157
    %4833 = vmatprep.subr.mxu0 %v161
    %4834 = vmatpush1.msra.mxu0 %v160
    %4835 = vmatprep.subr.mxu0 %v164
    %4836 = vmatpush1.msra.mxu0 %v163
    %4837 = vmatprep.subr.mxu0 %v167
    %4838 = vmatpush1.msra.mxu0 %v166
    %4839 = vmatprep.subr.mxu0 %v170
    %4840 = vmatpush1.msra.mxu0 %v169
    %4841 = vmatprep.subr.mxu0 %v173
    %4842 = vmatpush1.msra.mxu0 %v172
    %4843 = vmatprep.subr.mxu0 %v176
    %4844 = vmatpush1.msra.mxu0 %v175
    %4845 = vmatprep.subr.mxu0 %v179
    %4846 = vmatpush1.msra.mxu0 %v178
    %4847 = vmatprep.subr.mxu0 %v182
    %4848 = vmatpush1.msra.mxu0 %v181
    %4849 = vmatprep.subr.mxu0 %v185
    %4850 = vmatpush1.msra.mxu0 %v184
    %4851 = vmatprep.subr.mxu0 %v188
    %4852 = vmatpush1.msra.mxu0 %v187
    %4853 = vmatprep.subr.mxu0 %v191
    %4854 = vmatpush1.msra.mxu0 %v190
    %4855 = vmatprep.subr.mxu0 %v194
    %4856 = vmatpush1.msra.mxu0 %v193
    %4857 = vmatprep.subr.mxu0 %v197
    %4858 = vmatpush1.msra.mxu0 %v196
    %4859 = vmatprep.subr.mxu0 %v200
    %4860 = vmatpush1.msra.mxu0 %v199
    %4861 = vmatprep.subr.mxu0 0.0
    %4862 = vmatpush1.msra.mxu0 0.0
    %4863 = vmatprep.subr.mxu0 0.0
    %4864 = vmatpush1.msra.mxu0 0.0
    %4865 = vmatprep.subr.mxu0 0.0
    %4866 = vmatpush1.msra.mxu0 0.0
    %4867 = vmatprep.subr.mxu0 0.0
    %4868 = vmatpush1.msra.mxu0 0.0
    %4869 = vmatprep.subr.mxu0 0.0
    %4870 = vmatpush1.msra.mxu0 0.0
    %4871 = vmatprep.subr.mxu0 0.0
    %4872 = vmatpush1.msra.mxu0 0.0
    %4873 = vmatprep.subr.mxu0 0.0
    %4874 = vmatpush1.msra.mxu0 0.0
    %4875 = vmatprep.subr.mxu0 0.0
    %4876 = vmatpush1.msra.mxu0 0.0
    %4877 = vmatprep.subr.mxu0 0.0
    %4878 = vmatpush1.msra.mxu0 0.0
    %4879 = vmatprep.subr.mxu0 0.0
    %4880 = vmatpush1.msra.mxu0 0.0
    %4881 = vmatprep.subr.mxu0 0.0
    %4882 = vmatpush1.msra.mxu0 0.0
    %4883 = vmatprep.subr.mxu0 0.0
    %4884 = vmatpush1.msra.mxu0 0.0
    %4885 = vmatprep.subr.mxu0 0.0
    %4886 = vmatpush1.msra.mxu0 0.0
    %4887 = vmatprep.subr.mxu0 0.0
    %4888 = vmatpush1.msra.mxu0 0.0
    %4889 = vmatprep.subr.mxu0 0.0
    %4890 = vmatpush1.msra.mxu0 0.0
    %4891 = vmatprep.subr.mxu0 0.0
    %4892 = vmatpush1.msra.mxu0 0.0
    %4893 = vmatprep.mubr.f32.mxu0 0.0
    %4894 = vmatmul.mubr.f32.gmra.mrb[0].mxu0 %v4828
    %v4895 = vpop.f32.mrb[0].mxu0
    %v4896 = vadd.f32 %v696, %v4895
    %v4897 = vpop.f32.mrb[0].mxu0
    %v4898 = vadd.f32 %v700, %v4897
    %4899 = vdwg.mxu0
    %4900 = vmatprep.subr.mxu0 0.0
    %4901 = vmatpush1.msra.mxu0 %v156
    %4902 = vmatprep.subr.mxu0 0.0
    %4903 = vmatpush1.msra.mxu0 %v159
    %4904 = vmatprep.subr.mxu0 0.0
    %4905 = vmatpush1.msra.mxu0 %v162
    %4906 = vmatprep.subr.mxu0 0.0
    %4907 = vmatpush1.msra.mxu0 %v165
    %4908 = vmatprep.subr.mxu0 0.0
    %4909 = vmatpush1.msra.mxu0 %v168
    %4910 = vmatprep.subr.mxu0 0.0
    %4911 = vmatpush1.msra.mxu0 %v171
    %4912 = vmatprep.subr.mxu0 0.0
    %4913 = vmatpush1.msra.mxu0 %v174
    %4914 = vmatprep.subr.mxu0 0.0
    %4915 = vmatpush1.msra.mxu0 %v177
    %4916 = vmatprep.subr.mxu0 0.0
    %4917 = vmatpush1.msra.mxu0 %v180
    %4918 = vmatprep.subr.mxu0 0.0
    %4919 = vmatpush1.msra.mxu0 %v183
    %4920 = vmatprep.subr.mxu0 0.0
    %4921 = vmatpush1.msra.mxu0 %v186
    %4922 = vmatprep.subr.mxu0 0.0
    %4923 = vmatpush1.msra.mxu0 %v189
    %4924 = vmatprep.subr.mxu0 0.0
    %4925 = vmatpush1.msra.mxu0 %v192
    %4926 = vmatprep.subr.mxu0 0.0
    %4927 = vmatpush1.msra.mxu0 %v195
    %4928 = vmatprep.subr.mxu0 0.0
    %4929 = vmatpush1.msra.mxu0 %v198
    %4930 = vmatprep.subr.mxu0 0.0
    %4931 = vmatpush1.msra.mxu0 %v201
    %4932 = vmatprep.subr.mxu0 0.0
    %4933 = vmatpush1.msra.mxu0 0.0
    %4934 = vmatprep.subr.mxu0 0.0
    %4935 = vmatpush1.msra.mxu0 0.0
    %4936 = vmatprep.subr.mxu0 0.0
    %4937 = vmatpush1.msra.mxu0 0.0
    %4938 = vmatprep.subr.mxu0 0.0
    %4939 = vmatpush1.msra.mxu0 0.0
    %4940 = vmatprep.subr.mxu0 0.0
    %4941 = vmatpush1.msra.mxu0 0.0
    %4942 = vmatprep.subr.mxu0 0.0
    %4943 = vmatpush1.msra.mxu0 0.0
    %4944 = vmatprep.subr.mxu0 0.0
    %4945 = vmatpush1.msra.mxu0 0.0
    %4946 = vmatprep.subr.mxu0 0.0
    %4947 = vmatpush1.msra.mxu0 0.0
    %4948 = vmatprep.subr.mxu0 0.0
    %4949 = vmatpush1.msra.mxu0 0.0
    %4950 = vmatprep.subr.mxu0 0.0
    %4951 = vmatpush1.msra.mxu0 0.0
    %4952 = vmatprep.subr.mxu0 0.0
    %4953 = vmatpush1.msra.mxu0 0.0
    %4954 = vmatprep.subr.mxu0 0.0
    %4955 = vmatpush1.msra.mxu0 0.0
    %4956 = vmatprep.subr.mxu0 0.0
    %4957 = vmatpush1.msra.mxu0 0.0
    %4958 = vmatprep.subr.mxu0 0.0
    %4959 = vmatpush1.msra.mxu0 0.0
    %4960 = vmatprep.subr.mxu0 0.0
    %4961 = vmatpush1.msra.mxu0 0.0
    %4962 = vmatprep.subr.mxu0 0.0
    %4963 = vmatpush1.msra.mxu0 0.0
    %4964 = vmatprep.mubr.f32.mxu0 0.0
    %4965 = vmatmul.mubr.f32.gmra.mrb[0].mxu0 %v4828
    %v4966 = vpop.f32.mrb[0].mxu0
    %v4967 = vadd.f32 %v704, %v4966
    %v4968 = vpop.f32.mrb[0].mxu0
    %4969 = vdwg.mxu0
    %4970 = vmatprep.subr.mxu0 %v203
    %4971 = vmatpush1.msra.mxu0 %v202
    %4972 = vmatprep.subr.mxu0 %v206
    %4973 = vmatpush1.msra.mxu0 %v205
    %4974 = vmatprep.subr.mxu0 %v209
    %4975 = vmatpush1.msra.mxu0 %v208
    %4976 = vmatprep.subr.mxu0 %v212
    %4977 = vmatpush1.msra.mxu0 %v211
    %4978 = vmatprep.subr.mxu0 %v215
    %4979 = vmatpush1.msra.mxu0 %v214
    %4980 = vmatprep.subr.mxu0 %v218
    %4981 = vmatpush1.msra.mxu0 %v217
    %4982 = vmatprep.subr.mxu0 %v221
    %4983 = vmatpush1.msra.mxu0 %v220
    %4984 = vmatprep.subr.mxu0 %v224
    %4985 = vmatpush1.msra.mxu0 %v223
    %4986 = vmatprep.subr.mxu0 %v227
    %4987 = vmatpush1.msra.mxu0 %v226
    %4988 = vmatprep.subr.mxu0 %v230
    %4989 = vmatpush1.msra.mxu0 %v229
    %4990 = vmatprep.subr.mxu0 %v233
    %4991 = vmatpush1.msra.mxu0 %v232
    %4992 = vmatprep.subr.mxu0 %v236
    %4993 = vmatpush1.msra.mxu0 %v235
    %4994 = vmatprep.subr.mxu0 %v239
    %4995 = vmatpush1.msra.mxu0 %v238
    %4996 = vmatprep.subr.mxu0 %v242
    %4997 = vmatpush1.msra.mxu0 %v241
    %4998 = vmatprep.subr.mxu0 %v245
    %4999 = vmatpush1.msra.mxu0 %v244
    %5000 = vmatprep.subr.mxu0 %v248
    %5001 = vmatpush1.msra.mxu0 %v247
    %5002 = vmatprep.subr.mxu0 0.0
    %5003 = vmatpush1.msra.mxu0 0.0
    %5004 = vmatprep.subr.mxu0 0.0
    %5005 = vmatpush1.msra.mxu0 0.0
    %5006 = vmatprep.subr.mxu0 0.0
    %5007 = vmatpush1.msra.mxu0 0.0
    %5008 = vmatprep.subr.mxu0 0.0
    %5009 = vmatpush1.msra.mxu0 0.0
    %5010 = vmatprep.subr.mxu0 0.0
    %5011 = vmatpush1.msra.mxu0 0.0
    %5012 = vmatprep.subr.mxu0 0.0
    %5013 = vmatpush1.msra.mxu0 0.0
    %5014 = vmatprep.subr.mxu0 0.0
    %5015 = vmatpush1.msra.mxu0 0.0
    %5016 = vmatprep.subr.mxu0 0.0
    %5017 = vmatpush1.msra.mxu0 0.0
    %5018 = vmatprep.subr.mxu0 0.0
    %5019 = vmatpush1.msra.mxu0 0.0
    %5020 = vmatprep.subr.mxu0 0.0
    %5021 = vmatpush1.msra.mxu0 0.0
    %5022 = vmatprep.subr.mxu0 0.0
    %5023 = vmatpush1.msra.mxu0 0.0
    %5024 = vmatprep.subr.mxu0 0.0
    %5025 = vmatpush1.msra.mxu0 0.0
    %5026 = vmatprep.subr.mxu0 0.0
    %5027 = vmatpush1.msra.mxu0 0.0
    %5028 = vmatprep.subr.mxu0 0.0
    %5029 = vmatpush1.msra.mxu0 0.0
    %5030 = vmatprep.subr.mxu0 0.0
    %5031 = vmatpush1.msra.mxu0 0.0
    %5032 = vmatprep.subr.mxu0 0.0
    %5033 = vmatpush1.msra.mxu0 0.0
    %5034 = vmatprep.mubr.f32.mxu0 0.0
    %5035 = vmatmul.mubr.f32.gmra.mrb[0].mxu0 %v4447
    %v5036 = vpop.f32.mrb[0].mxu0
    %v5037 = vadd.f32 0.0, %v5036
    %v5038 = vpop.f32.mrb[0].mxu0
    %v5039 = vadd.f32 0.0, %v5038
    %5040 = vdwg.mxu0
    %5041 = vmatprep.subr.mxu0 0.0
    %5042 = vmatpush1.msra.mxu0 %v204
    %5043 = vmatprep.subr.mxu0 0.0
    %5044 = vmatpush1.msra.mxu0 %v207
    %5045 = vmatprep.subr.mxu0 0.0
    %5046 = vmatpush1.msra.mxu0 %v210
    %5047 = vmatprep.subr.mxu0 0.0
    %5048 = vmatpush1.msra.mxu0 %v213
    %5049 = vmatprep.subr.mxu0 0.0
    %5050 = vmatpush1.msra.mxu0 %v216
    %5051 = vmatprep.subr.mxu0 0.0
    %5052 = vmatpush1.msra.mxu0 %v219
    %5053 = vmatprep.subr.mxu0 0.0
    %5054 = vmatpush1.msra.mxu0 %v222
    %5055 = vmatprep.subr.mxu0 0.0
    %5056 = vmatpush1.msra.mxu0 %v225
    %5057 = vmatprep.subr.mxu0 0.0
    %5058 = vmatpush1.msra.mxu0 %v228
    %5059 = vmatprep.subr.mxu0 0.0
    %5060 = vmatpush1.msra.mxu0 %v231
    %5061 = vmatprep.subr.mxu0 0.0
    %5062 = vmatpush1.msra.mxu0 %v234
    %5063 = vmatprep.subr.mxu0 0.0
    %5064 = vmatpush1.msra.mxu0 %v237
    %5065 = vmatprep.subr.mxu0 0.0
    %5066 = vmatpush1.msra.mxu0 %v240
    %5067 = vmatprep.subr.mxu0 0.0
    %5068 = vmatpush1.msra.mxu0 %v243
    %5069 = vmatprep.subr.mxu0 0.0
    %5070 = vmatpush1.msra.mxu0 %v246
    %5071 = vmatprep.subr.mxu0 0.0
    %5072 = vmatpush1.msra.mxu0 %v249
    %5073 = vmatprep.subr.mxu0 0.0
    %5074 = vmatpush1.msra.mxu0 0.0
    %5075 = vmatprep.subr.mxu0 0.0
    %5076 = vmatpush1.msra.mxu0 0.0
    %5077 = vmatprep.subr.mxu0 0.0
    %5078 = vmatpush1.msra.mxu0 0.0
    %5079 = vmatprep.subr.mxu0 0.0
    %5080 = vmatpush1.msra.mxu0 0.0
    %5081 = vmatprep.subr.mxu0 0.0
    %5082 = vmatpush1.msra.mxu0 0.0
    %5083 = vmatprep.subr.mxu0 0.0
    %5084 = vmatpush1.msra.mxu0 0.0
    %5085 = vmatprep.subr.mxu0 0.0
    %5086 = vmatpush1.msra.mxu0 0.0
    %5087 = vmatprep.subr.mxu0 0.0
    %5088 = vmatpush1.msra.mxu0 0.0
    %5089 = vmatprep.subr.mxu0 0.0
    %5090 = vmatpush1.msra.mxu0 0.0
    %5091 = vmatprep.subr.mxu0 0.0
    %5092 = vmatpush1.msra.mxu0 0.0
    %5093 = vmatprep.subr.mxu0 0.0
    %5094 = vmatpush1.msra.mxu0 0.0
    %5095 = vmatprep.subr.mxu0 0.0
    %5096 = vmatpush1.msra.mxu0 0.0
    %5097 = vmatprep.subr.mxu0 0.0
    %5098 = vmatpush1.msra.mxu0 0.0
    %5099 = vmatprep.subr.mxu0 0.0
    %5100 = vmatpush1.msra.mxu0 0.0
    %5101 = vmatprep.subr.mxu0 0.0
    %5102 = vmatpush1.msra.mxu0 0.0
    %5103 = vmatprep.subr.mxu0 0.0
    %5104 = vmatpush1.msra.mxu0 0.0
    %5105 = vmatprep.mubr.f32.mxu0 0.0
    %5106 = vmatmul.mubr.f32.gmra.mrb[0].mxu0 %v4447
    %v5107 = vpop.f32.mrb[0].mxu0
    %v5108 = vadd.f32 0.0, %v5107
    %v5109 = vpop.f32.mrb[0].mxu0
    %5110 = vdwg.mxu0
    %v5111 = vadd.f32 %v4896, %v5037
    %v5112 = vxor.u32 %v5111, 2147483648
    %v5113 = vmul.f32 %v5112, 1.442695
    %v5114 = vpow.pop %v5113
    %v5115 = vadd.f32 %v5114, 1.0
    %v5116 = vrcp.pop %v5115
    %v5117 = vmul.f32 1.0, %v5116
    %v5118 = vadd.f32 %v4898, %v5039
    %v5119 = vxor.u32 %v5118, 2147483648
    %v5120 = vmul.f32 %v5119, 1.442695
    %v5121 = vpow.pop %v5120
    %v5122 = vadd.f32 %v5121, 1.0
    %v5123 = vrcp.pop %v5122
    %v5124 = vmul.f32 1.0, %v5123
    %v5125 = vadd.f32 %v5108, %v1008
    %v5126 = vmul.f32 %v5117, %v5125
    %v5127 = vadd.f32 %v4967, %v5126
    %v5128 = vtanh.pop %v5127
    %v5129 = vsub.f32 1.0, %v5124
    %v5130 = vmul.f32 %v5129, %v5128
    %v5131 = vmul.f32 %v5124, %v4447
    %v5132 = vadd.f32 %v5130, %v5131
    %5133 = vmatprep.subr.mxu0 0.0
    %5134 = vmatpush1.msra.mxu0 %v252
    %5135 = vmatprep.subr.mxu0 0.0
    %5136 = vmatpush1.msra.mxu0 %v253
    %5137 = vmatprep.subr.mxu0 0.0
    %5138 = vmatpush1.msra.mxu0 %v254
    %5139 = vmatprep.subr.mxu0 0.0
    %5140 = vmatpush1.msra.mxu0 %v255
    %5141 = vmatprep.subr.mxu0 0.0
    %5142 = vmatpush1.msra.mxu0 %v256
    %5143 = vmatprep.subr.mxu0 0.0
    %5144 = vmatpush1.msra.mxu0 %v257
    %5145 = vmatprep.subr.mxu0 0.0
    %5146 = vmatpush1.msra.mxu0 %v258
    %5147 = vmatprep.subr.mxu0 0.0
    %5148 = vmatpush1.msra.mxu0 %v259
    %5149 = vmatprep.subr.mxu0 0.0
    %5150 = vmatpush1.msra.mxu0 %v260
    %5151 = vmatprep.subr.mxu0 0.0
    %5152 = vmatpush1.msra.mxu0 %v261
    %5153 = vmatprep.subr.mxu0 0.0
    %5154 = vmatpush1.msra.mxu0 %v262
    %5155 = vmatprep.subr.mxu0 0.0
    %5156 = vmatpush1.msra.mxu0 %v263
    %5157 = vmatprep.subr.mxu0 0.0
    %5158 = vmatpush1.msra.mxu0 %v264
    %5159 = vmatprep.subr.mxu0 0.0
    %5160 = vmatpush1.msra.mxu0 %v265
    %5161 = vmatprep.subr.mxu0 0.0
    %5162 = vmatpush1.msra.mxu0 %v266
    %5163 = vmatprep.subr.mxu0 0.0
    %5164 = vmatpush1.msra.mxu0 %v267
    %5165 = vmatprep.subr.mxu0 0.0
    %5166 = vmatpush1.msra.mxu0 0.0
    %5167 = vmatprep.subr.mxu0 0.0
    %5168 = vmatpush1.msra.mxu0 0.0
    %5169 = vmatprep.subr.mxu0 0.0
    %5170 = vmatpush1.msra.mxu0 0.0
    %5171 = vmatprep.subr.mxu0 0.0
    %5172 = vmatpush1.msra.mxu0 0.0
    %5173 = vmatprep.subr.mxu0 0.0
    %5174 = vmatpush1.msra.mxu0 0.0
    %5175 = vmatprep.subr.mxu0 0.0
    %5176 = vmatpush1.msra.mxu0 0.0
    %5177 = vmatprep.subr.mxu0 0.0
    %5178 = vmatpush1.msra.mxu0 0.0
    %5179 = vmatprep.subr.mxu0 0.0
    %5180 = vmatpush1.msra.mxu0 0.0
    %5181 = vmatprep.subr.mxu0 0.0
    %5182 = vmatpush1.msra.mxu0 0.0
    %5183 = vmatprep.subr.mxu0 0.0
    %5184 = vmatpush1.msra.mxu0 0.0
    %5185 = vmatprep.subr.mxu0 0.0
    %5186 = vmatpush1.msra.mxu0 0.0
    %5187 = vmatprep.subr.mxu0 0.0
    %5188 = vmatpush1.msra.mxu0 0.0
    %5189 = vmatprep.subr.mxu0 0.0
    %5190 = vmatpush1.msra.mxu0 0.0
    %5191 = vmatprep.subr.mxu0 0.0
    %5192 = vmatpush1.msra.mxu0 0.0
    %5193 = vmatprep.subr.mxu0 0.0
    %5194 = vmatpush1.msra.mxu0 0.0
    %5195 = vmatprep.subr.mxu0 0.0
    %5196 = vmatpush1.msra.mxu0 0.0
    %5197 = vmatprep.mubr.f32.mxu0 0.0
    %5198 = vmatmul.mubr.f32.gmra.mrb[0].mxu0 %v5132
    %v5199 = vpop.f32.mrb[0].mxu0
    %v5200 = vadd.f32 %v1022, %v5199
    %v5201 = vpop.f32.mrb[0].mxu0
    %5202 = vdwg.mxu0
    %s5203 = scalar_lea.vmem [#allocation8], 12
    %5204 = vst.msk [vmem:[%s5203] sm:$0x3] %vm1094, %v5200
    %s5205 = scalar_lea.vmem %s0, 12
    %v5206 = vld [vmem:[%s5205] sm:$0x3]
    %v5208 = vsel %vm378, %v5206, 0
    %5210 = vmatprep.subr.mxu0 %v93
    %5211 = vmatpush1.msra.mxu0 %v92
    %5212 = vmatprep.subr.mxu0 %v96
    %5213 = vmatpush1.msra.mxu0 %v95
    %5214 = vmatprep.subr.mxu0 %v99
    %5215 = vmatpush1.msra.mxu0 %v98
    %5216 = vmatprep.subr.mxu0 %v102
    %5217 = vmatpush1.msra.mxu0 %v101
    %5218 = vmatprep.subr.mxu0 0.0
    %5219 = vmatpush1.msra.mxu0 0.0
    %5220 = vmatprep.subr.mxu0 0.0
    %5221 = vmatpush1.msra.mxu0 0.0
    %5222 = vmatprep.subr.mxu0 0.0
    %5223 = vmatpush1.msra.mxu0 0.0
    %5224 = vmatprep.subr.mxu0 0.0
    %5225 = vmatpush1.msra.mxu0 0.0
    %5226 = vmatprep.subr.mxu0 0.0
    %5227 = vmatpush1.msra.mxu0 0.0
    %5228 = vmatprep.subr.mxu0 0.0
    %5229 = vmatpush1.msra.mxu0 0.0
    %5230 = vmatprep.subr.mxu0 0.0
    %5231 = vmatpush1.msra.mxu0 0.0
    %5232 = vmatprep.subr.mxu0 0.0
    %5233 = vmatpush1.msra.mxu0 0.0
    %5234 = vmatprep.subr.mxu0 0.0
    %5235 = vmatpush1.msra.mxu0 0.0
    %5236 = vmatprep.subr.mxu0 0.0
    %5237 = vmatpush1.msra.mxu0 0.0
    %5238 = vmatprep.subr.mxu0 0.0
    %5239 = vmatpush1.msra.mxu0 0.0
    %5240 = vmatprep.subr.mxu0 0.0
    %5241 = vmatpush1.msra.mxu0 0.0
    %5242 = vmatprep.subr.mxu0 0.0
    %5243 = vmatpush1.msra.mxu0 0.0
    %5244 = vmatprep.subr.mxu0 0.0
    %5245 = vmatpush1.msra.mxu0 0.0
    %5246 = vmatprep.subr.mxu0 0.0
    %5247 = vmatpush1.msra.mxu0 0.0
    %5248 = vmatprep.subr.mxu0 0.0
    %5249 = vmatpush1.msra.mxu0 0.0
    %5250 = vmatprep.subr.mxu0 0.0
    %5251 = vmatpush1.msra.mxu0 0.0
    %5252 = vmatprep.subr.mxu0 0.0
    %5253 = vmatpush1.msra.mxu0 0.0
    %5254 = vmatprep.subr.mxu0 0.0
    %5255 = vmatpush1.msra.mxu0 0.0
    %5256 = vmatprep.subr.mxu0 0.0
    %5257 = vmatpush1.msra.mxu0 0.0
    %5258 = vmatprep.subr.mxu0 0.0
    %5259 = vmatpush1.msra.mxu0 0.0
    %5260 = vmatprep.subr.mxu0 0.0
    %5261 = vmatpush1.msra.mxu0 0.0
    %5262 = vmatprep.subr.mxu0 0.0
    %5263 = vmatpush1.msra.mxu0 0.0
    %5264 = vmatprep.subr.mxu0 0.0
    %5265 = vmatpush1.msra.mxu0 0.0
    %5266 = vmatprep.subr.mxu0 0.0
    %5267 = vmatpush1.msra.mxu0 0.0
    %5268 = vmatprep.subr.mxu0 0.0
    %5269 = vmatpush1.msra.mxu0 0.0
    %5270 = vmatprep.subr.mxu0 0.0
    %5271 = vmatpush1.msra.mxu0 0.0
    %5272 = vmatprep.subr.mxu0 0.0
    %5273 = vmatpush1.msra.mxu0 0.0
    %5274 = vmatprep.mubr.f32.mxu0 0.0
    %5275 = vmatmul.mubr.f32.gmra.mrb[0].mxu0 %v5208
    %v5276 = vpop.f32.mrb[0].mxu0
    %v5277 = vadd.f32 %v366, %v5276
    %v5278 = vpop.f32.mrb[0].mxu0
    %v5279 = vadd.f32 %v370, %v5278
    %5280 = vdwg.mxu0
    %5281 = vmatprep.subr.mxu0 0.0
    %5282 = vmatpush1.msra.mxu0 %v94
    %5283 = vmatprep.subr.mxu0 0.0
    %5284 = vmatpush1.msra.mxu0 %v97
    %5285 = vmatprep.subr.mxu0 0.0
    %5286 = vmatpush1.msra.mxu0 %v100
    %5287 = vmatprep.subr.mxu0 0.0
    %5288 = vmatpush1.msra.mxu0 %v103
    %5289 = vmatprep.subr.mxu0 0.0
    %5290 = vmatpush1.msra.mxu0 0.0
    %5291 = vmatprep.subr.mxu0 0.0
    %5292 = vmatpush1.msra.mxu0 0.0
    %5293 = vmatprep.subr.mxu0 0.0
    %5294 = vmatpush1.msra.mxu0 0.0
    %5295 = vmatprep.subr.mxu0 0.0
    %5296 = vmatpush1.msra.mxu0 0.0
    %5297 = vmatprep.subr.mxu0 0.0
    %5298 = vmatpush1.msra.mxu0 0.0
    %5299 = vmatprep.subr.mxu0 0.0
    %5300 = vmatpush1.msra.mxu0 0.0
    %5301 = vmatprep.subr.mxu0 0.0
    %5302 = vmatpush1.msra.mxu0 0.0
    %5303 = vmatprep.subr.mxu0 0.0
    %5304 = vmatpush1.msra.mxu0 0.0
    %5305 = vmatprep.subr.mxu0 0.0
    %5306 = vmatpush1.msra.mxu0 0.0
    %5307 = vmatprep.subr.mxu0 0.0
    %5308 = vmatpush1.msra.mxu0 0.0
    %5309 = vmatprep.subr.mxu0 0.0
    %5310 = vmatpush1.msra.mxu0 0.0
    %5311 = vmatprep.subr.mxu0 0.0
    %5312 = vmatpush1.msra.mxu0 0.0
    %5313 = vmatprep.subr.mxu0 0.0
    %5314 = vmatpush1.msra.mxu0 0.0
    %5315 = vmatprep.subr.mxu0 0.0
    %5316 = vmatpush1.msra.mxu0 0.0
    %5317 = vmatprep.subr.mxu0 0.0
    %5318 = vmatpush1.msra.mxu0 0.0
    %5319 = vmatprep.subr.mxu0 0.0
    %5320 = vmatpush1.msra.mxu0 0.0
    %5321 = vmatprep.subr.mxu0 0.0
    %5322 = vmatpush1.msra.mxu0 0.0
    %5323 = vmatprep.subr.mxu0 0.0
    %5324 = vmatpush1.msra.mxu0 0.0
    %5325 = vmatprep.subr.mxu0 0.0
    %5326 = vmatpush1.msra.mxu0 0.0
    %5327 = vmatprep.subr.mxu0 0.0
    %5328 = vmatpush1.msra.mxu0 0.0
    %5329 = vmatprep.subr.mxu0 0.0
    %5330 = vmatpush1.msra.mxu0 0.0
    %5331 = vmatprep.subr.mxu0 0.0
    %5332 = vmatpush1.msra.mxu0 0.0
    %5333 = vmatprep.subr.mxu0 0.0
    %5334 = vmatpush1.msra.mxu0 0.0
    %5335 = vmatprep.subr.mxu0 0.0
    %5336 = vmatpush1.msra.mxu0 0.0
    %5337 = vmatprep.subr.mxu0 0.0
    %5338 = vmatpush1.msra.mxu0 0.0
    %5339 = vmatprep.subr.mxu0 0.0
    %5340 = vmatpush1.msra.mxu0 0.0
    %5341 = vmatprep.subr.mxu0 0.0
    %5342 = vmatpush1.msra.mxu0 0.0
    %5343 = vmatprep.subr.mxu0 0.0
    %5344 = vmatpush1.msra.mxu0 0.0
    %5345 = vmatprep.mubr.f32.mxu0 0.0
    %5346 = vmatmul.mubr.f32.gmra.mrb[0].mxu0 %v5208
    %v5347 = vpop.f32.mrb[0].mxu0
    %v5348 = vadd.f32 %v374, %v5347
    %v5349 = vpop.f32.mrb[0].mxu0
    %5350 = vdwg.mxu0
    %5351 = vmatprep.subr.mxu0 %v105
    %5352 = vmatpush1.msra.mxu0 %v104
    %5353 = vmatprep.subr.mxu0 %v108
    %5354 = vmatpush1.msra.mxu0 %v107
    %5355 = vmatprep.subr.mxu0 %v111
    %5356 = vmatpush1.msra.mxu0 %v110
    %5357 = vmatprep.subr.mxu0 %v114
    %5358 = vmatpush1.msra.mxu0 %v113
    %5359 = vmatprep.subr.mxu0 %v117
    %5360 = vmatpush1.msra.mxu0 %v116
    %5361 = vmatprep.subr.mxu0 %v120
    %5362 = vmatpush1.msra.mxu0 %v119
    %5363 = vmatprep.subr.mxu0 %v123
    %5364 = vmatpush1.msra.mxu0 %v122
    %5365 = vmatprep.subr.mxu0 %v126
    %5366 = vmatpush1.msra.mxu0 %v125
    %5367 = vmatprep.subr.mxu0 %v129
    %5368 = vmatpush1.msra.mxu0 %v128
    %5369 = vmatprep.subr.mxu0 %v132
    %5370 = vmatpush1.msra.mxu0 %v131
    %5371 = vmatprep.subr.mxu0 %v135
    %5372 = vmatpush1.msra.mxu0 %v134
    %5373 = vmatprep.subr.mxu0 %v138
    %5374 = vmatpush1.msra.mxu0 %v137
    %5375 = vmatprep.subr.mxu0 %v141
    %5376 = vmatpush1.msra.mxu0 %v140
    %5377 = vmatprep.subr.mxu0 %v144
    %5378 = vmatpush1.msra.mxu0 %v143
    %5379 = vmatprep.subr.mxu0 %v147
    %5380 = vmatpush1.msra.mxu0 %v146
    %5381 = vmatprep.subr.mxu0 %v150
    %5382 = vmatpush1.msra.mxu0 %v149
    %5383 = vmatprep.subr.mxu0 0.0
    %5384 = vmatpush1.msra.mxu0 0.0
    %5385 = vmatprep.subr.mxu0 0.0
    %5386 = vmatpush1.msra.mxu0 0.0
    %5387 = vmatprep.subr.mxu0 0.0
    %5388 = vmatpush1.msra.mxu0 0.0
    %5389 = vmatprep.subr.mxu0 0.0
    %5390 = vmatpush1.msra.mxu0 0.0
    %5391 = vmatprep.subr.mxu0 0.0
    %5392 = vmatpush1.msra.mxu0 0.0
    %5393 = vmatprep.subr.mxu0 0.0
    %5394 = vmatpush1.msra.mxu0 0.0
    %5395 = vmatprep.subr.mxu0 0.0
    %5396 = vmatpush1.msra.mxu0 0.0
    %5397 = vmatprep.subr.mxu0 0.0
    %5398 = vmatpush1.msra.mxu0 0.0
    %5399 = vmatprep.subr.mxu0 0.0
    %5400 = vmatpush1.msra.mxu0 0.0
    %5401 = vmatprep.subr.mxu0 0.0
    %5402 = vmatpush1.msra.mxu0 0.0
    %5403 = vmatprep.subr.mxu0 0.0
    %5404 = vmatpush1.msra.mxu0 0.0
    %5405 = vmatprep.subr.mxu0 0.0
    %5406 = vmatpush1.msra.mxu0 0.0
    %5407 = vmatprep.subr.mxu0 0.0
    %5408 = vmatpush1.msra.mxu0 0.0
    %5409 = vmatprep.subr.mxu0 0.0
    %5410 = vmatpush1.msra.mxu0 0.0
    %5411 = vmatprep.subr.mxu0 0.0
    %5412 = vmatpush1.msra.mxu0 0.0
    %5413 = vmatprep.subr.mxu0 0.0
    %5414 = vmatpush1.msra.mxu0 0.0
    %5415 = vmatprep.mubr.f32.mxu0 0.0
    %5416 = vmatmul.mubr.f32.gmra.mrb[0].mxu0 %v4828
    %v5417 = vpop.f32.mrb[0].mxu0
    %v5418 = vadd.f32 0.0, %v5417
    %v5419 = vpop.f32.mrb[0].mxu0
    %v5420 = vadd.f32 0.0, %v5419
    %5421 = vdwg.mxu0
    %5422 = vmatprep.subr.mxu0 0.0
    %5423 = vmatpush1.msra.mxu0 %v106
    %5424 = vmatprep.subr.mxu0 0.0
    %5425 = vmatpush1.msra.mxu0 %v109
    %5426 = vmatprep.subr.mxu0 0.0
    %5427 = vmatpush1.msra.mxu0 %v112
    %5428 = vmatprep.subr.mxu0 0.0
    %5429 = vmatpush1.msra.mxu0 %v115
    %5430 = vmatprep.subr.mxu0 0.0
    %5431 = vmatpush1.msra.mxu0 %v118
    %5432 = vmatprep.subr.mxu0 0.0
    %5433 = vmatpush1.msra.mxu0 %v121
    %5434 = vmatprep.subr.mxu0 0.0
    %5435 = vmatpush1.msra.mxu0 %v124
    %5436 = vmatprep.subr.mxu0 0.0
    %5437 = vmatpush1.msra.mxu0 %v127
    %5438 = vmatprep.subr.mxu0 0.0
    %5439 = vmatpush1.msra.mxu0 %v130
    %5440 = vmatprep.subr.mxu0 0.0
    %5441 = vmatpush1.msra.mxu0 %v133
    %5442 = vmatprep.subr.mxu0 0.0
    %5443 = vmatpush1.msra.mxu0 %v136
    %5444 = vmatprep.subr.mxu0 0.0
    %5445 = vmatpush1.msra.mxu0 %v139
    %5446 = vmatprep.subr.mxu0 0.0
    %5447 = vmatpush1.msra.mxu0 %v142
    %5448 = vmatprep.subr.mxu0 0.0
    %5449 = vmatpush1.msra.mxu0 %v145
    %5450 = vmatprep.subr.mxu0 0.0
    %5451 = vmatpush1.msra.mxu0 %v148
    %5452 = vmatprep.subr.mxu0 0.0
    %5453 = vmatpush1.msra.mxu0 %v151
    %5454 = vmatprep.subr.mxu0 0.0
    %5455 = vmatpush1.msra.mxu0 0.0
    %5456 = vmatprep.subr.mxu0 0.0
    %5457 = vmatpush1.msra.mxu0 0.0
    %5458 = vmatprep.subr.mxu0 0.0
    %5459 = vmatpush1.msra.mxu0 0.0
    %5460 = vmatprep.subr.mxu0 0.0
    %5461 = vmatpush1.msra.mxu0 0.0
    %5462 = vmatprep.subr.mxu0 0.0
    %5463 = vmatpush1.msra.mxu0 0.0
    %5464 = vmatprep.subr.mxu0 0.0
    %5465 = vmatpush1.msra.mxu0 0.0
    %5466 = vmatprep.subr.mxu0 0.0
    %5467 = vmatpush1.msra.mxu0 0.0
    %5468 = vmatprep.subr.mxu0 0.0
    %5469 = vmatpush1.msra.mxu0 0.0
    %5470 = vmatprep.subr.mxu0 0.0
    %5471 = vmatpush1.msra.mxu0 0.0
    %5472 = vmatprep.subr.mxu0 0.0
    %5473 = vmatpush1.msra.mxu0 0.0
    %5474 = vmatprep.subr.mxu0 0.0
    %5475 = vmatpush1.msra.mxu0 0.0
    %5476 = vmatprep.subr.mxu0 0.0
    %5477 = vmatpush1.msra.mxu0 0.0
    %5478 = vmatprep.subr.mxu0 0.0
    %5479 = vmatpush1.msra.mxu0 0.0
    %5480 = vmatprep.subr.mxu0 0.0
    %5481 = vmatpush1.msra.mxu0 0.0
    %5482 = vmatprep.subr.mxu0 0.0
    %5483 = vmatpush1.msra.mxu0 0.0
    %5484 = vmatprep.subr.mxu0 0.0
    %5485 = vmatpush1.msra.mxu0 0.0
    %5486 = vmatprep.mubr.f32.mxu0 0.0
    %5487 = vmatmul.mubr.f32.gmra.mrb[0].mxu0 %v4828
    %v5488 = vpop.f32.mrb[0].mxu0
    %v5489 = vadd.f32 0.0, %v5488
    %v5490 = vpop.f32.mrb[0].mxu0
    %5491 = vdwg.mxu0
    %v5492 = vadd.f32 %v5277, %v5418
    %v5493 = vxor.u32 %v5492, 2147483648
    %v5494 = vmul.f32 %v5493, 1.442695
    %v5495 = vpow.pop %v5494
    %v5496 = vadd.f32 %v5495, 1.0
    %v5497 = vrcp.pop %v5496
    %v5498 = vmul.f32 1.0, %v5497
    %v5499 = vadd.f32 %v5279, %v5420
    %v5500 = vxor.u32 %v5499, 2147483648
    %v5501 = vmul.f32 %v5500, 1.442695
    %v5502 = vpow.pop %v5501
    %v5503 = vadd.f32 %v5502, 1.0
    %v5504 = vrcp.pop %v5503
    %v5505 = vmul.f32 1.0, %v5504
    %v5506 = vadd.f32 %v5489, %v682
    %v5507 = vmul.f32 %v5498, %v5506
    %v5508 = vadd.f32 %v5348, %v5507
    %v5509 = vtanh.pop %v5508
    %v5510 = vsub.f32 1.0, %v5505
    %v5511 = vmul.f32 %v5510, %v5509
    %v5512 = vmul.f32 %v5505, %v4828
    %v5513 = vadd.f32 %v5511, %v5512
    %5514 = vmatprep.subr.mxu0 %v155
    %5515 = vmatpush1.msra.mxu0 %v154
    %5516 = vmatprep.subr.mxu0 %v158
    %5517 = vmatpush1.msra.mxu0 %v157
    %5518 = vmatprep.subr.mxu0 %v161
    %5519 = vmatpush1.msra.mxu0 %v160
    %5520 = vmatprep.subr.mxu0 %v164
    %5521 = vmatpush1.msra.mxu0 %v163
    %5522 = vmatprep.subr.mxu0 %v167
    %5523 = vmatpush1.msra.mxu0 %v166
    %5524 = vmatprep.subr.mxu0 %v170
    %5525 = vmatpush1.msra.mxu0 %v169
    %5526 = vmatprep.subr.mxu0 %v173
    %5527 = vmatpush1.msra.mxu0 %v172
    %5528 = vmatprep.subr.mxu0 %v176
    %5529 = vmatpush1.msra.mxu0 %v175
    %5530 = vmatprep.subr.mxu0 %v179
    %5531 = vmatpush1.msra.mxu0 %v178
    %5532 = vmatprep.subr.mxu0 %v182
    %5533 = vmatpush1.msra.mxu0 %v181
    %5534 = vmatprep.subr.mxu0 %v185
    %5535 = vmatpush1.msra.mxu0 %v184
    %5536 = vmatprep.subr.mxu0 %v188
    %5537 = vmatpush1.msra.mxu0 %v187
    %5538 = vmatprep.subr.mxu0 %v191
    %5539 = vmatpush1.msra.mxu0 %v190
    %5540 = vmatprep.subr.mxu0 %v194
    %5541 = vmatpush1.msra.mxu0 %v193
    %5542 = vmatprep.subr.mxu0 %v197
    %5543 = vmatpush1.msra.mxu0 %v196
    %5544 = vmatprep.subr.mxu0 %v200
    %5545 = vmatpush1.msra.mxu0 %v199
    %5546 = vmatprep.subr.mxu0 0.0
    %5547 = vmatpush1.msra.mxu0 0.0
    %5548 = vmatprep.subr.mxu0 0.0
    %5549 = vmatpush1.msra.mxu0 0.0
    %5550 = vmatprep.subr.mxu0 0.0
    %5551 = vmatpush1.msra.mxu0 0.0
    %5552 = vmatprep.subr.mxu0 0.0
    %5553 = vmatpush1.msra.mxu0 0.0
    %5554 = vmatprep.subr.mxu0 0.0
    %5555 = vmatpush1.msra.mxu0 0.0
    %5556 = vmatprep.subr.mxu0 0.0
    %5557 = vmatpush1.msra.mxu0 0.0
    %5558 = vmatprep.subr.mxu0 0.0
    %5559 = vmatpush1.msra.mxu0 0.0
    %5560 = vmatprep.subr.mxu0 0.0
    %5561 = vmatpush1.msra.mxu0 0.0
    %5562 = vmatprep.subr.mxu0 0.0
    %5563 = vmatpush1.msra.mxu0 0.0
    %5564 = vmatprep.subr.mxu0 0.0
    %5565 = vmatpush1.msra.mxu0 0.0
    %5566 = vmatprep.subr.mxu0 0.0
    %5567 = vmatpush1.msra.mxu0 0.0
    %5568 = vmatprep.subr.mxu0 0.0
    %5569 = vmatpush1.msra.mxu0 0.0
    %5570 = vmatprep.subr.mxu0 0.0
    %5571 = vmatpush1.msra.mxu0 0.0
    %5572 = vmatprep.subr.mxu0 0.0
    %5573 = vmatpush1.msra.mxu0 0.0
    %5574 = vmatprep.subr.mxu0 0.0
    %5575 = vmatpush1.msra.mxu0 0.0
    %5576 = vmatprep.subr.mxu0 0.0
    %5577 = vmatpush1.msra.mxu0 0.0
    %5578 = vmatprep.mubr.f32.mxu0 0.0
    %5579 = vmatmul.mubr.f32.gmra.mrb[0].mxu0 %v5513
    %v5580 = vpop.f32.mrb[0].mxu0
    %v5581 = vadd.f32 %v696, %v5580
    %v5582 = vpop.f32.mrb[0].mxu0
    %v5583 = vadd.f32 %v700, %v5582
    %5584 = vdwg.mxu0
    %5585 = vmatprep.subr.mxu0 0.0
    %5586 = vmatpush1.msra.mxu0 %v156
    %5587 = vmatprep.subr.mxu0 0.0
    %5588 = vmatpush1.msra.mxu0 %v159
    %5589 = vmatprep.subr.mxu0 0.0
    %5590 = vmatpush1.msra.mxu0 %v162
    %5591 = vmatprep.subr.mxu0 0.0
    %5592 = vmatpush1.msra.mxu0 %v165
    %5593 = vmatprep.subr.mxu0 0.0
    %5594 = vmatpush1.msra.mxu0 %v168
    %5595 = vmatprep.subr.mxu0 0.0
    %5596 = vmatpush1.msra.mxu0 %v171
    %5597 = vmatprep.subr.mxu0 0.0
    %5598 = vmatpush1.msra.mxu0 %v174
    %5599 = vmatprep.subr.mxu0 0.0
    %5600 = vmatpush1.msra.mxu0 %v177
    %5601 = vmatprep.subr.mxu0 0.0
    %5602 = vmatpush1.msra.mxu0 %v180
    %5603 = vmatprep.subr.mxu0 0.0
    %5604 = vmatpush1.msra.mxu0 %v183
    %5605 = vmatprep.subr.mxu0 0.0
    %5606 = vmatpush1.msra.mxu0 %v186
    %5607 = vmatprep.subr.mxu0 0.0
    %5608 = vmatpush1.msra.mxu0 %v189
    %5609 = vmatprep.subr.mxu0 0.0
    %5610 = vmatpush1.msra.mxu0 %v192
    %5611 = vmatprep.subr.mxu0 0.0
    %5612 = vmatpush1.msra.mxu0 %v195
    %5613 = vmatprep.subr.mxu0 0.0
    %5614 = vmatpush1.msra.mxu0 %v198
    %5615 = vmatprep.subr.mxu0 0.0
    %5616 = vmatpush1.msra.mxu0 %v201
    %5617 = vmatprep.subr.mxu0 0.0
    %5618 = vmatpush1.msra.mxu0 0.0
    %5619 = vmatprep.subr.mxu0 0.0
    %5620 = vmatpush1.msra.mxu0 0.0
    %5621 = vmatprep.subr.mxu0 0.0
    %5622 = vmatpush1.msra.mxu0 0.0
    %5623 = vmatprep.subr.mxu0 0.0
    %5624 = vmatpush1.msra.mxu0 0.0
    %5625 = vmatprep.subr.mxu0 0.0
    %5626 = vmatpush1.msra.mxu0 0.0
    %5627 = vmatprep.subr.mxu0 0.0
    %5628 = vmatpush1.msra.mxu0 0.0
    %5629 = vmatprep.subr.mxu0 0.0
    %5630 = vmatpush1.msra.mxu0 0.0
    %5631 = vmatprep.subr.mxu0 0.0
    %5632 = vmatpush1.msra.mxu0 0.0
    %5633 = vmatprep.subr.mxu0 0.0
    %5634 = vmatpush1.msra.mxu0 0.0
    %5635 = vmatprep.subr.mxu0 0.0
    %5636 = vmatpush1.msra.mxu0 0.0
    %5637 = vmatprep.subr.mxu0 0.0
    %5638 = vmatpush1.msra.mxu0 0.0
    %5639 = vmatprep.subr.mxu0 0.0
    %5640 = vmatpush1.msra.mxu0 0.0
    %5641 = vmatprep.subr.mxu0 0.0
    %5642 = vmatpush1.msra.mxu0 0.0
    %5643 = vmatprep.subr.mxu0 0.0
    %5644 = vmatpush1.msra.mxu0 0.0
    %5645 = vmatprep.subr.mxu0 0.0
    %5646 = vmatpush1.msra.mxu0 0.0
    %5647 = vmatprep.subr.mxu0 0.0
    %5648 = vmatpush1.msra.mxu0 0.0
    %5649 = vmatprep.mubr.f32.mxu0 0.0
    %5650 = vmatmul.mubr.f32.gmra.mrb[0].mxu0 %v5513
    %v5651 = vpop.f32.mrb[0].mxu0
    %v5652 = vadd.f32 %v704, %v5651
    %v5653 = vpop.f32.mrb[0].mxu0
    %5654 = vdwg.mxu0
    %5655 = vmatprep.subr.mxu0 %v203
    %5656 = vmatpush1.msra.mxu0 %v202
    %5657 = vmatprep.subr.mxu0 %v206
    %5658 = vmatpush1.msra.mxu0 %v205
    %5659 = vmatprep.subr.mxu0 %v209
    %5660 = vmatpush1.msra.mxu0 %v208
    %5661 = vmatprep.subr.mxu0 %v212
    %5662 = vmatpush1.msra.mxu0 %v211
    %5663 = vmatprep.subr.mxu0 %v215
    %5664 = vmatpush1.msra.mxu0 %v214
    %5665 = vmatprep.subr.mxu0 %v218
    %5666 = vmatpush1.msra.mxu0 %v217
    %5667 = vmatprep.subr.mxu0 %v221
    %5668 = vmatpush1.msra.mxu0 %v220
    %5669 = vmatprep.subr.mxu0 %v224
    %5670 = vmatpush1.msra.mxu0 %v223
    %5671 = vmatprep.subr.mxu0 %v227
    %5672 = vmatpush1.msra.mxu0 %v226
    %5673 = vmatprep.subr.mxu0 %v230
    %5674 = vmatpush1.msra.mxu0 %v229
    %5675 = vmatprep.subr.mxu0 %v233
    %5676 = vmatpush1.msra.mxu0 %v232
    %5677 = vmatprep.subr.mxu0 %v236
    %5678 = vmatpush1.msra.mxu0 %v235
    %5679 = vmatprep.subr.mxu0 %v239
    %5680 = vmatpush1.msra.mxu0 %v238
    %5681 = vmatprep.subr.mxu0 %v242
    %5682 = vmatpush1.msra.mxu0 %v241
    %5683 = vmatprep.subr.mxu0 %v245
    %5684 = vmatpush1.msra.mxu0 %v244
    %5685 = vmatprep.subr.mxu0 %v248
    %5686 = vmatpush1.msra.mxu0 %v247
    %5687 = vmatprep.subr.mxu0 0.0
    %5688 = vmatpush1.msra.mxu0 0.0
    %5689 = vmatprep.subr.mxu0 0.0
    %5690 = vmatpush1.msra.mxu0 0.0
    %5691 = vmatprep.subr.mxu0 0.0
    %5692 = vmatpush1.msra.mxu0 0.0
    %5693 = vmatprep.subr.mxu0 0.0
    %5694 = vmatpush1.msra.mxu0 0.0
    %5695 = vmatprep.subr.mxu0 0.0
    %5696 = vmatpush1.msra.mxu0 0.0
    %5697 = vmatprep.subr.mxu0 0.0
    %5698 = vmatpush1.msra.mxu0 0.0
    %5699 = vmatprep.subr.mxu0 0.0
    %5700 = vmatpush1.msra.mxu0 0.0
    %5701 = vmatprep.subr.mxu0 0.0
    %5702 = vmatpush1.msra.mxu0 0.0
    %5703 = vmatprep.subr.mxu0 0.0
    %5704 = vmatpush1.msra.mxu0 0.0
    %5705 = vmatprep.subr.mxu0 0.0
    %5706 = vmatpush1.msra.mxu0 0.0
    %5707 = vmatprep.subr.mxu0 0.0
    %5708 = vmatpush1.msra.mxu0 0.0
    %5709 = vmatprep.subr.mxu0 0.0
    %5710 = vmatpush1.msra.mxu0 0.0
    %5711 = vmatprep.subr.mxu0 0.0
    %5712 = vmatpush1.msra.mxu0 0.0
    %5713 = vmatprep.subr.mxu0 0.0
    %5714 = vmatpush1.msra.mxu0 0.0
    %5715 = vmatprep.subr.mxu0 0.0
    %5716 = vmatpush1.msra.mxu0 0.0
    %5717 = vmatprep.subr.mxu0 0.0
    %5718 = vmatpush1.msra.mxu0 0.0
    %5719 = vmatprep.mubr.f32.mxu0 0.0
    %5720 = vmatmul.mubr.f32.gmra.mrb[0].mxu0 %v5132
    %v5721 = vpop.f32.mrb[0].mxu0
    %v5722 = vadd.f32 0.0, %v5721
    %v5723 = vpop.f32.mrb[0].mxu0
    %v5724 = vadd.f32 0.0, %v5723
    %5725 = vdwg.mxu0
    %5726 = vmatprep.subr.mxu0 0.0
    %5727 = vmatpush1.msra.mxu0 %v204
    %5728 = vmatprep.subr.mxu0 0.0
    %5729 = vmatpush1.msra.mxu0 %v207
    %5730 = vmatprep.subr.mxu0 0.0
    %5731 = vmatpush1.msra.mxu0 %v210
    %5732 = vmatprep.subr.mxu0 0.0
    %5733 = vmatpush1.msra.mxu0 %v213
    %5734 = vmatprep.subr.mxu0 0.0
    %5735 = vmatpush1.msra.mxu0 %v216
    %5736 = vmatprep.subr.mxu0 0.0
    %5737 = vmatpush1.msra.mxu0 %v219
    %5738 = vmatprep.subr.mxu0 0.0
    %5739 = vmatpush1.msra.mxu0 %v222
    %5740 = vmatprep.subr.mxu0 0.0
    %5741 = vmatpush1.msra.mxu0 %v225
    %5742 = vmatprep.subr.mxu0 0.0
    %5743 = vmatpush1.msra.mxu0 %v228
    %5744 = vmatprep.subr.mxu0 0.0
    %5745 = vmatpush1.msra.mxu0 %v231
    %5746 = vmatprep.subr.mxu0 0.0
    %5747 = vmatpush1.msra.mxu0 %v234
    %5748 = vmatprep.subr.mxu0 0.0
    %5749 = vmatpush1.msra.mxu0 %v237
    %5750 = vmatprep.subr.mxu0 0.0
    %5751 = vmatpush1.msra.mxu0 %v240
    %5752 = vmatprep.subr.mxu0 0.0
    %5753 = vmatpush1.msra.mxu0 %v243
    %5754 = vmatprep.subr.mxu0 0.0
    %5755 = vmatpush1.msra.mxu0 %v246
    %5756 = vmatprep.subr.mxu0 0.0
    %5757 = vmatpush1.msra.mxu0 %v249
    %5758 = vmatprep.subr.mxu0 0.0
    %5759 = vmatpush1.msra.mxu0 0.0
    %5760 = vmatprep.subr.mxu0 0.0
    %5761 = vmatpush1.msra.mxu0 0.0
    %5762 = vmatprep.subr.mxu0 0.0
    %5763 = vmatpush1.msra.mxu0 0.0
    %5764 = vmatprep.subr.mxu0 0.0
    %5765 = vmatpush1.msra.mxu0 0.0
    %5766 = vmatprep.subr.mxu0 0.0
    %5767 = vmatpush1.msra.mxu0 0.0
    %5768 = vmatprep.subr.mxu0 0.0
    %5769 = vmatpush1.msra.mxu0 0.0
    %5770 = vmatprep.subr.mxu0 0.0
    %5771 = vmatpush1.msra.mxu0 0.0
    %5772 = vmatprep.subr.mxu0 0.0
    %5773 = vmatpush1.msra.mxu0 0.0
    %5774 = vmatprep.subr.mxu0 0.0
    %5775 = vmatpush1.msra.mxu0 0.0
    %5776 = vmatprep.subr.mxu0 0.0
    %5777 = vmatpush1.msra.mxu0 0.0
    %5778 = vmatprep.subr.mxu0 0.0
    %5779 = vmatpush1.msra.mxu0 0.0
    %5780 = vmatprep.subr.mxu0 0.0
    %5781 = vmatpush1.msra.mxu0 0.0
    %5782 = vmatprep.subr.mxu0 0.0
    %5783 = vmatpush1.msra.mxu0 0.0
    %5784 = vmatprep.subr.mxu0 0.0
    %5785 = vmatpush1.msra.mxu0 0.0
    %5786 = vmatprep.subr.mxu0 0.0
    %5787 = vmatpush1.msra.mxu0 0.0
    %5788 = vmatprep.subr.mxu0 0.0
    %5789 = vmatpush1.msra.mxu0 0.0
    %5790 = vmatprep.mubr.f32.mxu0 0.0
    %5791 = vmatmul.mubr.f32.gmra.mrb[0].mxu0 %v5132
    %v5792 = vpop.f32.mrb[0].mxu0
    %v5793 = vadd.f32 0.0, %v5792
    %v5794 = vpop.f32.mrb[0].mxu0
    %5795 = vdwg.mxu0
    %v5796 = vadd.f32 %v5581, %v5722
    %v5797 = vxor.u32 %v5796, 2147483648
    %v5798 = vmul.f32 %v5797, 1.442695
    %v5799 = vpow.pop %v5798
    %v5800 = vadd.f32 %v5799, 1.0
    %v5801 = vrcp.pop %v5800
    %v5802 = vmul.f32 1.0, %v5801
    %v5803 = vadd.f32 %v5583, %v5724
    %v5804 = vxor.u32 %v5803, 2147483648
    %v5805 = vmul.f32 %v5804, 1.442695
    %v5806 = vpow.pop %v5805
    %v5807 = vadd.f32 %v5806, 1.0
    %v5808 = vrcp.pop %v5807
    %v5809 = vmul.f32 1.0, %v5808
    %v5810 = vadd.f32 %v5793, %v1008
    %v5811 = vmul.f32 %v5802, %v5810
    %v5812 = vadd.f32 %v5652, %v5811
    %v5813 = vtanh.pop %v5812
    %v5814 = vsub.f32 1.0, %v5809
    %v5815 = vmul.f32 %v5814, %v5813
    %v5816 = vmul.f32 %v5809, %v5132
    %v5817 = vadd.f32 %v5815, %v5816
    %5818 = vmatprep.subr.mxu0 0.0
    %5819 = vmatpush1.msra.mxu0 %v252
    %5820 = vmatprep.subr.mxu0 0.0
    %5821 = vmatpush1.msra.mxu0 %v253
    %5822 = vmatprep.subr.mxu0 0.0
    %5823 = vmatpush1.msra.mxu0 %v254
    %5824 = vmatprep.subr.mxu0 0.0
    %5825 = vmatpush1.msra.mxu0 %v255
    %5826 = vmatprep.subr.mxu0 0.0
    %5827 = vmatpush1.msra.mxu0 %v256
    %5828 = vmatprep.subr.mxu0 0.0
    %5829 = vmatpush1.msra.mxu0 %v257
    %5830 = vmatprep.subr.mxu0 0.0
    %5831 = vmatpush1.msra.mxu0 %v258
    %5832 = vmatprep.subr.mxu0 0.0
    %5833 = vmatpush1.msra.mxu0 %v259
    %5834 = vmatprep.subr.mxu0 0.0
    %5835 = vmatpush1.msra.mxu0 %v260
    %5836 = vmatprep.subr.mxu0 0.0
    %5837 = vmatpush1.msra.mxu0 %v261
    %5838 = vmatprep.subr.mxu0 0.0
    %5839 = vmatpush1.msra.mxu0 %v262
    %5840 = vmatprep.subr.mxu0 0.0
    %5841 = vmatpush1.msra.mxu0 %v263
    %5842 = vmatprep.subr.mxu0 0.0
    %5843 = vmatpush1.msra.mxu0 %v264
    %5844 = vmatprep.subr.mxu0 0.0
    %5845 = vmatpush1.msra.mxu0 %v265
    %5846 = vmatprep.subr.mxu0 0.0
    %5847 = vmatpush1.msra.mxu0 %v266
    %5848 = vmatprep.subr.mxu0 0.0
    %5849 = vmatpush1.msra.mxu0 %v267
    %5850 = vmatprep.subr.mxu0 0.0
    %5851 = vmatpush1.msra.mxu0 0.0
    %5852 = vmatprep.subr.mxu0 0.0
    %5853 = vmatpush1.msra.mxu0 0.0
    %5854 = vmatprep.subr.mxu0 0.0
    %5855 = vmatpush1.msra.mxu0 0.0
    %5856 = vmatprep.subr.mxu0 0.0
    %5857 = vmatpush1.msra.mxu0 0.0
    %5858 = vmatprep.subr.mxu0 0.0
    %5859 = vmatpush1.msra.mxu0 0.0
    %5860 = vmatprep.subr.mxu0 0.0
    %5861 = vmatpush1.msra.mxu0 0.0
    %5862 = vmatprep.subr.mxu0 0.0
    %5863 = vmatpush1.msra.mxu0 0.0
    %5864 = vmatprep.subr.mxu0 0.0
    %5865 = vmatpush1.msra.mxu0 0.0
    %5866 = vmatprep.subr.mxu0 0.0
    %5867 = vmatpush1.msra.mxu0 0.0
    %5868 = vmatprep.subr.mxu0 0.0
    %5869 = vmatpush1.msra.mxu0 0.0
    %5870 = vmatprep.subr.mxu0 0.0
    %5871 = vmatpush1.msra.mxu0 0.0
    %5872 = vmatprep.subr.mxu0 0.0
    %5873 = vmatpush1.msra.mxu0 0.0
    %5874 = vmatprep.subr.mxu0 0.0
    %5875 = vmatpush1.msra.mxu0 0.0
    %5876 = vmatprep.subr.mxu0 0.0
    %5877 = vmatpush1.msra.mxu0 0.0
    %5878 = vmatprep.subr.mxu0 0.0
    %5879 = vmatpush1.msra.mxu0 0.0
    %5880 = vmatprep.subr.mxu0 0.0
    %5881 = vmatpush1.msra.mxu0 0.0
    %5882 = vmatprep.mubr.f32.mxu0 0.0
    %5883 = vmatmul.mubr.f32.gmra.mrb[0].mxu0 %v5817
    %v5884 = vpop.f32.mrb[0].mxu0
    %v5885 = vadd.f32 %v1022, %v5884
    %v5886 = vpop.f32.mrb[0].mxu0
    %5887 = vdwg.mxu0
    %s5888 = scalar_lea.vmem [#allocation8], 14
    %5889 = vst.msk [vmem:[%s5888] sm:$0x3] %vm1094, %v5885
    // Predicated region
    $region74: #{tpu_custom_call.1} parent=1 // pred_check
      _
    $region75: #{tpu_custom_call.1} parent=1 // pred_check_branch
      %5891 = sbr.rel (0) target = $region77
    $region76: #{tpu_custom_call.1} parent=1 // pred_region
      %s5893 = ssub.s32 256, 256
      %5894 = vsyncadd [#allocation4], %s5893
      %s5895 = sshll.u32 [#allocation8], 4
      %s5896 = int_to_ptr.vmem [resolvable:$true] %s5895
      %5901 = dma.vmem_to_hbm [thread:$0]  %s5896, 256, %s15, [#allocation4], 32, 32, 2
    $region77: #{tpu_custom_call.1} parent=1 // pred_fallthru
      _
    // Predicated region
    $region78: #{tpu_custom_call.1} parent=1 // pred_check
      _
    $region79: #{tpu_custom_call.1} parent=1 // pred_check_branch
      %5903 = sbr.rel (0) target = $region81
    $region80: #{tpu_custom_call.1} parent=1 // pred_region
      %5904 = dma.done [#allocation4], 256
    $region81: #{tpu_custom_call.1} parent=1 // pred_fallthru
      _
    %5905 = vsyncpa [#allocation3], 1
    %5906 = vsyncpa [#allocation6], 1
    %5907 = vsyncpa [#allocation4], 1

</llo_original>
